<compile_context>
chip_gen: v6e
topology: v6e:2x2x1
jax: 0.10.0
libtpu: 0.0.40
codegen_flags: <defaults>
</compile_context>

<pallas_src>
import functools

import jax
import jax.numpy as jnp
from jax.experimental import pallas as pl
from jax.experimental.pallas import tpu as pltpu


def _fused_reg_block_kernel(
    x_ref, mask_ref,
    w1_ref, b1_ref, w2_ref, b2_ref, w3_ref, b3_ref,
    o_ref,
    big_ref, act_ref,
    *, H, W, KH, KW, cin, c1, c2, cout,
):
    """One batch element; fully fused 3-layer 5x5 'same' conv block.

    x_ref:    (cin, H*W)            input image, spatial flattened on lanes
    mask_ref: (KH*KW, H*W)          0/1 validity mask per tap ('same' padding)
    wX_ref:   (coutX, KH*KW*cinX)   packed conv weights (tap-major, then cin)
    bX_ref:   (coutX, 1)            biases
    o_ref:    (cout, H*W)           output (lane-dense last dim)
    big_ref:  (KH*KW*cmax, H*W) f32 scratch: im2col operand of the current layer
    act_ref:  (cmax, H*W)       f32 scratch: current layer's input activation
    """
    HW = H * W
    KK = KH * KW
    ph, pw = KH // 2, KW // 2

    def conv_layer(src_ref, c_in, w_ref, b_ref, relu):
        nrows = KK * c_in
        # Zero the im2col region once; the per-tap partial stores below fill the
        # columns whose source pixel is in range, everything else stays 0
        # (this implements the 'same' zero padding without a padded buffer).
        big_ref[0:nrows, :] = jnp.zeros((nrows, HW), jnp.float32)
        for t in range(KK):
            kh, kw = divmod(t, KW)
            s = (kh - ph) * W + (kw - pw)          # flattened spatial shift
            lo, hi = max(0, -s), min(HW, HW - s)   # output cols with in-range source
            win = src_ref[0:c_in, lo + s:hi + s].astype(jnp.float32)
            big_ref[t * c_in:(t + 1) * c_in, lo:hi] = (
                win * mask_ref[t:t + 1, lo:hi].astype(jnp.float32))
        # Single long-K MXU matmul for the whole layer.
        y = jnp.dot(w_ref[...].astype(jnp.float32), big_ref[0:nrows, :],
                    preferred_element_type=jnp.float32)
        y = y + b_ref[...].astype(jnp.float32)
        return jnp.maximum(y, 0.0) if relu else y

    h1 = conv_layer(x_ref, cin, w1_ref, b1_ref, relu=True)      # (c1, HW)
    act_ref[0:c1, :] = h1
    h2 = conv_layer(act_ref, c1, w2_ref, b2_ref, relu=True)     # (c2, HW)
    act_ref[0:c2, :] = h2
    h3 = conv_layer(act_ref, c2, w3_ref, b3_ref, relu=False)    # (cout, HW)
    o_ref[...] = h3.astype(o_ref.dtype)


def _make_tap_masks(H, W, KH, KW):
    """(KH*KW, H*W) float32 mask: 1 where the tap's source pixel is inside the image."""
    ph, pw = KH // 2, KW // 2
    hh = jnp.arange(H)[:, None]
    ww = jnp.arange(W)[None, :]
    rows = []
    for kh in range(KH):
        for kw in range(KW):
            dh, dw = kh - ph, kw - pw
            valid = ((hh + dh >= 0) & (hh + dh < H) &
                     (ww + dw >= 0) & (ww + dw < W))
            rows.append(valid.reshape(-1))
    return jnp.stack(rows).astype(jnp.float32)


def _pack_conv_weight(w_oihw):
    """OIHW conv weight -> (O, KH*KW*I), tap-major then input channel."""
    o, i, kh, kw = w_oihw.shape
    return jnp.transpose(w_oihw, (0, 2, 3, 1)).reshape(o, kh * kw * i)


def regularization_block(x_nchw, params):
    """Forward pass of RegularizationBlock.  x_nchw: (N, Cin, H, W); params in OIHW."""
    N, Cin, H, W = x_nchw.shape
    (w1, b1), (w2, b2), (w3, b3) = params
    C1, _, KH, KW = w1.shape
    C2 = w2.shape[0]
    Cout = w3.shape[0]
    HW = H * W
    KK = KH * KW
    cmax = max(Cin, C1, C2)

    x_flat = x_nchw.reshape(N, Cin, HW)                 # NCHW -> (N, C, H*W), free
    masks = _make_tap_masks(H, W, KH, KW)               # (KK, HW)
    w1m, w2m, w3m = (_pack_conv_weight(w) for w in (w1, w2, w3))
    b1c, b2c, b3c = b1.reshape(C1, 1), b2.reshape(C2, 1), b3.reshape(Cout, 1)

    kernel = functools.partial(
        _fused_reg_block_kernel,
        H=H, W=W, KH=KH, KW=KW, cin=Cin, c1=C1, c2=C2, cout=Cout)

    const = lambda n: (0, 0)
    out = pl.pallas_call(
        kernel,
        out_shape=jax.ShapeDtypeStruct((N, Cout, HW), x_nchw.dtype),
        grid=(N,),
        in_specs=[
            pl.BlockSpec((pl.Squeezed(), Cin, HW), lambda n: (n, 0, 0)),
            pl.BlockSpec((KK, HW), const),
            pl.BlockSpec((C1, KK * Cin), const),
            pl.BlockSpec((C1, 1), const),
            pl.BlockSpec((C2, KK * C1), const),
            pl.BlockSpec((C2, 1), const),
            pl.BlockSpec((Cout, KK * C2), const),
            pl.BlockSpec((Cout, 1), const),
        ],
        out_specs=pl.BlockSpec((pl.Squeezed(), Cout, HW), lambda n: (n, 0, 0)),
        scratch_shapes=[
            pltpu.VMEM((KK * cmax, HW), jnp.float32),   # im2col operand (<=1.2 MiB)
            pltpu.VMEM((cmax, HW), jnp.float32),        # current activation (48 KiB)
        ],
        compiler_params=pltpu.CompilerParams(
            dimension_semantics=("parallel",)),
    )(x_flat, masks, w1m, b1c, w2m, b2c, w3m, b3c)

    return out.reshape(N, Cout, H, W)


def init_params(key, in_channels=1, out_channels=1, kernel_size=5):
    """Deterministic synthetic init (normal std=0.01 weights, zero biases), OIHW layout."""
    ks = jax.random.split(key, 3)
    shapes = [
        (48, in_channels, kernel_size, kernel_size),
        (48, 48, kernel_size, kernel_size),
        (out_channels, 48, kernel_size, kernel_size),
    ]
    params = []
    for k, s in zip(ks, shapes):
        w = 0.01 * jax.random.normal(k, s, dtype=jnp.float32)
        b = jnp.zeros((s[0],), dtype=jnp.float32)
        params.append((w, b))
    return params


def _reference(x_nchw, params):
    """Pure-JAX reference (lax.conv) for a correctness sanity check."""
    x = x_nchw
    dn = ("NCHW", "OIHW", "NCHW")
    for i, (w, b) in enumerate(params):
        y = jax.lax.conv_general_dilated(
            x, w, window_strides=(1, 1), padding="SAME", dimension_numbers=dn
        ) + b.reshape(1, -1, 1, 1)
        x = jnp.maximum(y, 0.0) if i < 2 else y
    return x


if __name__ == "__main__":
    key = jax.random.PRNGKey(0)
    k_x, k_p = jax.random.split(key)

    # Small shapes consistent with the module: batch=2, in_channels=1, spatial=16x16.
    x = jax.random.normal(k_x, (2, 1, 16, 16), dtype=jnp.float32)
    params = init_params(k_p, in_channels=1, out_channels=1, kernel_size=5)

    out = jax.block_until_ready(regularization_block(x, params))
    ref = jax.block_until_ready(_reference(x, params))

    assert out.shape == (2, 1, 16, 16), out.shape
    max_err = float(jnp.max(jnp.abs(out - ref)))
    assert jnp.allclose(out, ref, atol=1e-4, rtol=1e-4), max_err

    print("KERNEL_OK")
</pallas_src>

<mosaic_0001>
module attributes {stable_mosaic.version = 11 : i64} {
  func.func @_fused_reg_block_kernel(%arg0: i32, %arg1: memref<1x1x256xf32, #tpu.memory_space<vmem>>, %arg2: memref<25x256xf32, #tpu.memory_space<vmem>>, %arg3: memref<48x25xf32, #tpu.memory_space<vmem>>, %arg4: memref<48x1xf32, #tpu.memory_space<vmem>>, %arg5: memref<48x1200xf32, #tpu.memory_space<vmem>>, %arg6: memref<48x1xf32, #tpu.memory_space<vmem>>, %arg7: memref<1x1200xf32, #tpu.memory_space<vmem>>, %arg8: memref<1x1xf32, #tpu.memory_space<vmem>>, %arg9: memref<1x1x256xf32, #tpu.memory_space<vmem>>, %arg10: memref<1200x256xf32, #tpu.memory_space<vmem>>, %arg11: memref<48x256xf32, #tpu.memory_space<vmem>>) attributes {dimension_semantics = [#tpu.dimension_semantics<parallel>], iteration_bounds = array<i64: 2>, scalar_prefetch = 0 : i64, scratch_operands = 2 : i64, tpu.core_type = #tpu.core_type<tc>, window_params = [{transform_indices = @transform_0, window_bounds = array<i64: 1, 1, 256>}, {pipeline_mode = #tpu.pipeline_mode<synchronous>, transform_indices = @transform_1, window_bounds = array<i64: 25, 256>}, {pipeline_mode = #tpu.pipeline_mode<synchronous>, transform_indices = @transform_2, window_bounds = array<i64: 48, 25>}, {pipeline_mode = #tpu.pipeline_mode<synchronous>, transform_indices = @transform_3, window_bounds = array<i64: 48, 1>}, {pipeline_mode = #tpu.pipeline_mode<synchronous>, transform_indices = @transform_4, window_bounds = array<i64: 48, 1200>}, {pipeline_mode = #tpu.pipeline_mode<synchronous>, transform_indices = @transform_5, window_bounds = array<i64: 48, 1>}, {pipeline_mode = #tpu.pipeline_mode<synchronous>, transform_indices = @transform_6, window_bounds = array<i64: 1, 1200>}, {pipeline_mode = #tpu.pipeline_mode<synchronous>, transform_indices = @transform_7, window_bounds = array<i64: 1, 1>}, {transform_indices = @transform_8, window_bounds = array<i64: 1, 1, 256>}]} {
    %cst = arith.constant 0.000000e+00 : f32
    %0 = vector.broadcast %cst : f32 to vector<25x256xf32>
    %c0 = arith.constant 0 : index
    %c0_0 = arith.constant 0 : index
    %1 = vector.load %arg10[%c0, %c0_0] : memref<1200x256xf32, #tpu.memory_space<vmem>>, vector<25x256xf32>
    tpu.vector_store %arg10[%c0, %c0_0], %0 {strides = array<i32>} : memref<1200x256xf32, #tpu.memory_space<vmem>>, vector<25x256xf32>,
    %c0_1 = arith.constant 0 : index
    %c0_2 = arith.constant 0 : index
    %c0_3 = arith.constant 0 : index
    %2 = vector.load %arg1[%c0_1, %c0_2, %c0_3] : memref<1x1x256xf32, #tpu.memory_space<vmem>>, vector<1x1x222xf32>
    %3 = vector.shape_cast %2 : vector<1x1x222xf32> to vector<1x222xf32>
    %c0_4 = arith.constant 0 : index
    %c34 = arith.constant 34 : index
    %4 = vector.load %arg2[%c0_4, %c34] : memref<25x256xf32, #tpu.memory_space<vmem>>, vector<1x222xf32>
    %5 = arith.mulf %3, %4 : vector<1x222xf32>
    %c0_5 = arith.constant 0 : index
    %c34_6 = arith.constant 34 : index
    %6 = vector.load %arg10[%c0_5, %c34_6] : memref<1200x256xf32, #tpu.memory_space<vmem>>, vector<1x222xf32>
    tpu.vector_store %arg10[%c0_5, %c34_6], %5 {strides = array<i32>} : memref<1200x256xf32, #tpu.memory_space<vmem>>, vector<1x222xf32>,
    %c0_7 = arith.constant 0 : index
    %c0_8 = arith.constant 0 : index
    %c0_9 = arith.constant 0 : index
    %7 = vector.load %arg1[%c0_7, %c0_8, %c0_9] : memref<1x1x256xf32, #tpu.memory_space<vmem>>, vector<1x1x223xf32>
    %8 = vector.shape_cast %7 : vector<1x1x223xf32> to vector<1x223xf32>
    %c1 = arith.constant 1 : index
    %c33 = arith.constant 33 : index
    %9 = vector.load %arg2[%c1, %c33] : memref<25x256xf32, #tpu.memory_space<vmem>>, vector<1x223xf32>
    %10 = arith.mulf %8, %9 : vector<1x223xf32>
    %c1_10 = arith.constant 1 : index
    %c33_11 = arith.constant 33 : index
    %11 = vector.load %arg10[%c1_10, %c33_11] : memref<1200x256xf32, #tpu.memory_space<vmem>>, vector<1x223xf32>
    tpu.vector_store %arg10[%c1_10, %c33_11], %10 {strides = array<i32>} : memref<1200x256xf32, #tpu.memory_space<vmem>>, vector<1x223xf32>,
    %c0_12 = arith.constant 0 : index
    %c0_13 = arith.constant 0 : index
    %c0_14 = arith.constant 0 : index
    %12 = vector.load %arg1[%c0_12, %c0_13, %c0_14] : memref<1x1x256xf32, #tpu.memory_space<vmem>>, vector<1x1x224xf32>
    %13 = vector.shape_cast %12 : vector<1x1x224xf32> to vector<1x224xf32>
    %c2 = arith.constant 2 : index
    %c32 = arith.constant 32 : index
    %14 = vector.load %arg2[%c2, %c32] : memref<25x256xf32, #tpu.memory_space<vmem>>, vector<1x224xf32>
    %15 = arith.mulf %13, %14 : vector<1x224xf32>
    %c2_15 = arith.constant 2 : index
    %c32_16 = arith.constant 32 : index
    %16 = vector.load %arg10[%c2_15, %c32_16] : memref<1200x256xf32, #tpu.memory_space<vmem>>, vector<1x224xf32>
    tpu.vector_store %arg10[%c2_15, %c32_16], %15 {strides = array<i32>} : memref<1200x256xf32, #tpu.memory_space<vmem>>, vector<1x224xf32>,
    %c0_17 = arith.constant 0 : index
    %c0_18 = arith.constant 0 : index
    %c0_19 = arith.constant 0 : index
    %17 = vector.load %arg1[%c0_17, %c0_18, %c0_19] : memref<1x1x256xf32, #tpu.memory_space<vmem>>, vector<1x1x225xf32>
    %18 = vector.shape_cast %17 : vector<1x1x225xf32> to vector<1x225xf32>
    %c3 = arith.constant 3 : index
    %c31 = arith.constant 31 : index
    %19 = vector.load %arg2[%c3, %c31] : memref<25x256xf32, #tpu.memory_space<vmem>>, vector<1x225xf32>
    %20 = arith.mulf %18, %19 : vector<1x225xf32>
    %c3_20 = arith.constant 3 : index
    %c31_21 = arith.constant 31 : index
    %21 = vector.load %arg10[%c3_20, %c31_21] : memref<1200x256xf32, #tpu.memory_space<vmem>>, vector<1x225xf32>
    tpu.vector_store %arg10[%c3_20, %c31_21], %20 {strides = array<i32>} : memref<1200x256xf32, #tpu.memory_space<vmem>>, vector<1x225xf32>,
    %c0_22 = arith.constant 0 : index
    %c0_23 = arith.constant 0 : index
    %c0_24 = arith.constant 0 : index
    %22 = vector.load %arg1[%c0_22, %c0_23, %c0_24] : memref<1x1x256xf32, #tpu.memory_space<vmem>>, vector<1x1x226xf32>
    %23 = vector.shape_cast %22 : vector<1x1x226xf32> to vector<1x226xf32>
    %c4 = arith.constant 4 : index
    %c30 = arith.constant 30 : index
    %24 = vector.load %arg2[%c4, %c30] : memref<25x256xf32, #tpu.memory_space<vmem>>, vector<1x226xf32>
    %25 = arith.mulf %23, %24 : vector<1x226xf32>
    %c4_25 = arith.constant 4 : index
    %c30_26 = arith.constant 30 : index
    %26 = vector.load %arg10[%c4_25, %c30_26] : memref<1200x256xf32, #tpu.memory_space<vmem>>, vector<1x226xf32>
    tpu.vector_store %arg10[%c4_25, %c30_26], %25 {strides = array<i32>} : memref<1200x256xf32, #tpu.memory_space<vmem>>, vector<1x226xf32>,
    %c0_27 = arith.constant 0 : index
    %c0_28 = arith.constant 0 : index
    %c0_29 = arith.constant 0 : index
    %27 = vector.load %arg1[%c0_27, %c0_28, %c0_29] : memref<1x1x256xf32, #tpu.memory_space<vmem>>, vector<1x1x238xf32>
    %28 = vector.shape_cast %27 : vector<1x1x238xf32> to vector<1x238xf32>
    %c5 = arith.constant 5 : index
    %c18 = arith.constant 18 : index
    %29 = vector.load %arg2[%c5, %c18] : memref<25x256xf32, #tpu.memory_space<vmem>>, vector<1x238xf32>
    %30 = arith.mulf %28, %29 : vector<1x238xf32>
    %c5_30 = arith.constant 5 : index
    %c18_31 = arith.constant 18 : index
    %31 = vector.load %arg10[%c5_30, %c18_31] : memref<1200x256xf32, #tpu.memory_space<vmem>>, vector<1x238xf32>
    tpu.vector_store %arg10[%c5_30, %c18_31], %30 {strides = array<i32>} : memref<1200x256xf32, #tpu.memory_space<vmem>>, vector<1x238xf32>,
    %c0_32 = arith.constant 0 : index
    %c0_33 = arith.constant 0 : index
    %c0_34 = arith.constant 0 : index
    %32 = vector.load %arg1[%c0_32, %c0_33, %c0_34] : memref<1x1x256xf32, #tpu.memory_space<vmem>>, vector<1x1x239xf32>
    %33 = vector.shape_cast %32 : vector<1x1x239xf32> to vector<1x239xf32>
    %c6 = arith.constant 6 : index
    %c17 = arith.constant 17 : index
    %34 = vector.load %arg2[%c6, %c17] : memref<25x256xf32, #tpu.memory_space<vmem>>, vector<1x239xf32>
    %35 = arith.mulf %33, %34 : vector<1x239xf32>
    %c6_35 = arith.constant 6 : index
    %c17_36 = arith.constant 17 : index
    %36 = vector.load %arg10[%c6_35, %c17_36] : memref<1200x256xf32, #tpu.memory_space<vmem>>, vector<1x239xf32>
    tpu.vector_store %arg10[%c6_35, %c17_36], %35 {strides = array<i32>} : memref<1200x256xf32, #tpu.memory_space<vmem>>, vector<1x239xf32>,
    %c0_37 = arith.constant 0 : index
    %c0_38 = arith.constant 0 : index
    %c0_39 = arith.constant 0 : index
    %37 = vector.load %arg1[%c0_37, %c0_38, %c0_39] : memref<1x1x256xf32, #tpu.memory_space<vmem>>, vector<1x1x240xf32>
    %38 = vector.shape_cast %37 : vector<1x1x240xf32> to vector<1x240xf32>
    %c7 = arith.constant 7 : index
    %c16 = arith.constant 16 : index
    %39 = vector.load %arg2[%c7, %c16] : memref<25x256xf32, #tpu.memory_space<vmem>>, vector<1x240xf32>
    %40 = arith.mulf %38, %39 : vector<1x240xf32>
    %c7_40 = arith.constant 7 : index
    %c16_41 = arith.constant 16 : index
    %41 = vector.load %arg10[%c7_40, %c16_41] : memref<1200x256xf32, #tpu.memory_space<vmem>>, vector<1x240xf32>
    tpu.vector_store %arg10[%c7_40, %c16_41], %40 {strides = array<i32>} : memref<1200x256xf32, #tpu.memory_space<vmem>>, vector<1x240xf32>,
    %c0_42 = arith.constant 0 : index
    %c0_43 = arith.constant 0 : index
    %c0_44 = arith.constant 0 : index
    %42 = vector.load %arg1[%c0_42, %c0_43, %c0_44] : memref<1x1x256xf32, #tpu.memory_space<vmem>>, vector<1x1x241xf32>
    %43 = vector.shape_cast %42 : vector<1x1x241xf32> to vector<1x241xf32>
    %c8 = arith.constant 8 : index
    %c15 = arith.constant 15 : index
    %44 = vector.load %arg2[%c8, %c15] : memref<25x256xf32, #tpu.memory_space<vmem>>, vector<1x241xf32>
    %45 = arith.mulf %43, %44 : vector<1x241xf32>
    %c8_45 = arith.constant 8 : index
    %c15_46 = arith.constant 15 : index
    %46 = vector.load %arg10[%c8_45, %c15_46] : memref<1200x256xf32, #tpu.memory_space<vmem>>, vector<1x241xf32>
    tpu.vector_store %arg10[%c8_45, %c15_46], %45 {strides = array<i32>} : memref<1200x256xf32, #tpu.memory_space<vmem>>, vector<1x241xf32>,
    %c0_47 = arith.constant 0 : index
    %c0_48 = arith.constant 0 : index
    %c0_49 = arith.constant 0 : index
    %47 = vector.load %arg1[%c0_47, %c0_48, %c0_49] : memref<1x1x256xf32, #tpu.memory_space<vmem>>, vector<1x1x242xf32>
    %48 = vector.shape_cast %47 : vector<1x1x242xf32> to vector<1x242xf32>
    %c9 = arith.constant 9 : index
    %c14 = arith.constant 14 : index
    %49 = vector.load %arg2[%c9, %c14] : memref<25x256xf32, #tpu.memory_space<vmem>>, vector<1x242xf32>
    %50 = arith.mulf %48, %49 : vector<1x242xf32>
    %c9_50 = arith.constant 9 : index
    %c14_51 = arith.constant 14 : index
    %51 = vector.load %arg10[%c9_50, %c14_51] : memref<1200x256xf32, #tpu.memory_space<vmem>>, vector<1x242xf32>
    tpu.vector_store %arg10[%c9_50, %c14_51], %50 {strides = array<i32>} : memref<1200x256xf32, #tpu.memory_space<vmem>>, vector<1x242xf32>,
    %c0_52 = arith.constant 0 : index
    %c0_53 = arith.constant 0 : index
    %c0_54 = arith.constant 0 : index
    %52 = vector.load %arg1[%c0_52, %c0_53, %c0_54] : memref<1x1x256xf32, #tpu.memory_space<vmem>>, vector<1x1x254xf32>
    %53 = vector.shape_cast %52 : vector<1x1x254xf32> to vector<1x254xf32>
    %c10 = arith.constant 10 : index
    %c2_55 = arith.constant 2 : index
    %54 = vector.load %arg2[%c10, %c2_55] : memref<25x256xf32, #tpu.memory_space<vmem>>, vector<1x254xf32>
    %55 = arith.mulf %53, %54 : vector<1x254xf32>
    %c10_56 = arith.constant 10 : index
    %c2_57 = arith.constant 2 : index
    %56 = vector.load %arg10[%c10_56, %c2_57] : memref<1200x256xf32, #tpu.memory_space<vmem>>, vector<1x254xf32>
    tpu.vector_store %arg10[%c10_56, %c2_57], %55 {strides = array<i32>} : memref<1200x256xf32, #tpu.memory_space<vmem>>, vector<1x254xf32>,
    %c0_58 = arith.constant 0 : index
    %c0_59 = arith.constant 0 : index
    %c0_60 = arith.constant 0 : index
    %57 = vector.load %arg1[%c0_58, %c0_59, %c0_60] : memref<1x1x256xf32, #tpu.memory_space<vmem>>, vector<1x1x255xf32>
    %58 = vector.shape_cast %57 : vector<1x1x255xf32> to vector<1x255xf32>
    %c11 = arith.constant 11 : index
    %c1_61 = arith.constant 1 : index
    %59 = vector.load %arg2[%c11, %c1_61] : memref<25x256xf32, #tpu.memory_space<vmem>>, vector<1x255xf32>
    %60 = arith.mulf %58, %59 : vector<1x255xf32>
    %c11_62 = arith.constant 11 : index
    %c1_63 = arith.constant 1 : index
    %61 = vector.load %arg10[%c11_62, %c1_63] : memref<1200x256xf32, #tpu.memory_space<vmem>>, vector<1x255xf32>
    tpu.vector_store %arg10[%c11_62, %c1_63], %60 {strides = array<i32>} : memref<1200x256xf32, #tpu.memory_space<vmem>>, vector<1x255xf32>,
    %c0_64 = arith.constant 0 : index
    %c0_65 = arith.constant 0 : index
    %c0_66 = arith.constant 0 : index
    %62 = vector.load %arg1[%c0_64, %c0_65, %c0_66] : memref<1x1x256xf32, #tpu.memory_space<vmem>>, vector<1x1x256xf32>
    %63 = vector.shape_cast %62 : vector<1x1x256xf32> to vector<1x256xf32>
    %c12 = arith.constant 12 : index
    %c0_67 = arith.constant 0 : index
    %64 = vector.load %arg2[%c12, %c0_67] : memref<25x256xf32, #tpu.memory_space<vmem>>, vector<1x256xf32>
    %65 = arith.mulf %63, %64 : vector<1x256xf32>
    %c12_68 = arith.constant 12 : index
    %c0_69 = arith.constant 0 : index
    %66 = vector.load %arg10[%c12_68, %c0_69] : memref<1200x256xf32, #tpu.memory_space<vmem>>, vector<1x256xf32>
    tpu.vector_store %arg10[%c12_68, %c0_69], %65 {strides = array<i32>} : memref<1200x256xf32, #tpu.memory_space<vmem>>, vector<1x256xf32>,
    %c0_70 = arith.constant 0 : index
    %c0_71 = arith.constant 0 : index
    %c1_72 = arith.constant 1 : index
    %67 = vector.load %arg1[%c0_70, %c0_71, %c1_72] : memref<1x1x256xf32, #tpu.memory_space<vmem>>, vector<1x1x255xf32>
    %68 = vector.shape_cast %67 : vector<1x1x255xf32> to vector<1x255xf32>
    %c13 = arith.constant 13 : index
    %c0_73 = arith.constant 0 : index
    %69 = vector.load %arg2[%c13, %c0_73] : memref<25x256xf32, #tpu.memory_space<vmem>>, vector<1x255xf32>
    %70 = arith.mulf %68, %69 : vector<1x255xf32>
    %c13_74 = arith.constant 13 : index
    %c0_75 = arith.constant 0 : index
    %71 = vector.load %arg10[%c13_74, %c0_75] : memref<1200x256xf32, #tpu.memory_space<vmem>>, vector<1x255xf32>
    tpu.vector_store %arg10[%c13_74, %c0_75], %70 {strides = array<i32>} : memref<1200x256xf32, #tpu.memory_space<vmem>>, vector<1x255xf32>,
    %c0_76 = arith.constant 0 : index
    %c0_77 = arith.constant 0 : index
    %c2_78 = arith.constant 2 : index
    %72 = vector.load %arg1[%c0_76, %c0_77, %c2_78] : memref<1x1x256xf32, #tpu.memory_space<vmem>>, vector<1x1x254xf32>
    %73 = vector.shape_cast %72 : vector<1x1x254xf32> to vector<1x254xf32>
    %c14_79 = arith.constant 14 : index
    %c0_80 = arith.constant 0 : index
    %74 = vector.load %arg2[%c14_79, %c0_80] : memref<25x256xf32, #tpu.memory_space<vmem>>, vector<1x254xf32>
    %75 = arith.mulf %73, %74 : vector<1x254xf32>
    %c14_81 = arith.constant 14 : index
    %c0_82 = arith.constant 0 : index
    %76 = vector.load %arg10[%c14_81, %c0_82] : memref<1200x256xf32, #tpu.memory_space<vmem>>, vector<1x254xf32>
    tpu.vector_store %arg10[%c14_81, %c0_82], %75 {strides = array<i32>} : memref<1200x256xf32, #tpu.memory_space<vmem>>, vector<1x254xf32>,
    %c0_83 = arith.constant 0 : index
    %c0_84 = arith.constant 0 : index
    %c14_85 = arith.constant 14 : index
    %77 = vector.load %arg1[%c0_83, %c0_84, %c14_85] : memref<1x1x256xf32, #tpu.memory_space<vmem>>, vector<1x1x242xf32>
    %78 = vector.shape_cast %77 : vector<1x1x242xf32> to vector<1x242xf32>
    %c15_86 = arith.constant 15 : index
    %c0_87 = arith.constant 0 : index
    %79 = vector.load %arg2[%c15_86, %c0_87] : memref<25x256xf32, #tpu.memory_space<vmem>>, vector<1x242xf32>
    %80 = arith.mulf %78, %79 : vector<1x242xf32>
    %c15_88 = arith.constant 15 : index
    %c0_89 = arith.constant 0 : index
    %81 = vector.load %arg10[%c15_88, %c0_89] : memref<1200x256xf32, #tpu.memory_space<vmem>>, vector<1x242xf32>
    tpu.vector_store %arg10[%c15_88, %c0_89], %80 {strides = array<i32>} : memref<1200x256xf32, #tpu.memory_space<vmem>>, vector<1x242xf32>,
    %c0_90 = arith.constant 0 : index
    %c0_91 = arith.constant 0 : index
    %c15_92 = arith.constant 15 : index
    %82 = vector.load %arg1[%c0_90, %c0_91, %c15_92] : memref<1x1x256xf32, #tpu.memory_space<vmem>>, vector<1x1x241xf32>
    %83 = vector.shape_cast %82 : vector<1x1x241xf32> to vector<1x241xf32>
    %c16_93 = arith.constant 16 : index
    %c0_94 = arith.constant 0 : index
    %84 = vector.load %arg2[%c16_93, %c0_94] : memref<25x256xf32, #tpu.memory_space<vmem>>, vector<1x241xf32>
    %85 = arith.mulf %83, %84 : vector<1x241xf32>
    %c16_95 = arith.constant 16 : index
    %c0_96 = arith.constant 0 : index
    %86 = vector.load %arg10[%c16_95, %c0_96] : memref<1200x256xf32, #tpu.memory_space<vmem>>, vector<1x241xf32>
    tpu.vector_store %arg10[%c16_95, %c0_96], %85 {strides = array<i32>} : memref<1200x256xf32, #tpu.memory_space<vmem>>, vector<1x241xf32>,
    %c0_97 = arith.constant 0 : index
    %c0_98 = arith.constant 0 : index
    %c16_99 = arith.constant 16 : index
    %87 = vector.load %arg1[%c0_97, %c0_98, %c16_99] : memref<1x1x256xf32, #tpu.memory_space<vmem>>, vector<1x1x240xf32>
    %88 = vector.shape_cast %87 : vector<1x1x240xf32> to vector<1x240xf32>
    %c17_100 = arith.constant 17 : index
    %c0_101 = arith.constant 0 : index
    %89 = vector.load %arg2[%c17_100, %c0_101] : memref<25x256xf32, #tpu.memory_space<vmem>>, vector<1x240xf32>
    %90 = arith.mulf %88, %89 : vector<1x240xf32>
    %c17_102 = arith.constant 17 : index
    %c0_103 = arith.constant 0 : index
    %91 = vector.load %arg10[%c17_102, %c0_103] : memref<1200x256xf32, #tpu.memory_space<vmem>>, vector<1x240xf32>
    tpu.vector_store %arg10[%c17_102, %c0_103], %90 {strides = array<i32>} : memref<1200x256xf32, #tpu.memory_space<vmem>>, vector<1x240xf32>,
    %c0_104 = arith.constant 0 : index
    %c0_105 = arith.constant 0 : index
    %c17_106 = arith.constant 17 : index
    %92 = vector.load %arg1[%c0_104, %c0_105, %c17_106] : memref<1x1x256xf32, #tpu.memory_space<vmem>>, vector<1x1x239xf32>
    %93 = vector.shape_cast %92 : vector<1x1x239xf32> to vector<1x239xf32>
    %c18_107 = arith.constant 18 : index
    %c0_108 = arith.constant 0 : index
    %94 = vector.load %arg2[%c18_107, %c0_108] : memref<25x256xf32, #tpu.memory_space<vmem>>, vector<1x239xf32>
    %95 = arith.mulf %93, %94 : vector<1x239xf32>
    %c18_109 = arith.constant 18 : index
    %c0_110 = arith.constant 0 : index
    %96 = vector.load %arg10[%c18_109, %c0_110] : memref<1200x256xf32, #tpu.memory_space<vmem>>, vector<1x239xf32>
    tpu.vector_store %arg10[%c18_109, %c0_110], %95 {strides = array<i32>} : memref<1200x256xf32, #tpu.memory_space<vmem>>, vector<1x239xf32>,
    %c0_111 = arith.constant 0 : index
    %c0_112 = arith.constant 0 : index
    %c18_113 = arith.constant 18 : index
    %97 = vector.load %arg1[%c0_111, %c0_112, %c18_113] : memref<1x1x256xf32, #tpu.memory_space<vmem>>, vector<1x1x238xf32>
    %98 = vector.shape_cast %97 : vector<1x1x238xf32> to vector<1x238xf32>
    %c19 = arith.constant 19 : index
    %c0_114 = arith.constant 0 : index
    %99 = vector.load %arg2[%c19, %c0_114] : memref<25x256xf32, #tpu.memory_space<vmem>>, vector<1x238xf32>
    %100 = arith.mulf %98, %99 : vector<1x238xf32>
    %c19_115 = arith.constant 19 : index
    %c0_116 = arith.constant 0 : index
    %101 = vector.load %arg10[%c19_115, %c0_116] : memref<1200x256xf32, #tpu.memory_space<vmem>>, vector<1x238xf32>
    tpu.vector_store %arg10[%c19_115, %c0_116], %100 {strides = array<i32>} : memref<1200x256xf32, #tpu.memory_space<vmem>>, vector<1x238xf32>,
    %c0_117 = arith.constant 0 : index
    %c0_118 = arith.constant 0 : index
    %c30_119 = arith.constant 30 : index
    %102 = vector.load %arg1[%c0_117, %c0_118, %c30_119] : memref<1x1x256xf32, #tpu.memory_space<vmem>>, vector<1x1x226xf32>
    %103 = vector.shape_cast %102 : vector<1x1x226xf32> to vector<1x226xf32>
    %c20 = arith.constant 20 : index
    %c0_120 = arith.constant 0 : index
    %104 = vector.load %arg2[%c20, %c0_120] : memref<25x256xf32, #tpu.memory_space<vmem>>, vector<1x226xf32>
    %105 = arith.mulf %103, %104 : vector<1x226xf32>
    %c20_121 = arith.constant 20 : index
    %c0_122 = arith.constant 0 : index
    %106 = vector.load %arg10[%c20_121, %c0_122] : memref<1200x256xf32, #tpu.memory_space<vmem>>, vector<1x226xf32>
    tpu.vector_store %arg10[%c20_121, %c0_122], %105 {strides = array<i32>} : memref<1200x256xf32, #tpu.memory_space<vmem>>, vector<1x226xf32>,
    %c0_123 = arith.constant 0 : index
    %c0_124 = arith.constant 0 : index
    %c31_125 = arith.constant 31 : index
    %107 = vector.load %arg1[%c0_123, %c0_124, %c31_125] : memref<1x1x256xf32, #tpu.memory_space<vmem>>, vector<1x1x225xf32>
    %108 = vector.shape_cast %107 : vector<1x1x225xf32> to vector<1x225xf32>
    %c21 = arith.constant 21 : index
    %c0_126 = arith.constant 0 : index
    %109 = vector.load %arg2[%c21, %c0_126] : memref<25x256xf32, #tpu.memory_space<vmem>>, vector<1x225xf32>
    %110 = arith.mulf %108, %109 : vector<1x225xf32>
    %c21_127 = arith.constant 21 : index
    %c0_128 = arith.constant 0 : index
    %111 = vector.load %arg10[%c21_127, %c0_128] : memref<1200x256xf32, #tpu.memory_space<vmem>>, vector<1x225xf32>
    tpu.vector_store %arg10[%c21_127, %c0_128], %110 {strides = array<i32>} : memref<1200x256xf32, #tpu.memory_space<vmem>>, vector<1x225xf32>,
    %c0_129 = arith.constant 0 : index
    %c0_130 = arith.constant 0 : index
    %c32_131 = arith.constant 32 : index
    %112 = vector.load %arg1[%c0_129, %c0_130, %c32_131] : memref<1x1x256xf32, #tpu.memory_space<vmem>>, vector<1x1x224xf32>
    %113 = vector.shape_cast %112 : vector<1x1x224xf32> to vector<1x224xf32>
    %c22 = arith.constant 22 : index
    %c0_132 = arith.constant 0 : index
    %114 = vector.load %arg2[%c22, %c0_132] : memref<25x256xf32, #tpu.memory_space<vmem>>, vector<1x224xf32>
    %115 = arith.mulf %113, %114 : vector<1x224xf32>
    %c22_133 = arith.constant 22 : index
    %c0_134 = arith.constant 0 : index
    %116 = vector.load %arg10[%c22_133, %c0_134] : memref<1200x256xf32, #tpu.memory_space<vmem>>, vector<1x224xf32>
    tpu.vector_store %arg10[%c22_133, %c0_134], %115 {strides = array<i32>} : memref<1200x256xf32, #tpu.memory_space<vmem>>, vector<1x224xf32>,
    %c0_135 = arith.constant 0 : index
    %c0_136 = arith.constant 0 : index
    %c33_137 = arith.constant 33 : index
    %117 = vector.load %arg1[%c0_135, %c0_136, %c33_137] : memref<1x1x256xf32, #tpu.memory_space<vmem>>, vector<1x1x223xf32>
    %118 = vector.shape_cast %117 : vector<1x1x223xf32> to vector<1x223xf32>
    %c23 = arith.constant 23 : index
    %c0_138 = arith.constant 0 : index
    %119 = vector.load %arg2[%c23, %c0_138] : memref<25x256xf32, #tpu.memory_space<vmem>>, vector<1x223xf32>
    %120 = arith.mulf %118, %119 : vector<1x223xf32>
    %c23_139 = arith.constant 23 : index
    %c0_140 = arith.constant 0 : index
    %121 = vector.load %arg10[%c23_139, %c0_140] : memref<1200x256xf32, #tpu.memory_space<vmem>>, vector<1x223xf32>
    tpu.vector_store %arg10[%c23_139, %c0_140], %120 {strides = array<i32>} : memref<1200x256xf32, #tpu.memory_space<vmem>>, vector<1x223xf32>,
    %c0_141 = arith.constant 0 : index
    %c0_142 = arith.constant 0 : index
    %c34_143 = arith.constant 34 : index
    %122 = vector.load %arg1[%c0_141, %c0_142, %c34_143] : memref<1x1x256xf32, #tpu.memory_space<vmem>>, vector<1x1x222xf32>
    %123 = vector.shape_cast %122 : vector<1x1x222xf32> to vector<1x222xf32>
    %c24 = arith.constant 24 : index
    %c0_144 = arith.constant 0 : index
    %124 = vector.load %arg2[%c24, %c0_144] : memref<25x256xf32, #tpu.memory_space<vmem>>, vector<1x222xf32>
    %125 = arith.mulf %123, %124 : vector<1x222xf32>
    %c24_145 = arith.constant 24 : index
    %c0_146 = arith.constant 0 : index
    %126 = vector.load %arg10[%c24_145, %c0_146] : memref<1200x256xf32, #tpu.memory_space<vmem>>, vector<1x222xf32>
    tpu.vector_store %arg10[%c24_145, %c0_146], %125 {strides = array<i32>} : memref<1200x256xf32, #tpu.memory_space<vmem>>, vector<1x222xf32>,
    %c0_147 = arith.constant 0 : index
    %c0_148 = arith.constant 0 : index
    %127 = vector.load %arg3[%c0_147, %c0_148] : memref<48x25xf32, #tpu.memory_space<vmem>>, vector<48x25xf32>
    %c0_149 = arith.constant 0 : index
    %c0_150 = arith.constant 0 : index
    %128 = vector.load %arg10[%c0_149, %c0_150] : memref<1200x256xf32, #tpu.memory_space<vmem>>, vector<25x256xf32>
    %cst_151 = arith.constant dense<0.000000e+00> : vector<48x256xf32>
    %129 = tpu.matmul %127, %128, %cst_151 {dimension_numbers = #tpu.dot_dimension_numbers<[1], [0], [0], [1], [0, 0, 1, 1], [], []>} : vector<48x25xf32>, vector<25x256xf32>, vector<48x256xf32> -> vector<48x256xf32>
    %c0_152 = arith.constant 0 : index
    %c0_153 = arith.constant 0 : index
    %130 = vector.load %arg4[%c0_152, %c0_153] : memref<48x1xf32, #tpu.memory_space<vmem>>, vector<48x1xf32>
    %131 = vector.broadcast %130 : vector<48x1xf32> to vector<48x256xf32>
    %132 = arith.addf %129, %131 : vector<48x256xf32>
    %cst_154 = arith.constant 0.000000e+00 : f32
    %133 = vector.broadcast %cst_154 : f32 to vector<48x256xf32>
    %134 = arith.maximumf %132, %133 : vector<48x256xf32>
    %c0_155 = arith.constant 0 : index
    %c0_156 = arith.constant 0 : index
    %135 = vector.load %arg11[%c0_155, %c0_156] : memref<48x256xf32, #tpu.memory_space<vmem>>, vector<48x256xf32>
    tpu.vector_store %arg11[%c0_155, %c0_156], %134 {strides = array<i32>} : memref<48x256xf32, #tpu.memory_space<vmem>>, vector<48x256xf32>,
    %cst_157 = arith.constant 0.000000e+00 : f32
    %136 = vector.broadcast %cst_157 : f32 to vector<1200x256xf32>
    %c0_158 = arith.constant 0 : index
    %c0_159 = arith.constant 0 : index
    %137 = vector.load %arg10[%c0_158, %c0_159] : memref<1200x256xf32, #tpu.memory_space<vmem>>, vector<1200x256xf32>
    tpu.vector_store %arg10[%c0_158, %c0_159], %136 {strides = array<i32>} : memref<1200x256xf32, #tpu.memory_space<vmem>>, vector<1200x256xf32>,
    %c0_160 = arith.constant 0 : index
    %c0_161 = arith.constant 0 : index
    %138 = vector.load %arg11[%c0_160, %c0_161] : memref<48x256xf32, #tpu.memory_space<vmem>>, vector<48x222xf32>
    %c0_162 = arith.constant 0 : index
    %c34_163 = arith.constant 34 : index
    %139 = vector.load %arg2[%c0_162, %c34_163] : memref<25x256xf32, #tpu.memory_space<vmem>>, vector<1x222xf32>
    %140 = vector.broadcast %139 : vector<1x222xf32> to vector<48x222xf32>
    %141 = arith.mulf %138, %140 : vector<48x222xf32>
    %c0_164 = arith.constant 0 : index
    %c34_165 = arith.constant 34 : index
    %142 = vector.load %arg10[%c0_164, %c34_165] : memref<1200x256xf32, #tpu.memory_space<vmem>>, vector<48x222xf32>
    tpu.vector_store %arg10[%c0_164, %c34_165], %141 {strides = array<i32>} : memref<1200x256xf32, #tpu.memory_space<vmem>>, vector<48x222xf32>,
    %c0_166 = arith.constant 0 : index
    %c0_167 = arith.constant 0 : index
    %143 = vector.load %arg11[%c0_166, %c0_167] : memref<48x256xf32, #tpu.memory_space<vmem>>, vector<48x223xf32>
    %c1_168 = arith.constant 1 : index
    %c33_169 = arith.constant 33 : index
    %144 = vector.load %arg2[%c1_168, %c33_169] : memref<25x256xf32, #tpu.memory_space<vmem>>, vector<1x223xf32>
    %145 = vector.broadcast %144 : vector<1x223xf32> to vector<48x223xf32>
    %146 = arith.mulf %143, %145 : vector<48x223xf32>
    %c48 = arith.constant 48 : index
    %c33_170 = arith.constant 33 : index
    %147 = vector.load %arg10[%c48, %c33_170] : memref<1200x256xf32, #tpu.memory_space<vmem>>, vector<48x223xf32>
    tpu.vector_store %arg10[%c48, %c33_170], %146 {strides = array<i32>} : memref<1200x256xf32, #tpu.memory_space<vmem>>, vector<48x223xf32>,
    %c0_171 = arith.constant 0 : index
    %c0_172 = arith.constant 0 : index
    %148 = vector.load %arg11[%c0_171, %c0_172] : memref<48x256xf32, #tpu.memory_space<vmem>>, vector<48x224xf32>
    %c2_173 = arith.constant 2 : index
    %c32_174 = arith.constant 32 : index
    %149 = vector.load %arg2[%c2_173, %c32_174] : memref<25x256xf32, #tpu.memory_space<vmem>>, vector<1x224xf32>
    %150 = vector.broadcast %149 : vector<1x224xf32> to vector<48x224xf32>
    %151 = arith.mulf %148, %150 : vector<48x224xf32>
    %c96 = arith.constant 96 : index
    %c32_175 = arith.constant 32 : index
    %152 = vector.load %arg10[%c96, %c32_175] : memref<1200x256xf32, #tpu.memory_space<vmem>>, vector<48x224xf32>
    tpu.vector_store %arg10[%c96, %c32_175], %151 {strides = array<i32>} : memref<1200x256xf32, #tpu.memory_space<vmem>>, vector<48x224xf32>,
    %c0_176 = arith.constant 0 : index
    %c0_177 = arith.constant 0 : index
    %153 = vector.load %arg11[%c0_176, %c0_177] : memref<48x256xf32, #tpu.memory_space<vmem>>, vector<48x225xf32>
    %c3_178 = arith.constant 3 : index
    %c31_179 = arith.constant 31 : index
    %154 = vector.load %arg2[%c3_178, %c31_179] : memref<25x256xf32, #tpu.memory_space<vmem>>, vector<1x225xf32>
    %155 = vector.broadcast %154 : vector<1x225xf32> to vector<48x225xf32>
    %156 = arith.mulf %153, %155 : vector<48x225xf32>
    %c144 = arith.constant 144 : index
    %c31_180 = arith.constant 31 : index
    %157 = vector.load %arg10[%c144, %c31_180] : memref<1200x256xf32, #tpu.memory_space<vmem>>, vector<48x225xf32>
    tpu.vector_store %arg10[%c144, %c31_180], %156 {strides = array<i32>} : memref<1200x256xf32, #tpu.memory_space<vmem>>, vector<48x225xf32>,
    %c0_181 = arith.constant 0 : index
    %c0_182 = arith.constant 0 : index
    %158 = vector.load %arg11[%c0_181, %c0_182] : memref<48x256xf32, #tpu.memory_space<vmem>>, vector<48x226xf32>
    %c4_183 = arith.constant 4 : index
    %c30_184 = arith.constant 30 : index
    %159 = vector.load %arg2[%c4_183, %c30_184] : memref<25x256xf32, #tpu.memory_space<vmem>>, vector<1x226xf32>
    %160 = vector.broadcast %159 : vector<1x226xf32> to vector<48x226xf32>
    %161 = arith.mulf %158, %160 : vector<48x226xf32>
    %c192 = arith.constant 192 : index
    %c30_185 = arith.constant 30 : index
    %162 = vector.load %arg10[%c192, %c30_185] : memref<1200x256xf32, #tpu.memory_space<vmem>>, vector<48x226xf32>
    tpu.vector_store %arg10[%c192, %c30_185], %161 {strides = array<i32>} : memref<1200x256xf32, #tpu.memory_space<vmem>>, vector<48x226xf32>,
    %c0_186 = arith.constant 0 : index
    %c0_187 = arith.constant 0 : index
    %163 = vector.load %arg11[%c0_186, %c0_187] : memref<48x256xf32, #tpu.memory_space<vmem>>, vector<48x238xf32>
    %c5_188 = arith.constant 5 : index
    %c18_189 = arith.constant 18 : index
    %164 = vector.load %arg2[%c5_188, %c18_189] : memref<25x256xf32, #tpu.memory_space<vmem>>, vector<1x238xf32>
    %165 = vector.broadcast %164 : vector<1x238xf32> to vector<48x238xf32>
    %166 = arith.mulf %163, %165 : vector<48x238xf32>
    %c240 = arith.constant 240 : index
    %c18_190 = arith.constant 18 : index
    %167 = vector.load %arg10[%c240, %c18_190] : memref<1200x256xf32, #tpu.memory_space<vmem>>, vector<48x238xf32>
    tpu.vector_store %arg10[%c240, %c18_190], %166 {strides = array<i32>} : memref<1200x256xf32, #tpu.memory_space<vmem>>, vector<48x238xf32>,
    %c0_191 = arith.constant 0 : index
    %c0_192 = arith.constant 0 : index
    %168 = vector.load %arg11[%c0_191, %c0_192] : memref<48x256xf32, #tpu.memory_space<vmem>>, vector<48x239xf32>
    %c6_193 = arith.constant 6 : index
    %c17_194 = arith.constant 17 : index
    %169 = vector.load %arg2[%c6_193, %c17_194] : memref<25x256xf32, #tpu.memory_space<vmem>>, vector<1x239xf32>
    %170 = vector.broadcast %169 : vector<1x239xf32> to vector<48x239xf32>
    %171 = arith.mulf %168, %170 : vector<48x239xf32>
    %c288 = arith.constant 288 : index
    %c17_195 = arith.constant 17 : index
    %172 = vector.load %arg10[%c288, %c17_195] : memref<1200x256xf32, #tpu.memory_space<vmem>>, vector<48x239xf32>
    tpu.vector_store %arg10[%c288, %c17_195], %171 {strides = array<i32>} : memref<1200x256xf32, #tpu.memory_space<vmem>>, vector<48x239xf32>,
    %c0_196 = arith.constant 0 : index
    %c0_197 = arith.constant 0 : index
    %173 = vector.load %arg11[%c0_196, %c0_197] : memref<48x256xf32, #tpu.memory_space<vmem>>, vector<48x240xf32>
    %c7_198 = arith.constant 7 : index
    %c16_199 = arith.constant 16 : index
    %174 = vector.load %arg2[%c7_198, %c16_199] : memref<25x256xf32, #tpu.memory_space<vmem>>, vector<1x240xf32>
    %175 = vector.broadcast %174 : vector<1x240xf32> to vector<48x240xf32>
    %176 = arith.mulf %173, %175 : vector<48x240xf32>
    %c336 = arith.constant 336 : index
    %c16_200 = arith.constant 16 : index
    %177 = vector.load %arg10[%c336, %c16_200] : memref<1200x256xf32, #tpu.memory_space<vmem>>, vector<48x240xf32>
    tpu.vector_store %arg10[%c336, %c16_200], %176 {strides = array<i32>} : memref<1200x256xf32, #tpu.memory_space<vmem>>, vector<48x240xf32>,
    %c0_201 = arith.constant 0 : index
    %c0_202 = arith.constant 0 : index
    %178 = vector.load %arg11[%c0_201, %c0_202] : memref<48x256xf32, #tpu.memory_space<vmem>>, vector<48x241xf32>
    %c8_203 = arith.constant 8 : index
    %c15_204 = arith.constant 15 : index
    %179 = vector.load %arg2[%c8_203, %c15_204] : memref<25x256xf32, #tpu.memory_space<vmem>>, vector<1x241xf32>
    %180 = vector.broadcast %179 : vector<1x241xf32> to vector<48x241xf32>
    %181 = arith.mulf %178, %180 : vector<48x241xf32>
    %c384 = arith.constant 384 : index
    %c15_205 = arith.constant 15 : index
    %182 = vector.load %arg10[%c384, %c15_205] : memref<1200x256xf32, #tpu.memory_space<vmem>>, vector<48x241xf32>
    tpu.vector_store %arg10[%c384, %c15_205], %181 {strides = array<i32>} : memref<1200x256xf32, #tpu.memory_space<vmem>>, vector<48x241xf32>,
    %c0_206 = arith.constant 0 : index
    %c0_207 = arith.constant 0 : index
    %183 = vector.load %arg11[%c0_206, %c0_207] : memref<48x256xf32, #tpu.memory_space<vmem>>, vector<48x242xf32>
    %c9_208 = arith.constant 9 : index
    %c14_209 = arith.constant 14 : index
    %184 = vector.load %arg2[%c9_208, %c14_209] : memref<25x256xf32, #tpu.memory_space<vmem>>, vector<1x242xf32>
    %185 = vector.broadcast %184 : vector<1x242xf32> to vector<48x242xf32>
    %186 = arith.mulf %183, %185 : vector<48x242xf32>
    %c432 = arith.constant 432 : index
    %c14_210 = arith.constant 14 : index
    %187 = vector.load %arg10[%c432, %c14_210] : memref<1200x256xf32, #tpu.memory_space<vmem>>, vector<48x242xf32>
    tpu.vector_store %arg10[%c432, %c14_210], %186 {strides = array<i32>} : memref<1200x256xf32, #tpu.memory_space<vmem>>, vector<48x242xf32>,
    %c0_211 = arith.constant 0 : index
    %c0_212 = arith.constant 0 : index
    %188 = vector.load %arg11[%c0_211, %c0_212] : memref<48x256xf32, #tpu.memory_space<vmem>>, vector<48x254xf32>
    %c10_213 = arith.constant 10 : index
    %c2_214 = arith.constant 2 : index
    %189 = vector.load %arg2[%c10_213, %c2_214] : memref<25x256xf32, #tpu.memory_space<vmem>>, vector<1x254xf32>
    %190 = vector.broadcast %189 : vector<1x254xf32> to vector<48x254xf32>
    %191 = arith.mulf %188, %190 : vector<48x254xf32>
    %c480 = arith.constant 480 : index
    %c2_215 = arith.constant 2 : index
    %192 = vector.load %arg10[%c480, %c2_215] : memref<1200x256xf32, #tpu.memory_space<vmem>>, vector<48x254xf32>
    tpu.vector_store %arg10[%c480, %c2_215], %191 {strides = array<i32>} : memref<1200x256xf32, #tpu.memory_space<vmem>>, vector<48x254xf32>,
    %c0_216 = arith.constant 0 : index
    %c0_217 = arith.constant 0 : index
    %193 = vector.load %arg11[%c0_216, %c0_217] : memref<48x256xf32, #tpu.memory_space<vmem>>, vector<48x255xf32>
    %c11_218 = arith.constant 11 : index
    %c1_219 = arith.constant 1 : index
    %194 = vector.load %arg2[%c11_218, %c1_219] : memref<25x256xf32, #tpu.memory_space<vmem>>, vector<1x255xf32>
    %195 = vector.broadcast %194 : vector<1x255xf32> to vector<48x255xf32>
    %196 = arith.mulf %193, %195 : vector<48x255xf32>
    %c528 = arith.constant 528 : index
    %c1_220 = arith.constant 1 : index
    %197 = vector.load %arg10[%c528, %c1_220] : memref<1200x256xf32, #tpu.memory_space<vmem>>, vector<48x255xf32>
    tpu.vector_store %arg10[%c528, %c1_220], %196 {strides = array<i32>} : memref<1200x256xf32, #tpu.memory_space<vmem>>, vector<48x255xf32>,
    %c0_221 = arith.constant 0 : index
    %c0_222 = arith.constant 0 : index
    %198 = vector.load %arg11[%c0_221, %c0_222] : memref<48x256xf32, #tpu.memory_space<vmem>>, vector<48x256xf32>
    %c12_223 = arith.constant 12 : index
    %c0_224 = arith.constant 0 : index
    %199 = vector.load %arg2[%c12_223, %c0_224] : memref<25x256xf32, #tpu.memory_space<vmem>>, vector<1x256xf32>
    %200 = vector.broadcast %199 : vector<1x256xf32> to vector<48x256xf32>
    %201 = arith.mulf %198, %200 : vector<48x256xf32>
    %c576 = arith.constant 576 : index
    %c0_225 = arith.constant 0 : index
    %202 = vector.load %arg10[%c576, %c0_225] : memref<1200x256xf32, #tpu.memory_space<vmem>>, vector<48x256xf32>
    tpu.vector_store %arg10[%c576, %c0_225], %201 {strides = array<i32>} : memref<1200x256xf32, #tpu.memory_space<vmem>>, vector<48x256xf32>,
    %c0_226 = arith.constant 0 : index
    %c1_227 = arith.constant 1 : index
    %203 = vector.load %arg11[%c0_226, %c1_227] : memref<48x256xf32, #tpu.memory_space<vmem>>, vector<48x255xf32>
    %c13_228 = arith.constant 13 : index
    %c0_229 = arith.constant 0 : index
    %204 = vector.load %arg2[%c13_228, %c0_229] : memref<25x256xf32, #tpu.memory_space<vmem>>, vector<1x255xf32>
    %205 = vector.broadcast %204 : vector<1x255xf32> to vector<48x255xf32>
    %206 = arith.mulf %203, %205 : vector<48x255xf32>
    %c624 = arith.constant 624 : index
    %c0_230 = arith.constant 0 : index
    %207 = vector.load %arg10[%c624, %c0_230] : memref<1200x256xf32, #tpu.memory_space<vmem>>, vector<48x255xf32>
    tpu.vector_store %arg10[%c624, %c0_230], %206 {strides = array<i32>} : memref<1200x256xf32, #tpu.memory_space<vmem>>, vector<48x255xf32>,
    %c0_231 = arith.constant 0 : index
    %c2_232 = arith.constant 2 : index
    %208 = vector.load %arg11[%c0_231, %c2_232] : memref<48x256xf32, #tpu.memory_space<vmem>>, vector<48x254xf32>
    %c14_233 = arith.constant 14 : index
    %c0_234 = arith.constant 0 : index
    %209 = vector.load %arg2[%c14_233, %c0_234] : memref<25x256xf32, #tpu.memory_space<vmem>>, vector<1x254xf32>
    %210 = vector.broadcast %209 : vector<1x254xf32> to vector<48x254xf32>
    %211 = arith.mulf %208, %210 : vector<48x254xf32>
    %c672 = arith.constant 672 : index
    %c0_235 = arith.constant 0 : index
    %212 = vector.load %arg10[%c672, %c0_235] : memref<1200x256xf32, #tpu.memory_space<vmem>>, vector<48x254xf32>
    tpu.vector_store %arg10[%c672, %c0_235], %211 {strides = array<i32>} : memref<1200x256xf32, #tpu.memory_space<vmem>>, vector<48x254xf32>,
    %c0_236 = arith.constant 0 : index
    %c14_237 = arith.constant 14 : index
    %213 = vector.load %arg11[%c0_236, %c14_237] : memref<48x256xf32, #tpu.memory_space<vmem>>, vector<48x242xf32>
    %c15_238 = arith.constant 15 : index
    %c0_239 = arith.constant 0 : index
    %214 = vector.load %arg2[%c15_238, %c0_239] : memref<25x256xf32, #tpu.memory_space<vmem>>, vector<1x242xf32>
    %215 = vector.broadcast %214 : vector<1x242xf32> to vector<48x242xf32>
    %216 = arith.mulf %213, %215 : vector<48x242xf32>
    %c720 = arith.constant 720 : index
    %c0_240 = arith.constant 0 : index
    %217 = vector.load %arg10[%c720, %c0_240] : memref<1200x256xf32, #tpu.memory_space<vmem>>, vector<48x242xf32>
    tpu.vector_store %arg10[%c720, %c0_240], %216 {strides = array<i32>} : memref<1200x256xf32, #tpu.memory_space<vmem>>, vector<48x242xf32>,
    %c0_241 = arith.constant 0 : index
    %c15_242 = arith.constant 15 : index
    %218 = vector.load %arg11[%c0_241, %c15_242] : memref<48x256xf32, #tpu.memory_space<vmem>>, vector<48x241xf32>
    %c16_243 = arith.constant 16 : index
    %c0_244 = arith.constant 0 : index
    %219 = vector.load %arg2[%c16_243, %c0_244] : memref<25x256xf32, #tpu.memory_space<vmem>>, vector<1x241xf32>
    %220 = vector.broadcast %219 : vector<1x241xf32> to vector<48x241xf32>
    %221 = arith.mulf %218, %220 : vector<48x241xf32>
    %c768 = arith.constant 768 : index
    %c0_245 = arith.constant 0 : index
    %222 = vector.load %arg10[%c768, %c0_245] : memref<1200x256xf32, #tpu.memory_space<vmem>>, vector<48x241xf32>
    tpu.vector_store %arg10[%c768, %c0_245], %221 {strides = array<i32>} : memref<1200x256xf32, #tpu.memory_space<vmem>>, vector<48x241xf32>,
    %c0_246 = arith.constant 0 : index
    %c16_247 = arith.constant 16 : index
    %223 = vector.load %arg11[%c0_246, %c16_247] : memref<48x256xf32, #tpu.memory_space<vmem>>, vector<48x240xf32>
    %c17_248 = arith.constant 17 : index
    %c0_249 = arith.constant 0 : index
    %224 = vector.load %arg2[%c17_248, %c0_249] : memref<25x256xf32, #tpu.memory_space<vmem>>, vector<1x240xf32>
    %225 = vector.broadcast %224 : vector<1x240xf32> to vector<48x240xf32>
    %226 = arith.mulf %223, %225 : vector<48x240xf32>
    %c816 = arith.constant 816 : index
    %c0_250 = arith.constant 0 : index
    %227 = vector.load %arg10[%c816, %c0_250] : memref<1200x256xf32, #tpu.memory_space<vmem>>, vector<48x240xf32>
    tpu.vector_store %arg10[%c816, %c0_250], %226 {strides = array<i32>} : memref<1200x256xf32, #tpu.memory_space<vmem>>, vector<48x240xf32>,
    %c0_251 = arith.constant 0 : index
    %c17_252 = arith.constant 17 : index
    %228 = vector.load %arg11[%c0_251, %c17_252] : memref<48x256xf32, #tpu.memory_space<vmem>>, vector<48x239xf32>
    %c18_253 = arith.constant 18 : index
    %c0_254 = arith.constant 0 : index
    %229 = vector.load %arg2[%c18_253, %c0_254] : memref<25x256xf32, #tpu.memory_space<vmem>>, vector<1x239xf32>
    %230 = vector.broadcast %229 : vector<1x239xf32> to vector<48x239xf32>
    %231 = arith.mulf %228, %230 : vector<48x239xf32>
    %c864 = arith.constant 864 : index
    %c0_255 = arith.constant 0 : index
    %232 = vector.load %arg10[%c864, %c0_255] : memref<1200x256xf32, #tpu.memory_space<vmem>>, vector<48x239xf32>
    tpu.vector_store %arg10[%c864, %c0_255], %231 {strides = array<i32>} : memref<1200x256xf32, #tpu.memory_space<vmem>>, vector<48x239xf32>,
    %c0_256 = arith.constant 0 : index
    %c18_257 = arith.constant 18 : index
    %233 = vector.load %arg11[%c0_256, %c18_257] : memref<48x256xf32, #tpu.memory_space<vmem>>, vector<48x238xf32>
    %c19_258 = arith.constant 19 : index
    %c0_259 = arith.constant 0 : index
    %234 = vector.load %arg2[%c19_258, %c0_259] : memref<25x256xf32, #tpu.memory_space<vmem>>, vector<1x238xf32>
    %235 = vector.broadcast %234 : vector<1x238xf32> to vector<48x238xf32>
    %236 = arith.mulf %233, %235 : vector<48x238xf32>
    %c912 = arith.constant 912 : index
    %c0_260 = arith.constant 0 : index
    %237 = vector.load %arg10[%c912, %c0_260] : memref<1200x256xf32, #tpu.memory_space<vmem>>, vector<48x238xf32>
    tpu.vector_store %arg10[%c912, %c0_260], %236 {strides = array<i32>} : memref<1200x256xf32, #tpu.memory_space<vmem>>, vector<48x238xf32>,
    %c0_261 = arith.constant 0 : index
    %c30_262 = arith.constant 30 : index
    %238 = vector.load %arg11[%c0_261, %c30_262] : memref<48x256xf32, #tpu.memory_space<vmem>>, vector<48x226xf32>
    %c20_263 = arith.constant 20 : index
    %c0_264 = arith.constant 0 : index
    %239 = vector.load %arg2[%c20_263, %c0_264] : memref<25x256xf32, #tpu.memory_space<vmem>>, vector<1x226xf32>
    %240 = vector.broadcast %239 : vector<1x226xf32> to vector<48x226xf32>
    %241 = arith.mulf %238, %240 : vector<48x226xf32>
    %c960 = arith.constant 960 : index
    %c0_265 = arith.constant 0 : index
    %242 = vector.load %arg10[%c960, %c0_265] : memref<1200x256xf32, #tpu.memory_space<vmem>>, vector<48x226xf32>
    tpu.vector_store %arg10[%c960, %c0_265], %241 {strides = array<i32>} : memref<1200x256xf32, #tpu.memory_space<vmem>>, vector<48x226xf32>,
    %c0_266 = arith.constant 0 : index
    %c31_267 = arith.constant 31 : index
    %243 = vector.load %arg11[%c0_266, %c31_267] : memref<48x256xf32, #tpu.memory_space<vmem>>, vector<48x225xf32>
    %c21_268 = arith.constant 21 : index
    %c0_269 = arith.constant 0 : index
    %244 = vector.load %arg2[%c21_268, %c0_269] : memref<25x256xf32, #tpu.memory_space<vmem>>, vector<1x225xf32>
    %245 = vector.broadcast %244 : vector<1x225xf32> to vector<48x225xf32>
    %246 = arith.mulf %243, %245 : vector<48x225xf32>
    %c1008 = arith.constant 1008 : index
    %c0_270 = arith.constant 0 : index
    %247 = vector.load %arg10[%c1008, %c0_270] : memref<1200x256xf32, #tpu.memory_space<vmem>>, vector<48x225xf32>
    tpu.vector_store %arg10[%c1008, %c0_270], %246 {strides = array<i32>} : memref<1200x256xf32, #tpu.memory_space<vmem>>, vector<48x225xf32>,
    %c0_271 = arith.constant 0 : index
    %c32_272 = arith.constant 32 : index
    %248 = vector.load %arg11[%c0_271, %c32_272] : memref<48x256xf32, #tpu.memory_space<vmem>>, vector<48x224xf32>
    %c22_273 = arith.constant 22 : index
    %c0_274 = arith.constant 0 : index
    %249 = vector.load %arg2[%c22_273, %c0_274] : memref<25x256xf32, #tpu.memory_space<vmem>>, vector<1x224xf32>
    %250 = vector.broadcast %249 : vector<1x224xf32> to vector<48x224xf32>
    %251 = arith.mulf %248, %250 : vector<48x224xf32>
    %c1056 = arith.constant 1056 : index
    %c0_275 = arith.constant 0 : index
    %252 = vector.load %arg10[%c1056, %c0_275] : memref<1200x256xf32, #tpu.memory_space<vmem>>, vector<48x224xf32>
    tpu.vector_store %arg10[%c1056, %c0_275], %251 {strides = array<i32>} : memref<1200x256xf32, #tpu.memory_space<vmem>>, vector<48x224xf32>,
    %c0_276 = arith.constant 0 : index
    %c33_277 = arith.constant 33 : index
    %253 = vector.load %arg11[%c0_276, %c33_277] : memref<48x256xf32, #tpu.memory_space<vmem>>, vector<48x223xf32>
    %c23_278 = arith.constant 23 : index
    %c0_279 = arith.constant 0 : index
    %254 = vector.load %arg2[%c23_278, %c0_279] : memref<25x256xf32, #tpu.memory_space<vmem>>, vector<1x223xf32>
    %255 = vector.broadcast %254 : vector<1x223xf32> to vector<48x223xf32>
    %256 = arith.mulf %253, %255 : vector<48x223xf32>
    %c1104 = arith.constant 1104 : index
    %c0_280 = arith.constant 0 : index
    %257 = vector.load %arg10[%c1104, %c0_280] : memref<1200x256xf32, #tpu.memory_space<vmem>>, vector<48x223xf32>
    tpu.vector_store %arg10[%c1104, %c0_280], %256 {strides = array<i32>} : memref<1200x256xf32, #tpu.memory_space<vmem>>, vector<48x223xf32>,
    %c0_281 = arith.constant 0 : index
    %c34_282 = arith.constant 34 : index
    %258 = vector.load %arg11[%c0_281, %c34_282] : memref<48x256xf32, #tpu.memory_space<vmem>>, vector<48x222xf32>
    %c24_283 = arith.constant 24 : index
    %c0_284 = arith.constant 0 : index
    %259 = vector.load %arg2[%c24_283, %c0_284] : memref<25x256xf32, #tpu.memory_space<vmem>>, vector<1x222xf32>
    %260 = vector.broadcast %259 : vector<1x222xf32> to vector<48x222xf32>
    %261 = arith.mulf %258, %260 : vector<48x222xf32>
    %c1152 = arith.constant 1152 : index
    %c0_285 = arith.constant 0 : index
    %262 = vector.load %arg10[%c1152, %c0_285] : memref<1200x256xf32, #tpu.memory_space<vmem>>, vector<48x222xf32>
    tpu.vector_store %arg10[%c1152, %c0_285], %261 {strides = array<i32>} : memref<1200x256xf32, #tpu.memory_space<vmem>>, vector<48x222xf32>,
    %c0_286 = arith.constant 0 : index
    %c0_287 = arith.constant 0 : index
    %263 = vector.load %arg5[%c0_286, %c0_287] : memref<48x1200xf32, #tpu.memory_space<vmem>>, vector<48x1200xf32>
    %c0_288 = arith.constant 0 : index
    %c0_289 = arith.constant 0 : index
    %264 = vector.load %arg10[%c0_288, %c0_289] : memref<1200x256xf32, #tpu.memory_space<vmem>>, vector<1200x256xf32>
    %cst_290 = arith.constant dense<0.000000e+00> : vector<48x256xf32>
    %265 = tpu.matmul %263, %264, %cst_290 {dimension_numbers = #tpu.dot_dimension_numbers<[1], [0], [0], [1], [0, 0, 1, 1], [], []>} : vector<48x1200xf32>, vector<1200x256xf32>, vector<48x256xf32> -> vector<48x256xf32>
    %c0_291 = arith.constant 0 : index
    %c0_292 = arith.constant 0 : index
    %266 = vector.load %arg6[%c0_291, %c0_292] : memref<48x1xf32, #tpu.memory_space<vmem>>, vector<48x1xf32>
    %267 = vector.broadcast %266 : vector<48x1xf32> to vector<48x256xf32>
    %268 = arith.addf %265, %267 : vector<48x256xf32>
    %cst_293 = arith.constant 0.000000e+00 : f32
    %269 = vector.broadcast %cst_293 : f32 to vector<48x256xf32>
    %270 = arith.maximumf %268, %269 : vector<48x256xf32>
    %c0_294 = arith.constant 0 : index
    %c0_295 = arith.constant 0 : index
    %271 = vector.load %arg11[%c0_294, %c0_295] : memref<48x256xf32, #tpu.memory_space<vmem>>, vector<48x256xf32>
    tpu.vector_store %arg11[%c0_294, %c0_295], %270 {strides = array<i32>} : memref<48x256xf32, #tpu.memory_space<vmem>>, vector<48x256xf32>,
    %cst_296 = arith.constant 0.000000e+00 : f32
    %272 = vector.broadcast %cst_296 : f32 to vector<1200x256xf32>
    %c0_297 = arith.constant 0 : index
    %c0_298 = arith.constant 0 : index
    %273 = vector.load %arg10[%c0_297, %c0_298] : memref<1200x256xf32, #tpu.memory_space<vmem>>, vector<1200x256xf32>
    tpu.vector_store %arg10[%c0_297, %c0_298], %272 {strides = array<i32>} : memref<1200x256xf32, #tpu.memory_space<vmem>>, vector<1200x256xf32>,
    %c0_299 = arith.constant 0 : index
    %c0_300 = arith.constant 0 : index
    %274 = vector.load %arg11[%c0_299, %c0_300] : memref<48x256xf32, #tpu.memory_space<vmem>>, vector<48x222xf32>
    %c0_301 = arith.constant 0 : index
    %c34_302 = arith.constant 34 : index
    %275 = vector.load %arg2[%c0_301, %c34_302] : memref<25x256xf32, #tpu.memory_space<vmem>>, vector<1x222xf32>
    %276 = vector.broadcast %275 : vector<1x222xf32> to vector<48x222xf32>
    %277 = arith.mulf %274, %276 : vector<48x222xf32>
    %c0_303 = arith.constant 0 : index
    %c34_304 = arith.constant 34 : index
    %278 = vector.load %arg10[%c0_303, %c34_304] : memref<1200x256xf32, #tpu.memory_space<vmem>>, vector<48x222xf32>
    tpu.vector_store %arg10[%c0_303, %c34_304], %277 {strides = array<i32>} : memref<1200x256xf32, #tpu.memory_space<vmem>>, vector<48x222xf32>,
    %c0_305 = arith.constant 0 : index
    %c0_306 = arith.constant 0 : index
    %279 = vector.load %arg11[%c0_305, %c0_306] : memref<48x256xf32, #tpu.memory_space<vmem>>, vector<48x223xf32>
    %c1_307 = arith.constant 1 : index
    %c33_308 = arith.constant 33 : index
    %280 = vector.load %arg2[%c1_307, %c33_308] : memref<25x256xf32, #tpu.memory_space<vmem>>, vector<1x223xf32>
    %281 = vector.broadcast %280 : vector<1x223xf32> to vector<48x223xf32>
    %282 = arith.mulf %279, %281 : vector<48x223xf32>
    %c48_309 = arith.constant 48 : index
    %c33_310 = arith.constant 33 : index
    %283 = vector.load %arg10[%c48_309, %c33_310] : memref<1200x256xf32, #tpu.memory_space<vmem>>, vector<48x223xf32>
    tpu.vector_store %arg10[%c48_309, %c33_310], %282 {strides = array<i32>} : memref<1200x256xf32, #tpu.memory_space<vmem>>, vector<48x223xf32>,
    %c0_311 = arith.constant 0 : index
    %c0_312 = arith.constant 0 : index
    %284 = vector.load %arg11[%c0_311, %c0_312] : memref<48x256xf32, #tpu.memory_space<vmem>>, vector<48x224xf32>
    %c2_313 = arith.constant 2 : index
    %c32_314 = arith.constant 32 : index
    %285 = vector.load %arg2[%c2_313, %c32_314] : memref<25x256xf32, #tpu.memory_space<vmem>>, vector<1x224xf32>
    %286 = vector.broadcast %285 : vector<1x224xf32> to vector<48x224xf32>
    %287 = arith.mulf %284, %286 : vector<48x224xf32>
    %c96_315 = arith.constant 96 : index
    %c32_316 = arith.constant 32 : index
    %288 = vector.load %arg10[%c96_315, %c32_316] : memref<1200x256xf32, #tpu.memory_space<vmem>>, vector<48x224xf32>
    tpu.vector_store %arg10[%c96_315, %c32_316], %287 {strides = array<i32>} : memref<1200x256xf32, #tpu.memory_space<vmem>>, vector<48x224xf32>,
    %c0_317 = arith.constant 0 : index
    %c0_318 = arith.constant 0 : index
    %289 = vector.load %arg11[%c0_317, %c0_318] : memref<48x256xf32, #tpu.memory_space<vmem>>, vector<48x225xf32>
    %c3_319 = arith.constant 3 : index
    %c31_320 = arith.constant 31 : index
    %290 = vector.load %arg2[%c3_319, %c31_320] : memref<25x256xf32, #tpu.memory_space<vmem>>, vector<1x225xf32>
    %291 = vector.broadcast %290 : vector<1x225xf32> to vector<48x225xf32>
    %292 = arith.mulf %289, %291 : vector<48x225xf32>
    %c144_321 = arith.constant 144 : index
    %c31_322 = arith.constant 31 : index
    %293 = vector.load %arg10[%c144_321, %c31_322] : memref<1200x256xf32, #tpu.memory_space<vmem>>, vector<48x225xf32>
    tpu.vector_store %arg10[%c144_321, %c31_322], %292 {strides = array<i32>} : memref<1200x256xf32, #tpu.memory_space<vmem>>, vector<48x225xf32>,
    %c0_323 = arith.constant 0 : index
    %c0_324 = arith.constant 0 : index
    %294 = vector.load %arg11[%c0_323, %c0_324] : memref<48x256xf32, #tpu.memory_space<vmem>>, vector<48x226xf32>
    %c4_325 = arith.constant 4 : index
    %c30_326 = arith.constant 30 : index
    %295 = vector.load %arg2[%c4_325, %c30_326] : memref<25x256xf32, #tpu.memory_space<vmem>>, vector<1x226xf32>
    %296 = vector.broadcast %295 : vector<1x226xf32> to vector<48x226xf32>
    %297 = arith.mulf %294, %296 : vector<48x226xf32>
    %c192_327 = arith.constant 192 : index
    %c30_328 = arith.constant 30 : index
    %298 = vector.load %arg10[%c192_327, %c30_328] : memref<1200x256xf32, #tpu.memory_space<vmem>>, vector<48x226xf32>
    tpu.vector_store %arg10[%c192_327, %c30_328], %297 {strides = array<i32>} : memref<1200x256xf32, #tpu.memory_space<vmem>>, vector<48x226xf32>,
    %c0_329 = arith.constant 0 : index
    %c0_330 = arith.constant 0 : index
    %299 = vector.load %arg11[%c0_329, %c0_330] : memref<48x256xf32, #tpu.memory_space<vmem>>, vector<48x238xf32>
    %c5_331 = arith.constant 5 : index
    %c18_332 = arith.constant 18 : index
    %300 = vector.load %arg2[%c5_331, %c18_332] : memref<25x256xf32, #tpu.memory_space<vmem>>, vector<1x238xf32>
    %301 = vector.broadcast %300 : vector<1x238xf32> to vector<48x238xf32>
    %302 = arith.mulf %299, %301 : vector<48x238xf32>
    %c240_333 = arith.constant 240 : index
    %c18_334 = arith.constant 18 : index
    %303 = vector.load %arg10[%c240_333, %c18_334] : memref<1200x256xf32, #tpu.memory_space<vmem>>, vector<48x238xf32>
    tpu.vector_store %arg10[%c240_333, %c18_334], %302 {strides = array<i32>} : memref<1200x256xf32, #tpu.memory_space<vmem>>, vector<48x238xf32>,
    %c0_335 = arith.constant 0 : index
    %c0_336 = arith.constant 0 : index
    %304 = vector.load %arg11[%c0_335, %c0_336] : memref<48x256xf32, #tpu.memory_space<vmem>>, vector<48x239xf32>
    %c6_337 = arith.constant 6 : index
    %c17_338 = arith.constant 17 : index
    %305 = vector.load %arg2[%c6_337, %c17_338] : memref<25x256xf32, #tpu.memory_space<vmem>>, vector<1x239xf32>
    %306 = vector.broadcast %305 : vector<1x239xf32> to vector<48x239xf32>
    %307 = arith.mulf %304, %306 : vector<48x239xf32>
    %c288_339 = arith.constant 288 : index
    %c17_340 = arith.constant 17 : index
    %308 = vector.load %arg10[%c288_339, %c17_340] : memref<1200x256xf32, #tpu.memory_space<vmem>>, vector<48x239xf32>
    tpu.vector_store %arg10[%c288_339, %c17_340], %307 {strides = array<i32>} : memref<1200x256xf32, #tpu.memory_space<vmem>>, vector<48x239xf32>,
    %c0_341 = arith.constant 0 : index
    %c0_342 = arith.constant 0 : index
    %309 = vector.load %arg11[%c0_341, %c0_342] : memref<48x256xf32, #tpu.memory_space<vmem>>, vector<48x240xf32>
    %c7_343 = arith.constant 7 : index
    %c16_344 = arith.constant 16 : index
    %310 = vector.load %arg2[%c7_343, %c16_344] : memref<25x256xf32, #tpu.memory_space<vmem>>, vector<1x240xf32>
    %311 = vector.broadcast %310 : vector<1x240xf32> to vector<48x240xf32>
    %312 = arith.mulf %309, %311 : vector<48x240xf32>
    %c336_345 = arith.constant 336 : index
    %c16_346 = arith.constant 16 : index
    %313 = vector.load %arg10[%c336_345, %c16_346] : memref<1200x256xf32, #tpu.memory_space<vmem>>, vector<48x240xf32>
    tpu.vector_store %arg10[%c336_345, %c16_346], %312 {strides = array<i32>} : memref<1200x256xf32, #tpu.memory_space<vmem>>, vector<48x240xf32>,
    %c0_347 = arith.constant 0 : index
    %c0_348 = arith.constant 0 : index
    %314 = vector.load %arg11[%c0_347, %c0_348] : memref<48x256xf32, #tpu.memory_space<vmem>>, vector<48x241xf32>
    %c8_349 = arith.constant 8 : index
    %c15_350 = arith.constant 15 : index
    %315 = vector.load %arg2[%c8_349, %c15_350] : memref<25x256xf32, #tpu.memory_space<vmem>>, vector<1x241xf32>
    %316 = vector.broadcast %315 : vector<1x241xf32> to vector<48x241xf32>
    %317 = arith.mulf %314, %316 : vector<48x241xf32>
    %c384_351 = arith.constant 384 : index
    %c15_352 = arith.constant 15 : index
    %318 = vector.load %arg10[%c384_351, %c15_352] : memref<1200x256xf32, #tpu.memory_space<vmem>>, vector<48x241xf32>
    tpu.vector_store %arg10[%c384_351, %c15_352], %317 {strides = array<i32>} : memref<1200x256xf32, #tpu.memory_space<vmem>>, vector<48x241xf32>,
    %c0_353 = arith.constant 0 : index
    %c0_354 = arith.constant 0 : index
    %319 = vector.load %arg11[%c0_353, %c0_354] : memref<48x256xf32, #tpu.memory_space<vmem>>, vector<48x242xf32>
    %c9_355 = arith.constant 9 : index
    %c14_356 = arith.constant 14 : index
    %320 = vector.load %arg2[%c9_355, %c14_356] : memref<25x256xf32, #tpu.memory_space<vmem>>, vector<1x242xf32>
    %321 = vector.broadcast %320 : vector<1x242xf32> to vector<48x242xf32>
    %322 = arith.mulf %319, %321 : vector<48x242xf32>
    %c432_357 = arith.constant 432 : index
    %c14_358 = arith.constant 14 : index
    %323 = vector.load %arg10[%c432_357, %c14_358] : memref<1200x256xf32, #tpu.memory_space<vmem>>, vector<48x242xf32>
    tpu.vector_store %arg10[%c432_357, %c14_358], %322 {strides = array<i32>} : memref<1200x256xf32, #tpu.memory_space<vmem>>, vector<48x242xf32>,
    %c0_359 = arith.constant 0 : index
    %c0_360 = arith.constant 0 : index
    %324 = vector.load %arg11[%c0_359, %c0_360] : memref<48x256xf32, #tpu.memory_space<vmem>>, vector<48x254xf32>
    %c10_361 = arith.constant 10 : index
    %c2_362 = arith.constant 2 : index
    %325 = vector.load %arg2[%c10_361, %c2_362] : memref<25x256xf32, #tpu.memory_space<vmem>>, vector<1x254xf32>
    %326 = vector.broadcast %325 : vector<1x254xf32> to vector<48x254xf32>
    %327 = arith.mulf %324, %326 : vector<48x254xf32>
    %c480_363 = arith.constant 480 : index
    %c2_364 = arith.constant 2 : index
    %328 = vector.load %arg10[%c480_363, %c2_364] : memref<1200x256xf32, #tpu.memory_space<vmem>>, vector<48x254xf32>
    tpu.vector_store %arg10[%c480_363, %c2_364], %327 {strides = array<i32>} : memref<1200x256xf32, #tpu.memory_space<vmem>>, vector<48x254xf32>,
    %c0_365 = arith.constant 0 : index
    %c0_366 = arith.constant 0 : index
    %329 = vector.load %arg11[%c0_365, %c0_366] : memref<48x256xf32, #tpu.memory_space<vmem>>, vector<48x255xf32>
    %c11_367 = arith.constant 11 : index
    %c1_368 = arith.constant 1 : index
    %330 = vector.load %arg2[%c11_367, %c1_368] : memref<25x256xf32, #tpu.memory_space<vmem>>, vector<1x255xf32>
    %331 = vector.broadcast %330 : vector<1x255xf32> to vector<48x255xf32>
    %332 = arith.mulf %329, %331 : vector<48x255xf32>
    %c528_369 = arith.constant 528 : index
    %c1_370 = arith.constant 1 : index
    %333 = vector.load %arg10[%c528_369, %c1_370] : memref<1200x256xf32, #tpu.memory_space<vmem>>, vector<48x255xf32>
    tpu.vector_store %arg10[%c528_369, %c1_370], %332 {strides = array<i32>} : memref<1200x256xf32, #tpu.memory_space<vmem>>, vector<48x255xf32>,
    %c0_371 = arith.constant 0 : index
    %c0_372 = arith.constant 0 : index
    %334 = vector.load %arg11[%c0_371, %c0_372] : memref<48x256xf32, #tpu.memory_space<vmem>>, vector<48x256xf32>
    %c12_373 = arith.constant 12 : index
    %c0_374 = arith.constant 0 : index
    %335 = vector.load %arg2[%c12_373, %c0_374] : memref<25x256xf32, #tpu.memory_space<vmem>>, vector<1x256xf32>
    %336 = vector.broadcast %335 : vector<1x256xf32> to vector<48x256xf32>
    %337 = arith.mulf %334, %336 : vector<48x256xf32>
    %c576_375 = arith.constant 576 : index
    %c0_376 = arith.constant 0 : index
    %338 = vector.load %arg10[%c576_375, %c0_376] : memref<1200x256xf32, #tpu.memory_space<vmem>>, vector<48x256xf32>
    tpu.vector_store %arg10[%c576_375, %c0_376], %337 {strides = array<i32>} : memref<1200x256xf32, #tpu.memory_space<vmem>>, vector<48x256xf32>,
    %c0_377 = arith.constant 0 : index
    %c1_378 = arith.constant 1 : index
    %339 = vector.load %arg11[%c0_377, %c1_378] : memref<48x256xf32, #tpu.memory_space<vmem>>, vector<48x255xf32>
    %c13_379 = arith.constant 13 : index
    %c0_380 = arith.constant 0 : index
    %340 = vector.load %arg2[%c13_379, %c0_380] : memref<25x256xf32, #tpu.memory_space<vmem>>, vector<1x255xf32>
    %341 = vector.broadcast %340 : vector<1x255xf32> to vector<48x255xf32>
    %342 = arith.mulf %339, %341 : vector<48x255xf32>
    %c624_381 = arith.constant 624 : index
    %c0_382 = arith.constant 0 : index
    %343 = vector.load %arg10[%c624_381, %c0_382] : memref<1200x256xf32, #tpu.memory_space<vmem>>, vector<48x255xf32>
    tpu.vector_store %arg10[%c624_381, %c0_382], %342 {strides = array<i32>} : memref<1200x256xf32, #tpu.memory_space<vmem>>, vector<48x255xf32>,
    %c0_383 = arith.constant 0 : index
    %c2_384 = arith.constant 2 : index
    %344 = vector.load %arg11[%c0_383, %c2_384] : memref<48x256xf32, #tpu.memory_space<vmem>>, vector<48x254xf32>
    %c14_385 = arith.constant 14 : index
    %c0_386 = arith.constant 0 : index
    %345 = vector.load %arg2[%c14_385, %c0_386] : memref<25x256xf32, #tpu.memory_space<vmem>>, vector<1x254xf32>
    %346 = vector.broadcast %345 : vector<1x254xf32> to vector<48x254xf32>
    %347 = arith.mulf %344, %346 : vector<48x254xf32>
    %c672_387 = arith.constant 672 : index
    %c0_388 = arith.constant 0 : index
    %348 = vector.load %arg10[%c672_387, %c0_388] : memref<1200x256xf32, #tpu.memory_space<vmem>>, vector<48x254xf32>
    tpu.vector_store %arg10[%c672_387, %c0_388], %347 {strides = array<i32>} : memref<1200x256xf32, #tpu.memory_space<vmem>>, vector<48x254xf32>,
    %c0_389 = arith.constant 0 : index
    %c14_390 = arith.constant 14 : index
    %349 = vector.load %arg11[%c0_389, %c14_390] : memref<48x256xf32, #tpu.memory_space<vmem>>, vector<48x242xf32>
    %c15_391 = arith.constant 15 : index
    %c0_392 = arith.constant 0 : index
    %350 = vector.load %arg2[%c15_391, %c0_392] : memref<25x256xf32, #tpu.memory_space<vmem>>, vector<1x242xf32>
    %351 = vector.broadcast %350 : vector<1x242xf32> to vector<48x242xf32>
    %352 = arith.mulf %349, %351 : vector<48x242xf32>
    %c720_393 = arith.constant 720 : index
    %c0_394 = arith.constant 0 : index
    %353 = vector.load %arg10[%c720_393, %c0_394] : memref<1200x256xf32, #tpu.memory_space<vmem>>, vector<48x242xf32>
    tpu.vector_store %arg10[%c720_393, %c0_394], %352 {strides = array<i32>} : memref<1200x256xf32, #tpu.memory_space<vmem>>, vector<48x242xf32>,
    %c0_395 = arith.constant 0 : index
    %c15_396 = arith.constant 15 : index
    %354 = vector.load %arg11[%c0_395, %c15_396] : memref<48x256xf32, #tpu.memory_space<vmem>>, vector<48x241xf32>
    %c16_397 = arith.constant 16 : index
    %c0_398 = arith.constant 0 : index
    %355 = vector.load %arg2[%c16_397, %c0_398] : memref<25x256xf32, #tpu.memory_space<vmem>>, vector<1x241xf32>
    %356 = vector.broadcast %355 : vector<1x241xf32> to vector<48x241xf32>
    %357 = arith.mulf %354, %356 : vector<48x241xf32>
    %c768_399 = arith.constant 768 : index
    %c0_400 = arith.constant 0 : index
    %358 = vector.load %arg10[%c768_399, %c0_400] : memref<1200x256xf32, #tpu.memory_space<vmem>>, vector<48x241xf32>
    tpu.vector_store %arg10[%c768_399, %c0_400], %357 {strides = array<i32>} : memref<1200x256xf32, #tpu.memory_space<vmem>>, vector<48x241xf32>,
    %c0_401 = arith.constant 0 : index
    %c16_402 = arith.constant 16 : index
    %359 = vector.load %arg11[%c0_401, %c16_402] : memref<48x256xf32, #tpu.memory_space<vmem>>, vector<48x240xf32>
    %c17_403 = arith.constant 17 : index
    %c0_404 = arith.constant 0 : index
    %360 = vector.load %arg2[%c17_403, %c0_404] : memref<25x256xf32, #tpu.memory_space<vmem>>, vector<1x240xf32>
    %361 = vector.broadcast %360 : vector<1x240xf32> to vector<48x240xf32>
    %362 = arith.mulf %359, %361 : vector<48x240xf32>
    %c816_405 = arith.constant 816 : index
    %c0_406 = arith.constant 0 : index
    %363 = vector.load %arg10[%c816_405, %c0_406] : memref<1200x256xf32, #tpu.memory_space<vmem>>, vector<48x240xf32>
    tpu.vector_store %arg10[%c816_405, %c0_406], %362 {strides = array<i32>} : memref<1200x256xf32, #tpu.memory_space<vmem>>, vector<48x240xf32>,
    %c0_407 = arith.constant 0 : index
    %c17_408 = arith.constant 17 : index
    %364 = vector.load %arg11[%c0_407, %c17_408] : memref<48x256xf32, #tpu.memory_space<vmem>>, vector<48x239xf32>
    %c18_409 = arith.constant 18 : index
    %c0_410 = arith.constant 0 : index
    %365 = vector.load %arg2[%c18_409, %c0_410] : memref<25x256xf32, #tpu.memory_space<vmem>>, vector<1x239xf32>
    %366 = vector.broadcast %365 : vector<1x239xf32> to vector<48x239xf32>
    %367 = arith.mulf %364, %366 : vector<48x239xf32>
    %c864_411 = arith.constant 864 : index
    %c0_412 = arith.constant 0 : index
    %368 = vector.load %arg10[%c864_411, %c0_412] : memref<1200x256xf32, #tpu.memory_space<vmem>>, vector<48x239xf32>
    tpu.vector_store %arg10[%c864_411, %c0_412], %367 {strides = array<i32>} : memref<1200x256xf32, #tpu.memory_space<vmem>>, vector<48x239xf32>,
    %c0_413 = arith.constant 0 : index
    %c18_414 = arith.constant 18 : index
    %369 = vector.load %arg11[%c0_413, %c18_414] : memref<48x256xf32, #tpu.memory_space<vmem>>, vector<48x238xf32>
    %c19_415 = arith.constant 19 : index
    %c0_416 = arith.constant 0 : index
    %370 = vector.load %arg2[%c19_415, %c0_416] : memref<25x256xf32, #tpu.memory_space<vmem>>, vector<1x238xf32>
    %371 = vector.broadcast %370 : vector<1x238xf32> to vector<48x238xf32>
    %372 = arith.mulf %369, %371 : vector<48x238xf32>
    %c912_417 = arith.constant 912 : index
    %c0_418 = arith.constant 0 : index
    %373 = vector.load %arg10[%c912_417, %c0_418] : memref<1200x256xf32, #tpu.memory_space<vmem>>, vector<48x238xf32>
    tpu.vector_store %arg10[%c912_417, %c0_418], %372 {strides = array<i32>} : memref<1200x256xf32, #tpu.memory_space<vmem>>, vector<48x238xf32>,
    %c0_419 = arith.constant 0 : index
    %c30_420 = arith.constant 30 : index
    %374 = vector.load %arg11[%c0_419, %c30_420] : memref<48x256xf32, #tpu.memory_space<vmem>>, vector<48x226xf32>
    %c20_421 = arith.constant 20 : index
    %c0_422 = arith.constant 0 : index
    %375 = vector.load %arg2[%c20_421, %c0_422] : memref<25x256xf32, #tpu.memory_space<vmem>>, vector<1x226xf32>
    %376 = vector.broadcast %375 : vector<1x226xf32> to vector<48x226xf32>
    %377 = arith.mulf %374, %376 : vector<48x226xf32>
    %c960_423 = arith.constant 960 : index
    %c0_424 = arith.constant 0 : index
    %378 = vector.load %arg10[%c960_423, %c0_424] : memref<1200x256xf32, #tpu.memory_space<vmem>>, vector<48x226xf32>
    tpu.vector_store %arg10[%c960_423, %c0_424], %377 {strides = array<i32>} : memref<1200x256xf32, #tpu.memory_space<vmem>>, vector<48x226xf32>,
    %c0_425 = arith.constant 0 : index
    %c31_426 = arith.constant 31 : index
    %379 = vector.load %arg11[%c0_425, %c31_426] : memref<48x256xf32, #tpu.memory_space<vmem>>, vector<48x225xf32>
    %c21_427 = arith.constant 21 : index
    %c0_428 = arith.constant 0 : index
    %380 = vector.load %arg2[%c21_427, %c0_428] : memref<25x256xf32, #tpu.memory_space<vmem>>, vector<1x225xf32>
    %381 = vector.broadcast %380 : vector<1x225xf32> to vector<48x225xf32>
    %382 = arith.mulf %379, %381 : vector<48x225xf32>
    %c1008_429 = arith.constant 1008 : index
    %c0_430 = arith.constant 0 : index
    %383 = vector.load %arg10[%c1008_429, %c0_430] : memref<1200x256xf32, #tpu.memory_space<vmem>>, vector<48x225xf32>
    tpu.vector_store %arg10[%c1008_429, %c0_430], %382 {strides = array<i32>} : memref<1200x256xf32, #tpu.memory_space<vmem>>, vector<48x225xf32>,
    %c0_431 = arith.constant 0 : index
    %c32_432 = arith.constant 32 : index
    %384 = vector.load %arg11[%c0_431, %c32_432] : memref<48x256xf32, #tpu.memory_space<vmem>>, vector<48x224xf32>
    %c22_433 = arith.constant 22 : index
    %c0_434 = arith.constant 0 : index
    %385 = vector.load %arg2[%c22_433, %c0_434] : memref<25x256xf32, #tpu.memory_space<vmem>>, vector<1x224xf32>
    %386 = vector.broadcast %385 : vector<1x224xf32> to vector<48x224xf32>
    %387 = arith.mulf %384, %386 : vector<48x224xf32>
    %c1056_435 = arith.constant 1056 : index
    %c0_436 = arith.constant 0 : index
    %388 = vector.load %arg10[%c1056_435, %c0_436] : memref<1200x256xf32, #tpu.memory_space<vmem>>, vector<48x224xf32>
    tpu.vector_store %arg10[%c1056_435, %c0_436], %387 {strides = array<i32>} : memref<1200x256xf32, #tpu.memory_space<vmem>>, vector<48x224xf32>,
    %c0_437 = arith.constant 0 : index
    %c33_438 = arith.constant 33 : index
    %389 = vector.load %arg11[%c0_437, %c33_438] : memref<48x256xf32, #tpu.memory_space<vmem>>, vector<48x223xf32>
    %c23_439 = arith.constant 23 : index
    %c0_440 = arith.constant 0 : index
    %390 = vector.load %arg2[%c23_439, %c0_440] : memref<25x256xf32, #tpu.memory_space<vmem>>, vector<1x223xf32>
    %391 = vector.broadcast %390 : vector<1x223xf32> to vector<48x223xf32>
    %392 = arith.mulf %389, %391 : vector<48x223xf32>
    %c1104_441 = arith.constant 1104 : index
    %c0_442 = arith.constant 0 : index
    %393 = vector.load %arg10[%c1104_441, %c0_442] : memref<1200x256xf32, #tpu.memory_space<vmem>>, vector<48x223xf32>
    tpu.vector_store %arg10[%c1104_441, %c0_442], %392 {strides = array<i32>} : memref<1200x256xf32, #tpu.memory_space<vmem>>, vector<48x223xf32>,
    %c0_443 = arith.constant 0 : index
    %c34_444 = arith.constant 34 : index
    %394 = vector.load %arg11[%c0_443, %c34_444] : memref<48x256xf32, #tpu.memory_space<vmem>>, vector<48x222xf32>
    %c24_445 = arith.constant 24 : index
    %c0_446 = arith.constant 0 : index
    %395 = vector.load %arg2[%c24_445, %c0_446] : memref<25x256xf32, #tpu.memory_space<vmem>>, vector<1x222xf32>
    %396 = vector.broadcast %395 : vector<1x222xf32> to vector<48x222xf32>
    %397 = arith.mulf %394, %396 : vector<48x222xf32>
    %c1152_447 = arith.constant 1152 : index
    %c0_448 = arith.constant 0 : index
    %398 = vector.load %arg10[%c1152_447, %c0_448] : memref<1200x256xf32, #tpu.memory_space<vmem>>, vector<48x222xf32>
    tpu.vector_store %arg10[%c1152_447, %c0_448], %397 {strides = array<i32>} : memref<1200x256xf32, #tpu.memory_space<vmem>>, vector<48x222xf32>,
    %c0_449 = arith.constant 0 : index
    %c0_450 = arith.constant 0 : index
    %399 = vector.load %arg7[%c0_449, %c0_450] : memref<1x1200xf32, #tpu.memory_space<vmem>>, vector<1x1200xf32>
    %c0_451 = arith.constant 0 : index
    %c0_452 = arith.constant 0 : index
    %400 = vector.load %arg10[%c0_451, %c0_452] : memref<1200x256xf32, #tpu.memory_space<vmem>>, vector<1200x256xf32>
    %cst_453 = arith.constant dense<0.000000e+00> : vector<1x256xf32>
    %401 = tpu.matmul %399, %400, %cst_453 {dimension_numbers = #tpu.dot_dimension_numbers<[1], [0], [0], [1], [0, 0, 1, 1], [], []>} : vector<1x1200xf32>, vector<1200x256xf32>, vector<1x256xf32> -> vector<1x256xf32>
    %c0_454 = arith.constant 0 : index
    %c0_455 = arith.constant 0 : index
    %402 = vector.load %arg8[%c0_454, %c0_455] : memref<1x1xf32, #tpu.memory_space<vmem>>, vector<1x1xf32>
    %403 = vector.broadcast %402 : vector<1x1xf32> to vector<1x256xf32>
    %404 = arith.addf %401, %403 : vector<1x256xf32>
    %c0_456 = arith.constant 0 : index
    %c0_457 = arith.constant 0 : index
    %c0_458 = arith.constant 0 : index
    %405 = vector.load %arg9[%c0_456, %c0_457, %c0_458] : memref<1x1x256xf32, #tpu.memory_space<vmem>>, vector<1x1x256xf32>
    %406 = vector.shape_cast %405 : vector<1x1x256xf32> to vector<1x256xf32>
    %407 = vector.shape_cast %404 : vector<1x256xf32> to vector<1x1x256xf32>
    tpu.vector_store %arg9[%c0_456, %c0_457, %c0_458], %407 {strides = array<i32>} : memref<1x1x256xf32, #tpu.memory_space<vmem>>, vector<1x1x256xf32>,
    return
  }
  func.func @transform_0(%arg0: i32) -> (i32, i32, i32) {
    %c0_i32 = arith.constant 0 : i32
    %c0_i32_0 = arith.constant 0 : i32
    %c0_i32_1 = arith.constant 0 : i32
    return %arg0, %c0_i32, %c0_i32_0 : i32, i32, i32
  }
  func.func @transform_1(%arg0: i32) -> (i32, i32) {
    %c0_i32 = arith.constant 0 : i32
    %c0_i32_0 = arith.constant 0 : i32
    %c0_i32_1 = arith.constant 0 : i32
    return %c0_i32, %c0_i32_0 : i32, i32
  }
  func.func @transform_2(%arg0: i32) -> (i32, i32) {
    %c0_i32 = arith.constant 0 : i32
    %c0_i32_0 = arith.constant 0 : i32
    %c0_i32_1 = arith.constant 0 : i32
    return %c0_i32, %c0_i32_0 : i32, i32
  }
  func.func @transform_3(%arg0: i32) -> (i32, i32) {
    %c0_i32 = arith.constant 0 : i32
    %c0_i32_0 = arith.constant 0 : i32
    %c0_i32_1 = arith.constant 0 : i32
    return %c0_i32, %c0_i32_0 : i32, i32
  }
  func.func @transform_4(%arg0: i32) -> (i32, i32) {
    %c0_i32 = arith.constant 0 : i32
    %c0_i32_0 = arith.constant 0 : i32
    %c0_i32_1 = arith.constant 0 : i32
    return %c0_i32, %c0_i32_0 : i32, i32
  }
  func.func @transform_5(%arg0: i32) -> (i32, i32) {
    %c0_i32 = arith.constant 0 : i32
    %c0_i32_0 = arith.constant 0 : i32
    %c0_i32_1 = arith.constant 0 : i32
    return %c0_i32, %c0_i32_0 : i32, i32
  }
  func.func @transform_6(%arg0: i32) -> (i32, i32) {
    %c0_i32 = arith.constant 0 : i32
    %c0_i32_0 = arith.constant 0 : i32
    %c0_i32_1 = arith.constant 0 : i32
    return %c0_i32, %c0_i32_0 : i32, i32
  }
  func.func @transform_7(%arg0: i32) -> (i32, i32) {
    %c0_i32 = arith.constant 0 : i32
    %c0_i32_0 = arith.constant 0 : i32
    %c0_i32_1 = arith.constant 0 : i32
    return %c0_i32, %c0_i32_0 : i32, i32
  }
  func.func @transform_8(%arg0: i32) -> (i32, i32, i32) {
    %c0_i32 = arith.constant 0 : i32
    %c0_i32_0 = arith.constant 0 : i32
    %c0_i32_1 = arith.constant 0 : i32
    return %arg0, %c0_i32, %c0_i32_0 : i32, i32, i32
  }
}

</mosaic_0001>

<llo_original>
// kernel: tpu_custom_call.1
$region0: #{tpu_custom_call.1}
  #allocation0 [shape = 'u32[]', space=smem, size = 0x4, offset = 0x4, fixed_abs, tag = 'smem constant byte address 0x4 - core index']
  #allocation1 [shape = 'u32[144,128]{1,0:T(1,128)}', space=vmem, size = 0x12000, scoped, tag = 'internal scratch']
  #allocation2 [shape = 'f32[1200,256]{1,0:T(8,128)}', space=vmem, size = 0x12c000, scoped, tag = 'scratch operand']
  #allocation3 [shape = 'f32[48,256]{1,0:T(8,128)}', space=vmem, size = 0xc000, scoped, tag = 'scratch operand']
  #allocation4 [shape = 'f32[1,1]{1,0:T(1,128)S(1)}', space=vmem, size = 0x200, scoped, tag = 'scoped memory for tpu_custom_call.1']
  %s0 = inlined_call_operand.vmem [shape: f32[2,1,256], index: 0, kind: input, shape index: {}]
  %s1 = inlined_call_operand.vmem [shape: f32[25,256], index: 1, kind: input, shape index: {}]
  %s2 = inlined_call_operand.vmem [shape: f32[48,25], index: 2, kind: input, shape index: {}]
  %s3 = inlined_call_operand.vmem [shape: f32[48,1], index: 3, kind: input, shape index: {}]
  %s4 = inlined_call_operand.hbm [shape: f32[48,1200], index: 4, kind: input, shape index: {}]
  %s5 = inlined_call_operand.vmem [shape: f32[48,1], index: 5, kind: input, shape index: {}]
  %s6 = inlined_call_operand.vmem [shape: f32[1,1200], index: 6, kind: input, shape index: {}]
  %s7 = inlined_call_operand.<no memory space> [shape: f32[1,1], index: 7, kind: input, shape index: {}]
  %s8 = inlined_call_operand.hbm [shape: f32[2,1,256], index: 8, kind: output, shape index: {}]
  %s9 = sld [smem:[#allocation0]]
  $region69: #{tpu_custom_call.1} parent=0
    _
  %s11 = ssub.s32 1, %s9
  %s12 = scalar_select 0, %s11, %s9
  %v13 = vstv %s7
  %14 = vst [vmem:[#allocation4] sm:$0x1] %v13
  $region1: #{tpu_custom_call.1} parent=0
    #allocation5 [shape = 'u8[245760]{0}', space=vmem, size = 0x3c000, scoped, tag = 'input window, operand 4, single buffered']
    #allocation6 [shape = 's32[2]{0}', space=sflag, size = 0x8, scoped, tag = 'scoped memory for tpu_custom_call.1']
    #allocation7 [shape = 's32[2]{0}', space=sflag, size = 0x8, scoped, tag = 'scoped memory for tpu_custom_call.1']
    #allocation8 [shape = 'u8[2048]{0}', space=vmem, size = 0x800, scoped, tag = 'output window, operand 0']
    %15 = vsyncpa [#allocation6], 0
    %16 = vsyncpa [#allocation7], 0
    %s17 = scalar_lea.sflag [#allocation7], 1
    %18 = vsyncpa %s17, 0
    loop: start=0, step=1, limit=4
    $region2: #{tpu_custom_call.1} parent=1 // loop_pre_header
      _
    $region3: #{tpu_custom_call.1} parent=1 // loop_header
      %s20 = sphi 0, %s24
      %p21 = scmp.ge.s32.totalorder %s20, 4
      %s30 = sphi 0, %s32
      %s33 = sphi 0, %s30
      %s34 = sphi 0, %s33
      %s50 = sphi 0, %s34
      %s54 = sphi 0, %s54
      %s56 = sphi 0, %s54
      %s57 = sphi 0, %s56
      %s71 = sphi 0, %s57
      %s75 = sphi 0, %s75
      %s77 = sphi 0, %s75
      %s78 = sphi 0, %s77
      %s92 = sphi 0, %s78
      %s96 = sphi 0, %s96
      %s98 = sphi 0, %s96
      %s99 = sphi 0, %s98
      %s113 = sphi 0, %s99
      %s117 = sphi 0, %s117
      %s119 = sphi 0, %s117
      %s120 = sphi 0, %s119
      %s134 = sphi 0, %s120
      %s138 = sphi 0, %s138
      %s140 = sphi 0, %s138
      %s141 = sphi 0, %s140
      %s155 = sphi 0, %s141
      %s159 = sphi 0, %s159
      %s161 = sphi 0, %s159
      %s162 = sphi 0, %s161
      %s176 = sphi 0, %s162
      %s180 = sphi 0, %s180
      %s182 = sphi 0, %s180
      %s183 = sphi 0, %s182
      %s197 = sphi 0, %s183
      %s203 = sphi 0, %s205
      %s206 = sphi 0, %s203
      %s207 = sphi 0, %s206
      %s223 = sphi 0, %s207
    $region4: #{tpu_custom_call.1} parent=1 // loop_header_branch
      %23 = sbr.rel (%p21) target = $region8
    $region5: #{tpu_custom_call.1} parent=1 // loop_body
      %s25 = ssub.s32 %s20, 1
      %s26 = ssub.s32 %s20, 2
      %s27 = sadd.s32 %s20, 1
      %s28 = ssub.s32 %s20, %s27
      %p29 = scmp.eq.s32.totalorder %s28, 0
      %s31 = sadd.s32 %s30, 1
      %s32 = scalar_select %p29, %s30, %s31
      %p35 = pneg %p29
      %p36 = scmp.eq.s32.totalorder %s20, 1
      %p37 = por %p35, %p36
      %p38 = scmp.ne.s32.totalorder %s30, %s33
      %p39 = scmp.eq.s32.totalorder %s20, 0
      %p40 = por %p38, %p39
      %p41 = scmp.ne.s32.totalorder %s30, %s33
      %p42 = scmp.eq.s32.totalorder %s25, 1
      %p43 = por %p41, %p42
      %p44 = scmp.ne.s32.totalorder %s33, %s34
      %p45 = scmp.eq.s32.totalorder %s25, 0
      %p46 = por %p44, %p45
      %p47 = scmp.ne.s32.totalorder %s33, %s34
      %p48 = scmp.eq.s32.totalorder %s26, 1
      %p49 = por %p47, %p48
      %p51 = scmp.ne.s32.totalorder %s34, %s50
      %p52 = scmp.eq.s32.totalorder %s26, 0
      %p53 = por %p51, %p52
      %s55 = sadd.s32 %s54, 1
      %p58 = scmp.eq.s32.totalorder %s20, 1
      %p59 = scmp.ne.s32.totalorder %s54, %s56
      %p60 = scmp.eq.s32.totalorder %s20, 0
      %p61 = por %p59, %p60
      %p62 = scmp.ne.s32.totalorder %s54, %s56
      %p63 = scmp.eq.s32.totalorder %s25, 1
      %p64 = por %p62, %p63
      %p65 = scmp.ne.s32.totalorder %s56, %s57
      %p66 = scmp.eq.s32.totalorder %s25, 0
      %p67 = por %p65, %p66
      %p68 = scmp.ne.s32.totalorder %s56, %s57
      %p69 = scmp.eq.s32.totalorder %s26, 1
      %p70 = por %p68, %p69
      %p72 = scmp.ne.s32.totalorder %s57, %s71
      %p73 = scmp.eq.s32.totalorder %s26, 0
      %p74 = por %p72, %p73
      %s76 = sadd.s32 %s75, 1
      %p79 = scmp.eq.s32.totalorder %s20, 1
      %p80 = scmp.ne.s32.totalorder %s75, %s77
      %p81 = scmp.eq.s32.totalorder %s20, 0
      %p82 = por %p80, %p81
      %p83 = scmp.ne.s32.totalorder %s75, %s77
      %p84 = scmp.eq.s32.totalorder %s25, 1
      %p85 = por %p83, %p84
      %p86 = scmp.ne.s32.totalorder %s77, %s78
      %p87 = scmp.eq.s32.totalorder %s25, 0
      %p88 = por %p86, %p87
      %p89 = scmp.ne.s32.totalorder %s77, %s78
      %p90 = scmp.eq.s32.totalorder %s26, 1
      %p91 = por %p89, %p90
      %p93 = scmp.ne.s32.totalorder %s78, %s92
      %p94 = scmp.eq.s32.totalorder %s26, 0
      %p95 = por %p93, %p94
      %s97 = sadd.s32 %s96, 1
      %p100 = scmp.eq.s32.totalorder %s20, 1
      %p101 = scmp.ne.s32.totalorder %s96, %s98
      %p102 = scmp.eq.s32.totalorder %s20, 0
      %p103 = por %p101, %p102
      %p104 = scmp.ne.s32.totalorder %s96, %s98
      %p105 = scmp.eq.s32.totalorder %s25, 1
      %p106 = por %p104, %p105
      %p107 = scmp.ne.s32.totalorder %s98, %s99
      %p108 = scmp.eq.s32.totalorder %s25, 0
      %p109 = por %p107, %p108
      %p110 = scmp.ne.s32.totalorder %s98, %s99
      %p111 = scmp.eq.s32.totalorder %s26, 1
      %p112 = por %p110, %p111
      %p114 = scmp.ne.s32.totalorder %s99, %s113
      %p115 = scmp.eq.s32.totalorder %s26, 0
      %p116 = por %p114, %p115
      %s118 = sadd.s32 %s117, 1
      %p121 = scmp.eq.s32.totalorder %s20, 1
      %p122 = scmp.ne.s32.totalorder %s117, %s119
      %p123 = scmp.eq.s32.totalorder %s20, 0
      %p124 = por %p122, %p123
      %p125 = scmp.ne.s32.totalorder %s117, %s119
      %p126 = scmp.eq.s32.totalorder %s25, 1
      %p127 = por %p125, %p126
      %p128 = scmp.ne.s32.totalorder %s119, %s120
      %p129 = scmp.eq.s32.totalorder %s25, 0
      %p130 = por %p128, %p129
      %p131 = scmp.ne.s32.totalorder %s119, %s120
      %p132 = scmp.eq.s32.totalorder %s26, 1
      %p133 = por %p131, %p132
      %p135 = scmp.ne.s32.totalorder %s120, %s134
      %p136 = scmp.eq.s32.totalorder %s26, 0
      %p137 = por %p135, %p136
      %s139 = sadd.s32 %s138, 1
      %p142 = scmp.eq.s32.totalorder %s20, 1
      %p143 = scmp.ne.s32.totalorder %s138, %s140
      %p144 = scmp.eq.s32.totalorder %s20, 0
      %p145 = por %p143, %p144
      %p146 = scmp.ne.s32.totalorder %s138, %s140
      %p147 = scmp.eq.s32.totalorder %s25, 1
      %p148 = por %p146, %p147
      %p149 = scmp.ne.s32.totalorder %s140, %s141
      %p150 = scmp.eq.s32.totalorder %s25, 0
      %p151 = por %p149, %p150
      %p152 = scmp.ne.s32.totalorder %s140, %s141
      %p153 = scmp.eq.s32.totalorder %s26, 1
      %p154 = por %p152, %p153
      %p156 = scmp.ne.s32.totalorder %s141, %s155
      %p157 = scmp.eq.s32.totalorder %s26, 0
      %p158 = por %p156, %p157
      %s160 = sadd.s32 %s159, 1
      %p163 = scmp.eq.s32.totalorder %s20, 1
      %p164 = scmp.ne.s32.totalorder %s159, %s161
      %p165 = scmp.eq.s32.totalorder %s20, 0
      %p166 = por %p164, %p165
      %p167 = scmp.ne.s32.totalorder %s159, %s161
      %p168 = scmp.eq.s32.totalorder %s25, 1
      %p169 = por %p167, %p168
      %p170 = scmp.ne.s32.totalorder %s161, %s162
      %p171 = scmp.eq.s32.totalorder %s25, 0
      %p172 = por %p170, %p171
      %p173 = scmp.ne.s32.totalorder %s161, %s162
      %p174 = scmp.eq.s32.totalorder %s26, 1
      %p175 = por %p173, %p174
      %p177 = scmp.ne.s32.totalorder %s162, %s176
      %p178 = scmp.eq.s32.totalorder %s26, 0
      %p179 = por %p177, %p178
      %s181 = sadd.s32 %s180, 1
      %p184 = scmp.eq.s32.totalorder %s20, 1
      %p185 = scmp.ne.s32.totalorder %s180, %s182
      %p186 = scmp.eq.s32.totalorder %s20, 0
      %p187 = por %p185, %p186
      %p188 = scmp.ne.s32.totalorder %s180, %s182
      %p189 = scmp.eq.s32.totalorder %s25, 1
      %p190 = por %p188, %p189
      %p191 = scmp.ne.s32.totalorder %s182, %s183
      %p192 = scmp.eq.s32.totalorder %s25, 0
      %p193 = por %p191, %p192
      %p194 = scmp.ne.s32.totalorder %s182, %s183
      %p195 = scmp.eq.s32.totalorder %s26, 1
      %p196 = por %p194, %p195
      %p198 = scmp.ne.s32.totalorder %s183, %s197
      %p199 = scmp.eq.s32.totalorder %s26, 0
      %p200 = por %p198, %p199
      %s201 = ssub.s32 %s20, %s27
      %p202 = scmp.eq.s32.totalorder %s201, 0
      %s204 = sadd.s32 %s203, 1
      %s205 = scalar_select %p202, %s203, %s204
      %p208 = pneg %p202
      %p209 = scmp.eq.s32.totalorder %s20, 1
      %p210 = por %p208, %p209
      %p211 = scmp.ne.s32.totalorder %s203, %s206
      %p212 = scmp.eq.s32.totalorder %s20, 0
      %p213 = por %p211, %p212
      %p214 = scmp.ne.s32.totalorder %s203, %s206
      %p215 = scmp.eq.s32.totalorder %s25, 1
      %p216 = por %p214, %p215
      %p217 = scmp.ne.s32.totalorder %s206, %s207
      %p218 = scmp.eq.s32.totalorder %s25, 0
      %p219 = por %p217, %p218
      %p220 = scmp.ne.s32.totalorder %s206, %s207
      %p221 = scmp.eq.s32.totalorder %s26, 1
      %p222 = por %p220, %p221
      %p224 = scmp.ne.s32.totalorder %s207, %s223
      %p225 = scmp.eq.s32.totalorder %s26, 0
      %p226 = por %p224, %p225
      %p227 = scmp.le.s32.totalorder 1, %s20
      %p228 = scmp.lt.s32.totalorder %s20, 3
      %p229 = pnand %p227, %p228
      %p230 = pneg %p229
      // Predicated region
      $region9: #{tpu_custom_call.1} parent=5 // pred_check
        _
      $region10: #{tpu_custom_call.1} parent=5 // pred_check_branch
        %232 = sbr.rel (%p229) target = $region12
      $region11: #{tpu_custom_call.1} parent=5 // pred_region
        %s233 = ssub.s32 %s20, 1
        // Predicated region
        $region13: #{tpu_custom_call.1} parent=11 // pred_check
          %p234 = pneg %p67
        $region14: #{tpu_custom_call.1} parent=11 // pred_check_branch
          %236 = sbr.rel (%p234) target = $region16
        $region15: #{tpu_custom_call.1} parent=11 // pred_region
          _
        $region16: #{tpu_custom_call.1} parent=11 // pred_fallthru
          _
        // Predicated region
        $region17: #{tpu_custom_call.1} parent=11 // pred_check
          %p237 = pneg %p88
        $region18: #{tpu_custom_call.1} parent=11 // pred_check_branch
          %239 = sbr.rel (%p237) target = $region20
        $region19: #{tpu_custom_call.1} parent=11 // pred_region
          _
        $region20: #{tpu_custom_call.1} parent=11 // pred_fallthru
          _
        // Predicated region
        $region21: #{tpu_custom_call.1} parent=11 // pred_check
          %p240 = pneg %p109
        $region22: #{tpu_custom_call.1} parent=11 // pred_check_branch
          %242 = sbr.rel (%p240) target = $region24
        $region23: #{tpu_custom_call.1} parent=11 // pred_region
          _
        $region24: #{tpu_custom_call.1} parent=11 // pred_fallthru
          _
        // Predicated region
        $region25: #{tpu_custom_call.1} parent=11 // pred_check
          %p243 = pneg %p130
        $region26: #{tpu_custom_call.1} parent=11 // pred_check_branch
          %245 = sbr.rel (%p243) target = $region28
        $region27: #{tpu_custom_call.1} parent=11 // pred_region
          %s247 = ssub.s32 7680, 7680
          %248 = vsyncadd [#allocation6], %s247
          %s249 = sshll.u32 [#allocation5], 4
          %s250 = int_to_ptr.vmem [resolvable:$true] %s249
          %255 = dma.hbm_to_vmem [thread:$0]  %s4, 7680, %s250, [#allocation6], 1280, 1280, 80
        $region28: #{tpu_custom_call.1} parent=11 // pred_fallthru
          _
        // Predicated region
        $region29: #{tpu_custom_call.1} parent=11 // pred_check
          %p256 = pneg %p151
        $region30: #{tpu_custom_call.1} parent=11 // pred_check_branch
          %258 = sbr.rel (%p256) target = $region32
        $region31: #{tpu_custom_call.1} parent=11 // pred_region
          _
        $region32: #{tpu_custom_call.1} parent=11 // pred_fallthru
          _
        // Predicated region
        $region33: #{tpu_custom_call.1} parent=11 // pred_check
          %p259 = pneg %p172
        $region34: #{tpu_custom_call.1} parent=11 // pred_check_branch
          %261 = sbr.rel (%p259) target = $region36
        $region35: #{tpu_custom_call.1} parent=11 // pred_region
          _
        $region36: #{tpu_custom_call.1} parent=11 // pred_fallthru
          _
        // Predicated region
        $region37: #{tpu_custom_call.1} parent=11 // pred_check
          %p262 = pneg %p193
        $region38: #{tpu_custom_call.1} parent=11 // pred_check_branch
          %264 = sbr.rel (%p262) target = $region40
        $region39: #{tpu_custom_call.1} parent=11 // pred_region
          _
        $region40: #{tpu_custom_call.1} parent=11 // pred_fallthru
          _
      $region12: #{tpu_custom_call.1} parent=5 // pred_fallthru
        _
      %p265 = scmp.lt.s32.totalorder %s20, 2
      // Predicated region
      $region41: #{tpu_custom_call.1} parent=5 // pred_check
        %p266 = pneg %p265
      $region42: #{tpu_custom_call.1} parent=5 // pred_check_branch
        %268 = sbr.rel (%p266) target = $region44
      $region43: #{tpu_custom_call.1} parent=5 // pred_region
        // Predicated region
        $region45: #{tpu_custom_call.1} parent=43 // pred_check
          %p269 = pneg %p40
        $region46: #{tpu_custom_call.1} parent=43 // pred_check_branch
          %271 = sbr.rel (%p269) target = $region48
        $region47: #{tpu_custom_call.1} parent=43 // pred_region
          %p272 = scmp.lt.s32.totalorder %s20, 1
          %s273 = scalar_select %p272, %s20, 1
          %s274 = smul.addr %s273, 2
          %s275 = scalar_lea.vmem %s0, %s274
        $region48: #{tpu_custom_call.1} parent=43 // pred_fallthru
          _
      $region44: #{tpu_custom_call.1} parent=5 // pred_fallthru
        _
      %p276 = scmp.le.s32.totalorder 1, %s20
      %p277 = scmp.lt.s32.totalorder %s20, 3
      %p278 = pnand %p276, %p277
      %p279 = pneg %p278
      // Predicated region
      $region49: #{tpu_custom_call.1} parent=5 // pred_check
        _
      $region50: #{tpu_custom_call.1} parent=5 // pred_check_branch
        %281 = sbr.rel (%p278) target = $region52
      $region51: #{tpu_custom_call.1} parent=5 // pred_region
        %s282 = ssub.s32 %s20, 1
        // Predicated region
        $region53: #{tpu_custom_call.1} parent=51 // pred_check
          %p283 = pneg %p130
        $region54: #{tpu_custom_call.1} parent=51 // pred_check_branch
          %285 = sbr.rel (%p283) target = $region56
        $region55: #{tpu_custom_call.1} parent=51 // pred_region
          %286 = dma.done [#allocation6], 7680
        $region56: #{tpu_custom_call.1} parent=51 // pred_fallthru
          _
        %p287 = scmp.lt.s32.totalorder %s25, 1
        %s288 = scalar_select %p287, %s25, 1
        %s289 = smul.addr %s288, 2
        %s290 = scalar_lea.vmem %s0, %s289
        %p291 = pneg %p46
        %p292 = pneg %p43
        %p293 = pneg %p67
        %p294 = pneg %p64
        %p295 = pneg %p88
        %p296 = pneg %p85
        %p297 = pneg %p109
        %p298 = pneg %p106
        %p299 = pneg %p130
        %p300 = pneg %p127
        %p301 = pneg %p151
        %p302 = pneg %p148
        %p303 = pneg %p172
        %p304 = pneg %p169
        %p305 = pneg %p193
        %p306 = pneg %p190
        %p307 = pneg %p219
        %p308 = pneg %p216
        %s309 = sand.u32 %s206, 1
        %s310 = scalar_lea.sflag [#allocation7], %s309
        %s311 = sand.u32 %s206, 1
        %s312 = smul.addr %s311, 2
        %s313 = scalar_lea.vmem [#allocation8], %s312
        %p314 = scmp.lt.s32.totalorder %s25, 1
        %s315 = scalar_select %p314, %s25, 1
        %s316 = smul.addr %s315, 2
        %s317 = scalar_lea.vmem %s0, %s316
        %318 = vst [vmem:[#allocation2] sm:$0xff] 0.0
        %319 = vst [vmem:[#allocation2 + $0x8] sm:$0xff] 0.0
        %320 = vst [vmem:[#allocation2 + $0x10] sm:$0xff] 0.0
        %321 = vst [vmem:[#allocation2 + $0x18] sm:$0xff] 0.0
        %322 = vst [vmem:[#allocation2 + $0x20] sm:$0xff] 0.0
        %323 = vst [vmem:[#allocation2 + $0x28] sm:$0xff] 0.0
        %324 = vst [vmem:[#allocation2 + $0x30] sm:$0x1] 0.0
        %325 = vst [vmem:[#allocation2 + $0x38] sm:$0x1] 0.0
        %v326 = vld [vmem:[%s317] sm:$0x3]
        %v327 = vld [vmem:[%s1] ss:$8 sm:$0x3]
        %329 = vrot.lane.b32.xlu0 %v327, 94
        %v330 = vpop.permute.xlu0 %329
        %v331 = vrot.slane %v330, 1
        %vm332 = vcmask 769024
        %v333 = vsel %vm332, %v330, %v331
        %v335 = vmul.f32 %v326, %v333
        %337 = vrot.lane.b32.xlu0 %v335, 34
        %v338 = vpop.permute.xlu0 %337
        %v339 = vrot.slane %v338, 7
        %vm340 = vcmask 277504
        %v341 = vsel %vm340, %v339, %v338
        %v343 = vlaneseq
        %vm344 = vcmp.ge.s32.totalorder %v343, 34
        %vm345 = vcmp.lt.s32.totalorder %v343, 256
        %vm346 = vmand %vm344, %vm345
        %347 = vst.msk [vmem:[#allocation2] ss:$8 sm:$0x3] %vm346, %v341
        %348 = vst.msk [vmem:[#allocation2] ss:$8 sm:$0x0] %vm346, %v341
        %v349 = vld [vmem:[%s317] sm:$0x3]
        %s350 = scalar_lea.vmem %s1, 1
        %v351 = vld [vmem:[%s350] ss:$8 sm:$0x3]
        %353 = vrot.lane.b32.xlu0 %v351, 95
        %v354 = vpop.permute.xlu0 %353
        %v355 = vrot.slane %v354, 1
        %vm356 = vcmask 777216
        %v357 = vsel %vm356, %v354, %v355
        %v359 = vmul.f32 %v349, %v357
        %361 = vrot.lane.b32.xlu0 %v359, 33
        %v362 = vpop.permute.xlu0 %361
        %v363 = vrot.slane %v362, 7
        %vm364 = vcmask 269312
        %v365 = vsel %vm364, %v363, %v362
        %vm367 = vcmp.ge.s32.totalorder %v343, 33
        %vm368 = vmand %vm367, %vm345
        %s369 = scalar_lea.vmem [#allocation2], 1
        %370 = vst.msk [vmem:[%s369] ss:$8 sm:$0x3] %vm368, %v365
        %371 = vst.msk [vmem:[%s369] ss:$8 sm:$0x0] %vm368, %v365
        %v372 = vld [vmem:[%s317] sm:$0x3]
        %s373 = scalar_lea.vmem %s1, 2
        %v374 = vld [vmem:[%s373] ss:$8 sm:$0x3]
        %376 = vrot.lane.b32.xlu0 %v374, 96
        %v377 = vpop.permute.xlu0 %376
        %v378 = vrot.slane %v377, 1
        %vm379 = vcmask 785408
        %v380 = vsel %vm379, %v377, %v378
        %v382 = vmul.f32 %v372, %v380
        %384 = vrot.lane.b32.xlu0 %v382, 32
        %v385 = vpop.permute.xlu0 %384
        %v386 = vrot.slane %v385, 7
        %vm387 = vcmask 261120
        %v388 = vsel %vm387, %v386, %v385
        %vm390 = vcmp.ge.s32.totalorder %v343, 32
        %vm391 = vmand %vm390, %vm345
        %s392 = scalar_lea.vmem [#allocation2], 2
        %393 = vst.msk [vmem:[%s392] ss:$8 sm:$0x3] %vm391, %v388
        %394 = vst.msk [vmem:[%s392] ss:$8 sm:$0x0] %vm391, %v388
        %v395 = vld [vmem:[%s317] sm:$0x3]
        %s396 = scalar_lea.vmem %s1, 3
        %v397 = vld [vmem:[%s396] ss:$8 sm:$0x3]
        %399 = vrot.lane.b32.xlu0 %v397, 97
        %v400 = vpop.permute.xlu0 %399
        %v401 = vrot.slane %v400, 1
        %vm402 = vcmask 793600
        %v403 = vsel %vm402, %v400, %v401
        %v405 = vmul.f32 %v395, %v403
        %407 = vrot.lane.b32.xlu0 %v405, 31
        %v408 = vpop.permute.xlu0 %407
        %v409 = vrot.slane %v408, 7
        %vm410 = vcmask 252928
        %v411 = vsel %vm410, %v409, %v408
        %vm413 = vcmp.ge.s32.totalorder %v343, 31
        %vm414 = vmand %vm413, %vm345
        %s415 = scalar_lea.vmem [#allocation2], 3
        %416 = vst.msk [vmem:[%s415] ss:$8 sm:$0x3] %vm414, %v411
        %417 = vst.msk [vmem:[%s415] ss:$8 sm:$0x0] %vm414, %v411
        %v418 = vld [vmem:[%s317] sm:$0x3]
        %s419 = scalar_lea.vmem %s1, 4
        %v420 = vld [vmem:[%s419] ss:$8 sm:$0x3]
        %422 = vrot.lane.b32.xlu0 %v420, 98
        %v423 = vpop.permute.xlu0 %422
        %v424 = vrot.slane %v423, 1
        %vm425 = vcmask 801792
        %v426 = vsel %vm425, %v423, %v424
        %v428 = vmul.f32 %v418, %v426
        %430 = vrot.lane.b32.xlu0 %v428, 30
        %v431 = vpop.permute.xlu0 %430
        %v432 = vrot.slane %v431, 7
        %vm433 = vcmask 244736
        %v434 = vsel %vm433, %v432, %v431
        %vm436 = vcmp.ge.s32.totalorder %v343, 30
        %vm437 = vmand %vm436, %vm345
        %s438 = scalar_lea.vmem [#allocation2], 4
        %439 = vst.msk [vmem:[%s438] ss:$8 sm:$0x3] %vm437, %v434
        %440 = vst.msk [vmem:[%s438] ss:$8 sm:$0x0] %vm437, %v434
        %v441 = vld [vmem:[%s317] sm:$0x3]
        %s442 = scalar_lea.vmem %s1, 5
        %v443 = vld [vmem:[%s442] ss:$8 sm:$0x3]
        %445 = vrot.lane.b32.xlu0 %v443, 110
        %v446 = vpop.permute.xlu0 %445
        %v447 = vrot.slane %v446, 1
        %vm448 = vcmask 900096
        %v449 = vsel %vm448, %v446, %v447
        %v451 = vmul.f32 %v441, %v449
        %453 = vrot.lane.b32.xlu0 %v451, 18
        %v454 = vpop.permute.xlu0 %453
        %v455 = vrot.slane %v454, 7
        %vm456 = vcmask 146432
        %v457 = vsel %vm456, %v455, %v454
        %vm459 = vcmp.ge.s32.totalorder %v343, 18
        %vm460 = vmand %vm459, %vm345
        %s461 = scalar_lea.vmem [#allocation2], 5
        %462 = vst.msk [vmem:[%s461] ss:$8 sm:$0x3] %vm460, %v457
        %463 = vst.msk [vmem:[%s461] ss:$8 sm:$0x0] %vm460, %v457
        %v464 = vld [vmem:[%s317] sm:$0x3]
        %s465 = scalar_lea.vmem %s1, 6
        %v466 = vld [vmem:[%s465] ss:$8 sm:$0x3]
        %468 = vrot.lane.b32.xlu0 %v466, 111
        %v469 = vpop.permute.xlu0 %468
        %v470 = vrot.slane %v469, 1
        %vm471 = vcmask 908288
        %v472 = vsel %vm471, %v469, %v470
        %v474 = vmul.f32 %v464, %v472
        %476 = vrot.lane.b32.xlu0 %v474, 17
        %v477 = vpop.permute.xlu0 %476
        %v478 = vrot.slane %v477, 7
        %vm479 = vcmask 138240
        %v480 = vsel %vm479, %v478, %v477
        %vm482 = vcmp.ge.s32.totalorder %v343, 17
        %vm483 = vmand %vm482, %vm345
        %s484 = scalar_lea.vmem [#allocation2], 6
        %485 = vst.msk [vmem:[%s484] ss:$8 sm:$0x3] %vm483, %v480
        %486 = vst.msk [vmem:[%s484] ss:$8 sm:$0x0] %vm483, %v480
        %v487 = vld [vmem:[%s317] sm:$0x3]
        %s488 = scalar_lea.vmem %s1, 7
        %v489 = vld [vmem:[%s488] ss:$8 sm:$0x3]
        %491 = vrot.lane.b32.xlu0 %v489, 112
        %v492 = vpop.permute.xlu0 %491
        %v493 = vrot.slane %v492, 1
        %vm494 = vcmask 916480
        %v495 = vsel %vm494, %v492, %v493
        %v497 = vmul.f32 %v487, %v495
        %499 = vrot.lane.b32.xlu0 %v497, 16
        %v500 = vpop.permute.xlu0 %499
        %v501 = vrot.slane %v500, 7
        %vm502 = vcmask 130048
        %v503 = vsel %vm502, %v501, %v500
        %vm505 = vcmp.ge.s32.totalorder %v343, 16
        %vm506 = vmand %vm505, %vm345
        %s507 = scalar_lea.vmem [#allocation2], 7
        %508 = vst.msk [vmem:[%s507] ss:$8 sm:$0x3] %vm506, %v503
        %509 = vst.msk [vmem:[%s507] ss:$8 sm:$0x0] %vm506, %v503
        %v510 = vld [vmem:[%s317] sm:$0x3]
        %s511 = scalar_lea.vmem %s1, 16
        %v512 = vld [vmem:[%s511] ss:$8 sm:$0x3]
        %514 = vrot.lane.b32.xlu0 %v512, 113
        %v515 = vpop.permute.xlu0 %514
        %v516 = vrot.slane %v515, 1
        %vm517 = vcmask 924672
        %v518 = vsel %vm517, %v515, %v516
        %v520 = vmul.f32 %v510, %v518
        %522 = vrot.lane.b32.xlu0 %v520, 15
        %v523 = vpop.permute.xlu0 %522
        %v524 = vrot.slane %v523, 7
        %vm525 = vcmask 121856
        %v526 = vsel %vm525, %v524, %v523
        %vm528 = vcmp.ge.s32.totalorder %v343, 15
        %vm529 = vmand %vm528, %vm345
        %s530 = scalar_lea.vmem [#allocation2], 16
        %531 = vst.msk [vmem:[%s530] ss:$8 sm:$0x3] %vm529, %v526
        %532 = vst.msk [vmem:[%s530] ss:$8 sm:$0x0] %vm529, %v526
        %v533 = vld [vmem:[%s317] sm:$0x3]
        %s534 = scalar_lea.vmem %s1, 17
        %v535 = vld [vmem:[%s534] ss:$8 sm:$0x3]
        %537 = vrot.lane.b32.xlu0 %v535, 114
        %v538 = vpop.permute.xlu0 %537
        %v539 = vrot.slane %v538, 1
        %vm540 = vcmask 932864
        %v541 = vsel %vm540, %v538, %v539
        %v543 = vmul.f32 %v533, %v541
        %545 = vrot.lane.b32.xlu0 %v543, 14
        %v546 = vpop.permute.xlu0 %545
        %v547 = vrot.slane %v546, 7
        %vm548 = vcmask 113664
        %v549 = vsel %vm548, %v547, %v546
        %vm551 = vcmp.ge.s32.totalorder %v343, 14
        %vm552 = vmand %vm551, %vm345
        %s553 = scalar_lea.vmem [#allocation2], 17
        %554 = vst.msk [vmem:[%s553] ss:$8 sm:$0x3] %vm552, %v549
        %555 = vst.msk [vmem:[%s553] ss:$8 sm:$0x0] %vm552, %v549
        %v556 = vld [vmem:[%s317] sm:$0x3]
        %s557 = scalar_lea.vmem %s1, 18
        %v558 = vld [vmem:[%s557] ss:$8 sm:$0x3]
        %560 = vrot.lane.b32.xlu0 %v558, 126
        %v561 = vpop.permute.xlu0 %560
        %v562 = vrot.slane %v561, 1
        %vm563 = vcmask 1031168
        %v564 = vsel %vm563, %v561, %v562
        %v566 = vmul.f32 %v556, %v564
        %568 = vrot.lane.b32.xlu0 %v566, 2
        %v569 = vpop.permute.xlu0 %568
        %v570 = vrot.slane %v569, 7
        %vm571 = vcmask 15360
        %v572 = vsel %vm571, %v570, %v569
        %vm574 = vcmp.ge.s32.totalorder %v343, 2
        %vm575 = vmand %vm574, %vm345
        %s576 = scalar_lea.vmem [#allocation2], 18
        %577 = vst.msk [vmem:[%s576] ss:$8 sm:$0x3] %vm575, %v572
        %578 = vst.msk [vmem:[%s576] ss:$8 sm:$0x0] %vm575, %v572
        %v579 = vld [vmem:[%s317] sm:$0x3]
        %s580 = scalar_lea.vmem %s1, 19
        %v581 = vld [vmem:[%s580] ss:$8 sm:$0x3]
        %583 = vrot.lane.b32.xlu0 %v581, 127
        %v584 = vpop.permute.xlu0 %583
        %v585 = vrot.slane %v584, 1
        %vm586 = vcmask 1039360
        %v587 = vsel %vm586, %v584, %v585
        %v589 = vmul.f32 %v579, %v587
        %591 = vrot.lane.b32.xlu0 %v589, 1
        %v592 = vpop.permute.xlu0 %591
        %v593 = vrot.slane %v592, 7
        %vm594 = vcmask 7168
        %v595 = vsel %vm594, %v593, %v592
        %vm597 = vcmp.ge.s32.totalorder %v343, 1
        %vm598 = vmand %vm597, %vm345
        %s599 = scalar_lea.vmem [#allocation2], 19
        %600 = vst.msk [vmem:[%s599] ss:$8 sm:$0x3] %vm598, %v595
        %601 = vst.msk [vmem:[%s599] ss:$8 sm:$0x0] %vm598, %v595
        %v602 = vld [vmem:[%s317] sm:$0x3]
        %s603 = scalar_lea.vmem %s1, 20
        %v604 = vld [vmem:[%s603] ss:$8 sm:$0x3]
        %v605 = vmul.f32 %v602, %v604
        %vm606 = vcmp.ge.s32.totalorder %v343, 0
        %vm607 = vmand %vm606, %vm345
        %s608 = scalar_lea.vmem [#allocation2], 20
        %609 = vst.msk [vmem:[%s608] ss:$8 sm:$0x3] %vm607, %v605
        %610 = vst.msk [vmem:[%s608] ss:$8 sm:$0x0] %vm607, %v605
        %v611 = vld [vmem:[%s317] sm:$0x3]
        %s612 = scalar_lea.vmem %s1, 21
        %v613 = vld [vmem:[%s612] ss:$8 sm:$0x3]
        %615 = vrot.lane.b32.xlu0 %v613, 1
        %v616 = vpop.permute.xlu0 %615
        %v617 = vrot.slane %v616, 7
        %v618 = vsel %vm594, %v617, %v616
        %v620 = vmul.f32 %v611, %v618
        %622 = vrot.lane.b32.xlu0 %v620, 127
        %v623 = vpop.permute.xlu0 %622
        %v624 = vrot.slane %v623, 1
        %v625 = vsel %vm586, %v623, %v624
        %vm627 = vcmp.lt.s32.totalorder %v343, 255
        %vm628 = vmand %vm606, %vm627
        %s629 = scalar_lea.vmem [#allocation2], 21
        %630 = vst.msk [vmem:[%s629] ss:$8 sm:$0x3] %vm628, %v625
        %631 = vst.msk [vmem:[%s629] ss:$8 sm:$0x0] %vm628, %v625
        %v632 = vld [vmem:[%s317] sm:$0x3]
        %s633 = scalar_lea.vmem %s1, 22
        %v634 = vld [vmem:[%s633] ss:$8 sm:$0x3]
        %636 = vrot.lane.b32.xlu0 %v634, 2
        %v637 = vpop.permute.xlu0 %636
        %v638 = vrot.slane %v637, 7
        %v639 = vsel %vm571, %v638, %v637
        %v641 = vmul.f32 %v632, %v639
        %643 = vrot.lane.b32.xlu0 %v641, 126
        %v644 = vpop.permute.xlu0 %643
        %v645 = vrot.slane %v644, 1
        %v646 = vsel %vm563, %v644, %v645
        %vm648 = vcmp.lt.s32.totalorder %v343, 254
        %vm649 = vmand %vm606, %vm648
        %s650 = scalar_lea.vmem [#allocation2], 22
        %651 = vst.msk [vmem:[%s650] ss:$8 sm:$0x3] %vm649, %v646
        %652 = vst.msk [vmem:[%s650] ss:$8 sm:$0x0] %vm649, %v646
        %v653 = vld [vmem:[%s317] sm:$0x3]
        %s654 = scalar_lea.vmem %s1, 23
        %v655 = vld [vmem:[%s654] ss:$8 sm:$0x3]
        %657 = vrot.lane.b32.xlu0 %v655, 14
        %v658 = vpop.permute.xlu0 %657
        %v659 = vrot.slane %v658, 7
        %v660 = vsel %vm548, %v659, %v658
        %v662 = vmul.f32 %v653, %v660
        %664 = vrot.lane.b32.xlu0 %v662, 114
        %v665 = vpop.permute.xlu0 %664
        %v666 = vrot.slane %v665, 1
        %v667 = vsel %vm540, %v665, %v666
        %vm669 = vcmp.lt.s32.totalorder %v343, 242
        %vm670 = vmand %vm606, %vm669
        %s671 = scalar_lea.vmem [#allocation2], 23
        %672 = vst.msk [vmem:[%s671] ss:$8 sm:$0x3] %vm670, %v667
        %673 = vst.msk [vmem:[%s671] ss:$8 sm:$0x0] %vm670, %v667
        %v674 = vld [vmem:[%s317] sm:$0x3]
        %s675 = scalar_lea.vmem %s1, 32
        %v676 = vld [vmem:[%s675] ss:$8 sm:$0x3]
        %678 = vrot.lane.b32.xlu0 %v676, 15
        %v679 = vpop.permute.xlu0 %678
        %v680 = vrot.slane %v679, 7
        %v681 = vsel %vm525, %v680, %v679
        %v683 = vmul.f32 %v674, %v681
        %685 = vrot.lane.b32.xlu0 %v683, 113
        %v686 = vpop.permute.xlu0 %685
        %v687 = vrot.slane %v686, 1
        %v688 = vsel %vm517, %v686, %v687
        %vm690 = vcmp.lt.s32.totalorder %v343, 241
        %vm691 = vmand %vm606, %vm690
        %s692 = scalar_lea.vmem [#allocation2], 32
        %693 = vst.msk [vmem:[%s692] ss:$8 sm:$0x3] %vm691, %v688
        %694 = vst.msk [vmem:[%s692] ss:$8 sm:$0x0] %vm691, %v688
        %v695 = vld [vmem:[%s317] sm:$0x3]
        %s696 = scalar_lea.vmem %s1, 33
        %v697 = vld [vmem:[%s696] ss:$8 sm:$0x3]
        %699 = vrot.lane.b32.xlu0 %v697, 16
        %v700 = vpop.permute.xlu0 %699
        %v701 = vrot.slane %v700, 7
        %v702 = vsel %vm502, %v701, %v700
        %v704 = vmul.f32 %v695, %v702
        %706 = vrot.lane.b32.xlu0 %v704, 112
        %v707 = vpop.permute.xlu0 %706
        %v708 = vrot.slane %v707, 1
        %v709 = vsel %vm494, %v707, %v708
        %vm711 = vcmp.lt.s32.totalorder %v343, 240
        %vm712 = vmand %vm606, %vm711
        %s713 = scalar_lea.vmem [#allocation2], 33
        %714 = vst.msk [vmem:[%s713] ss:$8 sm:$0x3] %vm712, %v709
        %715 = vst.msk [vmem:[%s713] ss:$8 sm:$0x0] %vm712, %v709
        %v716 = vld [vmem:[%s317] sm:$0x3]
        %s717 = scalar_lea.vmem %s1, 34
        %v718 = vld [vmem:[%s717] ss:$8 sm:$0x3]
        %720 = vrot.lane.b32.xlu0 %v718, 17
        %v721 = vpop.permute.xlu0 %720
        %v722 = vrot.slane %v721, 7
        %v723 = vsel %vm479, %v722, %v721
        %v725 = vmul.f32 %v716, %v723
        %727 = vrot.lane.b32.xlu0 %v725, 111
        %v728 = vpop.permute.xlu0 %727
        %v729 = vrot.slane %v728, 1
        %v730 = vsel %vm471, %v728, %v729
        %vm732 = vcmp.lt.s32.totalorder %v343, 239
        %vm733 = vmand %vm606, %vm732
        %s734 = scalar_lea.vmem [#allocation2], 34
        %735 = vst.msk [vmem:[%s734] ss:$8 sm:$0x3] %vm733, %v730
        %736 = vst.msk [vmem:[%s734] ss:$8 sm:$0x0] %vm733, %v730
        %v737 = vld [vmem:[%s317] sm:$0x3]
        %s738 = scalar_lea.vmem %s1, 35
        %v739 = vld [vmem:[%s738] ss:$8 sm:$0x3]
        %741 = vrot.lane.b32.xlu0 %v739, 18
        %v742 = vpop.permute.xlu0 %741
        %v743 = vrot.slane %v742, 7
        %v744 = vsel %vm456, %v743, %v742
        %v746 = vmul.f32 %v737, %v744
        %748 = vrot.lane.b32.xlu0 %v746, 110
        %v749 = vpop.permute.xlu0 %748
        %v750 = vrot.slane %v749, 1
        %v751 = vsel %vm448, %v749, %v750
        %vm753 = vcmp.lt.s32.totalorder %v343, 238
        %vm754 = vmand %vm606, %vm753
        %s755 = scalar_lea.vmem [#allocation2], 35
        %756 = vst.msk [vmem:[%s755] ss:$8 sm:$0x3] %vm754, %v751
        %757 = vst.msk [vmem:[%s755] ss:$8 sm:$0x0] %vm754, %v751
        %v758 = vld [vmem:[%s317] sm:$0x3]
        %s759 = scalar_lea.vmem %s1, 36
        %v760 = vld [vmem:[%s759] ss:$8 sm:$0x3]
        %762 = vrot.lane.b32.xlu0 %v760, 30
        %v763 = vpop.permute.xlu0 %762
        %v764 = vrot.slane %v763, 7
        %v765 = vsel %vm433, %v764, %v763
        %v767 = vmul.f32 %v758, %v765
        %769 = vrot.lane.b32.xlu0 %v767, 98
        %v770 = vpop.permute.xlu0 %769
        %v771 = vrot.slane %v770, 1
        %v772 = vsel %vm425, %v770, %v771
        %vm774 = vcmp.lt.s32.totalorder %v343, 226
        %vm775 = vmand %vm606, %vm774
        %s776 = scalar_lea.vmem [#allocation2], 36
        %777 = vst.msk [vmem:[%s776] ss:$8 sm:$0x3] %vm775, %v772
        %778 = vst.msk [vmem:[%s776] ss:$8 sm:$0x0] %vm775, %v772
        %v779 = vld [vmem:[%s317] sm:$0x3]
        %s780 = scalar_lea.vmem %s1, 37
        %v781 = vld [vmem:[%s780] ss:$8 sm:$0x3]
        %783 = vrot.lane.b32.xlu0 %v781, 31
        %v784 = vpop.permute.xlu0 %783
        %v785 = vrot.slane %v784, 7
        %v786 = vsel %vm410, %v785, %v784
        %v788 = vmul.f32 %v779, %v786
        %790 = vrot.lane.b32.xlu0 %v788, 97
        %v791 = vpop.permute.xlu0 %790
        %v792 = vrot.slane %v791, 1
        %v793 = vsel %vm402, %v791, %v792
        %vm795 = vcmp.lt.s32.totalorder %v343, 225
        %vm796 = vmand %vm606, %vm795
        %s797 = scalar_lea.vmem [#allocation2], 37
        %798 = vst.msk [vmem:[%s797] ss:$8 sm:$0x3] %vm796, %v793
        %799 = vst.msk [vmem:[%s797] ss:$8 sm:$0x0] %vm796, %v793
        %v800 = vld [vmem:[%s317] sm:$0x3]
        %s801 = scalar_lea.vmem %s1, 38
        %v802 = vld [vmem:[%s801] ss:$8 sm:$0x3]
        %804 = vrot.lane.b32.xlu0 %v802, 32
        %v805 = vpop.permute.xlu0 %804
        %v806 = vrot.slane %v805, 7
        %v807 = vsel %vm387, %v806, %v805
        %v809 = vmul.f32 %v800, %v807
        %811 = vrot.lane.b32.xlu0 %v809, 96
        %v812 = vpop.permute.xlu0 %811
        %v813 = vrot.slane %v812, 1
        %v814 = vsel %vm379, %v812, %v813
        %vm816 = vcmp.lt.s32.totalorder %v343, 224
        %vm817 = vmand %vm606, %vm816
        %s818 = scalar_lea.vmem [#allocation2], 38
        %819 = vst.msk [vmem:[%s818] ss:$8 sm:$0x3] %vm817, %v814
        %820 = vst.msk [vmem:[%s818] ss:$8 sm:$0x0] %vm817, %v814
        %v821 = vld [vmem:[%s317] sm:$0x3]
        %s822 = scalar_lea.vmem %s1, 39
        %v823 = vld [vmem:[%s822] ss:$8 sm:$0x3]
        %825 = vrot.lane.b32.xlu0 %v823, 33
        %v826 = vpop.permute.xlu0 %825
        %v827 = vrot.slane %v826, 7
        %v828 = vsel %vm364, %v827, %v826
        %v830 = vmul.f32 %v821, %v828
        %832 = vrot.lane.b32.xlu0 %v830, 95
        %v833 = vpop.permute.xlu0 %832
        %v834 = vrot.slane %v833, 1
        %v835 = vsel %vm356, %v833, %v834
        %vm837 = vcmp.lt.s32.totalorder %v343, 223
        %vm838 = vmand %vm606, %vm837
        %s839 = scalar_lea.vmem [#allocation2], 39
        %840 = vst.msk [vmem:[%s839] ss:$8 sm:$0x3] %vm838, %v835
        %841 = vst.msk [vmem:[%s839] ss:$8 sm:$0x0] %vm838, %v835
        %v842 = vld [vmem:[%s317] sm:$0x3]
        %s843 = scalar_lea.vmem %s1, 48
        %v844 = vld [vmem:[%s843] ss:$8 sm:$0x3]
        %846 = vrot.lane.b32.xlu0 %v844, 34
        %v847 = vpop.permute.xlu0 %846
        %v848 = vrot.slane %v847, 7
        %v849 = vsel %vm340, %v848, %v847
        %v851 = vmul.f32 %v842, %v849
        %853 = vrot.lane.b32.xlu0 %v851, 94
        %v854 = vpop.permute.xlu0 %853
        %v855 = vrot.slane %v854, 1
        %v856 = vsel %vm332, %v854, %v855
        %vm858 = vcmp.lt.s32.totalorder %v343, 222
        %vm859 = vmand %vm606, %vm858
        %s860 = scalar_lea.vmem [#allocation2], 48
        %861 = vst.msk [vmem:[%s860] ss:$8 sm:$0x3] %vm859, %v856
        %862 = vst.msk [vmem:[%s860] ss:$8 sm:$0x0] %vm859, %v856
        %v863 = vld [vmem:[%s2] sm:$0xff]
        %v864 = vld [vmem:[%s2 + $0x8] sm:$0xff]
        %v865 = vld [vmem:[%s2 + $0x10] sm:$0xff]
        %v866 = vld [vmem:[%s2 + $0x18] sm:$0xff]
        %v867 = vld [vmem:[%s2 + $0x20] sm:$0xff]
        %v868 = vld [vmem:[%s2 + $0x28] sm:$0xff]
        %v869 = vld [vmem:[#allocation2] sm:$0xff]
        %v870 = vld [vmem:[#allocation2 + $0x8] sm:$0xff]
        %v871 = vld [vmem:[#allocation2 + $0x10] sm:$0xff]
        %v872 = vld [vmem:[#allocation2 + $0x18] sm:$0xff]
        %v873 = vld [vmem:[#allocation2 + $0x20] sm:$0xff]
        %v874 = vld [vmem:[#allocation2 + $0x28] sm:$0xff]
        %v875 = vld [vmem:[#allocation2 + $0x30] sm:$0x1]
        %v876 = vld [vmem:[#allocation2 + $0x38] sm:$0x1]
        %v877 = vld [vmem:[%s3] sm:$0xff]
        %v878 = vld [vmem:[%s3 + $0x8] sm:$0xff]
        %v879 = vld [vmem:[%s3 + $0x10] sm:$0xff]
        %v880 = vld [vmem:[%s3 + $0x18] sm:$0xff]
        %v881 = vld [vmem:[%s3 + $0x20] sm:$0xff]
        %v882 = vld [vmem:[%s3 + $0x28] sm:$0xff]
        %884 = vset.pattern.permute.xlu0 0
        %885 = vperm.xlu0 %884, %v877
        %v886 = vpop.permute.xlu0 %885
        %889 = vset.pattern.permute.xlu0 0
        %890 = vperm.xlu0 %889, %v878
        %v891 = vpop.permute.xlu0 %890
        %894 = vset.pattern.permute.xlu0 0
        %895 = vperm.xlu0 %894, %v879
        %v896 = vpop.permute.xlu0 %895
        %899 = vset.pattern.permute.xlu0 0
        %900 = vperm.xlu0 %899, %v880
        %v901 = vpop.permute.xlu0 %900
        %904 = vset.pattern.permute.xlu0 0
        %905 = vperm.xlu0 %904, %v881
        %v906 = vpop.permute.xlu0 %905
        %909 = vset.pattern.permute.xlu0 0
        %910 = vperm.xlu0 %909, %v882
        %v911 = vpop.permute.xlu0 %910
        %vm913 = vcmask 203776
        %v915 = vsel %vm913, %v863, 0
        %v918 = vsel %vm913, %v864, 0
        %v921 = vsel %vm913, %v865, 0
        %v924 = vsel %vm913, %v866, 0
        %v927 = vsel %vm913, %v867, 0
        %v930 = vsel %vm913, %v868, 0
        %vm932 = vcmask 1040384
        %v934 = vsel %vm932, %v875, 0
        %v937 = vsel %vm932, %v876, 0
        %939 = vmatprep.subr.mxu0 0.0
        %940 = vmatpush1.msra.mxu0 0.0
        %941 = vmatprep.subr.mxu0 0.0
        %942 = vmatpush1.msra.mxu0 0.0
        %943 = vmatprep.subr.mxu0 0.0
        %944 = vmatpush1.msra.mxu0 0.0
        %945 = vmatprep.subr.mxu0 0.0
        %946 = vmatpush1.msra.mxu0 0.0
        %947 = vmatprep.subr.mxu0 0.0
        %948 = vmatpush1.msra.mxu0 0.0
        %949 = vmatprep.subr.mxu0 0.0
        %950 = vmatpush1.msra.mxu0 0.0
        %951 = vmatprep.subr.mxu0 0.0
        %952 = vmatpush1.msra.mxu0 0.0
        %953 = vmatprep.subr.mxu0 0.0
        %954 = vmatpush1.msra.mxu0 0.0
        %955 = vmatprep.subr.mxu0 0.0
        %956 = vmatpush1.msra.mxu0 0.0
        %957 = vmatprep.subr.mxu0 0.0
        %958 = vmatpush1.msra.mxu0 0.0
        %959 = vmatprep.subr.mxu0 0.0
        %960 = vmatpush1.msra.mxu0 0.0
        %961 = vmatprep.subr.mxu0 0.0
        %962 = vmatpush1.msra.mxu0 0.0
        %963 = vmatprep.subr.mxu0 %v937
        %964 = vmatpush1.msra.mxu0 %v934
        %965 = vmatprep.subr.mxu0 %v874
        %966 = vmatpush1.msra.mxu0 %v873
        %967 = vmatprep.subr.mxu0 %v872
        %968 = vmatpush1.msra.mxu0 %v871
        %969 = vmatprep.subr.mxu0 %v870
        %970 = vmatpush1.msra.mxu0 %v869
        %971 = vmatprep.subr.mxu0 0.0
        %972 = vmatpush2.msra.mxu0 0.0
        %973 = vmatprep.subr.mxu0 0.0
        %974 = vmatpush2.msra.mxu0 0.0
        %975 = vmatprep.subr.mxu0 0.0
        %976 = vmatpush2.msra.mxu0 0.0
        %977 = vmatprep.subr.mxu0 0.0
        %978 = vmatpush2.msra.mxu0 0.0
        %979 = vmatprep.subr.mxu0 0.0
        %980 = vmatpush2.msra.mxu0 0.0
        %981 = vmatprep.subr.mxu0 0.0
        %982 = vmatpush2.msra.mxu0 0.0
        %983 = vmatprep.subr.mxu0 0.0
        %984 = vmatpush2.msra.mxu0 0.0
        %985 = vmatprep.subr.mxu0 0.0
        %986 = vmatpush2.msra.mxu0 0.0
        %987 = vmatprep.subr.mxu0 0.0
        %988 = vmatpush2.msra.mxu0 0.0
        %989 = vmatprep.subr.mxu0 0.0
        %990 = vmatpush2.msra.mxu0 0.0
        %991 = vmatprep.subr.mxu0 0.0
        %992 = vmatpush2.msra.mxu0 0.0
        %993 = vmatprep.subr.mxu0 0.0
        %994 = vmatpush2.msra.mxu0 0.0
        %995 = vmatprep.subr.mxu0 0.0
        %996 = vmatpush2.msra.mxu0 0.0
        %997 = vmatprep.subr.mxu0 0.0
        %998 = vmatpush2.msra.mxu0 0.0
        %999 = vmatprep.subr.mxu0 0.0
        %1000 = vmatpush2.msra.mxu0 0.0
        %1001 = vmatprep.subr.mxu0 0.0
        %1002 = vmatpush2.msra.mxu0 0.0
        %1003 = vmatprep.mubr.f32.mxu0 0.0
        %1004 = vmatmul.mubr.f32.gmra.mxu0 %v915
        %v1005 = vpop.f32.mrf.mxu0
        %v1006 = vadd.f32 %v886, %v1005
        %v1007 = vpop.f32.mrf.mxu0
        %v1008 = vadd.f32 %v886, %v1007
        %1009 = vmatprep.mubr.f32.mxu0 0.0
        %1010 = vmatmul.mubr.f32.gmra.mxu0 %v918
        %v1011 = vpop.f32.mrf.mxu0
        %v1012 = vadd.f32 %v891, %v1011
        %v1013 = vpop.f32.mrf.mxu0
        %v1014 = vadd.f32 %v891, %v1013
        %1015 = vmatprep.mubr.f32.mxu0 0.0
        %1016 = vmatmul.mubr.f32.gmra.mxu0 %v921
        %v1017 = vpop.f32.mrf.mxu0
        %v1018 = vadd.f32 %v896, %v1017
        %v1019 = vpop.f32.mrf.mxu0
        %v1020 = vadd.f32 %v896, %v1019
        %1021 = vmatprep.mubr.f32.mxu0 0.0
        %1022 = vmatmul.mubr.f32.gmra.mxu0 %v924
        %v1023 = vpop.f32.mrf.mxu0
        %v1024 = vadd.f32 %v901, %v1023
        %v1025 = vpop.f32.mrf.mxu0
        %v1026 = vadd.f32 %v901, %v1025
        %1027 = vmatprep.mubr.f32.mxu0 0.0
        %1028 = vmatmul.mubr.f32.gmra.mxu0 %v927
        %v1029 = vpop.f32.mrf.mxu0
        %v1030 = vadd.f32 %v906, %v1029
        %v1031 = vpop.f32.mrf.mxu0
        %v1032 = vadd.f32 %v906, %v1031
        %1033 = vmatprep.mubr.f32.mxu0 0.0
        %1034 = vmatmul.mubr.f32.gmra.mxu0 %v930
        %v1035 = vpop.f32.mrf.mxu0
        %v1036 = vadd.f32 %v911, %v1035
        %v1037 = vpop.f32.mrf.mxu0
        %v1038 = vadd.f32 %v911, %v1037
        %1039 = vdwg.mxu0
        %v1040 = vmax.f32 %v1006, 0.0
        %v1041 = vmax.f32 %v1008, 0.0
        %v1042 = vmax.f32 %v1012, 0.0
        %v1043 = vmax.f32 %v1014, 0.0
        %v1044 = vmax.f32 %v1018, 0.0
        %v1045 = vmax.f32 %v1020, 0.0
        %v1046 = vmax.f32 %v1024, 0.0
        %v1047 = vmax.f32 %v1026, 0.0
        %v1048 = vmax.f32 %v1030, 0.0
        %v1049 = vmax.f32 %v1032, 0.0
        %v1050 = vmax.f32 %v1036, 0.0
        %v1051 = vmax.f32 %v1038, 0.0
        %1052 = vst [vmem:[#allocation3] sm:$0xff] %v1040
        %1053 = vst [vmem:[#allocation3 + $0x8] sm:$0xff] %v1041
        %1054 = vst [vmem:[#allocation3 + $0x10] sm:$0xff] %v1042
        %1055 = vst [vmem:[#allocation3 + $0x18] sm:$0xff] %v1043
        %1056 = vst [vmem:[#allocation3 + $0x20] sm:$0xff] %v1044
        %1057 = vst [vmem:[#allocation3 + $0x28] sm:$0xff] %v1045
        %1058 = vst [vmem:[#allocation3 + $0x30] sm:$0xff] %v1046
        %1059 = vst [vmem:[#allocation3 + $0x38] sm:$0xff] %v1047
        %1060 = vst [vmem:[#allocation3 + $0x40] sm:$0xff] %v1048
        %1061 = vst [vmem:[#allocation3 + $0x48] sm:$0xff] %v1049
        %1062 = vst [vmem:[#allocation3 + $0x50] sm:$0xff] %v1050
        %1063 = vst [vmem:[#allocation3 + $0x58] sm:$0xff] %v1051
        %1064 = vst [vmem:[#allocation2] sm:$0xff] 0.0
        %1065 = vst [vmem:[#allocation2 + $0x8] sm:$0xff] 0.0
        %1066 = vst [vmem:[#allocation2 + $0x10] sm:$0xff] 0.0
        %1067 = vst [vmem:[#allocation2 + $0x18] sm:$0xff] 0.0
        %1068 = vst [vmem:[#allocation2 + $0x20] sm:$0xff] 0.0
        %1069 = vst [vmem:[#allocation2 + $0x28] sm:$0xff] 0.0
        %1070 = vst [vmem:[#allocation2 + $0x30] sm:$0xff] 0.0
        %1071 = vst [vmem:[#allocation2 + $0x38] sm:$0xff] 0.0
        %1072 = vst [vmem:[#allocation2 + $0x40] sm:$0xff] 0.0
        %1073 = vst [vmem:[#allocation2 + $0x48] sm:$0xff] 0.0
        %1074 = vst [vmem:[#allocation2 + $0x50] sm:$0xff] 0.0
        %1075 = vst [vmem:[#allocation2 + $0x58] sm:$0xff] 0.0
        %1076 = vst [vmem:[#allocation2 + $0x60] sm:$0xff] 0.0
        %1077 = vst [vmem:[#allocation2 + $0x68] sm:$0xff] 0.0
        %1078 = vst [vmem:[#allocation2 + $0x70] sm:$0xff] 0.0
        %1079 = vst [vmem:[#allocation2 + $0x78] sm:$0xff] 0.0
        %1080 = vst [vmem:[#allocation2 + $0x80] sm:$0xff] 0.0
        %1081 = vst [vmem:[#allocation2 + $0x88] sm:$0xff] 0.0
        %1082 = vst [vmem:[#allocation2 + $0x90] sm:$0xff] 0.0
        %1083 = vst [vmem:[#allocation2 + $0x98] sm:$0xff] 0.0
        %1084 = vst [vmem:[#allocation2 + $0xa0] sm:$0xff] 0.0
        %1085 = vst [vmem:[#allocation2 + $0xa8] sm:$0xff] 0.0
        %1086 = vst [vmem:[#allocation2 + $0xb0] sm:$0xff] 0.0
        %1087 = vst [vmem:[#allocation2 + $0xb8] sm:$0xff] 0.0
        %1088 = vst [vmem:[#allocation2 + $0xc0] sm:$0xff] 0.0
        %1089 = vst [vmem:[#allocation2 + $0xc8] sm:$0xff] 0.0
        %1090 = vst [vmem:[#allocation2 + $0xd0] sm:$0xff] 0.0
        %1091 = vst [vmem:[#allocation2 + $0xd8] sm:$0xff] 0.0
        %1092 = vst [vmem:[#allocation2 + $0xe0] sm:$0xff] 0.0
        %1093 = vst [vmem:[#allocation2 + $0xe8] sm:$0xff] 0.0
        %1094 = vst [vmem:[#allocation2 + $0xf0] sm:$0xff] 0.0
        %1095 = vst [vmem:[#allocation2 + $0xf8] sm:$0xff] 0.0
        %1096 = vst [vmem:[#allocation2 + $0x100] sm:$0xff] 0.0
        %1097 = vst [vmem:[#allocation2 + $0x108] sm:$0xff] 0.0
        %1098 = vst [vmem:[#allocation2 + $0x110] sm:$0xff] 0.0
        %1099 = vst [vmem:[#allocation2 + $0x118] sm:$0xff] 0.0
        %1100 = vst [vmem:[#allocation2 + $0x120] sm:$0xff] 0.0
        %1101 = vst [vmem:[#allocation2 + $0x128] sm:$0xff] 0.0
        %1102 = vst [vmem:[#allocation2 + $0x130] sm:$0xff] 0.0
        %1103 = vst [vmem:[#allocation2 + $0x138] sm:$0xff] 0.0
        %1104 = vst [vmem:[#allocation2 + $0x140] sm:$0xff] 0.0
        %1105 = vst [vmem:[#allocation2 + $0x148] sm:$0xff] 0.0
        %1106 = vst [vmem:[#allocation2 + $0x150] sm:$0xff] 0.0
        %1107 = vst [vmem:[#allocation2 + $0x158] sm:$0xff] 0.0
        %1108 = vst [vmem:[#allocation2 + $0x160] sm:$0xff] 0.0
        %1109 = vst [vmem:[#allocation2 + $0x168] sm:$0xff] 0.0
        %1110 = vst [vmem:[#allocation2 + $0x170] sm:$0xff] 0.0
        %1111 = vst [vmem:[#allocation2 + $0x178] sm:$0xff] 0.0
        %1112 = vst [vmem:[#allocation2 + $0x180] sm:$0xff] 0.0
        %1113 = vst [vmem:[#allocation2 + $0x188] sm:$0xff] 0.0
        %1114 = vst [vmem:[#allocation2 + $0x190] sm:$0xff] 0.0
        %1115 = vst [vmem:[#allocation2 + $0x198] sm:$0xff] 0.0
        %1116 = vst [vmem:[#allocation2 + $0x1a0] sm:$0xff] 0.0
        %1117 = vst [vmem:[#allocation2 + $0x1a8] sm:$0xff] 0.0
        %1118 = vst [vmem:[#allocation2 + $0x1b0] sm:$0xff] 0.0
        %1119 = vst [vmem:[#allocation2 + $0x1b8] sm:$0xff] 0.0
        %1120 = vst [vmem:[#allocation2 + $0x1c0] sm:$0xff] 0.0
        %1121 = vst [vmem:[#allocation2 + $0x1c8] sm:$0xff] 0.0
        %1122 = vst [vmem:[#allocation2 + $0x1d0] sm:$0xff] 0.0
        %1123 = vst [vmem:[#allocation2 + $0x1d8] sm:$0xff] 0.0
        %1124 = vst [vmem:[#allocation2 + $0x1e0] sm:$0xff] 0.0
        %1125 = vst [vmem:[#allocation2 + $0x1e8] sm:$0xff] 0.0
        %1126 = vst [vmem:[#allocation2 + $0x1f0] sm:$0xff] 0.0
        %1127 = vst [vmem:[#allocation2 + $0x1f8] sm:$0xff] 0.0
        %1128 = vst [vmem:[#allocation2 + $0x200] sm:$0xff] 0.0
        %1129 = vst [vmem:[#allocation2 + $0x208] sm:$0xff] 0.0
        %1130 = vst [vmem:[#allocation2 + $0x210] sm:$0xff] 0.0
        %1131 = vst [vmem:[#allocation2 + $0x218] sm:$0xff] 0.0
        %1132 = vst [vmem:[#allocation2 + $0x220] sm:$0xff] 0.0
        %1133 = vst [vmem:[#allocation2 + $0x228] sm:$0xff] 0.0
        %1134 = vst [vmem:[#allocation2 + $0x230] sm:$0xff] 0.0
        %1135 = vst [vmem:[#allocation2 + $0x238] sm:$0xff] 0.0
        %1136 = vst [vmem:[#allocation2 + $0x240] sm:$0xff] 0.0
        %1137 = vst [vmem:[#allocation2 + $0x248] sm:$0xff] 0.0
        %1138 = vst [vmem:[#allocation2 + $0x250] sm:$0xff] 0.0
        %1139 = vst [vmem:[#allocation2 + $0x258] sm:$0xff] 0.0
        %1140 = vst [vmem:[#allocation2 + $0x260] sm:$0xff] 0.0
        %1141 = vst [vmem:[#allocation2 + $0x268] sm:$0xff] 0.0
        %1142 = vst [vmem:[#allocation2 + $0x270] sm:$0xff] 0.0
        %1143 = vst [vmem:[#allocation2 + $0x278] sm:$0xff] 0.0
        %1144 = vst [vmem:[#allocation2 + $0x280] sm:$0xff] 0.0
        %1145 = vst [vmem:[#allocation2 + $0x288] sm:$0xff] 0.0
        %1146 = vst [vmem:[#allocation2 + $0x290] sm:$0xff] 0.0
        %1147 = vst [vmem:[#allocation2 + $0x298] sm:$0xff] 0.0
        %1148 = vst [vmem:[#allocation2 + $0x2a0] sm:$0xff] 0.0
        %1149 = vst [vmem:[#allocation2 + $0x2a8] sm:$0xff] 0.0
        %1150 = vst [vmem:[#allocation2 + $0x2b0] sm:$0xff] 0.0
        %1151 = vst [vmem:[#allocation2 + $0x2b8] sm:$0xff] 0.0
        %1152 = vst [vmem:[#allocation2 + $0x2c0] sm:$0xff] 0.0
        %1153 = vst [vmem:[#allocation2 + $0x2c8] sm:$0xff] 0.0
        %1154 = vst [vmem:[#allocation2 + $0x2d0] sm:$0xff] 0.0
        %1155 = vst [vmem:[#allocation2 + $0x2d8] sm:$0xff] 0.0
        %1156 = vst [vmem:[#allocation2 + $0x2e0] sm:$0xff] 0.0
        %1157 = vst [vmem:[#allocation2 + $0x2e8] sm:$0xff] 0.0
        %1158 = vst [vmem:[#allocation2 + $0x2f0] sm:$0xff] 0.0
        %1159 = vst [vmem:[#allocation2 + $0x2f8] sm:$0xff] 0.0
        %1160 = vst [vmem:[#allocation2 + $0x300] sm:$0xff] 0.0
        %1161 = vst [vmem:[#allocation2 + $0x308] sm:$0xff] 0.0
        %1162 = vst [vmem:[#allocation2 + $0x310] sm:$0xff] 0.0
        %1163 = vst [vmem:[#allocation2 + $0x318] sm:$0xff] 0.0
        %1164 = vst [vmem:[#allocation2 + $0x320] sm:$0xff] 0.0
        %1165 = vst [vmem:[#allocation2 + $0x328] sm:$0xff] 0.0
        %1166 = vst [vmem:[#allocation2 + $0x330] sm:$0xff] 0.0
        %1167 = vst [vmem:[#allocation2 + $0x338] sm:$0xff] 0.0
        %1168 = vst [vmem:[#allocation2 + $0x340] sm:$0xff] 0.0
        %1169 = vst [vmem:[#allocation2 + $0x348] sm:$0xff] 0.0
        %1170 = vst [vmem:[#allocation2 + $0x350] sm:$0xff] 0.0
        %1171 = vst [vmem:[#allocation2 + $0x358] sm:$0xff] 0.0
        %1172 = vst [vmem:[#allocation2 + $0x360] sm:$0xff] 0.0
        %1173 = vst [vmem:[#allocation2 + $0x368] sm:$0xff] 0.0
        %1174 = vst [vmem:[#allocation2 + $0x370] sm:$0xff] 0.0
        %1175 = vst [vmem:[#allocation2 + $0x378] sm:$0xff] 0.0
        %1176 = vst [vmem:[#allocation2 + $0x380] sm:$0xff] 0.0
        %1177 = vst [vmem:[#allocation2 + $0x388] sm:$0xff] 0.0
        %1178 = vst [vmem:[#allocation2 + $0x390] sm:$0xff] 0.0
        %1179 = vst [vmem:[#allocation2 + $0x398] sm:$0xff] 0.0
        %1180 = vst [vmem:[#allocation2 + $0x3a0] sm:$0xff] 0.0
        %1181 = vst [vmem:[#allocation2 + $0x3a8] sm:$0xff] 0.0
        %1182 = vst [vmem:[#allocation2 + $0x3b0] sm:$0xff] 0.0
        %1183 = vst [vmem:[#allocation2 + $0x3b8] sm:$0xff] 0.0
        %1184 = vst [vmem:[#allocation2 + $0x3c0] sm:$0xff] 0.0
        %1185 = vst [vmem:[#allocation2 + $0x3c8] sm:$0xff] 0.0
        %1186 = vst [vmem:[#allocation2 + $0x3d0] sm:$0xff] 0.0
        %1187 = vst [vmem:[#allocation2 + $0x3d8] sm:$0xff] 0.0
        %1188 = vst [vmem:[#allocation2 + $0x3e0] sm:$0xff] 0.0
        %1189 = vst [vmem:[#allocation2 + $0x3e8] sm:$0xff] 0.0
        %1190 = vst [vmem:[#allocation2 + $0x3f0] sm:$0xff] 0.0
        %1191 = vst [vmem:[#allocation2 + $0x3f8] sm:$0xff] 0.0
        %1192 = vst [vmem:[#allocation2 + $0x400] sm:$0xff] 0.0
        %1193 = vst [vmem:[#allocation2 + $0x408] sm:$0xff] 0.0
        %1194 = vst [vmem:[#allocation2 + $0x410] sm:$0xff] 0.0
        %1195 = vst [vmem:[#allocation2 + $0x418] sm:$0xff] 0.0
        %1196 = vst [vmem:[#allocation2 + $0x420] sm:$0xff] 0.0
        %1197 = vst [vmem:[#allocation2 + $0x428] sm:$0xff] 0.0
        %1198 = vst [vmem:[#allocation2 + $0x430] sm:$0xff] 0.0
        %1199 = vst [vmem:[#allocation2 + $0x438] sm:$0xff] 0.0
        %1200 = vst [vmem:[#allocation2 + $0x440] sm:$0xff] 0.0
        %1201 = vst [vmem:[#allocation2 + $0x448] sm:$0xff] 0.0
        %1202 = vst [vmem:[#allocation2 + $0x450] sm:$0xff] 0.0
        %1203 = vst [vmem:[#allocation2 + $0x458] sm:$0xff] 0.0
        %1204 = vst [vmem:[#allocation2 + $0x460] sm:$0xff] 0.0
        %1205 = vst [vmem:[#allocation2 + $0x468] sm:$0xff] 0.0
        %1206 = vst [vmem:[#allocation2 + $0x470] sm:$0xff] 0.0
        %1207 = vst [vmem:[#allocation2 + $0x478] sm:$0xff] 0.0
        %1208 = vst [vmem:[#allocation2 + $0x480] sm:$0xff] 0.0
        %1209 = vst [vmem:[#allocation2 + $0x488] sm:$0xff] 0.0
        %1210 = vst [vmem:[#allocation2 + $0x490] sm:$0xff] 0.0
        %1211 = vst [vmem:[#allocation2 + $0x498] sm:$0xff] 0.0
        %1212 = vst [vmem:[#allocation2 + $0x4a0] sm:$0xff] 0.0
        %1213 = vst [vmem:[#allocation2 + $0x4a8] sm:$0xff] 0.0
        %1214 = vst [vmem:[#allocation2 + $0x4b0] sm:$0xff] 0.0
        %1215 = vst [vmem:[#allocation2 + $0x4b8] sm:$0xff] 0.0
        %1216 = vst [vmem:[#allocation2 + $0x4c0] sm:$0xff] 0.0
        %1217 = vst [vmem:[#allocation2 + $0x4c8] sm:$0xff] 0.0
        %1218 = vst [vmem:[#allocation2 + $0x4d0] sm:$0xff] 0.0
        %1219 = vst [vmem:[#allocation2 + $0x4d8] sm:$0xff] 0.0
        %1220 = vst [vmem:[#allocation2 + $0x4e0] sm:$0xff] 0.0
        %1221 = vst [vmem:[#allocation2 + $0x4e8] sm:$0xff] 0.0
        %1222 = vst [vmem:[#allocation2 + $0x4f0] sm:$0xff] 0.0
        %1223 = vst [vmem:[#allocation2 + $0x4f8] sm:$0xff] 0.0
        %1224 = vst [vmem:[#allocation2 + $0x500] sm:$0xff] 0.0
        %1225 = vst [vmem:[#allocation2 + $0x508] sm:$0xff] 0.0
        %1226 = vst [vmem:[#allocation2 + $0x510] sm:$0xff] 0.0
        %1227 = vst [vmem:[#allocation2 + $0x518] sm:$0xff] 0.0
        %1228 = vst [vmem:[#allocation2 + $0x520] sm:$0xff] 0.0
        %1229 = vst [vmem:[#allocation2 + $0x528] sm:$0xff] 0.0
        %1230 = vst [vmem:[#allocation2 + $0x530] sm:$0xff] 0.0
        %1231 = vst [vmem:[#allocation2 + $0x538] sm:$0xff] 0.0
        %1232 = vst [vmem:[#allocation2 + $0x540] sm:$0xff] 0.0
        %1233 = vst [vmem:[#allocation2 + $0x548] sm:$0xff] 0.0
        %1234 = vst [vmem:[#allocation2 + $0x550] sm:$0xff] 0.0
        %1235 = vst [vmem:[#allocation2 + $0x558] sm:$0xff] 0.0
        %1236 = vst [vmem:[#allocation2 + $0x560] sm:$0xff] 0.0
        %1237 = vst [vmem:[#allocation2 + $0x568] sm:$0xff] 0.0
        %1238 = vst [vmem:[#allocation2 + $0x570] sm:$0xff] 0.0
        %1239 = vst [vmem:[#allocation2 + $0x578] sm:$0xff] 0.0
        %1240 = vst [vmem:[#allocation2 + $0x580] sm:$0xff] 0.0
        %1241 = vst [vmem:[#allocation2 + $0x588] sm:$0xff] 0.0
        %1242 = vst [vmem:[#allocation2 + $0x590] sm:$0xff] 0.0
        %1243 = vst [vmem:[#allocation2 + $0x598] sm:$0xff] 0.0
        %1244 = vst [vmem:[#allocation2 + $0x5a0] sm:$0xff] 0.0
        %1245 = vst [vmem:[#allocation2 + $0x5a8] sm:$0xff] 0.0
        %1246 = vst [vmem:[#allocation2 + $0x5b0] sm:$0xff] 0.0
        %1247 = vst [vmem:[#allocation2 + $0x5b8] sm:$0xff] 0.0
        %1248 = vst [vmem:[#allocation2 + $0x5c0] sm:$0xff] 0.0
        %1249 = vst [vmem:[#allocation2 + $0x5c8] sm:$0xff] 0.0
        %1250 = vst [vmem:[#allocation2 + $0x5d0] sm:$0xff] 0.0
        %1251 = vst [vmem:[#allocation2 + $0x5d8] sm:$0xff] 0.0
        %1252 = vst [vmem:[#allocation2 + $0x5e0] sm:$0xff] 0.0
        %1253 = vst [vmem:[#allocation2 + $0x5e8] sm:$0xff] 0.0
        %1254 = vst [vmem:[#allocation2 + $0x5f0] sm:$0xff] 0.0
        %1255 = vst [vmem:[#allocation2 + $0x5f8] sm:$0xff] 0.0
        %1256 = vst [vmem:[#allocation2 + $0x600] sm:$0xff] 0.0
        %1257 = vst [vmem:[#allocation2 + $0x608] sm:$0xff] 0.0
        %1258 = vst [vmem:[#allocation2 + $0x610] sm:$0xff] 0.0
        %1259 = vst [vmem:[#allocation2 + $0x618] sm:$0xff] 0.0
        %1260 = vst [vmem:[#allocation2 + $0x620] sm:$0xff] 0.0
        %1261 = vst [vmem:[#allocation2 + $0x628] sm:$0xff] 0.0
        %1262 = vst [vmem:[#allocation2 + $0x630] sm:$0xff] 0.0
        %1263 = vst [vmem:[#allocation2 + $0x638] sm:$0xff] 0.0
        %1264 = vst [vmem:[#allocation2 + $0x640] sm:$0xff] 0.0
        %1265 = vst [vmem:[#allocation2 + $0x648] sm:$0xff] 0.0
        %1266 = vst [vmem:[#allocation2 + $0x650] sm:$0xff] 0.0
        %1267 = vst [vmem:[#allocation2 + $0x658] sm:$0xff] 0.0
        %1268 = vst [vmem:[#allocation2 + $0x660] sm:$0xff] 0.0
        %1269 = vst [vmem:[#allocation2 + $0x668] sm:$0xff] 0.0
        %1270 = vst [vmem:[#allocation2 + $0x670] sm:$0xff] 0.0
        %1271 = vst [vmem:[#allocation2 + $0x678] sm:$0xff] 0.0
        %1272 = vst [vmem:[#allocation2 + $0x680] sm:$0xff] 0.0
        %1273 = vst [vmem:[#allocation2 + $0x688] sm:$0xff] 0.0
        %1274 = vst [vmem:[#allocation2 + $0x690] sm:$0xff] 0.0
        %1275 = vst [vmem:[#allocation2 + $0x698] sm:$0xff] 0.0
        %1276 = vst [vmem:[#allocation2 + $0x6a0] sm:$0xff] 0.0
        %1277 = vst [vmem:[#allocation2 + $0x6a8] sm:$0xff] 0.0
        %1278 = vst [vmem:[#allocation2 + $0x6b0] sm:$0xff] 0.0
        %1279 = vst [vmem:[#allocation2 + $0x6b8] sm:$0xff] 0.0
        %1280 = vst [vmem:[#allocation2 + $0x6c0] sm:$0xff] 0.0
        %1281 = vst [vmem:[#allocation2 + $0x6c8] sm:$0xff] 0.0
        %1282 = vst [vmem:[#allocation2 + $0x6d0] sm:$0xff] 0.0
        %1283 = vst [vmem:[#allocation2 + $0x6d8] sm:$0xff] 0.0
        %1284 = vst [vmem:[#allocation2 + $0x6e0] sm:$0xff] 0.0
        %1285 = vst [vmem:[#allocation2 + $0x6e8] sm:$0xff] 0.0
        %1286 = vst [vmem:[#allocation2 + $0x6f0] sm:$0xff] 0.0
        %1287 = vst [vmem:[#allocation2 + $0x6f8] sm:$0xff] 0.0
        %1288 = vst [vmem:[#allocation2 + $0x700] sm:$0xff] 0.0
        %1289 = vst [vmem:[#allocation2 + $0x708] sm:$0xff] 0.0
        %1290 = vst [vmem:[#allocation2 + $0x710] sm:$0xff] 0.0
        %1291 = vst [vmem:[#allocation2 + $0x718] sm:$0xff] 0.0
        %1292 = vst [vmem:[#allocation2 + $0x720] sm:$0xff] 0.0
        %1293 = vst [vmem:[#allocation2 + $0x728] sm:$0xff] 0.0
        %1294 = vst [vmem:[#allocation2 + $0x730] sm:$0xff] 0.0
        %1295 = vst [vmem:[#allocation2 + $0x738] sm:$0xff] 0.0
        %1296 = vst [vmem:[#allocation2 + $0x740] sm:$0xff] 0.0
        %1297 = vst [vmem:[#allocation2 + $0x748] sm:$0xff] 0.0
        %1298 = vst [vmem:[#allocation2 + $0x750] sm:$0xff] 0.0
        %1299 = vst [vmem:[#allocation2 + $0x758] sm:$0xff] 0.0
        %1300 = vst [vmem:[#allocation2 + $0x760] sm:$0xff] 0.0
        %1301 = vst [vmem:[#allocation2 + $0x768] sm:$0xff] 0.0
        %1302 = vst [vmem:[#allocation2 + $0x770] sm:$0xff] 0.0
        %1303 = vst [vmem:[#allocation2 + $0x778] sm:$0xff] 0.0
        %1304 = vst [vmem:[#allocation2 + $0x780] sm:$0xff] 0.0
        %1305 = vst [vmem:[#allocation2 + $0x788] sm:$0xff] 0.0
        %1306 = vst [vmem:[#allocation2 + $0x790] sm:$0xff] 0.0
        %1307 = vst [vmem:[#allocation2 + $0x798] sm:$0xff] 0.0
        %1308 = vst [vmem:[#allocation2 + $0x7a0] sm:$0xff] 0.0
        %1309 = vst [vmem:[#allocation2 + $0x7a8] sm:$0xff] 0.0
        %1310 = vst [vmem:[#allocation2 + $0x7b0] sm:$0xff] 0.0
        %1311 = vst [vmem:[#allocation2 + $0x7b8] sm:$0xff] 0.0
        %1312 = vst [vmem:[#allocation2 + $0x7c0] sm:$0xff] 0.0
        %1313 = vst [vmem:[#allocation2 + $0x7c8] sm:$0xff] 0.0
        %1314 = vst [vmem:[#allocation2 + $0x7d0] sm:$0xff] 0.0
        %1315 = vst [vmem:[#allocation2 + $0x7d8] sm:$0xff] 0.0
        %1316 = vst [vmem:[#allocation2 + $0x7e0] sm:$0xff] 0.0
        %1317 = vst [vmem:[#allocation2 + $0x7e8] sm:$0xff] 0.0
        %1318 = vst [vmem:[#allocation2 + $0x7f0] sm:$0xff] 0.0
        %1319 = vst [vmem:[#allocation2 + $0x7f8] sm:$0xff] 0.0
        %1320 = vst [vmem:[#allocation2 + $0x800] sm:$0xff] 0.0
        %1321 = vst [vmem:[#allocation2 + $0x808] sm:$0xff] 0.0
        %1322 = vst [vmem:[#allocation2 + $0x810] sm:$0xff] 0.0
        %1323 = vst [vmem:[#allocation2 + $0x818] sm:$0xff] 0.0
        %1324 = vst [vmem:[#allocation2 + $0x820] sm:$0xff] 0.0
        %1325 = vst [vmem:[#allocation2 + $0x828] sm:$0xff] 0.0
        %1326 = vst [vmem:[#allocation2 + $0x830] sm:$0xff] 0.0
        %1327 = vst [vmem:[#allocation2 + $0x838] sm:$0xff] 0.0
        %1328 = vst [vmem:[#allocation2 + $0x840] sm:$0xff] 0.0
        %1329 = vst [vmem:[#allocation2 + $0x848] sm:$0xff] 0.0
        %1330 = vst [vmem:[#allocation2 + $0x850] sm:$0xff] 0.0
        %1331 = vst [vmem:[#allocation2 + $0x858] sm:$0xff] 0.0
        %1332 = vst [vmem:[#allocation2 + $0x860] sm:$0xff] 0.0
        %1333 = vst [vmem:[#allocation2 + $0x868] sm:$0xff] 0.0
        %1334 = vst [vmem:[#allocation2 + $0x870] sm:$0xff] 0.0
        %1335 = vst [vmem:[#allocation2 + $0x878] sm:$0xff] 0.0
        %1336 = vst [vmem:[#allocation2 + $0x880] sm:$0xff] 0.0
        %1337 = vst [vmem:[#allocation2 + $0x888] sm:$0xff] 0.0
        %1338 = vst [vmem:[#allocation2 + $0x890] sm:$0xff] 0.0
        %1339 = vst [vmem:[#allocation2 + $0x898] sm:$0xff] 0.0
        %1340 = vst [vmem:[#allocation2 + $0x8a0] sm:$0xff] 0.0
        %1341 = vst [vmem:[#allocation2 + $0x8a8] sm:$0xff] 0.0
        %1342 = vst [vmem:[#allocation2 + $0x8b0] sm:$0xff] 0.0
        %1343 = vst [vmem:[#allocation2 + $0x8b8] sm:$0xff] 0.0
        %1344 = vst [vmem:[#allocation2 + $0x8c0] sm:$0xff] 0.0
        %1345 = vst [vmem:[#allocation2 + $0x8c8] sm:$0xff] 0.0
        %1346 = vst [vmem:[#allocation2 + $0x8d0] sm:$0xff] 0.0
        %1347 = vst [vmem:[#allocation2 + $0x8d8] sm:$0xff] 0.0
        %1348 = vst [vmem:[#allocation2 + $0x8e0] sm:$0xff] 0.0
        %1349 = vst [vmem:[#allocation2 + $0x8e8] sm:$0xff] 0.0
        %1350 = vst [vmem:[#allocation2 + $0x8f0] sm:$0xff] 0.0
        %1351 = vst [vmem:[#allocation2 + $0x8f8] sm:$0xff] 0.0
        %1352 = vst [vmem:[#allocation2 + $0x900] sm:$0xff] 0.0
        %1353 = vst [vmem:[#allocation2 + $0x908] sm:$0xff] 0.0
        %1354 = vst [vmem:[#allocation2 + $0x910] sm:$0xff] 0.0
        %1355 = vst [vmem:[#allocation2 + $0x918] sm:$0xff] 0.0
        %1356 = vst [vmem:[#allocation2 + $0x920] sm:$0xff] 0.0
        %1357 = vst [vmem:[#allocation2 + $0x928] sm:$0xff] 0.0
        %1358 = vst [vmem:[#allocation2 + $0x930] sm:$0xff] 0.0
        %1359 = vst [vmem:[#allocation2 + $0x938] sm:$0xff] 0.0
        %1360 = vst [vmem:[#allocation2 + $0x940] sm:$0xff] 0.0
        %1361 = vst [vmem:[#allocation2 + $0x948] sm:$0xff] 0.0
        %1362 = vst [vmem:[#allocation2 + $0x950] sm:$0xff] 0.0
        %1363 = vst [vmem:[#allocation2 + $0x958] sm:$0xff] 0.0
        %v1364 = vld [vmem:[#allocation3] sm:$0xff]
        %v1365 = vld [vmem:[#allocation3 + $0x8] sm:$0xff]
        %v1366 = vld [vmem:[#allocation3 + $0x10] sm:$0xff]
        %v1367 = vld [vmem:[#allocation3 + $0x18] sm:$0xff]
        %v1368 = vld [vmem:[#allocation3 + $0x20] sm:$0xff]
        %v1369 = vld [vmem:[#allocation3 + $0x28] sm:$0xff]
        %v1370 = vld [vmem:[#allocation3 + $0x30] sm:$0xff]
        %v1371 = vld [vmem:[#allocation3 + $0x38] sm:$0xff]
        %v1372 = vld [vmem:[#allocation3 + $0x40] sm:$0xff]
        %v1373 = vld [vmem:[#allocation3 + $0x48] sm:$0xff]
        %v1374 = vld [vmem:[#allocation3 + $0x50] sm:$0xff]
        %v1375 = vld [vmem:[#allocation3 + $0x58] sm:$0xff]
        %v1376 = vld [vmem:[%s1] ss:$8 sm:$0x3]
        %v1378 = vlaneseq
        %v1379 = vshrl.u32 %v1378, 7
        %v1380 = vsub.s32 0, %v1379
        %v1381 = vrot.slane %v1376, %v1380
        %v1382 = vlaneseq
        %v1383 = vshrl.u32 %v1382, 7
        %v1384 = vsub.s32 1, %v1383
        %v1385 = vrot.slane %v1376, %v1384
        %1386 = vrot.lane.b32.xlu0 %v1381, 94
        %v1387 = vpop.permute.xlu0 %1386
        %1388 = vrot.lane.b32.xlu0 %v1385, 94
        %v1389 = vpop.permute.xlu0 %1388
        %v1390 = vsel %vm332, %v1387, %v1389
        %v1393 = vmul.f32 %v1364, %v1390
        %v1394 = vmul.f32 %v1365, %v1389
        %v1395 = vmul.f32 %v1366, %v1390
        %v1396 = vmul.f32 %v1367, %v1389
        %v1397 = vmul.f32 %v1368, %v1390
        %v1398 = vmul.f32 %v1369, %v1389
        %v1399 = vmul.f32 %v1370, %v1390
        %v1400 = vmul.f32 %v1371, %v1389
        %v1401 = vmul.f32 %v1372, %v1390
        %v1402 = vmul.f32 %v1373, %v1389
        %v1403 = vmul.f32 %v1374, %v1390
        %v1404 = vmul.f32 %v1375, %v1389
        %1417 = vrot.lane.b32.xlu0 %v1393, 34
        %v1418 = vpop.permute.xlu0 %1417
        %1419 = vrot.lane.b32.xlu0 %v1394, 34
        %v1420 = vpop.permute.xlu0 %1419
        %1421 = vrot.lane.b32.xlu0 %v1395, 34
        %v1422 = vpop.permute.xlu0 %1421
        %1423 = vrot.lane.b32.xlu0 %v1396, 34
        %v1424 = vpop.permute.xlu0 %1423
        %1425 = vrot.lane.b32.xlu0 %v1397, 34
        %v1426 = vpop.permute.xlu0 %1425
        %1427 = vrot.lane.b32.xlu0 %v1398, 34
        %v1428 = vpop.permute.xlu0 %1427
        %1429 = vrot.lane.b32.xlu0 %v1399, 34
        %v1430 = vpop.permute.xlu0 %1429
        %1431 = vrot.lane.b32.xlu0 %v1400, 34
        %v1432 = vpop.permute.xlu0 %1431
        %1433 = vrot.lane.b32.xlu0 %v1401, 34
        %v1434 = vpop.permute.xlu0 %1433
        %1435 = vrot.lane.b32.xlu0 %v1402, 34
        %v1436 = vpop.permute.xlu0 %1435
        %1437 = vrot.lane.b32.xlu0 %v1403, 34
        %v1438 = vpop.permute.xlu0 %1437
        %1439 = vrot.lane.b32.xlu0 %v1404, 34
        %v1440 = vpop.permute.xlu0 %1439
        %v1441 = vsel %vm340, %v1418, %v1420
        %v1442 = vsel %vm340, %v1422, %v1424
        %v1443 = vsel %vm340, %v1426, %v1428
        %v1444 = vsel %vm340, %v1430, %v1432
        %v1445 = vsel %vm340, %v1434, %v1436
        %v1446 = vsel %vm340, %v1438, %v1440
        %vm1459 = vcmask 1047824
        %1460 = vst.msk [vmem:[#allocation2] sm:$0xff] %vm1459, %v1418
        %1461 = vst [vmem:[#allocation2 + $0x8] sm:$0xff] %v1441
        %1462 = vst.msk [vmem:[#allocation2 + $0x10] sm:$0xff] %vm1459, %v1422
        %1463 = vst [vmem:[#allocation2 + $0x18] sm:$0xff] %v1442
        %1464 = vst.msk [vmem:[#allocation2 + $0x20] sm:$0xff] %vm1459, %v1426
        %1465 = vst [vmem:[#allocation2 + $0x28] sm:$0xff] %v1443
        %1466 = vst.msk [vmem:[#allocation2 + $0x30] sm:$0xff] %vm1459, %v1430
        %1467 = vst [vmem:[#allocation2 + $0x38] sm:$0xff] %v1444
        %1468 = vst.msk [vmem:[#allocation2 + $0x40] sm:$0xff] %vm1459, %v1434
        %1469 = vst [vmem:[#allocation2 + $0x48] sm:$0xff] %v1445
        %1470 = vst.msk [vmem:[#allocation2 + $0x50] sm:$0xff] %vm1459, %v1438
        %1471 = vst [vmem:[#allocation2 + $0x58] sm:$0xff] %v1446
        %v1472 = vld [vmem:[#allocation3] sm:$0xff]
        %v1473 = vld [vmem:[#allocation3 + $0x8] sm:$0xff]
        %v1474 = vld [vmem:[#allocation3 + $0x10] sm:$0xff]
        %v1475 = vld [vmem:[#allocation3 + $0x18] sm:$0xff]
        %v1476 = vld [vmem:[#allocation3 + $0x20] sm:$0xff]
        %v1477 = vld [vmem:[#allocation3 + $0x28] sm:$0xff]
        %v1478 = vld [vmem:[#allocation3 + $0x30] sm:$0xff]
        %v1479 = vld [vmem:[#allocation3 + $0x38] sm:$0xff]
        %v1480 = vld [vmem:[#allocation3 + $0x40] sm:$0xff]
        %v1481 = vld [vmem:[#allocation3 + $0x48] sm:$0xff]
        %v1482 = vld [vmem:[#allocation3 + $0x50] sm:$0xff]
        %v1483 = vld [vmem:[#allocation3 + $0x58] sm:$0xff]
        %v1484 = vld [vmem:[%s350] ss:$8 sm:$0x3]
        %v1486 = vlaneseq
        %v1487 = vshrl.u32 %v1486, 7
        %v1488 = vsub.s32 0, %v1487
        %v1489 = vrot.slane %v1484, %v1488
        %v1490 = vlaneseq
        %v1491 = vshrl.u32 %v1490, 7
        %v1492 = vsub.s32 1, %v1491
        %v1493 = vrot.slane %v1484, %v1492
        %1494 = vrot.lane.b32.xlu0 %v1489, 95
        %v1495 = vpop.permute.xlu0 %1494
        %1496 = vrot.lane.b32.xlu0 %v1493, 95
        %v1497 = vpop.permute.xlu0 %1496
        %v1498 = vsel %vm356, %v1495, %v1497
        %v1501 = vmul.f32 %v1472, %v1498
        %v1502 = vmul.f32 %v1473, %v1497
        %v1503 = vmul.f32 %v1474, %v1498
        %v1504 = vmul.f32 %v1475, %v1497
        %v1505 = vmul.f32 %v1476, %v1498
        %v1506 = vmul.f32 %v1477, %v1497
        %v1507 = vmul.f32 %v1478, %v1498
        %v1508 = vmul.f32 %v1479, %v1497
        %v1509 = vmul.f32 %v1480, %v1498
        %v1510 = vmul.f32 %v1481, %v1497
        %v1511 = vmul.f32 %v1482, %v1498
        %v1512 = vmul.f32 %v1483, %v1497
        %1525 = vrot.lane.b32.xlu0 %v1501, 33
        %v1526 = vpop.permute.xlu0 %1525
        %1527 = vrot.lane.b32.xlu0 %v1502, 33
        %v1528 = vpop.permute.xlu0 %1527
        %1529 = vrot.lane.b32.xlu0 %v1503, 33
        %v1530 = vpop.permute.xlu0 %1529
        %1531 = vrot.lane.b32.xlu0 %v1504, 33
        %v1532 = vpop.permute.xlu0 %1531
        %1533 = vrot.lane.b32.xlu0 %v1505, 33
        %v1534 = vpop.permute.xlu0 %1533
        %1535 = vrot.lane.b32.xlu0 %v1506, 33
        %v1536 = vpop.permute.xlu0 %1535
        %1537 = vrot.lane.b32.xlu0 %v1507, 33
        %v1538 = vpop.permute.xlu0 %1537
        %1539 = vrot.lane.b32.xlu0 %v1508, 33
        %v1540 = vpop.permute.xlu0 %1539
        %1541 = vrot.lane.b32.xlu0 %v1509, 33
        %v1542 = vpop.permute.xlu0 %1541
        %1543 = vrot.lane.b32.xlu0 %v1510, 33
        %v1544 = vpop.permute.xlu0 %1543
        %1545 = vrot.lane.b32.xlu0 %v1511, 33
        %v1546 = vpop.permute.xlu0 %1545
        %1547 = vrot.lane.b32.xlu0 %v1512, 33
        %v1548 = vpop.permute.xlu0 %1547
        %v1549 = vsel %vm364, %v1526, %v1528
        %v1550 = vsel %vm364, %v1530, %v1532
        %v1551 = vsel %vm364, %v1534, %v1536
        %v1552 = vsel %vm364, %v1538, %v1540
        %v1553 = vsel %vm364, %v1542, %v1544
        %v1554 = vsel %vm364, %v1546, %v1548
        %vm1567 = vcmask 1047816
        %1568 = vst.msk [vmem:[#allocation2 + $0x60] sm:$0xff] %vm1567, %v1526
        %1569 = vst [vmem:[#allocation2 + $0x68] sm:$0xff] %v1549
        %1570 = vst.msk [vmem:[#allocation2 + $0x70] sm:$0xff] %vm1567, %v1530
        %1571 = vst [vmem:[#allocation2 + $0x78] sm:$0xff] %v1550
        %1572 = vst.msk [vmem:[#allocation2 + $0x80] sm:$0xff] %vm1567, %v1534
        %1573 = vst [vmem:[#allocation2 + $0x88] sm:$0xff] %v1551
        %1574 = vst.msk [vmem:[#allocation2 + $0x90] sm:$0xff] %vm1567, %v1538
        %1575 = vst [vmem:[#allocation2 + $0x98] sm:$0xff] %v1552
        %1576 = vst.msk [vmem:[#allocation2 + $0xa0] sm:$0xff] %vm1567, %v1542
        %1577 = vst [vmem:[#allocation2 + $0xa8] sm:$0xff] %v1553
        %1578 = vst.msk [vmem:[#allocation2 + $0xb0] sm:$0xff] %vm1567, %v1546
        %1579 = vst [vmem:[#allocation2 + $0xb8] sm:$0xff] %v1554
        %v1580 = vld [vmem:[#allocation3] sm:$0xff]
        %v1581 = vld [vmem:[#allocation3 + $0x8] sm:$0xff]
        %v1582 = vld [vmem:[#allocation3 + $0x10] sm:$0xff]
        %v1583 = vld [vmem:[#allocation3 + $0x18] sm:$0xff]
        %v1584 = vld [vmem:[#allocation3 + $0x20] sm:$0xff]
        %v1585 = vld [vmem:[#allocation3 + $0x28] sm:$0xff]
        %v1586 = vld [vmem:[#allocation3 + $0x30] sm:$0xff]
        %v1587 = vld [vmem:[#allocation3 + $0x38] sm:$0xff]
        %v1588 = vld [vmem:[#allocation3 + $0x40] sm:$0xff]
        %v1589 = vld [vmem:[#allocation3 + $0x48] sm:$0xff]
        %v1590 = vld [vmem:[#allocation3 + $0x50] sm:$0xff]
        %v1591 = vld [vmem:[#allocation3 + $0x58] sm:$0xff]
        %v1592 = vld [vmem:[%s373] ss:$8 sm:$0x3]
        %v1594 = vlaneseq
        %v1595 = vshrl.u32 %v1594, 7
        %v1596 = vsub.s32 0, %v1595
        %v1597 = vrot.slane %v1592, %v1596
        %v1598 = vlaneseq
        %v1599 = vshrl.u32 %v1598, 7
        %v1600 = vsub.s32 1, %v1599
        %v1601 = vrot.slane %v1592, %v1600
        %1602 = vrot.lane.b32.xlu0 %v1597, 96
        %v1603 = vpop.permute.xlu0 %1602
        %1604 = vrot.lane.b32.xlu0 %v1601, 96
        %v1605 = vpop.permute.xlu0 %1604
        %v1606 = vsel %vm379, %v1603, %v1605
        %v1609 = vmul.f32 %v1580, %v1606
        %v1610 = vmul.f32 %v1581, %v1605
        %v1611 = vmul.f32 %v1582, %v1606
        %v1612 = vmul.f32 %v1583, %v1605
        %v1613 = vmul.f32 %v1584, %v1606
        %v1614 = vmul.f32 %v1585, %v1605
        %v1615 = vmul.f32 %v1586, %v1606
        %v1616 = vmul.f32 %v1587, %v1605
        %v1617 = vmul.f32 %v1588, %v1606
        %v1618 = vmul.f32 %v1589, %v1605
        %v1619 = vmul.f32 %v1590, %v1606
        %v1620 = vmul.f32 %v1591, %v1605
        %1633 = vrot.lane.b32.xlu0 %v1609, 32
        %v1634 = vpop.permute.xlu0 %1633
        %1635 = vrot.lane.b32.xlu0 %v1610, 32
        %v1636 = vpop.permute.xlu0 %1635
        %1637 = vrot.lane.b32.xlu0 %v1611, 32
        %v1638 = vpop.permute.xlu0 %1637
        %1639 = vrot.lane.b32.xlu0 %v1612, 32
        %v1640 = vpop.permute.xlu0 %1639
        %1641 = vrot.lane.b32.xlu0 %v1613, 32
        %v1642 = vpop.permute.xlu0 %1641
        %1643 = vrot.lane.b32.xlu0 %v1614, 32
        %v1644 = vpop.permute.xlu0 %1643
        %1645 = vrot.lane.b32.xlu0 %v1615, 32
        %v1646 = vpop.permute.xlu0 %1645
        %1647 = vrot.lane.b32.xlu0 %v1616, 32
        %v1648 = vpop.permute.xlu0 %1647
        %1649 = vrot.lane.b32.xlu0 %v1617, 32
        %v1650 = vpop.permute.xlu0 %1649
        %1651 = vrot.lane.b32.xlu0 %v1618, 32
        %v1652 = vpop.permute.xlu0 %1651
        %1653 = vrot.lane.b32.xlu0 %v1619, 32
        %v1654 = vpop.permute.xlu0 %1653
        %1655 = vrot.lane.b32.xlu0 %v1620, 32
        %v1656 = vpop.permute.xlu0 %1655
        %v1657 = vsel %vm387, %v1634, %v1636
        %v1658 = vsel %vm387, %v1638, %v1640
        %v1659 = vsel %vm387, %v1642, %v1644
        %v1660 = vsel %vm387, %v1646, %v1648
        %v1661 = vsel %vm387, %v1650, %v1652
        %v1662 = vsel %vm387, %v1654, %v1656
        %vm1675 = vcmask 1047808
        %1676 = vst.msk [vmem:[#allocation2 + $0xc0] sm:$0xff] %vm1675, %v1634
        %1677 = vst [vmem:[#allocation2 + $0xc8] sm:$0xff] %v1657
        %1678 = vst.msk [vmem:[#allocation2 + $0xd0] sm:$0xff] %vm1675, %v1638
        %1679 = vst [vmem:[#allocation2 + $0xd8] sm:$0xff] %v1658
        %1680 = vst.msk [vmem:[#allocation2 + $0xe0] sm:$0xff] %vm1675, %v1642
        %1681 = vst [vmem:[#allocation2 + $0xe8] sm:$0xff] %v1659
        %1682 = vst.msk [vmem:[#allocation2 + $0xf0] sm:$0xff] %vm1675, %v1646
        %1683 = vst [vmem:[#allocation2 + $0xf8] sm:$0xff] %v1660
        %1684 = vst.msk [vmem:[#allocation2 + $0x100] sm:$0xff] %vm1675, %v1650
        %1685 = vst [vmem:[#allocation2 + $0x108] sm:$0xff] %v1661
        %1686 = vst.msk [vmem:[#allocation2 + $0x110] sm:$0xff] %vm1675, %v1654
        %1687 = vst [vmem:[#allocation2 + $0x118] sm:$0xff] %v1662
        %v1688 = vld [vmem:[#allocation3] sm:$0xff]
        %v1689 = vld [vmem:[#allocation3 + $0x8] sm:$0xff]
        %v1690 = vld [vmem:[#allocation3 + $0x10] sm:$0xff]
        %v1691 = vld [vmem:[#allocation3 + $0x18] sm:$0xff]
        %v1692 = vld [vmem:[#allocation3 + $0x20] sm:$0xff]
        %v1693 = vld [vmem:[#allocation3 + $0x28] sm:$0xff]
        %v1694 = vld [vmem:[#allocation3 + $0x30] sm:$0xff]
        %v1695 = vld [vmem:[#allocation3 + $0x38] sm:$0xff]
        %v1696 = vld [vmem:[#allocation3 + $0x40] sm:$0xff]
        %v1697 = vld [vmem:[#allocation3 + $0x48] sm:$0xff]
        %v1698 = vld [vmem:[#allocation3 + $0x50] sm:$0xff]
        %v1699 = vld [vmem:[#allocation3 + $0x58] sm:$0xff]
        %v1700 = vld [vmem:[%s396] ss:$8 sm:$0x3]
        %v1702 = vlaneseq
        %v1703 = vshrl.u32 %v1702, 7
        %v1704 = vsub.s32 0, %v1703
        %v1705 = vrot.slane %v1700, %v1704
        %v1706 = vlaneseq
        %v1707 = vshrl.u32 %v1706, 7
        %v1708 = vsub.s32 1, %v1707
        %v1709 = vrot.slane %v1700, %v1708
        %1710 = vrot.lane.b32.xlu0 %v1705, 97
        %v1711 = vpop.permute.xlu0 %1710
        %1712 = vrot.lane.b32.xlu0 %v1709, 97
        %v1713 = vpop.permute.xlu0 %1712
        %v1714 = vsel %vm402, %v1711, %v1713
        %v1717 = vmul.f32 %v1688, %v1714
        %v1718 = vmul.f32 %v1689, %v1713
        %v1719 = vmul.f32 %v1690, %v1714
        %v1720 = vmul.f32 %v1691, %v1713
        %v1721 = vmul.f32 %v1692, %v1714
        %v1722 = vmul.f32 %v1693, %v1713
        %v1723 = vmul.f32 %v1694, %v1714
        %v1724 = vmul.f32 %v1695, %v1713
        %v1725 = vmul.f32 %v1696, %v1714
        %v1726 = vmul.f32 %v1697, %v1713
        %v1727 = vmul.f32 %v1698, %v1714
        %v1728 = vmul.f32 %v1699, %v1713
        %1741 = vrot.lane.b32.xlu0 %v1717, 31
        %v1742 = vpop.permute.xlu0 %1741
        %1743 = vrot.lane.b32.xlu0 %v1718, 31
        %v1744 = vpop.permute.xlu0 %1743
        %1745 = vrot.lane.b32.xlu0 %v1719, 31
        %v1746 = vpop.permute.xlu0 %1745
        %1747 = vrot.lane.b32.xlu0 %v1720, 31
        %v1748 = vpop.permute.xlu0 %1747
        %1749 = vrot.lane.b32.xlu0 %v1721, 31
        %v1750 = vpop.permute.xlu0 %1749
        %1751 = vrot.lane.b32.xlu0 %v1722, 31
        %v1752 = vpop.permute.xlu0 %1751
        %1753 = vrot.lane.b32.xlu0 %v1723, 31
        %v1754 = vpop.permute.xlu0 %1753
        %1755 = vrot.lane.b32.xlu0 %v1724, 31
        %v1756 = vpop.permute.xlu0 %1755
        %1757 = vrot.lane.b32.xlu0 %v1725, 31
        %v1758 = vpop.permute.xlu0 %1757
        %1759 = vrot.lane.b32.xlu0 %v1726, 31
        %v1760 = vpop.permute.xlu0 %1759
        %1761 = vrot.lane.b32.xlu0 %v1727, 31
        %v1762 = vpop.permute.xlu0 %1761
        %1763 = vrot.lane.b32.xlu0 %v1728, 31
        %v1764 = vpop.permute.xlu0 %1763
        %v1765 = vsel %vm410, %v1742, %v1744
        %v1766 = vsel %vm410, %v1746, %v1748
        %v1767 = vsel %vm410, %v1750, %v1752
        %v1768 = vsel %vm410, %v1754, %v1756
        %v1769 = vsel %vm410, %v1758, %v1760
        %v1770 = vsel %vm410, %v1762, %v1764
        %vm1783 = vcmask 1047800
        %1784 = vst.msk [vmem:[#allocation2 + $0x120] sm:$0xff] %vm1783, %v1742
        %1785 = vst [vmem:[#allocation2 + $0x128] sm:$0xff] %v1765
        %1786 = vst.msk [vmem:[#allocation2 + $0x130] sm:$0xff] %vm1783, %v1746
        %1787 = vst [vmem:[#allocation2 + $0x138] sm:$0xff] %v1766
        %1788 = vst.msk [vmem:[#allocation2 + $0x140] sm:$0xff] %vm1783, %v1750
        %1789 = vst [vmem:[#allocation2 + $0x148] sm:$0xff] %v1767
        %1790 = vst.msk [vmem:[#allocation2 + $0x150] sm:$0xff] %vm1783, %v1754
        %1791 = vst [vmem:[#allocation2 + $0x158] sm:$0xff] %v1768
        %1792 = vst.msk [vmem:[#allocation2 + $0x160] sm:$0xff] %vm1783, %v1758
        %1793 = vst [vmem:[#allocation2 + $0x168] sm:$0xff] %v1769
        %1794 = vst.msk [vmem:[#allocation2 + $0x170] sm:$0xff] %vm1783, %v1762
        %1795 = vst [vmem:[#allocation2 + $0x178] sm:$0xff] %v1770
        %v1796 = vld [vmem:[#allocation3] sm:$0xff]
        %v1797 = vld [vmem:[#allocation3 + $0x8] sm:$0xff]
        %v1798 = vld [vmem:[#allocation3 + $0x10] sm:$0xff]
        %v1799 = vld [vmem:[#allocation3 + $0x18] sm:$0xff]
        %v1800 = vld [vmem:[#allocation3 + $0x20] sm:$0xff]
        %v1801 = vld [vmem:[#allocation3 + $0x28] sm:$0xff]
        %v1802 = vld [vmem:[#allocation3 + $0x30] sm:$0xff]
        %v1803 = vld [vmem:[#allocation3 + $0x38] sm:$0xff]
        %v1804 = vld [vmem:[#allocation3 + $0x40] sm:$0xff]
        %v1805 = vld [vmem:[#allocation3 + $0x48] sm:$0xff]
        %v1806 = vld [vmem:[#allocation3 + $0x50] sm:$0xff]
        %v1807 = vld [vmem:[#allocation3 + $0x58] sm:$0xff]
        %v1808 = vld [vmem:[%s419] ss:$8 sm:$0x3]
        %v1810 = vlaneseq
        %v1811 = vshrl.u32 %v1810, 7
        %v1812 = vsub.s32 0, %v1811
        %v1813 = vrot.slane %v1808, %v1812
        %v1814 = vlaneseq
        %v1815 = vshrl.u32 %v1814, 7
        %v1816 = vsub.s32 1, %v1815
        %v1817 = vrot.slane %v1808, %v1816
        %1818 = vrot.lane.b32.xlu0 %v1813, 98
        %v1819 = vpop.permute.xlu0 %1818
        %1820 = vrot.lane.b32.xlu0 %v1817, 98
        %v1821 = vpop.permute.xlu0 %1820
        %v1822 = vsel %vm425, %v1819, %v1821
        %v1825 = vmul.f32 %v1796, %v1822
        %v1826 = vmul.f32 %v1797, %v1821
        %v1827 = vmul.f32 %v1798, %v1822
        %v1828 = vmul.f32 %v1799, %v1821
        %v1829 = vmul.f32 %v1800, %v1822
        %v1830 = vmul.f32 %v1801, %v1821
        %v1831 = vmul.f32 %v1802, %v1822
        %v1832 = vmul.f32 %v1803, %v1821
        %v1833 = vmul.f32 %v1804, %v1822
        %v1834 = vmul.f32 %v1805, %v1821
        %v1835 = vmul.f32 %v1806, %v1822
        %v1836 = vmul.f32 %v1807, %v1821
        %1849 = vrot.lane.b32.xlu0 %v1825, 30
        %v1850 = vpop.permute.xlu0 %1849
        %1851 = vrot.lane.b32.xlu0 %v1826, 30
        %v1852 = vpop.permute.xlu0 %1851
        %1853 = vrot.lane.b32.xlu0 %v1827, 30
        %v1854 = vpop.permute.xlu0 %1853
        %1855 = vrot.lane.b32.xlu0 %v1828, 30
        %v1856 = vpop.permute.xlu0 %1855
        %1857 = vrot.lane.b32.xlu0 %v1829, 30
        %v1858 = vpop.permute.xlu0 %1857
        %1859 = vrot.lane.b32.xlu0 %v1830, 30
        %v1860 = vpop.permute.xlu0 %1859
        %1861 = vrot.lane.b32.xlu0 %v1831, 30
        %v1862 = vpop.permute.xlu0 %1861
        %1863 = vrot.lane.b32.xlu0 %v1832, 30
        %v1864 = vpop.permute.xlu0 %1863
        %1865 = vrot.lane.b32.xlu0 %v1833, 30
        %v1866 = vpop.permute.xlu0 %1865
        %1867 = vrot.lane.b32.xlu0 %v1834, 30
        %v1868 = vpop.permute.xlu0 %1867
        %1869 = vrot.lane.b32.xlu0 %v1835, 30
        %v1870 = vpop.permute.xlu0 %1869
        %1871 = vrot.lane.b32.xlu0 %v1836, 30
        %v1872 = vpop.permute.xlu0 %1871
        %v1873 = vsel %vm433, %v1850, %v1852
        %v1874 = vsel %vm433, %v1854, %v1856
        %v1875 = vsel %vm433, %v1858, %v1860
        %v1876 = vsel %vm433, %v1862, %v1864
        %v1877 = vsel %vm433, %v1866, %v1868
        %v1878 = vsel %vm433, %v1870, %v1872
        %vm1891 = vcmask 1047792
        %1892 = vst.msk [vmem:[#allocation2 + $0x180] sm:$0xff] %vm1891, %v1850
        %1893 = vst [vmem:[#allocation2 + $0x188] sm:$0xff] %v1873
        %1894 = vst.msk [vmem:[#allocation2 + $0x190] sm:$0xff] %vm1891, %v1854
        %1895 = vst [vmem:[#allocation2 + $0x198] sm:$0xff] %v1874
        %1896 = vst.msk [vmem:[#allocation2 + $0x1a0] sm:$0xff] %vm1891, %v1858
        %1897 = vst [vmem:[#allocation2 + $0x1a8] sm:$0xff] %v1875
        %1898 = vst.msk [vmem:[#allocation2 + $0x1b0] sm:$0xff] %vm1891, %v1862
        %1899 = vst [vmem:[#allocation2 + $0x1b8] sm:$0xff] %v1876
        %1900 = vst.msk [vmem:[#allocation2 + $0x1c0] sm:$0xff] %vm1891, %v1866
        %1901 = vst [vmem:[#allocation2 + $0x1c8] sm:$0xff] %v1877
        %1902 = vst.msk [vmem:[#allocation2 + $0x1d0] sm:$0xff] %vm1891, %v1870
        %1903 = vst [vmem:[#allocation2 + $0x1d8] sm:$0xff] %v1878
        %v1904 = vld [vmem:[#allocation3] sm:$0xff]
        %v1905 = vld [vmem:[#allocation3 + $0x8] sm:$0xff]
        %v1906 = vld [vmem:[#allocation3 + $0x10] sm:$0xff]
        %v1907 = vld [vmem:[#allocation3 + $0x18] sm:$0xff]
        %v1908 = vld [vmem:[#allocation3 + $0x20] sm:$0xff]
        %v1909 = vld [vmem:[#allocation3 + $0x28] sm:$0xff]
        %v1910 = vld [vmem:[#allocation3 + $0x30] sm:$0xff]
        %v1911 = vld [vmem:[#allocation3 + $0x38] sm:$0xff]
        %v1912 = vld [vmem:[#allocation3 + $0x40] sm:$0xff]
        %v1913 = vld [vmem:[#allocation3 + $0x48] sm:$0xff]
        %v1914 = vld [vmem:[#allocation3 + $0x50] sm:$0xff]
        %v1915 = vld [vmem:[#allocation3 + $0x58] sm:$0xff]
        %v1916 = vld [vmem:[%s442] ss:$8 sm:$0x3]
        %v1918 = vlaneseq
        %v1919 = vshrl.u32 %v1918, 7
        %v1920 = vsub.s32 0, %v1919
        %v1921 = vrot.slane %v1916, %v1920
        %v1922 = vlaneseq
        %v1923 = vshrl.u32 %v1922, 7
        %v1924 = vsub.s32 1, %v1923
        %v1925 = vrot.slane %v1916, %v1924
        %1926 = vrot.lane.b32.xlu0 %v1921, 110
        %v1927 = vpop.permute.xlu0 %1926
        %1928 = vrot.lane.b32.xlu0 %v1925, 110
        %v1929 = vpop.permute.xlu0 %1928
        %v1930 = vsel %vm448, %v1927, %v1929
        %v1933 = vmul.f32 %v1904, %v1930
        %v1934 = vmul.f32 %v1905, %v1929
        %v1935 = vmul.f32 %v1906, %v1930
        %v1936 = vmul.f32 %v1907, %v1929
        %v1937 = vmul.f32 %v1908, %v1930
        %v1938 = vmul.f32 %v1909, %v1929
        %v1939 = vmul.f32 %v1910, %v1930
        %v1940 = vmul.f32 %v1911, %v1929
        %v1941 = vmul.f32 %v1912, %v1930
        %v1942 = vmul.f32 %v1913, %v1929
        %v1943 = vmul.f32 %v1914, %v1930
        %v1944 = vmul.f32 %v1915, %v1929
        %1957 = vrot.lane.b32.xlu0 %v1933, 18
        %v1958 = vpop.permute.xlu0 %1957
        %1959 = vrot.lane.b32.xlu0 %v1934, 18
        %v1960 = vpop.permute.xlu0 %1959
        %1961 = vrot.lane.b32.xlu0 %v1935, 18
        %v1962 = vpop.permute.xlu0 %1961
        %1963 = vrot.lane.b32.xlu0 %v1936, 18
        %v1964 = vpop.permute.xlu0 %1963
        %1965 = vrot.lane.b32.xlu0 %v1937, 18
        %v1966 = vpop.permute.xlu0 %1965
        %1967 = vrot.lane.b32.xlu0 %v1938, 18
        %v1968 = vpop.permute.xlu0 %1967
        %1969 = vrot.lane.b32.xlu0 %v1939, 18
        %v1970 = vpop.permute.xlu0 %1969
        %1971 = vrot.lane.b32.xlu0 %v1940, 18
        %v1972 = vpop.permute.xlu0 %1971
        %1973 = vrot.lane.b32.xlu0 %v1941, 18
        %v1974 = vpop.permute.xlu0 %1973
        %1975 = vrot.lane.b32.xlu0 %v1942, 18
        %v1976 = vpop.permute.xlu0 %1975
        %1977 = vrot.lane.b32.xlu0 %v1943, 18
        %v1978 = vpop.permute.xlu0 %1977
        %1979 = vrot.lane.b32.xlu0 %v1944, 18
        %v1980 = vpop.permute.xlu0 %1979
        %v1981 = vsel %vm456, %v1958, %v1960
        %v1982 = vsel %vm456, %v1962, %v1964
        %v1983 = vsel %vm456, %v1966, %v1968
        %v1984 = vsel %vm456, %v1970, %v1972
        %v1985 = vsel %vm456, %v1974, %v1976
        %v1986 = vsel %vm456, %v1978, %v1980
        %vm1999 = vcmask 1047696
        %2000 = vst.msk [vmem:[#allocation2 + $0x1e0] sm:$0xff] %vm1999, %v1958
        %2001 = vst [vmem:[#allocation2 + $0x1e8] sm:$0xff] %v1981
        %2002 = vst.msk [vmem:[#allocation2 + $0x1f0] sm:$0xff] %vm1999, %v1962
        %2003 = vst [vmem:[#allocation2 + $0x1f8] sm:$0xff] %v1982
        %2004 = vst.msk [vmem:[#allocation2 + $0x200] sm:$0xff] %vm1999, %v1966
        %2005 = vst [vmem:[#allocation2 + $0x208] sm:$0xff] %v1983
        %2006 = vst.msk [vmem:[#allocation2 + $0x210] sm:$0xff] %vm1999, %v1970
        %2007 = vst [vmem:[#allocation2 + $0x218] sm:$0xff] %v1984
        %2008 = vst.msk [vmem:[#allocation2 + $0x220] sm:$0xff] %vm1999, %v1974
        %2009 = vst [vmem:[#allocation2 + $0x228] sm:$0xff] %v1985
        %2010 = vst.msk [vmem:[#allocation2 + $0x230] sm:$0xff] %vm1999, %v1978
        %2011 = vst [vmem:[#allocation2 + $0x238] sm:$0xff] %v1986
        %v2012 = vld [vmem:[#allocation3] sm:$0xff]
        %v2013 = vld [vmem:[#allocation3 + $0x8] sm:$0xff]
        %v2014 = vld [vmem:[#allocation3 + $0x10] sm:$0xff]
        %v2015 = vld [vmem:[#allocation3 + $0x18] sm:$0xff]
        %v2016 = vld [vmem:[#allocation3 + $0x20] sm:$0xff]
        %v2017 = vld [vmem:[#allocation3 + $0x28] sm:$0xff]
        %v2018 = vld [vmem:[#allocation3 + $0x30] sm:$0xff]
        %v2019 = vld [vmem:[#allocation3 + $0x38] sm:$0xff]
        %v2020 = vld [vmem:[#allocation3 + $0x40] sm:$0xff]
        %v2021 = vld [vmem:[#allocation3 + $0x48] sm:$0xff]
        %v2022 = vld [vmem:[#allocation3 + $0x50] sm:$0xff]
        %v2023 = vld [vmem:[#allocation3 + $0x58] sm:$0xff]
        %v2024 = vld [vmem:[%s465] ss:$8 sm:$0x3]
        %v2026 = vlaneseq
        %v2027 = vshrl.u32 %v2026, 7
        %v2028 = vsub.s32 0, %v2027
        %v2029 = vrot.slane %v2024, %v2028
        %v2030 = vlaneseq
        %v2031 = vshrl.u32 %v2030, 7
        %v2032 = vsub.s32 1, %v2031
        %v2033 = vrot.slane %v2024, %v2032
        %2034 = vrot.lane.b32.xlu0 %v2029, 111
        %v2035 = vpop.permute.xlu0 %2034
        %2036 = vrot.lane.b32.xlu0 %v2033, 111
        %v2037 = vpop.permute.xlu0 %2036
        %v2038 = vsel %vm471, %v2035, %v2037
        %v2041 = vmul.f32 %v2012, %v2038
        %v2042 = vmul.f32 %v2013, %v2037
        %v2043 = vmul.f32 %v2014, %v2038
        %v2044 = vmul.f32 %v2015, %v2037
        %v2045 = vmul.f32 %v2016, %v2038
        %v2046 = vmul.f32 %v2017, %v2037
        %v2047 = vmul.f32 %v2018, %v2038
        %v2048 = vmul.f32 %v2019, %v2037
        %v2049 = vmul.f32 %v2020, %v2038
        %v2050 = vmul.f32 %v2021, %v2037
        %v2051 = vmul.f32 %v2022, %v2038
        %v2052 = vmul.f32 %v2023, %v2037
        %2065 = vrot.lane.b32.xlu0 %v2041, 17
        %v2066 = vpop.permute.xlu0 %2065
        %2067 = vrot.lane.b32.xlu0 %v2042, 17
        %v2068 = vpop.permute.xlu0 %2067
        %2069 = vrot.lane.b32.xlu0 %v2043, 17
        %v2070 = vpop.permute.xlu0 %2069
        %2071 = vrot.lane.b32.xlu0 %v2044, 17
        %v2072 = vpop.permute.xlu0 %2071
        %2073 = vrot.lane.b32.xlu0 %v2045, 17
        %v2074 = vpop.permute.xlu0 %2073
        %2075 = vrot.lane.b32.xlu0 %v2046, 17
        %v2076 = vpop.permute.xlu0 %2075
        %2077 = vrot.lane.b32.xlu0 %v2047, 17
        %v2078 = vpop.permute.xlu0 %2077
        %2079 = vrot.lane.b32.xlu0 %v2048, 17
        %v2080 = vpop.permute.xlu0 %2079
        %2081 = vrot.lane.b32.xlu0 %v2049, 17
        %v2082 = vpop.permute.xlu0 %2081
        %2083 = vrot.lane.b32.xlu0 %v2050, 17
        %v2084 = vpop.permute.xlu0 %2083
        %2085 = vrot.lane.b32.xlu0 %v2051, 17
        %v2086 = vpop.permute.xlu0 %2085
        %2087 = vrot.lane.b32.xlu0 %v2052, 17
        %v2088 = vpop.permute.xlu0 %2087
        %v2089 = vsel %vm479, %v2066, %v2068
        %v2090 = vsel %vm479, %v2070, %v2072
        %v2091 = vsel %vm479, %v2074, %v2076
        %v2092 = vsel %vm479, %v2078, %v2080
        %v2093 = vsel %vm479, %v2082, %v2084
        %v2094 = vsel %vm479, %v2086, %v2088
        %vm2107 = vcmask 1047688
        %2108 = vst.msk [vmem:[#allocation2 + $0x240] sm:$0xff] %vm2107, %v2066
        %2109 = vst [vmem:[#allocation2 + $0x248] sm:$0xff] %v2089
        %2110 = vst.msk [vmem:[#allocation2 + $0x250] sm:$0xff] %vm2107, %v2070
        %2111 = vst [vmem:[#allocation2 + $0x258] sm:$0xff] %v2090
        %2112 = vst.msk [vmem:[#allocation2 + $0x260] sm:$0xff] %vm2107, %v2074
        %2113 = vst [vmem:[#allocation2 + $0x268] sm:$0xff] %v2091
        %2114 = vst.msk [vmem:[#allocation2 + $0x270] sm:$0xff] %vm2107, %v2078
        %2115 = vst [vmem:[#allocation2 + $0x278] sm:$0xff] %v2092
        %2116 = vst.msk [vmem:[#allocation2 + $0x280] sm:$0xff] %vm2107, %v2082
        %2117 = vst [vmem:[#allocation2 + $0x288] sm:$0xff] %v2093
        %2118 = vst.msk [vmem:[#allocation2 + $0x290] sm:$0xff] %vm2107, %v2086
        %2119 = vst [vmem:[#allocation2 + $0x298] sm:$0xff] %v2094
        %v2120 = vld [vmem:[#allocation3] sm:$0xff]
        %v2121 = vld [vmem:[#allocation3 + $0x8] sm:$0xff]
        %v2122 = vld [vmem:[#allocation3 + $0x10] sm:$0xff]
        %v2123 = vld [vmem:[#allocation3 + $0x18] sm:$0xff]
        %v2124 = vld [vmem:[#allocation3 + $0x20] sm:$0xff]
        %v2125 = vld [vmem:[#allocation3 + $0x28] sm:$0xff]
        %v2126 = vld [vmem:[#allocation3 + $0x30] sm:$0xff]
        %v2127 = vld [vmem:[#allocation3 + $0x38] sm:$0xff]
        %v2128 = vld [vmem:[#allocation3 + $0x40] sm:$0xff]
        %v2129 = vld [vmem:[#allocation3 + $0x48] sm:$0xff]
        %v2130 = vld [vmem:[#allocation3 + $0x50] sm:$0xff]
        %v2131 = vld [vmem:[#allocation3 + $0x58] sm:$0xff]
        %v2132 = vld [vmem:[%s488] ss:$8 sm:$0x3]
        %v2134 = vlaneseq
        %v2135 = vshrl.u32 %v2134, 7
        %v2136 = vsub.s32 0, %v2135
        %v2137 = vrot.slane %v2132, %v2136
        %v2138 = vlaneseq
        %v2139 = vshrl.u32 %v2138, 7
        %v2140 = vsub.s32 1, %v2139
        %v2141 = vrot.slane %v2132, %v2140
        %2142 = vrot.lane.b32.xlu0 %v2137, 112
        %v2143 = vpop.permute.xlu0 %2142
        %2144 = vrot.lane.b32.xlu0 %v2141, 112
        %v2145 = vpop.permute.xlu0 %2144
        %v2146 = vsel %vm494, %v2143, %v2145
        %v2149 = vmul.f32 %v2120, %v2146
        %v2150 = vmul.f32 %v2121, %v2145
        %v2151 = vmul.f32 %v2122, %v2146
        %v2152 = vmul.f32 %v2123, %v2145
        %v2153 = vmul.f32 %v2124, %v2146
        %v2154 = vmul.f32 %v2125, %v2145
        %v2155 = vmul.f32 %v2126, %v2146
        %v2156 = vmul.f32 %v2127, %v2145
        %v2157 = vmul.f32 %v2128, %v2146
        %v2158 = vmul.f32 %v2129, %v2145
        %v2159 = vmul.f32 %v2130, %v2146
        %v2160 = vmul.f32 %v2131, %v2145
        %2173 = vrot.lane.b32.xlu0 %v2149, 16
        %v2174 = vpop.permute.xlu0 %2173
        %2175 = vrot.lane.b32.xlu0 %v2150, 16
        %v2176 = vpop.permute.xlu0 %2175
        %2177 = vrot.lane.b32.xlu0 %v2151, 16
        %v2178 = vpop.permute.xlu0 %2177
        %2179 = vrot.lane.b32.xlu0 %v2152, 16
        %v2180 = vpop.permute.xlu0 %2179
        %2181 = vrot.lane.b32.xlu0 %v2153, 16
        %v2182 = vpop.permute.xlu0 %2181
        %2183 = vrot.lane.b32.xlu0 %v2154, 16
        %v2184 = vpop.permute.xlu0 %2183
        %2185 = vrot.lane.b32.xlu0 %v2155, 16
        %v2186 = vpop.permute.xlu0 %2185
        %2187 = vrot.lane.b32.xlu0 %v2156, 16
        %v2188 = vpop.permute.xlu0 %2187
        %2189 = vrot.lane.b32.xlu0 %v2157, 16
        %v2190 = vpop.permute.xlu0 %2189
        %2191 = vrot.lane.b32.xlu0 %v2158, 16
        %v2192 = vpop.permute.xlu0 %2191
        %2193 = vrot.lane.b32.xlu0 %v2159, 16
        %v2194 = vpop.permute.xlu0 %2193
        %2195 = vrot.lane.b32.xlu0 %v2160, 16
        %v2196 = vpop.permute.xlu0 %2195
        %v2197 = vsel %vm502, %v2174, %v2176
        %v2198 = vsel %vm502, %v2178, %v2180
        %v2199 = vsel %vm502, %v2182, %v2184
        %v2200 = vsel %vm502, %v2186, %v2188
        %v2201 = vsel %vm502, %v2190, %v2192
        %v2202 = vsel %vm502, %v2194, %v2196
        %vm2215 = vcmask 1047680
        %2216 = vst.msk [vmem:[#allocation2 + $0x2a0] sm:$0xff] %vm2215, %v2174
        %2217 = vst [vmem:[#allocation2 + $0x2a8] sm:$0xff] %v2197
        %2218 = vst.msk [vmem:[#allocation2 + $0x2b0] sm:$0xff] %vm2215, %v2178
        %2219 = vst [vmem:[#allocation2 + $0x2b8] sm:$0xff] %v2198
        %2220 = vst.msk [vmem:[#allocation2 + $0x2c0] sm:$0xff] %vm2215, %v2182
        %2221 = vst [vmem:[#allocation2 + $0x2c8] sm:$0xff] %v2199
        %2222 = vst.msk [vmem:[#allocation2 + $0x2d0] sm:$0xff] %vm2215, %v2186
        %2223 = vst [vmem:[#allocation2 + $0x2d8] sm:$0xff] %v2200
        %2224 = vst.msk [vmem:[#allocation2 + $0x2e0] sm:$0xff] %vm2215, %v2190
        %2225 = vst [vmem:[#allocation2 + $0x2e8] sm:$0xff] %v2201
        %2226 = vst.msk [vmem:[#allocation2 + $0x2f0] sm:$0xff] %vm2215, %v2194
        %2227 = vst [vmem:[#allocation2 + $0x2f8] sm:$0xff] %v2202
        %v2228 = vld [vmem:[#allocation3] sm:$0xff]
        %v2229 = vld [vmem:[#allocation3 + $0x8] sm:$0xff]
        %v2230 = vld [vmem:[#allocation3 + $0x10] sm:$0xff]
        %v2231 = vld [vmem:[#allocation3 + $0x18] sm:$0xff]
        %v2232 = vld [vmem:[#allocation3 + $0x20] sm:$0xff]
        %v2233 = vld [vmem:[#allocation3 + $0x28] sm:$0xff]
        %v2234 = vld [vmem:[#allocation3 + $0x30] sm:$0xff]
        %v2235 = vld [vmem:[#allocation3 + $0x38] sm:$0xff]
        %v2236 = vld [vmem:[#allocation3 + $0x40] sm:$0xff]
        %v2237 = vld [vmem:[#allocation3 + $0x48] sm:$0xff]
        %v2238 = vld [vmem:[#allocation3 + $0x50] sm:$0xff]
        %v2239 = vld [vmem:[#allocation3 + $0x58] sm:$0xff]
        %v2240 = vld [vmem:[%s511] ss:$8 sm:$0x3]
        %v2242 = vlaneseq
        %v2243 = vshrl.u32 %v2242, 7
        %v2244 = vsub.s32 0, %v2243
        %v2245 = vrot.slane %v2240, %v2244
        %v2246 = vlaneseq
        %v2247 = vshrl.u32 %v2246, 7
        %v2248 = vsub.s32 1, %v2247
        %v2249 = vrot.slane %v2240, %v2248
        %2250 = vrot.lane.b32.xlu0 %v2245, 113
        %v2251 = vpop.permute.xlu0 %2250
        %2252 = vrot.lane.b32.xlu0 %v2249, 113
        %v2253 = vpop.permute.xlu0 %2252
        %v2254 = vsel %vm517, %v2251, %v2253
        %v2257 = vmul.f32 %v2228, %v2254
        %v2258 = vmul.f32 %v2229, %v2253
        %v2259 = vmul.f32 %v2230, %v2254
        %v2260 = vmul.f32 %v2231, %v2253
        %v2261 = vmul.f32 %v2232, %v2254
        %v2262 = vmul.f32 %v2233, %v2253
        %v2263 = vmul.f32 %v2234, %v2254
        %v2264 = vmul.f32 %v2235, %v2253
        %v2265 = vmul.f32 %v2236, %v2254
        %v2266 = vmul.f32 %v2237, %v2253
        %v2267 = vmul.f32 %v2238, %v2254
        %v2268 = vmul.f32 %v2239, %v2253
        %2281 = vrot.lane.b32.xlu0 %v2257, 15
        %v2282 = vpop.permute.xlu0 %2281
        %2283 = vrot.lane.b32.xlu0 %v2258, 15
        %v2284 = vpop.permute.xlu0 %2283
        %2285 = vrot.lane.b32.xlu0 %v2259, 15
        %v2286 = vpop.permute.xlu0 %2285
        %2287 = vrot.lane.b32.xlu0 %v2260, 15
        %v2288 = vpop.permute.xlu0 %2287
        %2289 = vrot.lane.b32.xlu0 %v2261, 15
        %v2290 = vpop.permute.xlu0 %2289
        %2291 = vrot.lane.b32.xlu0 %v2262, 15
        %v2292 = vpop.permute.xlu0 %2291
        %2293 = vrot.lane.b32.xlu0 %v2263, 15
        %v2294 = vpop.permute.xlu0 %2293
        %2295 = vrot.lane.b32.xlu0 %v2264, 15
        %v2296 = vpop.permute.xlu0 %2295
        %2297 = vrot.lane.b32.xlu0 %v2265, 15
        %v2298 = vpop.permute.xlu0 %2297
        %2299 = vrot.lane.b32.xlu0 %v2266, 15
        %v2300 = vpop.permute.xlu0 %2299
        %2301 = vrot.lane.b32.xlu0 %v2267, 15
        %v2302 = vpop.permute.xlu0 %2301
        %2303 = vrot.lane.b32.xlu0 %v2268, 15
        %v2304 = vpop.permute.xlu0 %2303
        %v2305 = vsel %vm525, %v2282, %v2284
        %v2306 = vsel %vm525, %v2286, %v2288
        %v2307 = vsel %vm525, %v2290, %v2292
        %v2308 = vsel %vm525, %v2294, %v2296
        %v2309 = vsel %vm525, %v2298, %v2300
        %v2310 = vsel %vm525, %v2302, %v2304
        %vm2323 = vcmask 1047672
        %2324 = vst.msk [vmem:[#allocation2 + $0x300] sm:$0xff] %vm2323, %v2282
        %2325 = vst [vmem:[#allocation2 + $0x308] sm:$0xff] %v2305
        %2326 = vst.msk [vmem:[#allocation2 + $0x310] sm:$0xff] %vm2323, %v2286
        %2327 = vst [vmem:[#allocation2 + $0x318] sm:$0xff] %v2306
        %2328 = vst.msk [vmem:[#allocation2 + $0x320] sm:$0xff] %vm2323, %v2290
        %2329 = vst [vmem:[#allocation2 + $0x328] sm:$0xff] %v2307
        %2330 = vst.msk [vmem:[#allocation2 + $0x330] sm:$0xff] %vm2323, %v2294
        %2331 = vst [vmem:[#allocation2 + $0x338] sm:$0xff] %v2308
        %2332 = vst.msk [vmem:[#allocation2 + $0x340] sm:$0xff] %vm2323, %v2298
        %2333 = vst [vmem:[#allocation2 + $0x348] sm:$0xff] %v2309
        %2334 = vst.msk [vmem:[#allocation2 + $0x350] sm:$0xff] %vm2323, %v2302
        %2335 = vst [vmem:[#allocation2 + $0x358] sm:$0xff] %v2310
        %v2336 = vld [vmem:[#allocation3] sm:$0xff]
        %v2337 = vld [vmem:[#allocation3 + $0x8] sm:$0xff]
        %v2338 = vld [vmem:[#allocation3 + $0x10] sm:$0xff]
        %v2339 = vld [vmem:[#allocation3 + $0x18] sm:$0xff]
        %v2340 = vld [vmem:[#allocation3 + $0x20] sm:$0xff]
        %v2341 = vld [vmem:[#allocation3 + $0x28] sm:$0xff]
        %v2342 = vld [vmem:[#allocation3 + $0x30] sm:$0xff]
        %v2343 = vld [vmem:[#allocation3 + $0x38] sm:$0xff]
        %v2344 = vld [vmem:[#allocation3 + $0x40] sm:$0xff]
        %v2345 = vld [vmem:[#allocation3 + $0x48] sm:$0xff]
        %v2346 = vld [vmem:[#allocation3 + $0x50] sm:$0xff]
        %v2347 = vld [vmem:[#allocation3 + $0x58] sm:$0xff]
        %v2348 = vld [vmem:[%s534] ss:$8 sm:$0x3]
        %v2350 = vlaneseq
        %v2351 = vshrl.u32 %v2350, 7
        %v2352 = vsub.s32 0, %v2351
        %v2353 = vrot.slane %v2348, %v2352
        %v2354 = vlaneseq
        %v2355 = vshrl.u32 %v2354, 7
        %v2356 = vsub.s32 1, %v2355
        %v2357 = vrot.slane %v2348, %v2356
        %2358 = vrot.lane.b32.xlu0 %v2353, 114
        %v2359 = vpop.permute.xlu0 %2358
        %2360 = vrot.lane.b32.xlu0 %v2357, 114
        %v2361 = vpop.permute.xlu0 %2360
        %v2362 = vsel %vm540, %v2359, %v2361
        %v2365 = vmul.f32 %v2336, %v2362
        %v2366 = vmul.f32 %v2337, %v2361
        %v2367 = vmul.f32 %v2338, %v2362
        %v2368 = vmul.f32 %v2339, %v2361
        %v2369 = vmul.f32 %v2340, %v2362
        %v2370 = vmul.f32 %v2341, %v2361
        %v2371 = vmul.f32 %v2342, %v2362
        %v2372 = vmul.f32 %v2343, %v2361
        %v2373 = vmul.f32 %v2344, %v2362
        %v2374 = vmul.f32 %v2345, %v2361
        %v2375 = vmul.f32 %v2346, %v2362
        %v2376 = vmul.f32 %v2347, %v2361
        %2389 = vrot.lane.b32.xlu0 %v2365, 14
        %v2390 = vpop.permute.xlu0 %2389
        %2391 = vrot.lane.b32.xlu0 %v2366, 14
        %v2392 = vpop.permute.xlu0 %2391
        %2393 = vrot.lane.b32.xlu0 %v2367, 14
        %v2394 = vpop.permute.xlu0 %2393
        %2395 = vrot.lane.b32.xlu0 %v2368, 14
        %v2396 = vpop.permute.xlu0 %2395
        %2397 = vrot.lane.b32.xlu0 %v2369, 14
        %v2398 = vpop.permute.xlu0 %2397
        %2399 = vrot.lane.b32.xlu0 %v2370, 14
        %v2400 = vpop.permute.xlu0 %2399
        %2401 = vrot.lane.b32.xlu0 %v2371, 14
        %v2402 = vpop.permute.xlu0 %2401
        %2403 = vrot.lane.b32.xlu0 %v2372, 14
        %v2404 = vpop.permute.xlu0 %2403
        %2405 = vrot.lane.b32.xlu0 %v2373, 14
        %v2406 = vpop.permute.xlu0 %2405
        %2407 = vrot.lane.b32.xlu0 %v2374, 14
        %v2408 = vpop.permute.xlu0 %2407
        %2409 = vrot.lane.b32.xlu0 %v2375, 14
        %v2410 = vpop.permute.xlu0 %2409
        %2411 = vrot.lane.b32.xlu0 %v2376, 14
        %v2412 = vpop.permute.xlu0 %2411
        %v2413 = vsel %vm548, %v2390, %v2392
        %v2414 = vsel %vm548, %v2394, %v2396
        %v2415 = vsel %vm548, %v2398, %v2400
        %v2416 = vsel %vm548, %v2402, %v2404
        %v2417 = vsel %vm548, %v2406, %v2408
        %v2418 = vsel %vm548, %v2410, %v2412
        %vm2431 = vcmask 1047664
        %2432 = vst.msk [vmem:[#allocation2 + $0x360] sm:$0xff] %vm2431, %v2390
        %2433 = vst [vmem:[#allocation2 + $0x368] sm:$0xff] %v2413
        %2434 = vst.msk [vmem:[#allocation2 + $0x370] sm:$0xff] %vm2431, %v2394
        %2435 = vst [vmem:[#allocation2 + $0x378] sm:$0xff] %v2414
        %2436 = vst.msk [vmem:[#allocation2 + $0x380] sm:$0xff] %vm2431, %v2398
        %2437 = vst [vmem:[#allocation2 + $0x388] sm:$0xff] %v2415
        %2438 = vst.msk [vmem:[#allocation2 + $0x390] sm:$0xff] %vm2431, %v2402
        %2439 = vst [vmem:[#allocation2 + $0x398] sm:$0xff] %v2416
        %2440 = vst.msk [vmem:[#allocation2 + $0x3a0] sm:$0xff] %vm2431, %v2406
        %2441 = vst [vmem:[#allocation2 + $0x3a8] sm:$0xff] %v2417
        %2442 = vst.msk [vmem:[#allocation2 + $0x3b0] sm:$0xff] %vm2431, %v2410
        %2443 = vst [vmem:[#allocation2 + $0x3b8] sm:$0xff] %v2418
        %v2444 = vld [vmem:[#allocation3] sm:$0xff]
        %v2445 = vld [vmem:[#allocation3 + $0x8] sm:$0xff]
        %v2446 = vld [vmem:[#allocation3 + $0x10] sm:$0xff]
        %v2447 = vld [vmem:[#allocation3 + $0x18] sm:$0xff]
        %v2448 = vld [vmem:[#allocation3 + $0x20] sm:$0xff]
        %v2449 = vld [vmem:[#allocation3 + $0x28] sm:$0xff]
        %v2450 = vld [vmem:[#allocation3 + $0x30] sm:$0xff]
        %v2451 = vld [vmem:[#allocation3 + $0x38] sm:$0xff]
        %v2452 = vld [vmem:[#allocation3 + $0x40] sm:$0xff]
        %v2453 = vld [vmem:[#allocation3 + $0x48] sm:$0xff]
        %v2454 = vld [vmem:[#allocation3 + $0x50] sm:$0xff]
        %v2455 = vld [vmem:[#allocation3 + $0x58] sm:$0xff]
        %v2456 = vld [vmem:[%s557] ss:$8 sm:$0x3]
        %v2458 = vlaneseq
        %v2459 = vshrl.u32 %v2458, 7
        %v2460 = vsub.s32 0, %v2459
        %v2461 = vrot.slane %v2456, %v2460
        %v2462 = vlaneseq
        %v2463 = vshrl.u32 %v2462, 7
        %v2464 = vsub.s32 1, %v2463
        %v2465 = vrot.slane %v2456, %v2464
        %2466 = vrot.lane.b32.xlu0 %v2461, 126
        %v2467 = vpop.permute.xlu0 %2466
        %2468 = vrot.lane.b32.xlu0 %v2465, 126
        %v2469 = vpop.permute.xlu0 %2468
        %v2470 = vsel %vm563, %v2467, %v2469
        %v2473 = vmul.f32 %v2444, %v2470
        %v2474 = vmul.f32 %v2445, %v2469
        %v2475 = vmul.f32 %v2446, %v2470
        %v2476 = vmul.f32 %v2447, %v2469
        %v2477 = vmul.f32 %v2448, %v2470
        %v2478 = vmul.f32 %v2449, %v2469
        %v2479 = vmul.f32 %v2450, %v2470
        %v2480 = vmul.f32 %v2451, %v2469
        %v2481 = vmul.f32 %v2452, %v2470
        %v2482 = vmul.f32 %v2453, %v2469
        %v2483 = vmul.f32 %v2454, %v2470
        %v2484 = vmul.f32 %v2455, %v2469
        %2497 = vrot.lane.b32.xlu0 %v2473, 2
        %v2498 = vpop.permute.xlu0 %2497
        %2499 = vrot.lane.b32.xlu0 %v2474, 2
        %v2500 = vpop.permute.xlu0 %2499
        %2501 = vrot.lane.b32.xlu0 %v2475, 2
        %v2502 = vpop.permute.xlu0 %2501
        %2503 = vrot.lane.b32.xlu0 %v2476, 2
        %v2504 = vpop.permute.xlu0 %2503
        %2505 = vrot.lane.b32.xlu0 %v2477, 2
        %v2506 = vpop.permute.xlu0 %2505
        %2507 = vrot.lane.b32.xlu0 %v2478, 2
        %v2508 = vpop.permute.xlu0 %2507
        %2509 = vrot.lane.b32.xlu0 %v2479, 2
        %v2510 = vpop.permute.xlu0 %2509
        %2511 = vrot.lane.b32.xlu0 %v2480, 2
        %v2512 = vpop.permute.xlu0 %2511
        %2513 = vrot.lane.b32.xlu0 %v2481, 2
        %v2514 = vpop.permute.xlu0 %2513
        %2515 = vrot.lane.b32.xlu0 %v2482, 2
        %v2516 = vpop.permute.xlu0 %2515
        %2517 = vrot.lane.b32.xlu0 %v2483, 2
        %v2518 = vpop.permute.xlu0 %2517
        %2519 = vrot.lane.b32.xlu0 %v2484, 2
        %v2520 = vpop.permute.xlu0 %2519
        %v2521 = vsel %vm571, %v2498, %v2500
        %v2522 = vsel %vm571, %v2502, %v2504
        %v2523 = vsel %vm571, %v2506, %v2508
        %v2524 = vsel %vm571, %v2510, %v2512
        %v2525 = vsel %vm571, %v2514, %v2516
        %v2526 = vsel %vm571, %v2518, %v2520
        %vm2539 = vcmask 1047568
        %2540 = vst.msk [vmem:[#allocation2 + $0x3c0] sm:$0xff] %vm2539, %v2498
        %2541 = vst [vmem:[#allocation2 + $0x3c8] sm:$0xff] %v2521
        %2542 = vst.msk [vmem:[#allocation2 + $0x3d0] sm:$0xff] %vm2539, %v2502
        %2543 = vst [vmem:[#allocation2 + $0x3d8] sm:$0xff] %v2522
        %2544 = vst.msk [vmem:[#allocation2 + $0x3e0] sm:$0xff] %vm2539, %v2506
        %2545 = vst [vmem:[#allocation2 + $0x3e8] sm:$0xff] %v2523
        %2546 = vst.msk [vmem:[#allocation2 + $0x3f0] sm:$0xff] %vm2539, %v2510
        %2547 = vst [vmem:[#allocation2 + $0x3f8] sm:$0xff] %v2524
        %2548 = vst.msk [vmem:[#allocation2 + $0x400] sm:$0xff] %vm2539, %v2514
        %2549 = vst [vmem:[#allocation2 + $0x408] sm:$0xff] %v2525
        %2550 = vst.msk [vmem:[#allocation2 + $0x410] sm:$0xff] %vm2539, %v2518
        %2551 = vst [vmem:[#allocation2 + $0x418] sm:$0xff] %v2526
        %v2552 = vld [vmem:[#allocation3] sm:$0xff]
        %v2553 = vld [vmem:[#allocation3 + $0x8] sm:$0xff]
        %v2554 = vld [vmem:[#allocation3 + $0x10] sm:$0xff]
        %v2555 = vld [vmem:[#allocation3 + $0x18] sm:$0xff]
        %v2556 = vld [vmem:[#allocation3 + $0x20] sm:$0xff]
        %v2557 = vld [vmem:[#allocation3 + $0x28] sm:$0xff]
        %v2558 = vld [vmem:[#allocation3 + $0x30] sm:$0xff]
        %v2559 = vld [vmem:[#allocation3 + $0x38] sm:$0xff]
        %v2560 = vld [vmem:[#allocation3 + $0x40] sm:$0xff]
        %v2561 = vld [vmem:[#allocation3 + $0x48] sm:$0xff]
        %v2562 = vld [vmem:[#allocation3 + $0x50] sm:$0xff]
        %v2563 = vld [vmem:[#allocation3 + $0x58] sm:$0xff]
        %v2564 = vld [vmem:[%s580] ss:$8 sm:$0x3]
        %v2566 = vlaneseq
        %v2567 = vshrl.u32 %v2566, 7
        %v2568 = vsub.s32 0, %v2567
        %v2569 = vrot.slane %v2564, %v2568
        %v2570 = vlaneseq
        %v2571 = vshrl.u32 %v2570, 7
        %v2572 = vsub.s32 1, %v2571
        %v2573 = vrot.slane %v2564, %v2572
        %2574 = vrot.lane.b32.xlu0 %v2569, 127
        %v2575 = vpop.permute.xlu0 %2574
        %2576 = vrot.lane.b32.xlu0 %v2573, 127
        %v2577 = vpop.permute.xlu0 %2576
        %v2578 = vsel %vm586, %v2575, %v2577
        %v2581 = vmul.f32 %v2552, %v2578
        %v2582 = vmul.f32 %v2553, %v2577
        %v2583 = vmul.f32 %v2554, %v2578
        %v2584 = vmul.f32 %v2555, %v2577
        %v2585 = vmul.f32 %v2556, %v2578
        %v2586 = vmul.f32 %v2557, %v2577
        %v2587 = vmul.f32 %v2558, %v2578
        %v2588 = vmul.f32 %v2559, %v2577
        %v2589 = vmul.f32 %v2560, %v2578
        %v2590 = vmul.f32 %v2561, %v2577
        %v2591 = vmul.f32 %v2562, %v2578
        %v2592 = vmul.f32 %v2563, %v2577
        %2605 = vrot.lane.b32.xlu0 %v2581, 1
        %v2606 = vpop.permute.xlu0 %2605
        %2607 = vrot.lane.b32.xlu0 %v2582, 1
        %v2608 = vpop.permute.xlu0 %2607
        %2609 = vrot.lane.b32.xlu0 %v2583, 1
        %v2610 = vpop.permute.xlu0 %2609
        %2611 = vrot.lane.b32.xlu0 %v2584, 1
        %v2612 = vpop.permute.xlu0 %2611
        %2613 = vrot.lane.b32.xlu0 %v2585, 1
        %v2614 = vpop.permute.xlu0 %2613
        %2615 = vrot.lane.b32.xlu0 %v2586, 1
        %v2616 = vpop.permute.xlu0 %2615
        %2617 = vrot.lane.b32.xlu0 %v2587, 1
        %v2618 = vpop.permute.xlu0 %2617
        %2619 = vrot.lane.b32.xlu0 %v2588, 1
        %v2620 = vpop.permute.xlu0 %2619
        %2621 = vrot.lane.b32.xlu0 %v2589, 1
        %v2622 = vpop.permute.xlu0 %2621
        %2623 = vrot.lane.b32.xlu0 %v2590, 1
        %v2624 = vpop.permute.xlu0 %2623
        %2625 = vrot.lane.b32.xlu0 %v2591, 1
        %v2626 = vpop.permute.xlu0 %2625
        %2627 = vrot.lane.b32.xlu0 %v2592, 1
        %v2628 = vpop.permute.xlu0 %2627
        %v2629 = vsel %vm594, %v2606, %v2608
        %v2630 = vsel %vm594, %v2610, %v2612
        %v2631 = vsel %vm594, %v2614, %v2616
        %v2632 = vsel %vm594, %v2618, %v2620
        %v2633 = vsel %vm594, %v2622, %v2624
        %v2634 = vsel %vm594, %v2626, %v2628
        %vm2647 = vcmask 1047560
        %2648 = vst.msk [vmem:[#allocation2 + $0x420] sm:$0xff] %vm2647, %v2606
        %2649 = vst [vmem:[#allocation2 + $0x428] sm:$0xff] %v2629
        %2650 = vst.msk [vmem:[#allocation2 + $0x430] sm:$0xff] %vm2647, %v2610
        %2651 = vst [vmem:[#allocation2 + $0x438] sm:$0xff] %v2630
        %2652 = vst.msk [vmem:[#allocation2 + $0x440] sm:$0xff] %vm2647, %v2614
        %2653 = vst [vmem:[#allocation2 + $0x448] sm:$0xff] %v2631
        %2654 = vst.msk [vmem:[#allocation2 + $0x450] sm:$0xff] %vm2647, %v2618
        %2655 = vst [vmem:[#allocation2 + $0x458] sm:$0xff] %v2632
        %2656 = vst.msk [vmem:[#allocation2 + $0x460] sm:$0xff] %vm2647, %v2622
        %2657 = vst [vmem:[#allocation2 + $0x468] sm:$0xff] %v2633
        %2658 = vst.msk [vmem:[#allocation2 + $0x470] sm:$0xff] %vm2647, %v2626
        %2659 = vst [vmem:[#allocation2 + $0x478] sm:$0xff] %v2634
        %v2660 = vld [vmem:[#allocation3] sm:$0xff]
        %v2661 = vld [vmem:[#allocation3 + $0x8] sm:$0xff]
        %v2662 = vld [vmem:[#allocation3 + $0x10] sm:$0xff]
        %v2663 = vld [vmem:[#allocation3 + $0x18] sm:$0xff]
        %v2664 = vld [vmem:[#allocation3 + $0x20] sm:$0xff]
        %v2665 = vld [vmem:[#allocation3 + $0x28] sm:$0xff]
        %v2666 = vld [vmem:[#allocation3 + $0x30] sm:$0xff]
        %v2667 = vld [vmem:[#allocation3 + $0x38] sm:$0xff]
        %v2668 = vld [vmem:[#allocation3 + $0x40] sm:$0xff]
        %v2669 = vld [vmem:[#allocation3 + $0x48] sm:$0xff]
        %v2670 = vld [vmem:[#allocation3 + $0x50] sm:$0xff]
        %v2671 = vld [vmem:[#allocation3 + $0x58] sm:$0xff]
        %v2672 = vld [vmem:[%s603] ss:$8 sm:$0x3]
        %v2674 = vlaneseq
        %v2675 = vshrl.u32 %v2674, 7
        %v2676 = vsub.s32 0, %v2675
        %v2677 = vrot.slane %v2672, %v2676
        %v2678 = vlaneseq
        %v2679 = vshrl.u32 %v2678, 7
        %v2680 = vsub.s32 1, %v2679
        %v2681 = vrot.slane %v2672, %v2680
        %v2684 = vmul.f32 %v2660, %v2677
        %v2685 = vmul.f32 %v2661, %v2681
        %v2686 = vmul.f32 %v2662, %v2677
        %v2687 = vmul.f32 %v2663, %v2681
        %v2688 = vmul.f32 %v2664, %v2677
        %v2689 = vmul.f32 %v2665, %v2681
        %v2690 = vmul.f32 %v2666, %v2677
        %v2691 = vmul.f32 %v2667, %v2681
        %v2692 = vmul.f32 %v2668, %v2677
        %v2693 = vmul.f32 %v2669, %v2681
        %v2694 = vmul.f32 %v2670, %v2677
        %v2695 = vmul.f32 %v2671, %v2681
        %2696 = vst [vmem:[#allocation2 + $0x480] sm:$0xff] %v2684
        %2697 = vst [vmem:[#allocation2 + $0x488] sm:$0xff] %v2685
        %2698 = vst [vmem:[#allocation2 + $0x490] sm:$0xff] %v2686
        %2699 = vst [vmem:[#allocation2 + $0x498] sm:$0xff] %v2687
        %2700 = vst [vmem:[#allocation2 + $0x4a0] sm:$0xff] %v2688
        %2701 = vst [vmem:[#allocation2 + $0x4a8] sm:$0xff] %v2689
        %2702 = vst [vmem:[#allocation2 + $0x4b0] sm:$0xff] %v2690
        %2703 = vst [vmem:[#allocation2 + $0x4b8] sm:$0xff] %v2691
        %2704 = vst [vmem:[#allocation2 + $0x4c0] sm:$0xff] %v2692
        %2705 = vst [vmem:[#allocation2 + $0x4c8] sm:$0xff] %v2693
        %2706 = vst [vmem:[#allocation2 + $0x4d0] sm:$0xff] %v2694
        %2707 = vst [vmem:[#allocation2 + $0x4d8] sm:$0xff] %v2695
        %v2708 = vld [vmem:[#allocation3] sm:$0xff]
        %v2709 = vld [vmem:[#allocation3 + $0x8] sm:$0xff]
        %v2710 = vld [vmem:[#allocation3 + $0x10] sm:$0xff]
        %v2711 = vld [vmem:[#allocation3 + $0x18] sm:$0xff]
        %v2712 = vld [vmem:[#allocation3 + $0x20] sm:$0xff]
        %v2713 = vld [vmem:[#allocation3 + $0x28] sm:$0xff]
        %v2714 = vld [vmem:[#allocation3 + $0x30] sm:$0xff]
        %v2715 = vld [vmem:[#allocation3 + $0x38] sm:$0xff]
        %v2716 = vld [vmem:[#allocation3 + $0x40] sm:$0xff]
        %v2717 = vld [vmem:[#allocation3 + $0x48] sm:$0xff]
        %v2718 = vld [vmem:[#allocation3 + $0x50] sm:$0xff]
        %v2719 = vld [vmem:[#allocation3 + $0x58] sm:$0xff]
        %v2720 = vld [vmem:[%s612] ss:$8 sm:$0x3]
        %v2722 = vlaneseq
        %v2723 = vshrl.u32 %v2722, 7
        %v2724 = vsub.s32 0, %v2723
        %v2725 = vrot.slane %v2720, %v2724
        %v2726 = vlaneseq
        %v2727 = vshrl.u32 %v2726, 7
        %v2728 = vsub.s32 1, %v2727
        %v2729 = vrot.slane %v2720, %v2728
        %2730 = vrot.lane.b32.xlu0 %v2725, 1
        %v2731 = vpop.permute.xlu0 %2730
        %2732 = vrot.lane.b32.xlu0 %v2729, 1
        %v2733 = vpop.permute.xlu0 %2732
        %v2734 = vsel %vm594, %v2731, %v2733
        %v2737 = vmul.f32 %v2708, %v2731
        %v2738 = vmul.f32 %v2709, %v2734
        %v2739 = vmul.f32 %v2710, %v2731
        %v2740 = vmul.f32 %v2711, %v2734
        %v2741 = vmul.f32 %v2712, %v2731
        %v2742 = vmul.f32 %v2713, %v2734
        %v2743 = vmul.f32 %v2714, %v2731
        %v2744 = vmul.f32 %v2715, %v2734
        %v2745 = vmul.f32 %v2716, %v2731
        %v2746 = vmul.f32 %v2717, %v2734
        %v2747 = vmul.f32 %v2718, %v2731
        %v2748 = vmul.f32 %v2719, %v2734
        %2761 = vrot.lane.b32.xlu0 %v2737, 127
        %v2762 = vpop.permute.xlu0 %2761
        %2763 = vrot.lane.b32.xlu0 %v2738, 127
        %v2764 = vpop.permute.xlu0 %2763
        %2765 = vrot.lane.b32.xlu0 %v2739, 127
        %v2766 = vpop.permute.xlu0 %2765
        %2767 = vrot.lane.b32.xlu0 %v2740, 127
        %v2768 = vpop.permute.xlu0 %2767
        %2769 = vrot.lane.b32.xlu0 %v2741, 127
        %v2770 = vpop.permute.xlu0 %2769
        %2771 = vrot.lane.b32.xlu0 %v2742, 127
        %v2772 = vpop.permute.xlu0 %2771
        %2773 = vrot.lane.b32.xlu0 %v2743, 127
        %v2774 = vpop.permute.xlu0 %2773
        %2775 = vrot.lane.b32.xlu0 %v2744, 127
        %v2776 = vpop.permute.xlu0 %2775
        %2777 = vrot.lane.b32.xlu0 %v2745, 127
        %v2778 = vpop.permute.xlu0 %2777
        %2779 = vrot.lane.b32.xlu0 %v2746, 127
        %v2780 = vpop.permute.xlu0 %2779
        %2781 = vrot.lane.b32.xlu0 %v2747, 127
        %v2782 = vpop.permute.xlu0 %2781
        %2783 = vrot.lane.b32.xlu0 %v2748, 127
        %v2784 = vpop.permute.xlu0 %2783
        %v2785 = vsel %vm586, %v2762, %v2764
        %v2786 = vsel %vm586, %v2766, %v2768
        %v2787 = vsel %vm586, %v2770, %v2772
        %v2788 = vsel %vm586, %v2774, %v2776
        %v2789 = vsel %vm586, %v2778, %v2780
        %v2790 = vsel %vm586, %v2782, %v2784
        %2803 = vst [vmem:[#allocation2 + $0x4e0] sm:$0xff] %v2785
        %2804 = vst.msk [vmem:[#allocation2 + $0x4e8] sm:$0xff] %vm586, %v2764
        %2805 = vst [vmem:[#allocation2 + $0x4f0] sm:$0xff] %v2786
        %2806 = vst.msk [vmem:[#allocation2 + $0x4f8] sm:$0xff] %vm586, %v2768
        %2807 = vst [vmem:[#allocation2 + $0x500] sm:$0xff] %v2787
        %2808 = vst.msk [vmem:[#allocation2 + $0x508] sm:$0xff] %vm586, %v2772
        %2809 = vst [vmem:[#allocation2 + $0x510] sm:$0xff] %v2788
        %2810 = vst.msk [vmem:[#allocation2 + $0x518] sm:$0xff] %vm586, %v2776
        %2811 = vst [vmem:[#allocation2 + $0x520] sm:$0xff] %v2789
        %2812 = vst.msk [vmem:[#allocation2 + $0x528] sm:$0xff] %vm586, %v2780
        %2813 = vst [vmem:[#allocation2 + $0x530] sm:$0xff] %v2790
        %2814 = vst.msk [vmem:[#allocation2 + $0x538] sm:$0xff] %vm586, %v2784
        %v2815 = vld [vmem:[#allocation3] sm:$0xff]
        %v2816 = vld [vmem:[#allocation3 + $0x8] sm:$0xff]
        %v2817 = vld [vmem:[#allocation3 + $0x10] sm:$0xff]
        %v2818 = vld [vmem:[#allocation3 + $0x18] sm:$0xff]
        %v2819 = vld [vmem:[#allocation3 + $0x20] sm:$0xff]
        %v2820 = vld [vmem:[#allocation3 + $0x28] sm:$0xff]
        %v2821 = vld [vmem:[#allocation3 + $0x30] sm:$0xff]
        %v2822 = vld [vmem:[#allocation3 + $0x38] sm:$0xff]
        %v2823 = vld [vmem:[#allocation3 + $0x40] sm:$0xff]
        %v2824 = vld [vmem:[#allocation3 + $0x48] sm:$0xff]
        %v2825 = vld [vmem:[#allocation3 + $0x50] sm:$0xff]
        %v2826 = vld [vmem:[#allocation3 + $0x58] sm:$0xff]
        %v2827 = vld [vmem:[%s633] ss:$8 sm:$0x3]
        %v2829 = vlaneseq
        %v2830 = vshrl.u32 %v2829, 7
        %v2831 = vsub.s32 0, %v2830
        %v2832 = vrot.slane %v2827, %v2831
        %v2833 = vlaneseq
        %v2834 = vshrl.u32 %v2833, 7
        %v2835 = vsub.s32 1, %v2834
        %v2836 = vrot.slane %v2827, %v2835
        %2837 = vrot.lane.b32.xlu0 %v2832, 2
        %v2838 = vpop.permute.xlu0 %2837
        %2839 = vrot.lane.b32.xlu0 %v2836, 2
        %v2840 = vpop.permute.xlu0 %2839
        %v2841 = vsel %vm571, %v2838, %v2840
        %v2844 = vmul.f32 %v2815, %v2838
        %v2845 = vmul.f32 %v2816, %v2841
        %v2846 = vmul.f32 %v2817, %v2838
        %v2847 = vmul.f32 %v2818, %v2841
        %v2848 = vmul.f32 %v2819, %v2838
        %v2849 = vmul.f32 %v2820, %v2841
        %v2850 = vmul.f32 %v2821, %v2838
        %v2851 = vmul.f32 %v2822, %v2841
        %v2852 = vmul.f32 %v2823, %v2838
        %v2853 = vmul.f32 %v2824, %v2841
        %v2854 = vmul.f32 %v2825, %v2838
        %v2855 = vmul.f32 %v2826, %v2841
        %2868 = vrot.lane.b32.xlu0 %v2844, 126
        %v2869 = vpop.permute.xlu0 %2868
        %2870 = vrot.lane.b32.xlu0 %v2845, 126
        %v2871 = vpop.permute.xlu0 %2870
        %2872 = vrot.lane.b32.xlu0 %v2846, 126
        %v2873 = vpop.permute.xlu0 %2872
        %2874 = vrot.lane.b32.xlu0 %v2847, 126
        %v2875 = vpop.permute.xlu0 %2874
        %2876 = vrot.lane.b32.xlu0 %v2848, 126
        %v2877 = vpop.permute.xlu0 %2876
        %2878 = vrot.lane.b32.xlu0 %v2849, 126
        %v2879 = vpop.permute.xlu0 %2878
        %2880 = vrot.lane.b32.xlu0 %v2850, 126
        %v2881 = vpop.permute.xlu0 %2880
        %2882 = vrot.lane.b32.xlu0 %v2851, 126
        %v2883 = vpop.permute.xlu0 %2882
        %2884 = vrot.lane.b32.xlu0 %v2852, 126
        %v2885 = vpop.permute.xlu0 %2884
        %2886 = vrot.lane.b32.xlu0 %v2853, 126
        %v2887 = vpop.permute.xlu0 %2886
        %2888 = vrot.lane.b32.xlu0 %v2854, 126
        %v2889 = vpop.permute.xlu0 %2888
        %2890 = vrot.lane.b32.xlu0 %v2855, 126
        %v2891 = vpop.permute.xlu0 %2890
        %v2892 = vsel %vm563, %v2869, %v2871
        %v2893 = vsel %vm563, %v2873, %v2875
        %v2894 = vsel %vm563, %v2877, %v2879
        %v2895 = vsel %vm563, %v2881, %v2883
        %v2896 = vsel %vm563, %v2885, %v2887
        %v2897 = vsel %vm563, %v2889, %v2891
        %2910 = vst [vmem:[#allocation2 + $0x540] sm:$0xff] %v2892
        %2911 = vst.msk [vmem:[#allocation2 + $0x548] sm:$0xff] %vm563, %v2871
        %2912 = vst [vmem:[#allocation2 + $0x550] sm:$0xff] %v2893
        %2913 = vst.msk [vmem:[#allocation2 + $0x558] sm:$0xff] %vm563, %v2875
        %2914 = vst [vmem:[#allocation2 + $0x560] sm:$0xff] %v2894
        %2915 = vst.msk [vmem:[#allocation2 + $0x568] sm:$0xff] %vm563, %v2879
        %2916 = vst [vmem:[#allocation2 + $0x570] sm:$0xff] %v2895
        %2917 = vst.msk [vmem:[#allocation2 + $0x578] sm:$0xff] %vm563, %v2883
        %2918 = vst [vmem:[#allocation2 + $0x580] sm:$0xff] %v2896
        %2919 = vst.msk [vmem:[#allocation2 + $0x588] sm:$0xff] %vm563, %v2887
        %2920 = vst [vmem:[#allocation2 + $0x590] sm:$0xff] %v2897
        %2921 = vst.msk [vmem:[#allocation2 + $0x598] sm:$0xff] %vm563, %v2891
        %v2922 = vld [vmem:[#allocation3] sm:$0xff]
        %v2923 = vld [vmem:[#allocation3 + $0x8] sm:$0xff]
        %v2924 = vld [vmem:[#allocation3 + $0x10] sm:$0xff]
        %v2925 = vld [vmem:[#allocation3 + $0x18] sm:$0xff]
        %v2926 = vld [vmem:[#allocation3 + $0x20] sm:$0xff]
        %v2927 = vld [vmem:[#allocation3 + $0x28] sm:$0xff]
        %v2928 = vld [vmem:[#allocation3 + $0x30] sm:$0xff]
        %v2929 = vld [vmem:[#allocation3 + $0x38] sm:$0xff]
        %v2930 = vld [vmem:[#allocation3 + $0x40] sm:$0xff]
        %v2931 = vld [vmem:[#allocation3 + $0x48] sm:$0xff]
        %v2932 = vld [vmem:[#allocation3 + $0x50] sm:$0xff]
        %v2933 = vld [vmem:[#allocation3 + $0x58] sm:$0xff]
        %v2934 = vld [vmem:[%s654] ss:$8 sm:$0x3]
        %v2936 = vlaneseq
        %v2937 = vshrl.u32 %v2936, 7
        %v2938 = vsub.s32 0, %v2937
        %v2939 = vrot.slane %v2934, %v2938
        %v2940 = vlaneseq
        %v2941 = vshrl.u32 %v2940, 7
        %v2942 = vsub.s32 1, %v2941
        %v2943 = vrot.slane %v2934, %v2942
        %2944 = vrot.lane.b32.xlu0 %v2939, 14
        %v2945 = vpop.permute.xlu0 %2944
        %2946 = vrot.lane.b32.xlu0 %v2943, 14
        %v2947 = vpop.permute.xlu0 %2946
        %v2948 = vsel %vm548, %v2945, %v2947
        %v2951 = vmul.f32 %v2922, %v2945
        %v2952 = vmul.f32 %v2923, %v2948
        %v2953 = vmul.f32 %v2924, %v2945
        %v2954 = vmul.f32 %v2925, %v2948
        %v2955 = vmul.f32 %v2926, %v2945
        %v2956 = vmul.f32 %v2927, %v2948
        %v2957 = vmul.f32 %v2928, %v2945
        %v2958 = vmul.f32 %v2929, %v2948
        %v2959 = vmul.f32 %v2930, %v2945
        %v2960 = vmul.f32 %v2931, %v2948
        %v2961 = vmul.f32 %v2932, %v2945
        %v2962 = vmul.f32 %v2933, %v2948
        %2975 = vrot.lane.b32.xlu0 %v2951, 114
        %v2976 = vpop.permute.xlu0 %2975
        %2977 = vrot.lane.b32.xlu0 %v2952, 114
        %v2978 = vpop.permute.xlu0 %2977
        %2979 = vrot.lane.b32.xlu0 %v2953, 114
        %v2980 = vpop.permute.xlu0 %2979
        %2981 = vrot.lane.b32.xlu0 %v2954, 114
        %v2982 = vpop.permute.xlu0 %2981
        %2983 = vrot.lane.b32.xlu0 %v2955, 114
        %v2984 = vpop.permute.xlu0 %2983
        %2985 = vrot.lane.b32.xlu0 %v2956, 114
        %v2986 = vpop.permute.xlu0 %2985
        %2987 = vrot.lane.b32.xlu0 %v2957, 114
        %v2988 = vpop.permute.xlu0 %2987
        %2989 = vrot.lane.b32.xlu0 %v2958, 114
        %v2990 = vpop.permute.xlu0 %2989
        %2991 = vrot.lane.b32.xlu0 %v2959, 114
        %v2992 = vpop.permute.xlu0 %2991
        %2993 = vrot.lane.b32.xlu0 %v2960, 114
        %v2994 = vpop.permute.xlu0 %2993
        %2995 = vrot.lane.b32.xlu0 %v2961, 114
        %v2996 = vpop.permute.xlu0 %2995
        %2997 = vrot.lane.b32.xlu0 %v2962, 114
        %v2998 = vpop.permute.xlu0 %2997
        %v2999 = vsel %vm540, %v2976, %v2978
        %v3000 = vsel %vm540, %v2980, %v2982
        %v3001 = vsel %vm540, %v2984, %v2986
        %v3002 = vsel %vm540, %v2988, %v2990
        %v3003 = vsel %vm540, %v2992, %v2994
        %v3004 = vsel %vm540, %v2996, %v2998
        %3017 = vst [vmem:[#allocation2 + $0x5a0] sm:$0xff] %v2999
        %3018 = vst.msk [vmem:[#allocation2 + $0x5a8] sm:$0xff] %vm540, %v2978
        %3019 = vst [vmem:[#allocation2 + $0x5b0] sm:$0xff] %v3000
        %3020 = vst.msk [vmem:[#allocation2 + $0x5b8] sm:$0xff] %vm540, %v2982
        %3021 = vst [vmem:[#allocation2 + $0x5c0] sm:$0xff] %v3001
        %3022 = vst.msk [vmem:[#allocation2 + $0x5c8] sm:$0xff] %vm540, %v2986
        %3023 = vst [vmem:[#allocation2 + $0x5d0] sm:$0xff] %v3002
        %3024 = vst.msk [vmem:[#allocation2 + $0x5d8] sm:$0xff] %vm540, %v2990
        %3025 = vst [vmem:[#allocation2 + $0x5e0] sm:$0xff] %v3003
        %3026 = vst.msk [vmem:[#allocation2 + $0x5e8] sm:$0xff] %vm540, %v2994
        %3027 = vst [vmem:[#allocation2 + $0x5f0] sm:$0xff] %v3004
        %3028 = vst.msk [vmem:[#allocation2 + $0x5f8] sm:$0xff] %vm540, %v2998
        %v3029 = vld [vmem:[#allocation3] sm:$0xff]
        %v3030 = vld [vmem:[#allocation3 + $0x8] sm:$0xff]
        %v3031 = vld [vmem:[#allocation3 + $0x10] sm:$0xff]
        %v3032 = vld [vmem:[#allocation3 + $0x18] sm:$0xff]
        %v3033 = vld [vmem:[#allocation3 + $0x20] sm:$0xff]
        %v3034 = vld [vmem:[#allocation3 + $0x28] sm:$0xff]
        %v3035 = vld [vmem:[#allocation3 + $0x30] sm:$0xff]
        %v3036 = vld [vmem:[#allocation3 + $0x38] sm:$0xff]
        %v3037 = vld [vmem:[#allocation3 + $0x40] sm:$0xff]
        %v3038 = vld [vmem:[#allocation3 + $0x48] sm:$0xff]
        %v3039 = vld [vmem:[#allocation3 + $0x50] sm:$0xff]
        %v3040 = vld [vmem:[#allocation3 + $0x58] sm:$0xff]
        %v3041 = vld [vmem:[%s675] ss:$8 sm:$0x3]
        %v3043 = vlaneseq
        %v3044 = vshrl.u32 %v3043, 7
        %v3045 = vsub.s32 0, %v3044
        %v3046 = vrot.slane %v3041, %v3045
        %v3047 = vlaneseq
        %v3048 = vshrl.u32 %v3047, 7
        %v3049 = vsub.s32 1, %v3048
        %v3050 = vrot.slane %v3041, %v3049
        %3051 = vrot.lane.b32.xlu0 %v3046, 15
        %v3052 = vpop.permute.xlu0 %3051
        %3053 = vrot.lane.b32.xlu0 %v3050, 15
        %v3054 = vpop.permute.xlu0 %3053
        %v3055 = vsel %vm525, %v3052, %v3054
        %v3058 = vmul.f32 %v3029, %v3052
        %v3059 = vmul.f32 %v3030, %v3055
        %v3060 = vmul.f32 %v3031, %v3052
        %v3061 = vmul.f32 %v3032, %v3055
        %v3062 = vmul.f32 %v3033, %v3052
        %v3063 = vmul.f32 %v3034, %v3055
        %v3064 = vmul.f32 %v3035, %v3052
        %v3065 = vmul.f32 %v3036, %v3055
        %v3066 = vmul.f32 %v3037, %v3052
        %v3067 = vmul.f32 %v3038, %v3055
        %v3068 = vmul.f32 %v3039, %v3052
        %v3069 = vmul.f32 %v3040, %v3055
        %3082 = vrot.lane.b32.xlu0 %v3058, 113
        %v3083 = vpop.permute.xlu0 %3082
        %3084 = vrot.lane.b32.xlu0 %v3059, 113
        %v3085 = vpop.permute.xlu0 %3084
        %3086 = vrot.lane.b32.xlu0 %v3060, 113
        %v3087 = vpop.permute.xlu0 %3086
        %3088 = vrot.lane.b32.xlu0 %v3061, 113
        %v3089 = vpop.permute.xlu0 %3088
        %3090 = vrot.lane.b32.xlu0 %v3062, 113
        %v3091 = vpop.permute.xlu0 %3090
        %3092 = vrot.lane.b32.xlu0 %v3063, 113
        %v3093 = vpop.permute.xlu0 %3092
        %3094 = vrot.lane.b32.xlu0 %v3064, 113
        %v3095 = vpop.permute.xlu0 %3094
        %3096 = vrot.lane.b32.xlu0 %v3065, 113
        %v3097 = vpop.permute.xlu0 %3096
        %3098 = vrot.lane.b32.xlu0 %v3066, 113
        %v3099 = vpop.permute.xlu0 %3098
        %3100 = vrot.lane.b32.xlu0 %v3067, 113
        %v3101 = vpop.permute.xlu0 %3100
        %3102 = vrot.lane.b32.xlu0 %v3068, 113
        %v3103 = vpop.permute.xlu0 %3102
        %3104 = vrot.lane.b32.xlu0 %v3069, 113
        %v3105 = vpop.permute.xlu0 %3104
        %v3106 = vsel %vm517, %v3083, %v3085
        %v3107 = vsel %vm517, %v3087, %v3089
        %v3108 = vsel %vm517, %v3091, %v3093
        %v3109 = vsel %vm517, %v3095, %v3097
        %v3110 = vsel %vm517, %v3099, %v3101
        %v3111 = vsel %vm517, %v3103, %v3105
        %3124 = vst [vmem:[#allocation2 + $0x600] sm:$0xff] %v3106
        %3125 = vst.msk [vmem:[#allocation2 + $0x608] sm:$0xff] %vm517, %v3085
        %3126 = vst [vmem:[#allocation2 + $0x610] sm:$0xff] %v3107
        %3127 = vst.msk [vmem:[#allocation2 + $0x618] sm:$0xff] %vm517, %v3089
        %3128 = vst [vmem:[#allocation2 + $0x620] sm:$0xff] %v3108
        %3129 = vst.msk [vmem:[#allocation2 + $0x628] sm:$0xff] %vm517, %v3093
        %3130 = vst [vmem:[#allocation2 + $0x630] sm:$0xff] %v3109
        %3131 = vst.msk [vmem:[#allocation2 + $0x638] sm:$0xff] %vm517, %v3097
        %3132 = vst [vmem:[#allocation2 + $0x640] sm:$0xff] %v3110
        %3133 = vst.msk [vmem:[#allocation2 + $0x648] sm:$0xff] %vm517, %v3101
        %3134 = vst [vmem:[#allocation2 + $0x650] sm:$0xff] %v3111
        %3135 = vst.msk [vmem:[#allocation2 + $0x658] sm:$0xff] %vm517, %v3105
        %v3136 = vld [vmem:[#allocation3] sm:$0xff]
        %v3137 = vld [vmem:[#allocation3 + $0x8] sm:$0xff]
        %v3138 = vld [vmem:[#allocation3 + $0x10] sm:$0xff]
        %v3139 = vld [vmem:[#allocation3 + $0x18] sm:$0xff]
        %v3140 = vld [vmem:[#allocation3 + $0x20] sm:$0xff]
        %v3141 = vld [vmem:[#allocation3 + $0x28] sm:$0xff]
        %v3142 = vld [vmem:[#allocation3 + $0x30] sm:$0xff]
        %v3143 = vld [vmem:[#allocation3 + $0x38] sm:$0xff]
        %v3144 = vld [vmem:[#allocation3 + $0x40] sm:$0xff]
        %v3145 = vld [vmem:[#allocation3 + $0x48] sm:$0xff]
        %v3146 = vld [vmem:[#allocation3 + $0x50] sm:$0xff]
        %v3147 = vld [vmem:[#allocation3 + $0x58] sm:$0xff]
        %v3148 = vld [vmem:[%s696] ss:$8 sm:$0x3]
        %v3150 = vlaneseq
        %v3151 = vshrl.u32 %v3150, 7
        %v3152 = vsub.s32 0, %v3151
        %v3153 = vrot.slane %v3148, %v3152
        %v3154 = vlaneseq
        %v3155 = vshrl.u32 %v3154, 7
        %v3156 = vsub.s32 1, %v3155
        %v3157 = vrot.slane %v3148, %v3156
        %3158 = vrot.lane.b32.xlu0 %v3153, 16
        %v3159 = vpop.permute.xlu0 %3158
        %3160 = vrot.lane.b32.xlu0 %v3157, 16
        %v3161 = vpop.permute.xlu0 %3160
        %v3162 = vsel %vm502, %v3159, %v3161
        %v3165 = vmul.f32 %v3136, %v3159
        %v3166 = vmul.f32 %v3137, %v3162
        %v3167 = vmul.f32 %v3138, %v3159
        %v3168 = vmul.f32 %v3139, %v3162
        %v3169 = vmul.f32 %v3140, %v3159
        %v3170 = vmul.f32 %v3141, %v3162
        %v3171 = vmul.f32 %v3142, %v3159
        %v3172 = vmul.f32 %v3143, %v3162
        %v3173 = vmul.f32 %v3144, %v3159
        %v3174 = vmul.f32 %v3145, %v3162
        %v3175 = vmul.f32 %v3146, %v3159
        %v3176 = vmul.f32 %v3147, %v3162
        %3189 = vrot.lane.b32.xlu0 %v3165, 112
        %v3190 = vpop.permute.xlu0 %3189
        %3191 = vrot.lane.b32.xlu0 %v3166, 112
        %v3192 = vpop.permute.xlu0 %3191
        %3193 = vrot.lane.b32.xlu0 %v3167, 112
        %v3194 = vpop.permute.xlu0 %3193
        %3195 = vrot.lane.b32.xlu0 %v3168, 112
        %v3196 = vpop.permute.xlu0 %3195
        %3197 = vrot.lane.b32.xlu0 %v3169, 112
        %v3198 = vpop.permute.xlu0 %3197
        %3199 = vrot.lane.b32.xlu0 %v3170, 112
        %v3200 = vpop.permute.xlu0 %3199
        %3201 = vrot.lane.b32.xlu0 %v3171, 112
        %v3202 = vpop.permute.xlu0 %3201
        %3203 = vrot.lane.b32.xlu0 %v3172, 112
        %v3204 = vpop.permute.xlu0 %3203
        %3205 = vrot.lane.b32.xlu0 %v3173, 112
        %v3206 = vpop.permute.xlu0 %3205
        %3207 = vrot.lane.b32.xlu0 %v3174, 112
        %v3208 = vpop.permute.xlu0 %3207
        %3209 = vrot.lane.b32.xlu0 %v3175, 112
        %v3210 = vpop.permute.xlu0 %3209
        %3211 = vrot.lane.b32.xlu0 %v3176, 112
        %v3212 = vpop.permute.xlu0 %3211
        %v3213 = vsel %vm494, %v3190, %v3192
        %v3214 = vsel %vm494, %v3194, %v3196
        %v3215 = vsel %vm494, %v3198, %v3200
        %v3216 = vsel %vm494, %v3202, %v3204
        %v3217 = vsel %vm494, %v3206, %v3208
        %v3218 = vsel %vm494, %v3210, %v3212
        %3231 = vst [vmem:[#allocation2 + $0x660] sm:$0xff] %v3213
        %3232 = vst.msk [vmem:[#allocation2 + $0x668] sm:$0xff] %vm494, %v3192
        %3233 = vst [vmem:[#allocation2 + $0x670] sm:$0xff] %v3214
        %3234 = vst.msk [vmem:[#allocation2 + $0x678] sm:$0xff] %vm494, %v3196
        %3235 = vst [vmem:[#allocation2 + $0x680] sm:$0xff] %v3215
        %3236 = vst.msk [vmem:[#allocation2 + $0x688] sm:$0xff] %vm494, %v3200
        %3237 = vst [vmem:[#allocation2 + $0x690] sm:$0xff] %v3216
        %3238 = vst.msk [vmem:[#allocation2 + $0x698] sm:$0xff] %vm494, %v3204
        %3239 = vst [vmem:[#allocation2 + $0x6a0] sm:$0xff] %v3217
        %3240 = vst.msk [vmem:[#allocation2 + $0x6a8] sm:$0xff] %vm494, %v3208
        %3241 = vst [vmem:[#allocation2 + $0x6b0] sm:$0xff] %v3218
        %3242 = vst.msk [vmem:[#allocation2 + $0x6b8] sm:$0xff] %vm494, %v3212
        %v3243 = vld [vmem:[#allocation3] sm:$0xff]
        %v3244 = vld [vmem:[#allocation3 + $0x8] sm:$0xff]
        %v3245 = vld [vmem:[#allocation3 + $0x10] sm:$0xff]
        %v3246 = vld [vmem:[#allocation3 + $0x18] sm:$0xff]
        %v3247 = vld [vmem:[#allocation3 + $0x20] sm:$0xff]
        %v3248 = vld [vmem:[#allocation3 + $0x28] sm:$0xff]
        %v3249 = vld [vmem:[#allocation3 + $0x30] sm:$0xff]
        %v3250 = vld [vmem:[#allocation3 + $0x38] sm:$0xff]
        %v3251 = vld [vmem:[#allocation3 + $0x40] sm:$0xff]
        %v3252 = vld [vmem:[#allocation3 + $0x48] sm:$0xff]
        %v3253 = vld [vmem:[#allocation3 + $0x50] sm:$0xff]
        %v3254 = vld [vmem:[#allocation3 + $0x58] sm:$0xff]
        %v3255 = vld [vmem:[%s717] ss:$8 sm:$0x3]
        %v3257 = vlaneseq
        %v3258 = vshrl.u32 %v3257, 7
        %v3259 = vsub.s32 0, %v3258
        %v3260 = vrot.slane %v3255, %v3259
        %v3261 = vlaneseq
        %v3262 = vshrl.u32 %v3261, 7
        %v3263 = vsub.s32 1, %v3262
        %v3264 = vrot.slane %v3255, %v3263
        %3265 = vrot.lane.b32.xlu0 %v3260, 17
        %v3266 = vpop.permute.xlu0 %3265
        %3267 = vrot.lane.b32.xlu0 %v3264, 17
        %v3268 = vpop.permute.xlu0 %3267
        %v3269 = vsel %vm479, %v3266, %v3268
        %v3272 = vmul.f32 %v3243, %v3266
        %v3273 = vmul.f32 %v3244, %v3269
        %v3274 = vmul.f32 %v3245, %v3266
        %v3275 = vmul.f32 %v3246, %v3269
        %v3276 = vmul.f32 %v3247, %v3266
        %v3277 = vmul.f32 %v3248, %v3269
        %v3278 = vmul.f32 %v3249, %v3266
        %v3279 = vmul.f32 %v3250, %v3269
        %v3280 = vmul.f32 %v3251, %v3266
        %v3281 = vmul.f32 %v3252, %v3269
        %v3282 = vmul.f32 %v3253, %v3266
        %v3283 = vmul.f32 %v3254, %v3269
        %3296 = vrot.lane.b32.xlu0 %v3272, 111
        %v3297 = vpop.permute.xlu0 %3296
        %3298 = vrot.lane.b32.xlu0 %v3273, 111
        %v3299 = vpop.permute.xlu0 %3298
        %3300 = vrot.lane.b32.xlu0 %v3274, 111
        %v3301 = vpop.permute.xlu0 %3300
        %3302 = vrot.lane.b32.xlu0 %v3275, 111
        %v3303 = vpop.permute.xlu0 %3302
        %3304 = vrot.lane.b32.xlu0 %v3276, 111
        %v3305 = vpop.permute.xlu0 %3304
        %3306 = vrot.lane.b32.xlu0 %v3277, 111
        %v3307 = vpop.permute.xlu0 %3306
        %3308 = vrot.lane.b32.xlu0 %v3278, 111
        %v3309 = vpop.permute.xlu0 %3308
        %3310 = vrot.lane.b32.xlu0 %v3279, 111
        %v3311 = vpop.permute.xlu0 %3310
        %3312 = vrot.lane.b32.xlu0 %v3280, 111
        %v3313 = vpop.permute.xlu0 %3312
        %3314 = vrot.lane.b32.xlu0 %v3281, 111
        %v3315 = vpop.permute.xlu0 %3314
        %3316 = vrot.lane.b32.xlu0 %v3282, 111
        %v3317 = vpop.permute.xlu0 %3316
        %3318 = vrot.lane.b32.xlu0 %v3283, 111
        %v3319 = vpop.permute.xlu0 %3318
        %v3320 = vsel %vm471, %v3297, %v3299
        %v3321 = vsel %vm471, %v3301, %v3303
        %v3322 = vsel %vm471, %v3305, %v3307
        %v3323 = vsel %vm471, %v3309, %v3311
        %v3324 = vsel %vm471, %v3313, %v3315
        %v3325 = vsel %vm471, %v3317, %v3319
        %3338 = vst [vmem:[#allocation2 + $0x6c0] sm:$0xff] %v3320
        %3339 = vst.msk [vmem:[#allocation2 + $0x6c8] sm:$0xff] %vm471, %v3299
        %3340 = vst [vmem:[#allocation2 + $0x6d0] sm:$0xff] %v3321
        %3341 = vst.msk [vmem:[#allocation2 + $0x6d8] sm:$0xff] %vm471, %v3303
        %3342 = vst [vmem:[#allocation2 + $0x6e0] sm:$0xff] %v3322
        %3343 = vst.msk [vmem:[#allocation2 + $0x6e8] sm:$0xff] %vm471, %v3307
        %3344 = vst [vmem:[#allocation2 + $0x6f0] sm:$0xff] %v3323
        %3345 = vst.msk [vmem:[#allocation2 + $0x6f8] sm:$0xff] %vm471, %v3311
        %3346 = vst [vmem:[#allocation2 + $0x700] sm:$0xff] %v3324
        %3347 = vst.msk [vmem:[#allocation2 + $0x708] sm:$0xff] %vm471, %v3315
        %3348 = vst [vmem:[#allocation2 + $0x710] sm:$0xff] %v3325
        %3349 = vst.msk [vmem:[#allocation2 + $0x718] sm:$0xff] %vm471, %v3319
        %v3350 = vld [vmem:[#allocation3] sm:$0xff]
        %v3351 = vld [vmem:[#allocation3 + $0x8] sm:$0xff]
        %v3352 = vld [vmem:[#allocation3 + $0x10] sm:$0xff]
        %v3353 = vld [vmem:[#allocation3 + $0x18] sm:$0xff]
        %v3354 = vld [vmem:[#allocation3 + $0x20] sm:$0xff]
        %v3355 = vld [vmem:[#allocation3 + $0x28] sm:$0xff]
        %v3356 = vld [vmem:[#allocation3 + $0x30] sm:$0xff]
        %v3357 = vld [vmem:[#allocation3 + $0x38] sm:$0xff]
        %v3358 = vld [vmem:[#allocation3 + $0x40] sm:$0xff]
        %v3359 = vld [vmem:[#allocation3 + $0x48] sm:$0xff]
        %v3360 = vld [vmem:[#allocation3 + $0x50] sm:$0xff]
        %v3361 = vld [vmem:[#allocation3 + $0x58] sm:$0xff]
        %v3362 = vld [vmem:[%s738] ss:$8 sm:$0x3]
        %v3364 = vlaneseq
        %v3365 = vshrl.u32 %v3364, 7
        %v3366 = vsub.s32 0, %v3365
        %v3367 = vrot.slane %v3362, %v3366
        %v3368 = vlaneseq
        %v3369 = vshrl.u32 %v3368, 7
        %v3370 = vsub.s32 1, %v3369
        %v3371 = vrot.slane %v3362, %v3370
        %3372 = vrot.lane.b32.xlu0 %v3367, 18
        %v3373 = vpop.permute.xlu0 %3372
        %3374 = vrot.lane.b32.xlu0 %v3371, 18
        %v3375 = vpop.permute.xlu0 %3374
        %v3376 = vsel %vm456, %v3373, %v3375
        %v3379 = vmul.f32 %v3350, %v3373
        %v3380 = vmul.f32 %v3351, %v3376
        %v3381 = vmul.f32 %v3352, %v3373
        %v3382 = vmul.f32 %v3353, %v3376
        %v3383 = vmul.f32 %v3354, %v3373
        %v3384 = vmul.f32 %v3355, %v3376
        %v3385 = vmul.f32 %v3356, %v3373
        %v3386 = vmul.f32 %v3357, %v3376
        %v3387 = vmul.f32 %v3358, %v3373
        %v3388 = vmul.f32 %v3359, %v3376
        %v3389 = vmul.f32 %v3360, %v3373
        %v3390 = vmul.f32 %v3361, %v3376
        %3403 = vrot.lane.b32.xlu0 %v3379, 110
        %v3404 = vpop.permute.xlu0 %3403
        %3405 = vrot.lane.b32.xlu0 %v3380, 110
        %v3406 = vpop.permute.xlu0 %3405
        %3407 = vrot.lane.b32.xlu0 %v3381, 110
        %v3408 = vpop.permute.xlu0 %3407
        %3409 = vrot.lane.b32.xlu0 %v3382, 110
        %v3410 = vpop.permute.xlu0 %3409
        %3411 = vrot.lane.b32.xlu0 %v3383, 110
        %v3412 = vpop.permute.xlu0 %3411
        %3413 = vrot.lane.b32.xlu0 %v3384, 110
        %v3414 = vpop.permute.xlu0 %3413
        %3415 = vrot.lane.b32.xlu0 %v3385, 110
        %v3416 = vpop.permute.xlu0 %3415
        %3417 = vrot.lane.b32.xlu0 %v3386, 110
        %v3418 = vpop.permute.xlu0 %3417
        %3419 = vrot.lane.b32.xlu0 %v3387, 110
        %v3420 = vpop.permute.xlu0 %3419
        %3421 = vrot.lane.b32.xlu0 %v3388, 110
        %v3422 = vpop.permute.xlu0 %3421
        %3423 = vrot.lane.b32.xlu0 %v3389, 110
        %v3424 = vpop.permute.xlu0 %3423
        %3425 = vrot.lane.b32.xlu0 %v3390, 110
        %v3426 = vpop.permute.xlu0 %3425
        %v3427 = vsel %vm448, %v3404, %v3406
        %v3428 = vsel %vm448, %v3408, %v3410
        %v3429 = vsel %vm448, %v3412, %v3414
        %v3430 = vsel %vm448, %v3416, %v3418
        %v3431 = vsel %vm448, %v3420, %v3422
        %v3432 = vsel %vm448, %v3424, %v3426
        %3445 = vst [vmem:[#allocation2 + $0x720] sm:$0xff] %v3427
        %3446 = vst.msk [vmem:[#allocation2 + $0x728] sm:$0xff] %vm448, %v3406
        %3447 = vst [vmem:[#allocation2 + $0x730] sm:$0xff] %v3428
        %3448 = vst.msk [vmem:[#allocation2 + $0x738] sm:$0xff] %vm448, %v3410
        %3449 = vst [vmem:[#allocation2 + $0x740] sm:$0xff] %v3429
        %3450 = vst.msk [vmem:[#allocation2 + $0x748] sm:$0xff] %vm448, %v3414
        %3451 = vst [vmem:[#allocation2 + $0x750] sm:$0xff] %v3430
        %3452 = vst.msk [vmem:[#allocation2 + $0x758] sm:$0xff] %vm448, %v3418
        %3453 = vst [vmem:[#allocation2 + $0x760] sm:$0xff] %v3431
        %3454 = vst.msk [vmem:[#allocation2 + $0x768] sm:$0xff] %vm448, %v3422
        %3455 = vst [vmem:[#allocation2 + $0x770] sm:$0xff] %v3432
        %3456 = vst.msk [vmem:[#allocation2 + $0x778] sm:$0xff] %vm448, %v3426
        %v3457 = vld [vmem:[#allocation3] sm:$0xff]
        %v3458 = vld [vmem:[#allocation3 + $0x8] sm:$0xff]
        %v3459 = vld [vmem:[#allocation3 + $0x10] sm:$0xff]
        %v3460 = vld [vmem:[#allocation3 + $0x18] sm:$0xff]
        %v3461 = vld [vmem:[#allocation3 + $0x20] sm:$0xff]
        %v3462 = vld [vmem:[#allocation3 + $0x28] sm:$0xff]
        %v3463 = vld [vmem:[#allocation3 + $0x30] sm:$0xff]
        %v3464 = vld [vmem:[#allocation3 + $0x38] sm:$0xff]
        %v3465 = vld [vmem:[#allocation3 + $0x40] sm:$0xff]
        %v3466 = vld [vmem:[#allocation3 + $0x48] sm:$0xff]
        %v3467 = vld [vmem:[#allocation3 + $0x50] sm:$0xff]
        %v3468 = vld [vmem:[#allocation3 + $0x58] sm:$0xff]
        %v3469 = vld [vmem:[%s759] ss:$8 sm:$0x3]
        %v3471 = vlaneseq
        %v3472 = vshrl.u32 %v3471, 7
        %v3473 = vsub.s32 0, %v3472
        %v3474 = vrot.slane %v3469, %v3473
        %v3475 = vlaneseq
        %v3476 = vshrl.u32 %v3475, 7
        %v3477 = vsub.s32 1, %v3476
        %v3478 = vrot.slane %v3469, %v3477
        %3479 = vrot.lane.b32.xlu0 %v3474, 30
        %v3480 = vpop.permute.xlu0 %3479
        %3481 = vrot.lane.b32.xlu0 %v3478, 30
        %v3482 = vpop.permute.xlu0 %3481
        %v3483 = vsel %vm433, %v3480, %v3482
        %v3486 = vmul.f32 %v3457, %v3480
        %v3487 = vmul.f32 %v3458, %v3483
        %v3488 = vmul.f32 %v3459, %v3480
        %v3489 = vmul.f32 %v3460, %v3483
        %v3490 = vmul.f32 %v3461, %v3480
        %v3491 = vmul.f32 %v3462, %v3483
        %v3492 = vmul.f32 %v3463, %v3480
        %v3493 = vmul.f32 %v3464, %v3483
        %v3494 = vmul.f32 %v3465, %v3480
        %v3495 = vmul.f32 %v3466, %v3483
        %v3496 = vmul.f32 %v3467, %v3480
        %v3497 = vmul.f32 %v3468, %v3483
        %3510 = vrot.lane.b32.xlu0 %v3486, 98
        %v3511 = vpop.permute.xlu0 %3510
        %3512 = vrot.lane.b32.xlu0 %v3487, 98
        %v3513 = vpop.permute.xlu0 %3512
        %3514 = vrot.lane.b32.xlu0 %v3488, 98
        %v3515 = vpop.permute.xlu0 %3514
        %3516 = vrot.lane.b32.xlu0 %v3489, 98
        %v3517 = vpop.permute.xlu0 %3516
        %3518 = vrot.lane.b32.xlu0 %v3490, 98
        %v3519 = vpop.permute.xlu0 %3518
        %3520 = vrot.lane.b32.xlu0 %v3491, 98
        %v3521 = vpop.permute.xlu0 %3520
        %3522 = vrot.lane.b32.xlu0 %v3492, 98
        %v3523 = vpop.permute.xlu0 %3522
        %3524 = vrot.lane.b32.xlu0 %v3493, 98
        %v3525 = vpop.permute.xlu0 %3524
        %3526 = vrot.lane.b32.xlu0 %v3494, 98
        %v3527 = vpop.permute.xlu0 %3526
        %3528 = vrot.lane.b32.xlu0 %v3495, 98
        %v3529 = vpop.permute.xlu0 %3528
        %3530 = vrot.lane.b32.xlu0 %v3496, 98
        %v3531 = vpop.permute.xlu0 %3530
        %3532 = vrot.lane.b32.xlu0 %v3497, 98
        %v3533 = vpop.permute.xlu0 %3532
        %v3534 = vsel %vm425, %v3511, %v3513
        %v3535 = vsel %vm425, %v3515, %v3517
        %v3536 = vsel %vm425, %v3519, %v3521
        %v3537 = vsel %vm425, %v3523, %v3525
        %v3538 = vsel %vm425, %v3527, %v3529
        %v3539 = vsel %vm425, %v3531, %v3533
        %3552 = vst [vmem:[#allocation2 + $0x780] sm:$0xff] %v3534
        %3553 = vst.msk [vmem:[#allocation2 + $0x788] sm:$0xff] %vm425, %v3513
        %3554 = vst [vmem:[#allocation2 + $0x790] sm:$0xff] %v3535
        %3555 = vst.msk [vmem:[#allocation2 + $0x798] sm:$0xff] %vm425, %v3517
        %3556 = vst [vmem:[#allocation2 + $0x7a0] sm:$0xff] %v3536
        %3557 = vst.msk [vmem:[#allocation2 + $0x7a8] sm:$0xff] %vm425, %v3521
        %3558 = vst [vmem:[#allocation2 + $0x7b0] sm:$0xff] %v3537
        %3559 = vst.msk [vmem:[#allocation2 + $0x7b8] sm:$0xff] %vm425, %v3525
        %3560 = vst [vmem:[#allocation2 + $0x7c0] sm:$0xff] %v3538
        %3561 = vst.msk [vmem:[#allocation2 + $0x7c8] sm:$0xff] %vm425, %v3529
        %3562 = vst [vmem:[#allocation2 + $0x7d0] sm:$0xff] %v3539
        %3563 = vst.msk [vmem:[#allocation2 + $0x7d8] sm:$0xff] %vm425, %v3533
        %v3564 = vld [vmem:[#allocation3] sm:$0xff]
        %v3565 = vld [vmem:[#allocation3 + $0x8] sm:$0xff]
        %v3566 = vld [vmem:[#allocation3 + $0x10] sm:$0xff]
        %v3567 = vld [vmem:[#allocation3 + $0x18] sm:$0xff]
        %v3568 = vld [vmem:[#allocation3 + $0x20] sm:$0xff]
        %v3569 = vld [vmem:[#allocation3 + $0x28] sm:$0xff]
        %v3570 = vld [vmem:[#allocation3 + $0x30] sm:$0xff]
        %v3571 = vld [vmem:[#allocation3 + $0x38] sm:$0xff]
        %v3572 = vld [vmem:[#allocation3 + $0x40] sm:$0xff]
        %v3573 = vld [vmem:[#allocation3 + $0x48] sm:$0xff]
        %v3574 = vld [vmem:[#allocation3 + $0x50] sm:$0xff]
        %v3575 = vld [vmem:[#allocation3 + $0x58] sm:$0xff]
        %v3576 = vld [vmem:[%s780] ss:$8 sm:$0x3]
        %v3578 = vlaneseq
        %v3579 = vshrl.u32 %v3578, 7
        %v3580 = vsub.s32 0, %v3579
        %v3581 = vrot.slane %v3576, %v3580
        %v3582 = vlaneseq
        %v3583 = vshrl.u32 %v3582, 7
        %v3584 = vsub.s32 1, %v3583
        %v3585 = vrot.slane %v3576, %v3584
        %3586 = vrot.lane.b32.xlu0 %v3581, 31
        %v3587 = vpop.permute.xlu0 %3586
        %3588 = vrot.lane.b32.xlu0 %v3585, 31
        %v3589 = vpop.permute.xlu0 %3588
        %v3590 = vsel %vm410, %v3587, %v3589
        %v3593 = vmul.f32 %v3564, %v3587
        %v3594 = vmul.f32 %v3565, %v3590
        %v3595 = vmul.f32 %v3566, %v3587
        %v3596 = vmul.f32 %v3567, %v3590
        %v3597 = vmul.f32 %v3568, %v3587
        %v3598 = vmul.f32 %v3569, %v3590
        %v3599 = vmul.f32 %v3570, %v3587
        %v3600 = vmul.f32 %v3571, %v3590
        %v3601 = vmul.f32 %v3572, %v3587
        %v3602 = vmul.f32 %v3573, %v3590
        %v3603 = vmul.f32 %v3574, %v3587
        %v3604 = vmul.f32 %v3575, %v3590
        %3617 = vrot.lane.b32.xlu0 %v3593, 97
        %v3618 = vpop.permute.xlu0 %3617
        %3619 = vrot.lane.b32.xlu0 %v3594, 97
        %v3620 = vpop.permute.xlu0 %3619
        %3621 = vrot.lane.b32.xlu0 %v3595, 97
        %v3622 = vpop.permute.xlu0 %3621
        %3623 = vrot.lane.b32.xlu0 %v3596, 97
        %v3624 = vpop.permute.xlu0 %3623
        %3625 = vrot.lane.b32.xlu0 %v3597, 97
        %v3626 = vpop.permute.xlu0 %3625
        %3627 = vrot.lane.b32.xlu0 %v3598, 97
        %v3628 = vpop.permute.xlu0 %3627
        %3629 = vrot.lane.b32.xlu0 %v3599, 97
        %v3630 = vpop.permute.xlu0 %3629
        %3631 = vrot.lane.b32.xlu0 %v3600, 97
        %v3632 = vpop.permute.xlu0 %3631
        %3633 = vrot.lane.b32.xlu0 %v3601, 97
        %v3634 = vpop.permute.xlu0 %3633
        %3635 = vrot.lane.b32.xlu0 %v3602, 97
        %v3636 = vpop.permute.xlu0 %3635
        %3637 = vrot.lane.b32.xlu0 %v3603, 97
        %v3638 = vpop.permute.xlu0 %3637
        %3639 = vrot.lane.b32.xlu0 %v3604, 97
        %v3640 = vpop.permute.xlu0 %3639
        %v3641 = vsel %vm402, %v3618, %v3620
        %v3642 = vsel %vm402, %v3622, %v3624
        %v3643 = vsel %vm402, %v3626, %v3628
        %v3644 = vsel %vm402, %v3630, %v3632
        %v3645 = vsel %vm402, %v3634, %v3636
        %v3646 = vsel %vm402, %v3638, %v3640
        %3659 = vst [vmem:[#allocation2 + $0x7e0] sm:$0xff] %v3641
        %3660 = vst.msk [vmem:[#allocation2 + $0x7e8] sm:$0xff] %vm402, %v3620
        %3661 = vst [vmem:[#allocation2 + $0x7f0] sm:$0xff] %v3642
        %3662 = vst.msk [vmem:[#allocation2 + $0x7f8] sm:$0xff] %vm402, %v3624
        %3663 = vst [vmem:[#allocation2 + $0x800] sm:$0xff] %v3643
        %3664 = vst.msk [vmem:[#allocation2 + $0x808] sm:$0xff] %vm402, %v3628
        %3665 = vst [vmem:[#allocation2 + $0x810] sm:$0xff] %v3644
        %3666 = vst.msk [vmem:[#allocation2 + $0x818] sm:$0xff] %vm402, %v3632
        %3667 = vst [vmem:[#allocation2 + $0x820] sm:$0xff] %v3645
        %3668 = vst.msk [vmem:[#allocation2 + $0x828] sm:$0xff] %vm402, %v3636
        %3669 = vst [vmem:[#allocation2 + $0x830] sm:$0xff] %v3646
        %3670 = vst.msk [vmem:[#allocation2 + $0x838] sm:$0xff] %vm402, %v3640
        %v3671 = vld [vmem:[#allocation3] sm:$0xff]
        %v3672 = vld [vmem:[#allocation3 + $0x8] sm:$0xff]
        %v3673 = vld [vmem:[#allocation3 + $0x10] sm:$0xff]
        %v3674 = vld [vmem:[#allocation3 + $0x18] sm:$0xff]
        %v3675 = vld [vmem:[#allocation3 + $0x20] sm:$0xff]
        %v3676 = vld [vmem:[#allocation3 + $0x28] sm:$0xff]
        %v3677 = vld [vmem:[#allocation3 + $0x30] sm:$0xff]
        %v3678 = vld [vmem:[#allocation3 + $0x38] sm:$0xff]
        %v3679 = vld [vmem:[#allocation3 + $0x40] sm:$0xff]
        %v3680 = vld [vmem:[#allocation3 + $0x48] sm:$0xff]
        %v3681 = vld [vmem:[#allocation3 + $0x50] sm:$0xff]
        %v3682 = vld [vmem:[#allocation3 + $0x58] sm:$0xff]
        %v3683 = vld [vmem:[%s801] ss:$8 sm:$0x3]
        %v3685 = vlaneseq
        %v3686 = vshrl.u32 %v3685, 7
        %v3687 = vsub.s32 0, %v3686
        %v3688 = vrot.slane %v3683, %v3687
        %v3689 = vlaneseq
        %v3690 = vshrl.u32 %v3689, 7
        %v3691 = vsub.s32 1, %v3690
        %v3692 = vrot.slane %v3683, %v3691
        %3693 = vrot.lane.b32.xlu0 %v3688, 32
        %v3694 = vpop.permute.xlu0 %3693
        %3695 = vrot.lane.b32.xlu0 %v3692, 32
        %v3696 = vpop.permute.xlu0 %3695
        %v3697 = vsel %vm387, %v3694, %v3696
        %v3700 = vmul.f32 %v3671, %v3694
        %v3701 = vmul.f32 %v3672, %v3697
        %v3702 = vmul.f32 %v3673, %v3694
        %v3703 = vmul.f32 %v3674, %v3697
        %v3704 = vmul.f32 %v3675, %v3694
        %v3705 = vmul.f32 %v3676, %v3697
        %v3706 = vmul.f32 %v3677, %v3694
        %v3707 = vmul.f32 %v3678, %v3697
        %v3708 = vmul.f32 %v3679, %v3694
        %v3709 = vmul.f32 %v3680, %v3697
        %v3710 = vmul.f32 %v3681, %v3694
        %v3711 = vmul.f32 %v3682, %v3697
        %3724 = vrot.lane.b32.xlu0 %v3700, 96
        %v3725 = vpop.permute.xlu0 %3724
        %3726 = vrot.lane.b32.xlu0 %v3701, 96
        %v3727 = vpop.permute.xlu0 %3726
        %3728 = vrot.lane.b32.xlu0 %v3702, 96
        %v3729 = vpop.permute.xlu0 %3728
        %3730 = vrot.lane.b32.xlu0 %v3703, 96
        %v3731 = vpop.permute.xlu0 %3730
        %3732 = vrot.lane.b32.xlu0 %v3704, 96
        %v3733 = vpop.permute.xlu0 %3732
        %3734 = vrot.lane.b32.xlu0 %v3705, 96
        %v3735 = vpop.permute.xlu0 %3734
        %3736 = vrot.lane.b32.xlu0 %v3706, 96
        %v3737 = vpop.permute.xlu0 %3736
        %3738 = vrot.lane.b32.xlu0 %v3707, 96
        %v3739 = vpop.permute.xlu0 %3738
        %3740 = vrot.lane.b32.xlu0 %v3708, 96
        %v3741 = vpop.permute.xlu0 %3740
        %3742 = vrot.lane.b32.xlu0 %v3709, 96
        %v3743 = vpop.permute.xlu0 %3742
        %3744 = vrot.lane.b32.xlu0 %v3710, 96
        %v3745 = vpop.permute.xlu0 %3744
        %3746 = vrot.lane.b32.xlu0 %v3711, 96
        %v3747 = vpop.permute.xlu0 %3746
        %v3748 = vsel %vm379, %v3725, %v3727
        %v3749 = vsel %vm379, %v3729, %v3731
        %v3750 = vsel %vm379, %v3733, %v3735
        %v3751 = vsel %vm379, %v3737, %v3739
        %v3752 = vsel %vm379, %v3741, %v3743
        %v3753 = vsel %vm379, %v3745, %v3747
        %3766 = vst [vmem:[#allocation2 + $0x840] sm:$0xff] %v3748
        %3767 = vst.msk [vmem:[#allocation2 + $0x848] sm:$0xff] %vm379, %v3727
        %3768 = vst [vmem:[#allocation2 + $0x850] sm:$0xff] %v3749
        %3769 = vst.msk [vmem:[#allocation2 + $0x858] sm:$0xff] %vm379, %v3731
        %3770 = vst [vmem:[#allocation2 + $0x860] sm:$0xff] %v3750
        %3771 = vst.msk [vmem:[#allocation2 + $0x868] sm:$0xff] %vm379, %v3735
        %3772 = vst [vmem:[#allocation2 + $0x870] sm:$0xff] %v3751
        %3773 = vst.msk [vmem:[#allocation2 + $0x878] sm:$0xff] %vm379, %v3739
        %3774 = vst [vmem:[#allocation2 + $0x880] sm:$0xff] %v3752
        %3775 = vst.msk [vmem:[#allocation2 + $0x888] sm:$0xff] %vm379, %v3743
        %3776 = vst [vmem:[#allocation2 + $0x890] sm:$0xff] %v3753
        %3777 = vst.msk [vmem:[#allocation2 + $0x898] sm:$0xff] %vm379, %v3747
        %v3778 = vld [vmem:[#allocation3] sm:$0xff]
        %v3779 = vld [vmem:[#allocation3 + $0x8] sm:$0xff]
        %v3780 = vld [vmem:[#allocation3 + $0x10] sm:$0xff]
        %v3781 = vld [vmem:[#allocation3 + $0x18] sm:$0xff]
        %v3782 = vld [vmem:[#allocation3 + $0x20] sm:$0xff]
        %v3783 = vld [vmem:[#allocation3 + $0x28] sm:$0xff]
        %v3784 = vld [vmem:[#allocation3 + $0x30] sm:$0xff]
        %v3785 = vld [vmem:[#allocation3 + $0x38] sm:$0xff]
        %v3786 = vld [vmem:[#allocation3 + $0x40] sm:$0xff]
        %v3787 = vld [vmem:[#allocation3 + $0x48] sm:$0xff]
        %v3788 = vld [vmem:[#allocation3 + $0x50] sm:$0xff]
        %v3789 = vld [vmem:[#allocation3 + $0x58] sm:$0xff]
        %v3790 = vld [vmem:[%s822] ss:$8 sm:$0x3]
        %v3792 = vlaneseq
        %v3793 = vshrl.u32 %v3792, 7
        %v3794 = vsub.s32 0, %v3793
        %v3795 = vrot.slane %v3790, %v3794
        %v3796 = vlaneseq
        %v3797 = vshrl.u32 %v3796, 7
        %v3798 = vsub.s32 1, %v3797
        %v3799 = vrot.slane %v3790, %v3798
        %3800 = vrot.lane.b32.xlu0 %v3795, 33
        %v3801 = vpop.permute.xlu0 %3800
        %3802 = vrot.lane.b32.xlu0 %v3799, 33
        %v3803 = vpop.permute.xlu0 %3802
        %v3804 = vsel %vm364, %v3801, %v3803
        %v3807 = vmul.f32 %v3778, %v3801
        %v3808 = vmul.f32 %v3779, %v3804
        %v3809 = vmul.f32 %v3780, %v3801
        %v3810 = vmul.f32 %v3781, %v3804
        %v3811 = vmul.f32 %v3782, %v3801
        %v3812 = vmul.f32 %v3783, %v3804
        %v3813 = vmul.f32 %v3784, %v3801
        %v3814 = vmul.f32 %v3785, %v3804
        %v3815 = vmul.f32 %v3786, %v3801
        %v3816 = vmul.f32 %v3787, %v3804
        %v3817 = vmul.f32 %v3788, %v3801
        %v3818 = vmul.f32 %v3789, %v3804
        %3831 = vrot.lane.b32.xlu0 %v3807, 95
        %v3832 = vpop.permute.xlu0 %3831
        %3833 = vrot.lane.b32.xlu0 %v3808, 95
        %v3834 = vpop.permute.xlu0 %3833
        %3835 = vrot.lane.b32.xlu0 %v3809, 95
        %v3836 = vpop.permute.xlu0 %3835
        %3837 = vrot.lane.b32.xlu0 %v3810, 95
        %v3838 = vpop.permute.xlu0 %3837
        %3839 = vrot.lane.b32.xlu0 %v3811, 95
        %v3840 = vpop.permute.xlu0 %3839
        %3841 = vrot.lane.b32.xlu0 %v3812, 95
        %v3842 = vpop.permute.xlu0 %3841
        %3843 = vrot.lane.b32.xlu0 %v3813, 95
        %v3844 = vpop.permute.xlu0 %3843
        %3845 = vrot.lane.b32.xlu0 %v3814, 95
        %v3846 = vpop.permute.xlu0 %3845
        %3847 = vrot.lane.b32.xlu0 %v3815, 95
        %v3848 = vpop.permute.xlu0 %3847
        %3849 = vrot.lane.b32.xlu0 %v3816, 95
        %v3850 = vpop.permute.xlu0 %3849
        %3851 = vrot.lane.b32.xlu0 %v3817, 95
        %v3852 = vpop.permute.xlu0 %3851
        %3853 = vrot.lane.b32.xlu0 %v3818, 95
        %v3854 = vpop.permute.xlu0 %3853
        %v3855 = vsel %vm356, %v3832, %v3834
        %v3856 = vsel %vm356, %v3836, %v3838
        %v3857 = vsel %vm356, %v3840, %v3842
        %v3858 = vsel %vm356, %v3844, %v3846
        %v3859 = vsel %vm356, %v3848, %v3850
        %v3860 = vsel %vm356, %v3852, %v3854
        %3873 = vst [vmem:[#allocation2 + $0x8a0] sm:$0xff] %v3855
        %3874 = vst.msk [vmem:[#allocation2 + $0x8a8] sm:$0xff] %vm356, %v3834
        %3875 = vst [vmem:[#allocation2 + $0x8b0] sm:$0xff] %v3856
        %3876 = vst.msk [vmem:[#allocation2 + $0x8b8] sm:$0xff] %vm356, %v3838
        %3877 = vst [vmem:[#allocation2 + $0x8c0] sm:$0xff] %v3857
        %3878 = vst.msk [vmem:[#allocation2 + $0x8c8] sm:$0xff] %vm356, %v3842
        %3879 = vst [vmem:[#allocation2 + $0x8d0] sm:$0xff] %v3858
        %3880 = vst.msk [vmem:[#allocation2 + $0x8d8] sm:$0xff] %vm356, %v3846
        %3881 = vst [vmem:[#allocation2 + $0x8e0] sm:$0xff] %v3859
        %3882 = vst.msk [vmem:[#allocation2 + $0x8e8] sm:$0xff] %vm356, %v3850
        %3883 = vst [vmem:[#allocation2 + $0x8f0] sm:$0xff] %v3860
        %3884 = vst.msk [vmem:[#allocation2 + $0x8f8] sm:$0xff] %vm356, %v3854
        %v3885 = vld [vmem:[#allocation3] sm:$0xff]
        %v3886 = vld [vmem:[#allocation3 + $0x8] sm:$0xff]
        %v3887 = vld [vmem:[#allocation3 + $0x10] sm:$0xff]
        %v3888 = vld [vmem:[#allocation3 + $0x18] sm:$0xff]
        %v3889 = vld [vmem:[#allocation3 + $0x20] sm:$0xff]
        %v3890 = vld [vmem:[#allocation3 + $0x28] sm:$0xff]
        %v3891 = vld [vmem:[#allocation3 + $0x30] sm:$0xff]
        %v3892 = vld [vmem:[#allocation3 + $0x38] sm:$0xff]
        %v3893 = vld [vmem:[#allocation3 + $0x40] sm:$0xff]
        %v3894 = vld [vmem:[#allocation3 + $0x48] sm:$0xff]
        %v3895 = vld [vmem:[#allocation3 + $0x50] sm:$0xff]
        %v3896 = vld [vmem:[#allocation3 + $0x58] sm:$0xff]
        %v3897 = vld [vmem:[%s843] ss:$8 sm:$0x3]
        %v3899 = vlaneseq
        %v3900 = vshrl.u32 %v3899, 7
        %v3901 = vsub.s32 0, %v3900
        %v3902 = vrot.slane %v3897, %v3901
        %v3903 = vlaneseq
        %v3904 = vshrl.u32 %v3903, 7
        %v3905 = vsub.s32 1, %v3904
        %v3906 = vrot.slane %v3897, %v3905
        %3907 = vrot.lane.b32.xlu0 %v3902, 34
        %v3908 = vpop.permute.xlu0 %3907
        %3909 = vrot.lane.b32.xlu0 %v3906, 34
        %v3910 = vpop.permute.xlu0 %3909
        %v3911 = vsel %vm340, %v3908, %v3910
        %v3914 = vmul.f32 %v3885, %v3908
        %v3915 = vmul.f32 %v3886, %v3911
        %v3916 = vmul.f32 %v3887, %v3908
        %v3917 = vmul.f32 %v3888, %v3911
        %v3918 = vmul.f32 %v3889, %v3908
        %v3919 = vmul.f32 %v3890, %v3911
        %v3920 = vmul.f32 %v3891, %v3908
        %v3921 = vmul.f32 %v3892, %v3911
        %v3922 = vmul.f32 %v3893, %v3908
        %v3923 = vmul.f32 %v3894, %v3911
        %v3924 = vmul.f32 %v3895, %v3908
        %v3925 = vmul.f32 %v3896, %v3911
        %3938 = vrot.lane.b32.xlu0 %v3914, 94
        %v3939 = vpop.permute.xlu0 %3938
        %3940 = vrot.lane.b32.xlu0 %v3915, 94
        %v3941 = vpop.permute.xlu0 %3940
        %3942 = vrot.lane.b32.xlu0 %v3916, 94
        %v3943 = vpop.permute.xlu0 %3942
        %3944 = vrot.lane.b32.xlu0 %v3917, 94
        %v3945 = vpop.permute.xlu0 %3944
        %3946 = vrot.lane.b32.xlu0 %v3918, 94
        %v3947 = vpop.permute.xlu0 %3946
        %3948 = vrot.lane.b32.xlu0 %v3919, 94
        %v3949 = vpop.permute.xlu0 %3948
        %3950 = vrot.lane.b32.xlu0 %v3920, 94
        %v3951 = vpop.permute.xlu0 %3950
        %3952 = vrot.lane.b32.xlu0 %v3921, 94
        %v3953 = vpop.permute.xlu0 %3952
        %3954 = vrot.lane.b32.xlu0 %v3922, 94
        %v3955 = vpop.permute.xlu0 %3954
        %3956 = vrot.lane.b32.xlu0 %v3923, 94
        %v3957 = vpop.permute.xlu0 %3956
        %3958 = vrot.lane.b32.xlu0 %v3924, 94
        %v3959 = vpop.permute.xlu0 %3958
        %3960 = vrot.lane.b32.xlu0 %v3925, 94
        %v3961 = vpop.permute.xlu0 %3960
        %v3962 = vsel %vm332, %v3939, %v3941
        %v3963 = vsel %vm332, %v3943, %v3945
        %v3964 = vsel %vm332, %v3947, %v3949
        %v3965 = vsel %vm332, %v3951, %v3953
        %v3966 = vsel %vm332, %v3955, %v3957
        %v3967 = vsel %vm332, %v3959, %v3961
        %3980 = vst [vmem:[#allocation2 + $0x900] sm:$0xff] %v3962
        %3981 = vst.msk [vmem:[#allocation2 + $0x908] sm:$0xff] %vm332, %v3941
        %3982 = vst [vmem:[#allocation2 + $0x910] sm:$0xff] %v3963
        %3983 = vst.msk [vmem:[#allocation2 + $0x918] sm:$0xff] %vm332, %v3945
        %3984 = vst [vmem:[#allocation2 + $0x920] sm:$0xff] %v3964
        %3985 = vst.msk [vmem:[#allocation2 + $0x928] sm:$0xff] %vm332, %v3949
        %3986 = vst [vmem:[#allocation2 + $0x930] sm:$0xff] %v3965
        %3987 = vst.msk [vmem:[#allocation2 + $0x938] sm:$0xff] %vm332, %v3953
        %3988 = vst [vmem:[#allocation2 + $0x940] sm:$0xff] %v3966
        %3989 = vst.msk [vmem:[#allocation2 + $0x948] sm:$0xff] %vm332, %v3957
        %3990 = vst [vmem:[#allocation2 + $0x950] sm:$0xff] %v3967
        %3991 = vst.msk [vmem:[#allocation2 + $0x958] sm:$0xff] %vm332, %v3961
        %v3992 = vld [vmem:[#allocation5] sm:$0xff]
        %v3993 = vld [vmem:[#allocation5 + $0x8] sm:$0xff]
        %v3994 = vld [vmem:[#allocation5 + $0x10] sm:$0xff]
        %v3995 = vld [vmem:[#allocation5 + $0x18] sm:$0xff]
        %v3996 = vld [vmem:[#allocation5 + $0x20] sm:$0xff]
        %v3997 = vld [vmem:[#allocation5 + $0x28] sm:$0xff]
        %v3998 = vld [vmem:[#allocation5 + $0x30] sm:$0xff]
        %v3999 = vld [vmem:[#allocation5 + $0x38] sm:$0xff]
        %v4000 = vld [vmem:[#allocation5 + $0x40] sm:$0xff]
        %v4001 = vld [vmem:[#allocation5 + $0x48] sm:$0xff]
        %v4002 = vld [vmem:[#allocation5 + $0x50] sm:$0xff]
        %v4003 = vld [vmem:[#allocation5 + $0x58] sm:$0xff]
        %v4004 = vld [vmem:[#allocation5 + $0x60] sm:$0xff]
        %v4005 = vld [vmem:[#allocation5 + $0x68] sm:$0xff]
        %v4006 = vld [vmem:[#allocation5 + $0x70] sm:$0xff]
        %v4007 = vld [vmem:[#allocation5 + $0x78] sm:$0xff]
        %v4008 = vld [vmem:[#allocation5 + $0x80] sm:$0xff]
        %v4009 = vld [vmem:[#allocation5 + $0x88] sm:$0xff]
        %v4010 = vld [vmem:[#allocation5 + $0x90] sm:$0xff]
        %v4011 = vld [vmem:[#allocation5 + $0x98] sm:$0xff]
        %v4012 = vld [vmem:[#allocation5 + $0xa0] sm:$0xff]
        %v4013 = vld [vmem:[#allocation5 + $0xa8] sm:$0xff]
        %v4014 = vld [vmem:[#allocation5 + $0xb0] sm:$0xff]
        %v4015 = vld [vmem:[#allocation5 + $0xb8] sm:$0xff]
        %v4016 = vld [vmem:[#allocation5 + $0xc0] sm:$0xff]
        %v4017 = vld [vmem:[#allocation5 + $0xc8] sm:$0xff]
        %v4018 = vld [vmem:[#allocation5 + $0xd0] sm:$0xff]
        %v4019 = vld [vmem:[#allocation5 + $0xd8] sm:$0xff]
        %v4020 = vld [vmem:[#allocation5 + $0xe0] sm:$0xff]
        %v4021 = vld [vmem:[#allocation5 + $0xe8] sm:$0xff]
        %v4022 = vld [vmem:[#allocation5 + $0xf0] sm:$0xff]
        %v4023 = vld [vmem:[#allocation5 + $0xf8] sm:$0xff]
        %v4024 = vld [vmem:[#allocation5 + $0x100] sm:$0xff]
        %v4025 = vld [vmem:[#allocation5 + $0x108] sm:$0xff]
        %v4026 = vld [vmem:[#allocation5 + $0x110] sm:$0xff]
        %v4027 = vld [vmem:[#allocation5 + $0x118] sm:$0xff]
        %v4028 = vld [vmem:[#allocation5 + $0x120] sm:$0xff]
        %v4029 = vld [vmem:[#allocation5 + $0x128] sm:$0xff]
        %v4030 = vld [vmem:[#allocation5 + $0x130] sm:$0xff]
        %v4031 = vld [vmem:[#allocation5 + $0x138] sm:$0xff]
        %v4032 = vld [vmem:[#allocation5 + $0x140] sm:$0xff]
        %v4033 = vld [vmem:[#allocation5 + $0x148] sm:$0xff]
        %v4034 = vld [vmem:[#allocation5 + $0x150] sm:$0xff]
        %v4035 = vld [vmem:[#allocation5 + $0x158] sm:$0xff]
        %v4036 = vld [vmem:[#allocation5 + $0x160] sm:$0xff]
        %v4037 = vld [vmem:[#allocation5 + $0x168] sm:$0xff]
        %v4038 = vld [vmem:[#allocation5 + $0x170] sm:$0xff]
        %v4039 = vld [vmem:[#allocation5 + $0x178] sm:$0xff]
        %v4040 = vld [vmem:[#allocation5 + $0x180] sm:$0xff]
        %v4041 = vld [vmem:[#allocation5 + $0x188] sm:$0xff]
        %v4042 = vld [vmem:[#allocation5 + $0x190] sm:$0xff]
        %v4043 = vld [vmem:[#allocation5 + $0x198] sm:$0xff]
        %v4044 = vld [vmem:[#allocation5 + $0x1a0] sm:$0xff]
        %v4045 = vld [vmem:[#allocation5 + $0x1a8] sm:$0xff]
        %v4046 = vld [vmem:[#allocation5 + $0x1b0] sm:$0xff]
        %v4047 = vld [vmem:[#allocation5 + $0x1b8] sm:$0xff]
        %v4048 = vld [vmem:[#allocation5 + $0x1c0] sm:$0xff]
        %v4049 = vld [vmem:[#allocation5 + $0x1c8] sm:$0xff]
        %v4050 = vld [vmem:[#allocation5 + $0x1d0] sm:$0xff]
        %v4051 = vld [vmem:[#allocation5 + $0x1d8] sm:$0xff]
        %v4052 = vld [vmem:[#allocation2] sm:$0xff]
        %v4053 = vld [vmem:[#allocation2 + $0x8] sm:$0xff]
        %v4054 = vld [vmem:[#allocation2 + $0x10] sm:$0xff]
        %v4055 = vld [vmem:[#allocation2 + $0x18] sm:$0xff]
        %v4056 = vld [vmem:[#allocation2 + $0x20] sm:$0xff]
        %v4057 = vld [vmem:[#allocation2 + $0x28] sm:$0xff]
        %v4058 = vld [vmem:[#allocation2 + $0x30] sm:$0xff]
        %v4059 = vld [vmem:[#allocation2 + $0x38] sm:$0xff]
        %v4060 = vld [vmem:[#allocation2 + $0x40] sm:$0xff]
        %v4061 = vld [vmem:[#allocation2 + $0x48] sm:$0xff]
        %v4062 = vld [vmem:[#allocation2 + $0x50] sm:$0xff]
        %v4063 = vld [vmem:[#allocation2 + $0x58] sm:$0xff]
        %v4064 = vld [vmem:[#allocation2 + $0x60] sm:$0xff]
        %v4065 = vld [vmem:[#allocation2 + $0x68] sm:$0xff]
        %v4066 = vld [vmem:[#allocation2 + $0x70] sm:$0xff]
        %v4067 = vld [vmem:[#allocation2 + $0x78] sm:$0xff]
        %v4068 = vld [vmem:[#allocation2 + $0x80] sm:$0xff]
        %v4069 = vld [vmem:[#allocation2 + $0x88] sm:$0xff]
        %v4070 = vld [vmem:[#allocation2 + $0x90] sm:$0xff]
        %v4071 = vld [vmem:[#allocation2 + $0x98] sm:$0xff]
        %v4072 = vld [vmem:[#allocation2 + $0xa0] sm:$0xff]
        %v4073 = vld [vmem:[#allocation2 + $0xa8] sm:$0xff]
        %v4074 = vld [vmem:[#allocation2 + $0xb0] sm:$0xff]
        %v4075 = vld [vmem:[#allocation2 + $0xb8] sm:$0xff]
        %v4076 = vld [vmem:[#allocation2 + $0xc0] sm:$0xff]
        %v4077 = vld [vmem:[#allocation2 + $0xc8] sm:$0xff]
        %v4078 = vld [vmem:[#allocation2 + $0xd0] sm:$0xff]
        %v4079 = vld [vmem:[#allocation2 + $0xd8] sm:$0xff]
        %v4080 = vld [vmem:[#allocation2 + $0xe0] sm:$0xff]
        %v4081 = vld [vmem:[#allocation2 + $0xe8] sm:$0xff]
        %v4082 = vld [vmem:[#allocation2 + $0xf0] sm:$0xff]
        %v4083 = vld [vmem:[#allocation2 + $0xf8] sm:$0xff]
        %v4084 = vld [vmem:[#allocation2 + $0x100] sm:$0xff]
        %v4085 = vld [vmem:[#allocation2 + $0x108] sm:$0xff]
        %v4086 = vld [vmem:[#allocation2 + $0x110] sm:$0xff]
        %v4087 = vld [vmem:[#allocation2 + $0x118] sm:$0xff]
        %v4088 = vld [vmem:[#allocation2 + $0x120] sm:$0xff]
        %v4089 = vld [vmem:[#allocation2 + $0x128] sm:$0xff]
        %v4090 = vld [vmem:[#allocation2 + $0x130] sm:$0xff]
        %v4091 = vld [vmem:[#allocation2 + $0x138] sm:$0xff]
        %v4092 = vld [vmem:[#allocation2 + $0x140] sm:$0xff]
        %v4093 = vld [vmem:[#allocation2 + $0x148] sm:$0xff]
        %v4094 = vld [vmem:[#allocation2 + $0x150] sm:$0xff]
        %v4095 = vld [vmem:[#allocation2 + $0x158] sm:$0xff]
        %v4096 = vld [vmem:[#allocation2 + $0x160] sm:$0xff]
        %v4097 = vld [vmem:[#allocation2 + $0x168] sm:$0xff]
        %v4098 = vld [vmem:[#allocation2 + $0x170] sm:$0xff]
        %v4099 = vld [vmem:[#allocation2 + $0x178] sm:$0xff]
        %v4100 = vld [vmem:[#allocation2 + $0x180] sm:$0xff]
        %v4101 = vld [vmem:[#allocation2 + $0x188] sm:$0xff]
        %v4102 = vld [vmem:[#allocation2 + $0x190] sm:$0xff]
        %v4103 = vld [vmem:[#allocation2 + $0x198] sm:$0xff]
        %v4104 = vld [vmem:[#allocation2 + $0x1a0] sm:$0xff]
        %v4105 = vld [vmem:[#allocation2 + $0x1a8] sm:$0xff]
        %v4106 = vld [vmem:[#allocation2 + $0x1b0] sm:$0xff]
        %v4107 = vld [vmem:[#allocation2 + $0x1b8] sm:$0xff]
        %v4108 = vld [vmem:[#allocation2 + $0x1c0] sm:$0xff]
        %v4109 = vld [vmem:[#allocation2 + $0x1c8] sm:$0xff]
        %v4110 = vld [vmem:[#allocation2 + $0x1d0] sm:$0xff]
        %v4111 = vld [vmem:[#allocation2 + $0x1d8] sm:$0xff]
        %v4112 = vld [vmem:[#allocation2 + $0x1e0] sm:$0xff]
        %v4113 = vld [vmem:[#allocation2 + $0x1e8] sm:$0xff]
        %v4114 = vld [vmem:[#allocation2 + $0x1f0] sm:$0xff]
        %v4115 = vld [vmem:[#allocation2 + $0x1f8] sm:$0xff]
        %v4116 = vld [vmem:[#allocation2 + $0x200] sm:$0xff]
        %v4117 = vld [vmem:[#allocation2 + $0x208] sm:$0xff]
        %v4118 = vld [vmem:[#allocation2 + $0x210] sm:$0xff]
        %v4119 = vld [vmem:[#allocation2 + $0x218] sm:$0xff]
        %v4120 = vld [vmem:[#allocation2 + $0x220] sm:$0xff]
        %v4121 = vld [vmem:[#allocation2 + $0x228] sm:$0xff]
        %v4122 = vld [vmem:[#allocation2 + $0x230] sm:$0xff]
        %v4123 = vld [vmem:[#allocation2 + $0x238] sm:$0xff]
        %v4124 = vld [vmem:[#allocation2 + $0x240] sm:$0xff]
        %v4125 = vld [vmem:[#allocation2 + $0x248] sm:$0xff]
        %v4126 = vld [vmem:[#allocation2 + $0x250] sm:$0xff]
        %v4127 = vld [vmem:[#allocation2 + $0x258] sm:$0xff]
        %v4128 = vld [vmem:[#allocation2 + $0x260] sm:$0xff]
        %v4129 = vld [vmem:[#allocation2 + $0x268] sm:$0xff]
        %v4130 = vld [vmem:[#allocation2 + $0x270] sm:$0xff]
        %v4131 = vld [vmem:[#allocation2 + $0x278] sm:$0xff]
        %v4132 = vld [vmem:[#allocation2 + $0x280] sm:$0xff]
        %v4133 = vld [vmem:[#allocation2 + $0x288] sm:$0xff]
        %v4134 = vld [vmem:[#allocation2 + $0x290] sm:$0xff]
        %v4135 = vld [vmem:[#allocation2 + $0x298] sm:$0xff]
        %v4136 = vld [vmem:[#allocation2 + $0x2a0] sm:$0xff]
        %v4137 = vld [vmem:[#allocation2 + $0x2a8] sm:$0xff]
        %v4138 = vld [vmem:[#allocation2 + $0x2b0] sm:$0xff]
        %v4139 = vld [vmem:[#allocation2 + $0x2b8] sm:$0xff]
        %v4140 = vld [vmem:[#allocation2 + $0x2c0] sm:$0xff]
        %v4141 = vld [vmem:[#allocation2 + $0x2c8] sm:$0xff]
        %v4142 = vld [vmem:[#allocation2 + $0x2d0] sm:$0xff]
        %v4143 = vld [vmem:[#allocation2 + $0x2d8] sm:$0xff]
        %v4144 = vld [vmem:[#allocation2 + $0x2e0] sm:$0xff]
        %v4145 = vld [vmem:[#allocation2 + $0x2e8] sm:$0xff]
        %v4146 = vld [vmem:[#allocation2 + $0x2f0] sm:$0xff]
        %v4147 = vld [vmem:[#allocation2 + $0x2f8] sm:$0xff]
        %v4148 = vld [vmem:[#allocation2 + $0x300] sm:$0xff]
        %v4149 = vld [vmem:[#allocation2 + $0x308] sm:$0xff]
        %v4150 = vld [vmem:[#allocation2 + $0x310] sm:$0xff]
        %v4151 = vld [vmem:[#allocation2 + $0x318] sm:$0xff]
        %v4152 = vld [vmem:[#allocation2 + $0x320] sm:$0xff]
        %v4153 = vld [vmem:[#allocation2 + $0x328] sm:$0xff]
        %v4154 = vld [vmem:[#allocation2 + $0x330] sm:$0xff]
        %v4155 = vld [vmem:[#allocation2 + $0x338] sm:$0xff]
        %v4156 = vld [vmem:[#allocation2 + $0x340] sm:$0xff]
        %v4157 = vld [vmem:[#allocation2 + $0x348] sm:$0xff]
        %v4158 = vld [vmem:[#allocation2 + $0x350] sm:$0xff]
        %v4159 = vld [vmem:[#allocation2 + $0x358] sm:$0xff]
        %v4160 = vld [vmem:[#allocation2 + $0x360] sm:$0xff]
        %v4161 = vld [vmem:[#allocation2 + $0x368] sm:$0xff]
        %v4162 = vld [vmem:[#allocation2 + $0x370] sm:$0xff]
        %v4163 = vld [vmem:[#allocation2 + $0x378] sm:$0xff]
        %v4164 = vld [vmem:[#allocation2 + $0x380] sm:$0xff]
        %v4165 = vld [vmem:[#allocation2 + $0x388] sm:$0xff]
        %v4166 = vld [vmem:[#allocation2 + $0x390] sm:$0xff]
        %v4167 = vld [vmem:[#allocation2 + $0x398] sm:$0xff]
        %v4168 = vld [vmem:[#allocation2 + $0x3a0] sm:$0xff]
        %v4169 = vld [vmem:[#allocation2 + $0x3a8] sm:$0xff]
        %v4170 = vld [vmem:[#allocation2 + $0x3b0] sm:$0xff]
        %v4171 = vld [vmem:[#allocation2 + $0x3b8] sm:$0xff]
        %v4172 = vld [vmem:[#allocation2 + $0x3c0] sm:$0xff]
        %v4173 = vld [vmem:[#allocation2 + $0x3c8] sm:$0xff]
        %v4174 = vld [vmem:[#allocation2 + $0x3d0] sm:$0xff]
        %v4175 = vld [vmem:[#allocation2 + $0x3d8] sm:$0xff]
        %v4176 = vld [vmem:[#allocation2 + $0x3e0] sm:$0xff]
        %v4177 = vld [vmem:[#allocation2 + $0x3e8] sm:$0xff]
        %v4178 = vld [vmem:[#allocation2 + $0x3f0] sm:$0xff]
        %v4179 = vld [vmem:[#allocation2 + $0x3f8] sm:$0xff]
        %v4180 = vld [vmem:[#allocation2 + $0x400] sm:$0xff]
        %v4181 = vld [vmem:[#allocation2 + $0x408] sm:$0xff]
        %v4182 = vld [vmem:[#allocation2 + $0x410] sm:$0xff]
        %v4183 = vld [vmem:[#allocation2 + $0x418] sm:$0xff]
        %v4184 = vld [vmem:[#allocation2 + $0x420] sm:$0xff]
        %v4185 = vld [vmem:[#allocation2 + $0x428] sm:$0xff]
        %v4186 = vld [vmem:[#allocation2 + $0x430] sm:$0xff]
        %v4187 = vld [vmem:[#allocation2 + $0x438] sm:$0xff]
        %v4188 = vld [vmem:[#allocation2 + $0x440] sm:$0xff]
        %v4189 = vld [vmem:[#allocation2 + $0x448] sm:$0xff]
        %v4190 = vld [vmem:[#allocation2 + $0x450] sm:$0xff]
        %v4191 = vld [vmem:[#allocation2 + $0x458] sm:$0xff]
        %v4192 = vld [vmem:[#allocation2 + $0x460] sm:$0xff]
        %v4193 = vld [vmem:[#allocation2 + $0x468] sm:$0xff]
        %v4194 = vld [vmem:[#allocation2 + $0x470] sm:$0xff]
        %v4195 = vld [vmem:[#allocation2 + $0x478] sm:$0xff]
        %v4196 = vld [vmem:[#allocation2 + $0x480] sm:$0xff]
        %v4197 = vld [vmem:[#allocation2 + $0x488] sm:$0xff]
        %v4198 = vld [vmem:[#allocation2 + $0x490] sm:$0xff]
        %v4199 = vld [vmem:[#allocation2 + $0x498] sm:$0xff]
        %v4200 = vld [vmem:[#allocation2 + $0x4a0] sm:$0xff]
        %v4201 = vld [vmem:[#allocation2 + $0x4a8] sm:$0xff]
        %v4202 = vld [vmem:[#allocation2 + $0x4b0] sm:$0xff]
        %v4203 = vld [vmem:[#allocation2 + $0x4b8] sm:$0xff]
        %v4204 = vld [vmem:[#allocation2 + $0x4c0] sm:$0xff]
        %v4205 = vld [vmem:[#allocation2 + $0x4c8] sm:$0xff]
        %v4206 = vld [vmem:[#allocation2 + $0x4d0] sm:$0xff]
        %v4207 = vld [vmem:[#allocation2 + $0x4d8] sm:$0xff]
        %v4208 = vld [vmem:[#allocation2 + $0x4e0] sm:$0xff]
        %v4209 = vld [vmem:[#allocation2 + $0x4e8] sm:$0xff]
        %v4210 = vld [vmem:[#allocation2 + $0x4f0] sm:$0xff]
        %v4211 = vld [vmem:[#allocation2 + $0x4f8] sm:$0xff]
        %v4212 = vld [vmem:[#allocation2 + $0x500] sm:$0xff]
        %v4213 = vld [vmem:[#allocation2 + $0x508] sm:$0xff]
        %v4214 = vld [vmem:[#allocation2 + $0x510] sm:$0xff]
        %v4215 = vld [vmem:[#allocation2 + $0x518] sm:$0xff]
        %v4216 = vld [vmem:[#allocation2 + $0x520] sm:$0xff]
        %v4217 = vld [vmem:[#allocation2 + $0x528] sm:$0xff]
        %v4218 = vld [vmem:[#allocation2 + $0x530] sm:$0xff]
        %v4219 = vld [vmem:[#allocation2 + $0x538] sm:$0xff]
        %v4220 = vld [vmem:[#allocation2 + $0x540] sm:$0xff]
        %v4221 = vld [vmem:[#allocation2 + $0x548] sm:$0xff]
        %v4222 = vld [vmem:[#allocation2 + $0x550] sm:$0xff]
        %v4223 = vld [vmem:[#allocation2 + $0x558] sm:$0xff]
        %v4224 = vld [vmem:[#allocation2 + $0x560] sm:$0xff]
        %v4225 = vld [vmem:[#allocation2 + $0x568] sm:$0xff]
        %v4226 = vld [vmem:[#allocation2 + $0x570] sm:$0xff]
        %v4227 = vld [vmem:[#allocation2 + $0x578] sm:$0xff]
        %v4228 = vld [vmem:[#allocation2 + $0x580] sm:$0xff]
        %v4229 = vld [vmem:[#allocation2 + $0x588] sm:$0xff]
        %v4230 = vld [vmem:[#allocation2 + $0x590] sm:$0xff]
        %v4231 = vld [vmem:[#allocation2 + $0x598] sm:$0xff]
        %v4232 = vld [vmem:[#allocation2 + $0x5a0] sm:$0xff]
        %v4233 = vld [vmem:[#allocation2 + $0x5a8] sm:$0xff]
        %v4234 = vld [vmem:[#allocation2 + $0x5b0] sm:$0xff]
        %v4235 = vld [vmem:[#allocation2 + $0x5b8] sm:$0xff]
        %v4236 = vld [vmem:[#allocation2 + $0x5c0] sm:$0xff]
        %v4237 = vld [vmem:[#allocation2 + $0x5c8] sm:$0xff]
        %v4238 = vld [vmem:[#allocation2 + $0x5d0] sm:$0xff]
        %v4239 = vld [vmem:[#allocation2 + $0x5d8] sm:$0xff]
        %v4240 = vld [vmem:[#allocation2 + $0x5e0] sm:$0xff]
        %v4241 = vld [vmem:[#allocation2 + $0x5e8] sm:$0xff]
        %v4242 = vld [vmem:[#allocation2 + $0x5f0] sm:$0xff]
        %v4243 = vld [vmem:[#allocation2 + $0x5f8] sm:$0xff]
        %v4244 = vld [vmem:[#allocation2 + $0x600] sm:$0xff]
        %v4245 = vld [vmem:[#allocation2 + $0x608] sm:$0xff]
        %v4246 = vld [vmem:[#allocation2 + $0x610] sm:$0xff]
        %v4247 = vld [vmem:[#allocation2 + $0x618] sm:$0xff]
        %v4248 = vld [vmem:[#allocation2 + $0x620] sm:$0xff]
        %v4249 = vld [vmem:[#allocation2 + $0x628] sm:$0xff]
        %v4250 = vld [vmem:[#allocation2 + $0x630] sm:$0xff]
        %v4251 = vld [vmem:[#allocation2 + $0x638] sm:$0xff]
        %v4252 = vld [vmem:[#allocation2 + $0x640] sm:$0xff]
        %v4253 = vld [vmem:[#allocation2 + $0x648] sm:$0xff]
        %v4254 = vld [vmem:[#allocation2 + $0x650] sm:$0xff]
        %v4255 = vld [vmem:[#allocation2 + $0x658] sm:$0xff]
        %v4256 = vld [vmem:[#allocation2 + $0x660] sm:$0xff]
        %v4257 = vld [vmem:[#allocation2 + $0x668] sm:$0xff]
        %v4258 = vld [vmem:[#allocation2 + $0x670] sm:$0xff]
        %v4259 = vld [vmem:[#allocation2 + $0x678] sm:$0xff]
        %v4260 = vld [vmem:[#allocation2 + $0x680] sm:$0xff]
        %v4261 = vld [vmem:[#allocation2 + $0x688] sm:$0xff]
        %v4262 = vld [vmem:[#allocation2 + $0x690] sm:$0xff]
        %v4263 = vld [vmem:[#allocation2 + $0x698] sm:$0xff]
        %v4264 = vld [vmem:[#allocation2 + $0x6a0] sm:$0xff]
        %v4265 = vld [vmem:[#allocation2 + $0x6a8] sm:$0xff]
        %v4266 = vld [vmem:[#allocation2 + $0x6b0] sm:$0xff]
        %v4267 = vld [vmem:[#allocation2 + $0x6b8] sm:$0xff]
        %v4268 = vld [vmem:[#allocation2 + $0x6c0] sm:$0xff]
        %v4269 = vld [vmem:[#allocation2 + $0x6c8] sm:$0xff]
        %v4270 = vld [vmem:[#allocation2 + $0x6d0] sm:$0xff]
        %v4271 = vld [vmem:[#allocation2 + $0x6d8] sm:$0xff]
        %v4272 = vld [vmem:[#allocation2 + $0x6e0] sm:$0xff]
        %v4273 = vld [vmem:[#allocation2 + $0x6e8] sm:$0xff]
        %v4274 = vld [vmem:[#allocation2 + $0x6f0] sm:$0xff]
        %v4275 = vld [vmem:[#allocation2 + $0x6f8] sm:$0xff]
        %v4276 = vld [vmem:[#allocation2 + $0x700] sm:$0xff]
        %v4277 = vld [vmem:[#allocation2 + $0x708] sm:$0xff]
        %v4278 = vld [vmem:[#allocation2 + $0x710] sm:$0xff]
        %v4279 = vld [vmem:[#allocation2 + $0x718] sm:$0xff]
        %v4280 = vld [vmem:[#allocation2 + $0x720] sm:$0xff]
        %v4281 = vld [vmem:[#allocation2 + $0x728] sm:$0xff]
        %v4282 = vld [vmem:[#allocation2 + $0x730] sm:$0xff]
        %v4283 = vld [vmem:[#allocation2 + $0x738] sm:$0xff]
        %v4284 = vld [vmem:[#allocation2 + $0x740] sm:$0xff]
        %v4285 = vld [vmem:[#allocation2 + $0x748] sm:$0xff]
        %v4286 = vld [vmem:[#allocation2 + $0x750] sm:$0xff]
        %v4287 = vld [vmem:[#allocation2 + $0x758] sm:$0xff]
        %v4288 = vld [vmem:[#allocation2 + $0x760] sm:$0xff]
        %v4289 = vld [vmem:[#allocation2 + $0x768] sm:$0xff]
        %v4290 = vld [vmem:[#allocation2 + $0x770] sm:$0xff]
        %v4291 = vld [vmem:[#allocation2 + $0x778] sm:$0xff]
        %v4292 = vld [vmem:[#allocation2 + $0x780] sm:$0xff]
        %v4293 = vld [vmem:[#allocation2 + $0x788] sm:$0xff]
        %v4294 = vld [vmem:[#allocation2 + $0x790] sm:$0xff]
        %v4295 = vld [vmem:[#allocation2 + $0x798] sm:$0xff]
        %v4296 = vld [vmem:[#allocation2 + $0x7a0] sm:$0xff]
        %v4297 = vld [vmem:[#allocation2 + $0x7a8] sm:$0xff]
        %v4298 = vld [vmem:[#allocation2 + $0x7b0] sm:$0xff]
        %v4299 = vld [vmem:[#allocation2 + $0x7b8] sm:$0xff]
        %v4300 = vld [vmem:[#allocation2 + $0x7c0] sm:$0xff]
        %v4301 = vld [vmem:[#allocation2 + $0x7c8] sm:$0xff]
        %v4302 = vld [vmem:[#allocation2 + $0x7d0] sm:$0xff]
        %v4303 = vld [vmem:[#allocation2 + $0x7d8] sm:$0xff]
        %v4304 = vld [vmem:[#allocation2 + $0x7e0] sm:$0xff]
        %v4305 = vld [vmem:[#allocation2 + $0x7e8] sm:$0xff]
        %v4306 = vld [vmem:[#allocation2 + $0x7f0] sm:$0xff]
        %v4307 = vld [vmem:[#allocation2 + $0x7f8] sm:$0xff]
        %v4308 = vld [vmem:[#allocation2 + $0x800] sm:$0xff]
        %v4309 = vld [vmem:[#allocation2 + $0x808] sm:$0xff]
        %v4310 = vld [vmem:[#allocation2 + $0x810] sm:$0xff]
        %v4311 = vld [vmem:[#allocation2 + $0x818] sm:$0xff]
        %v4312 = vld [vmem:[#allocation2 + $0x820] sm:$0xff]
        %v4313 = vld [vmem:[#allocation2 + $0x828] sm:$0xff]
        %v4314 = vld [vmem:[#allocation2 + $0x830] sm:$0xff]
        %v4315 = vld [vmem:[#allocation2 + $0x838] sm:$0xff]
        %v4316 = vld [vmem:[#allocation2 + $0x840] sm:$0xff]
        %v4317 = vld [vmem:[#allocation2 + $0x848] sm:$0xff]
        %v4318 = vld [vmem:[#allocation2 + $0x850] sm:$0xff]
        %v4319 = vld [vmem:[#allocation2 + $0x858] sm:$0xff]
        %v4320 = vld [vmem:[#allocation2 + $0x860] sm:$0xff]
        %v4321 = vld [vmem:[#allocation2 + $0x868] sm:$0xff]
        %v4322 = vld [vmem:[#allocation2 + $0x870] sm:$0xff]
        %v4323 = vld [vmem:[#allocation2 + $0x878] sm:$0xff]
        %v4324 = vld [vmem:[#allocation2 + $0x880] sm:$0xff]
        %v4325 = vld [vmem:[#allocation2 + $0x888] sm:$0xff]
        %v4326 = vld [vmem:[#allocation2 + $0x890] sm:$0xff]
        %v4327 = vld [vmem:[#allocation2 + $0x898] sm:$0xff]
        %v4328 = vld [vmem:[#allocation2 + $0x8a0] sm:$0xff]
        %v4329 = vld [vmem:[#allocation2 + $0x8a8] sm:$0xff]
        %v4330 = vld [vmem:[#allocation2 + $0x8b0] sm:$0xff]
        %v4331 = vld [vmem:[#allocation2 + $0x8b8] sm:$0xff]
        %v4332 = vld [vmem:[#allocation2 + $0x8c0] sm:$0xff]
        %v4333 = vld [vmem:[#allocation2 + $0x8c8] sm:$0xff]
        %v4334 = vld [vmem:[#allocation2 + $0x8d0] sm:$0xff]
        %v4335 = vld [vmem:[#allocation2 + $0x8d8] sm:$0xff]
        %v4336 = vld [vmem:[#allocation2 + $0x8e0] sm:$0xff]
        %v4337 = vld [vmem:[#allocation2 + $0x8e8] sm:$0xff]
        %v4338 = vld [vmem:[#allocation2 + $0x8f0] sm:$0xff]
        %v4339 = vld [vmem:[#allocation2 + $0x8f8] sm:$0xff]
        %v4340 = vld [vmem:[#allocation2 + $0x900] sm:$0xff]
        %v4341 = vld [vmem:[#allocation2 + $0x908] sm:$0xff]
        %v4342 = vld [vmem:[#allocation2 + $0x910] sm:$0xff]
        %v4343 = vld [vmem:[#allocation2 + $0x918] sm:$0xff]
        %v4344 = vld [vmem:[#allocation2 + $0x920] sm:$0xff]
        %v4345 = vld [vmem:[#allocation2 + $0x928] sm:$0xff]
        %v4346 = vld [vmem:[#allocation2 + $0x930] sm:$0xff]
        %v4347 = vld [vmem:[#allocation2 + $0x938] sm:$0xff]
        %v4348 = vld [vmem:[#allocation2 + $0x940] sm:$0xff]
        %v4349 = vld [vmem:[#allocation2 + $0x948] sm:$0xff]
        %v4350 = vld [vmem:[#allocation2 + $0x950] sm:$0xff]
        %v4351 = vld [vmem:[#allocation2 + $0x958] sm:$0xff]
        %v4352 = vld [vmem:[%s5] sm:$0xff]
        %v4353 = vld [vmem:[%s5 + $0x8] sm:$0xff]
        %v4354 = vld [vmem:[%s5 + $0x10] sm:$0xff]
        %v4355 = vld [vmem:[%s5 + $0x18] sm:$0xff]
        %v4356 = vld [vmem:[%s5 + $0x20] sm:$0xff]
        %v4357 = vld [vmem:[%s5 + $0x28] sm:$0xff]
        %4359 = vset.pattern.permute.xlu0 0
        %4360 = vperm.xlu0 %4359, %v4352
        %v4361 = vpop.permute.xlu0 %4360
        %4364 = vset.pattern.permute.xlu0 0
        %4365 = vperm.xlu0 %4364, %v4353
        %v4366 = vpop.permute.xlu0 %4365
        %4369 = vset.pattern.permute.xlu0 0
        %4370 = vperm.xlu0 %4369, %v4354
        %v4371 = vpop.permute.xlu0 %4370
        %4374 = vset.pattern.permute.xlu0 0
        %4375 = vperm.xlu0 %4374, %v4355
        %v4376 = vpop.permute.xlu0 %4375
        %4379 = vset.pattern.permute.xlu0 0
        %4380 = vperm.xlu0 %4379, %v4356
        %v4381 = vpop.permute.xlu0 %4380
        %4384 = vset.pattern.permute.xlu0 0
        %4385 = vperm.xlu0 %4384, %v4357
        %v4386 = vpop.permute.xlu0 %4385
        %vm4388 = vcmask 392192
        %v4390 = vsel %vm4388, %v4001, 0
        %v4393 = vsel %vm4388, %v4011, 0
        %v4396 = vsel %vm4388, %v4021, 0
        %v4399 = vsel %vm4388, %v4031, 0
        %v4402 = vsel %vm4388, %v4041, 0
        %v4405 = vsel %vm4388, %v4051, 0
        %4407 = vmatprep.subr.mxu0 %v4083
        %4408 = vmatpush1.msra.mxu0 %v4082
        %4409 = vmatprep.subr.mxu0 %v4081
        %4410 = vmatpush1.msra.mxu0 %v4080
        %4411 = vmatprep.subr.mxu0 %v4079
        %4412 = vmatpush1.msra.mxu0 %v4078
        %4413 = vmatprep.subr.mxu0 %v4077
        %4414 = vmatpush1.msra.mxu0 %v4076
        %4415 = vmatprep.subr.mxu0 %v4075
        %4416 = vmatpush1.msra.mxu0 %v4074
        %4417 = vmatprep.subr.mxu0 %v4073
        %4418 = vmatpush1.msra.mxu0 %v4072
        %4419 = vmatprep.subr.mxu0 %v4071
        %4420 = vmatpush1.msra.mxu0 %v4070
        %4421 = vmatprep.subr.mxu0 %v4069
        %4422 = vmatpush1.msra.mxu0 %v4068
        %4423 = vmatprep.subr.mxu0 %v4067
        %4424 = vmatpush1.msra.mxu0 %v4066
        %4425 = vmatprep.subr.mxu0 %v4065
        %4426 = vmatpush1.msra.mxu0 %v4064
        %4427 = vmatprep.subr.mxu0 %v4063
        %4428 = vmatpush1.msra.mxu0 %v4062
        %4429 = vmatprep.subr.mxu0 %v4061
        %4430 = vmatpush1.msra.mxu0 %v4060
        %4431 = vmatprep.subr.mxu0 %v4059
        %4432 = vmatpush1.msra.mxu0 %v4058
        %4433 = vmatprep.subr.mxu0 %v4057
        %4434 = vmatpush1.msra.mxu0 %v4056
        %4435 = vmatprep.subr.mxu0 %v4055
        %4436 = vmatpush1.msra.mxu0 %v4054
        %4437 = vmatprep.subr.mxu0 %v4053
        %4438 = vmatpush1.msra.mxu0 %v4052
        %4439 = vmatprep.subr.mxu0 %v4115
        %4440 = vmatpush2.msra.mxu0 %v4114
        %4441 = vmatprep.subr.mxu0 %v4113
        %4442 = vmatpush2.msra.mxu0 %v4112
        %4443 = vmatprep.subr.mxu0 %v4111
        %4444 = vmatpush2.msra.mxu0 %v4110
        %4445 = vmatprep.subr.mxu0 %v4109
        %4446 = vmatpush2.msra.mxu0 %v4108
        %4447 = vmatprep.subr.mxu0 %v4107
        %4448 = vmatpush2.msra.mxu0 %v4106
        %4449 = vmatprep.subr.mxu0 %v4105
        %4450 = vmatpush2.msra.mxu0 %v4104
        %4451 = vmatprep.subr.mxu0 %v4103
        %4452 = vmatpush2.msra.mxu0 %v4102
        %4453 = vmatprep.subr.mxu0 %v4101
        %4454 = vmatpush2.msra.mxu0 %v4100
        %4455 = vmatprep.subr.mxu0 %v4099
        %4456 = vmatpush2.msra.mxu0 %v4098
        %4457 = vmatprep.subr.mxu0 %v4097
        %4458 = vmatpush2.msra.mxu0 %v4096
        %4459 = vmatprep.subr.mxu0 %v4095
        %4460 = vmatpush2.msra.mxu0 %v4094
        %4461 = vmatprep.subr.mxu0 %v4093
        %4462 = vmatpush2.msra.mxu0 %v4092
        %4463 = vmatprep.subr.mxu0 %v4091
        %4464 = vmatpush2.msra.mxu0 %v4090
        %4465 = vmatprep.subr.mxu0 %v4089
        %4466 = vmatpush2.msra.mxu0 %v4088
        %4467 = vmatprep.subr.mxu0 %v4087
        %4468 = vmatpush2.msra.mxu0 %v4086
        %4469 = vmatprep.subr.mxu0 %v4085
        %4470 = vmatpush2.msra.mxu0 %v4084
        %4471 = vmatprep.mubr.f32.mxu0 %v3993
        %4472 = vmatmul.mubr.f32.gmra.mxu0 %v3992
        %v4473 = vpop.f32.mrf.mxu0
        %v4474 = vadd.f32 %v4361, %v4473
        %v4475 = vpop.f32.mrf.mxu0
        %v4476 = vadd.f32 %v4361, %v4475
        %4477 = vmatprep.mubr.f32.mxu0 %v4003
        %4478 = vmatmul.mubr.f32.gmra.mxu0 %v4002
        %v4479 = vpop.f32.mrf.mxu0
        %v4480 = vadd.f32 %v4366, %v4479
        %v4481 = vpop.f32.mrf.mxu0
        %v4482 = vadd.f32 %v4366, %v4481
        %4483 = vmatprep.mubr.f32.mxu0 %v4013
        %4484 = vmatmul.mubr.f32.gmra.mxu0 %v4012
        %v4485 = vpop.f32.mrf.mxu0
        %v4486 = vadd.f32 %v4371, %v4485
        %v4487 = vpop.f32.mrf.mxu0
        %v4488 = vadd.f32 %v4371, %v4487
        %4489 = vmatprep.mubr.f32.mxu0 %v4023
        %4490 = vmatmul.mubr.f32.gmra.mxu0 %v4022
        %v4491 = vpop.f32.mrf.mxu0
        %v4492 = vadd.f32 %v4376, %v4491
        %v4493 = vpop.f32.mrf.mxu0
        %v4494 = vadd.f32 %v4376, %v4493
        %4495 = vmatprep.mubr.f32.mxu0 %v4033
        %4496 = vmatmul.mubr.f32.gmra.mxu0 %v4032
        %v4497 = vpop.f32.mrf.mxu0
        %v4498 = vadd.f32 %v4381, %v4497
        %v4499 = vpop.f32.mrf.mxu0
        %v4500 = vadd.f32 %v4381, %v4499
        %4501 = vmatprep.mubr.f32.mxu0 %v4043
        %4502 = vmatmul.mubr.f32.gmra.mxu0 %v4042
        %v4503 = vpop.f32.mrf.mxu0
        %v4504 = vadd.f32 %v4386, %v4503
        %v4505 = vpop.f32.mrf.mxu0
        %v4506 = vadd.f32 %v4386, %v4505
        %4507 = vdwg.mxu0
        %4508 = vmatprep.subr.mxu0 %v4147
        %4509 = vmatpush1.msra.mxu0 %v4146
        %4510 = vmatprep.subr.mxu0 %v4145
        %4511 = vmatpush1.msra.mxu0 %v4144
        %4512 = vmatprep.subr.mxu0 %v4143
        %4513 = vmatpush1.msra.mxu0 %v4142
        %4514 = vmatprep.subr.mxu0 %v4141
        %4515 = vmatpush1.msra.mxu0 %v4140
        %4516 = vmatprep.subr.mxu0 %v4139
        %4517 = vmatpush1.msra.mxu0 %v4138
        %4518 = vmatprep.subr.mxu0 %v4137
        %4519 = vmatpush1.msra.mxu0 %v4136
        %4520 = vmatprep.subr.mxu0 %v4135
        %4521 = vmatpush1.msra.mxu0 %v4134
        %4522 = vmatprep.subr.mxu0 %v4133
        %4523 = vmatpush1.msra.mxu0 %v4132
        %4524 = vmatprep.subr.mxu0 %v4131
        %4525 = vmatpush1.msra.mxu0 %v4130
        %4526 = vmatprep.subr.mxu0 %v4129
        %4527 = vmatpush1.msra.mxu0 %v4128
        %4528 = vmatprep.subr.mxu0 %v4127
        %4529 = vmatpush1.msra.mxu0 %v4126
        %4530 = vmatprep.subr.mxu0 %v4125
        %4531 = vmatpush1.msra.mxu0 %v4124
        %4532 = vmatprep.subr.mxu0 %v4123
        %4533 = vmatpush1.msra.mxu0 %v4122
        %4534 = vmatprep.subr.mxu0 %v4121
        %4535 = vmatpush1.msra.mxu0 %v4120
        %4536 = vmatprep.subr.mxu0 %v4119
        %4537 = vmatpush1.msra.mxu0 %v4118
        %4538 = vmatprep.subr.mxu0 %v4117
        %4539 = vmatpush1.msra.mxu0 %v4116
        %4540 = vmatprep.subr.mxu0 %v4179
        %4541 = vmatpush2.msra.mxu0 %v4178
        %4542 = vmatprep.subr.mxu0 %v4177
        %4543 = vmatpush2.msra.mxu0 %v4176
        %4544 = vmatprep.subr.mxu0 %v4175
        %4545 = vmatpush2.msra.mxu0 %v4174
        %4546 = vmatprep.subr.mxu0 %v4173
        %4547 = vmatpush2.msra.mxu0 %v4172
        %4548 = vmatprep.subr.mxu0 %v4171
        %4549 = vmatpush2.msra.mxu0 %v4170
        %4550 = vmatprep.subr.mxu0 %v4169
        %4551 = vmatpush2.msra.mxu0 %v4168
        %4552 = vmatprep.subr.mxu0 %v4167
        %4553 = vmatpush2.msra.mxu0 %v4166
        %4554 = vmatprep.subr.mxu0 %v4165
        %4555 = vmatpush2.msra.mxu0 %v4164
        %4556 = vmatprep.subr.mxu0 %v4163
        %4557 = vmatpush2.msra.mxu0 %v4162
        %4558 = vmatprep.subr.mxu0 %v4161
        %4559 = vmatpush2.msra.mxu0 %v4160
        %4560 = vmatprep.subr.mxu0 %v4159
        %4561 = vmatpush2.msra.mxu0 %v4158
        %4562 = vmatprep.subr.mxu0 %v4157
        %4563 = vmatpush2.msra.mxu0 %v4156
        %4564 = vmatprep.subr.mxu0 %v4155
        %4565 = vmatpush2.msra.mxu0 %v4154
        %4566 = vmatprep.subr.mxu0 %v4153
        %4567 = vmatpush2.msra.mxu0 %v4152
        %4568 = vmatprep.subr.mxu0 %v4151
        %4569 = vmatpush2.msra.mxu0 %v4150
        %4570 = vmatprep.subr.mxu0 %v4149
        %4571 = vmatpush2.msra.mxu0 %v4148
        %4572 = vmatprep.mubr.f32.mxu0 %v3995
        %4573 = vmatmul.mubr.f32.gmra.mxu0 %v3994
        %v4574 = vpop.f32.mrf.mxu0
        %v4575 = vadd.f32 %v4474, %v4574
        %v4576 = vpop.f32.mrf.mxu0
        %v4577 = vadd.f32 %v4476, %v4576
        %4578 = vmatprep.mubr.f32.mxu0 %v4005
        %4579 = vmatmul.mubr.f32.gmra.mxu0 %v4004
        %v4580 = vpop.f32.mrf.mxu0
        %v4581 = vadd.f32 %v4480, %v4580
        %v4582 = vpop.f32.mrf.mxu0
        %v4583 = vadd.f32 %v4482, %v4582
        %4584 = vmatprep.mubr.f32.mxu0 %v4015
        %4585 = vmatmul.mubr.f32.gmra.mxu0 %v4014
        %v4586 = vpop.f32.mrf.mxu0
        %v4587 = vadd.f32 %v4486, %v4586
        %v4588 = vpop.f32.mrf.mxu0
        %v4589 = vadd.f32 %v4488, %v4588
        %4590 = vmatprep.mubr.f32.mxu0 %v4025
        %4591 = vmatmul.mubr.f32.gmra.mxu0 %v4024
        %v4592 = vpop.f32.mrf.mxu0
        %v4593 = vadd.f32 %v4492, %v4592
        %v4594 = vpop.f32.mrf.mxu0
        %v4595 = vadd.f32 %v4494, %v4594
        %4596 = vmatprep.mubr.f32.mxu0 %v4035
        %4597 = vmatmul.mubr.f32.gmra.mxu0 %v4034
        %v4598 = vpop.f32.mrf.mxu0
        %v4599 = vadd.f32 %v4498, %v4598
        %v4600 = vpop.f32.mrf.mxu0
        %v4601 = vadd.f32 %v4500, %v4600
        %4602 = vmatprep.mubr.f32.mxu0 %v4045
        %4603 = vmatmul.mubr.f32.gmra.mxu0 %v4044
        %v4604 = vpop.f32.mrf.mxu0
        %v4605 = vadd.f32 %v4504, %v4604
        %v4606 = vpop.f32.mrf.mxu0
        %v4607 = vadd.f32 %v4506, %v4606
        %4608 = vdwg.mxu0
        %4609 = vmatprep.subr.mxu0 %v4211
        %4610 = vmatpush1.msra.mxu0 %v4210
        %4611 = vmatprep.subr.mxu0 %v4209
        %4612 = vmatpush1.msra.mxu0 %v4208
        %4613 = vmatprep.subr.mxu0 %v4207
        %4614 = vmatpush1.msra.mxu0 %v4206
        %4615 = vmatprep.subr.mxu0 %v4205
        %4616 = vmatpush1.msra.mxu0 %v4204
        %4617 = vmatprep.subr.mxu0 %v4203
        %4618 = vmatpush1.msra.mxu0 %v4202
        %4619 = vmatprep.subr.mxu0 %v4201
        %4620 = vmatpush1.msra.mxu0 %v4200
        %4621 = vmatprep.subr.mxu0 %v4199
        %4622 = vmatpush1.msra.mxu0 %v4198
        %4623 = vmatprep.subr.mxu0 %v4197
        %4624 = vmatpush1.msra.mxu0 %v4196
        %4625 = vmatprep.subr.mxu0 %v4195
        %4626 = vmatpush1.msra.mxu0 %v4194
        %4627 = vmatprep.subr.mxu0 %v4193
        %4628 = vmatpush1.msra.mxu0 %v4192
        %4629 = vmatprep.subr.mxu0 %v4191
        %4630 = vmatpush1.msra.mxu0 %v4190
        %4631 = vmatprep.subr.mxu0 %v4189
        %4632 = vmatpush1.msra.mxu0 %v4188
        %4633 = vmatprep.subr.mxu0 %v4187
        %4634 = vmatpush1.msra.mxu0 %v4186
        %4635 = vmatprep.subr.mxu0 %v4185
        %4636 = vmatpush1.msra.mxu0 %v4184
        %4637 = vmatprep.subr.mxu0 %v4183
        %4638 = vmatpush1.msra.mxu0 %v4182
        %4639 = vmatprep.subr.mxu0 %v4181
        %4640 = vmatpush1.msra.mxu0 %v4180
        %4641 = vmatprep.subr.mxu0 %v4243
        %4642 = vmatpush2.msra.mxu0 %v4242
        %4643 = vmatprep.subr.mxu0 %v4241
        %4644 = vmatpush2.msra.mxu0 %v4240
        %4645 = vmatprep.subr.mxu0 %v4239
        %4646 = vmatpush2.msra.mxu0 %v4238
        %4647 = vmatprep.subr.mxu0 %v4237
        %4648 = vmatpush2.msra.mxu0 %v4236
        %4649 = vmatprep.subr.mxu0 %v4235
        %4650 = vmatpush2.msra.mxu0 %v4234
        %4651 = vmatprep.subr.mxu0 %v4233
        %4652 = vmatpush2.msra.mxu0 %v4232
        %4653 = vmatprep.subr.mxu0 %v4231
        %4654 = vmatpush2.msra.mxu0 %v4230
        %4655 = vmatprep.subr.mxu0 %v4229
        %4656 = vmatpush2.msra.mxu0 %v4228
        %4657 = vmatprep.subr.mxu0 %v4227
        %4658 = vmatpush2.msra.mxu0 %v4226
        %4659 = vmatprep.subr.mxu0 %v4225
        %4660 = vmatpush2.msra.mxu0 %v4224
        %4661 = vmatprep.subr.mxu0 %v4223
        %4662 = vmatpush2.msra.mxu0 %v4222
        %4663 = vmatprep.subr.mxu0 %v4221
        %4664 = vmatpush2.msra.mxu0 %v4220
        %4665 = vmatprep.subr.mxu0 %v4219
        %4666 = vmatpush2.msra.mxu0 %v4218
        %4667 = vmatprep.subr.mxu0 %v4217
        %4668 = vmatpush2.msra.mxu0 %v4216
        %4669 = vmatprep.subr.mxu0 %v4215
        %4670 = vmatpush2.msra.mxu0 %v4214
        %4671 = vmatprep.subr.mxu0 %v4213
        %4672 = vmatpush2.msra.mxu0 %v4212
        %4673 = vmatprep.mubr.f32.mxu0 %v3997
        %4674 = vmatmul.mubr.f32.gmra.mxu0 %v3996
        %v4675 = vpop.f32.mrf.mxu0
        %v4676 = vadd.f32 %v4575, %v4675
        %v4677 = vpop.f32.mrf.mxu0
        %v4678 = vadd.f32 %v4577, %v4677
        %4679 = vmatprep.mubr.f32.mxu0 %v4007
        %4680 = vmatmul.mubr.f32.gmra.mxu0 %v4006
        %v4681 = vpop.f32.mrf.mxu0
        %v4682 = vadd.f32 %v4581, %v4681
        %v4683 = vpop.f32.mrf.mxu0
        %v4684 = vadd.f32 %v4583, %v4683
        %4685 = vmatprep.mubr.f32.mxu0 %v4017
        %4686 = vmatmul.mubr.f32.gmra.mxu0 %v4016
        %v4687 = vpop.f32.mrf.mxu0
        %v4688 = vadd.f32 %v4587, %v4687
        %v4689 = vpop.f32.mrf.mxu0
        %v4690 = vadd.f32 %v4589, %v4689
        %4691 = vmatprep.mubr.f32.mxu0 %v4027
        %4692 = vmatmul.mubr.f32.gmra.mxu0 %v4026
        %v4693 = vpop.f32.mrf.mxu0
        %v4694 = vadd.f32 %v4593, %v4693
        %v4695 = vpop.f32.mrf.mxu0
        %v4696 = vadd.f32 %v4595, %v4695
        %4697 = vmatprep.mubr.f32.mxu0 %v4037
        %4698 = vmatmul.mubr.f32.gmra.mxu0 %v4036
        %v4699 = vpop.f32.mrf.mxu0
        %v4700 = vadd.f32 %v4599, %v4699
        %v4701 = vpop.f32.mrf.mxu0
        %v4702 = vadd.f32 %v4601, %v4701
        %4703 = vmatprep.mubr.f32.mxu0 %v4047
        %4704 = vmatmul.mubr.f32.gmra.mxu0 %v4046
        %v4705 = vpop.f32.mrf.mxu0
        %v4706 = vadd.f32 %v4605, %v4705
        %v4707 = vpop.f32.mrf.mxu0
        %v4708 = vadd.f32 %v4607, %v4707
        %4709 = vdwg.mxu0
        %4710 = vmatprep.subr.mxu0 %v4275
        %4711 = vmatpush1.msra.mxu0 %v4274
        %4712 = vmatprep.subr.mxu0 %v4273
        %4713 = vmatpush1.msra.mxu0 %v4272
        %4714 = vmatprep.subr.mxu0 %v4271
        %4715 = vmatpush1.msra.mxu0 %v4270
        %4716 = vmatprep.subr.mxu0 %v4269
        %4717 = vmatpush1.msra.mxu0 %v4268
        %4718 = vmatprep.subr.mxu0 %v4267
        %4719 = vmatpush1.msra.mxu0 %v4266
        %4720 = vmatprep.subr.mxu0 %v4265
        %4721 = vmatpush1.msra.mxu0 %v4264
        %4722 = vmatprep.subr.mxu0 %v4263
        %4723 = vmatpush1.msra.mxu0 %v4262
        %4724 = vmatprep.subr.mxu0 %v4261
        %4725 = vmatpush1.msra.mxu0 %v4260
        %4726 = vmatprep.subr.mxu0 %v4259
        %4727 = vmatpush1.msra.mxu0 %v4258
        %4728 = vmatprep.subr.mxu0 %v4257
        %4729 = vmatpush1.msra.mxu0 %v4256
        %4730 = vmatprep.subr.mxu0 %v4255
        %4731 = vmatpush1.msra.mxu0 %v4254
        %4732 = vmatprep.subr.mxu0 %v4253
        %4733 = vmatpush1.msra.mxu0 %v4252
        %4734 = vmatprep.subr.mxu0 %v4251
        %4735 = vmatpush1.msra.mxu0 %v4250
        %4736 = vmatprep.subr.mxu0 %v4249
        %4737 = vmatpush1.msra.mxu0 %v4248
        %4738 = vmatprep.subr.mxu0 %v4247
        %4739 = vmatpush1.msra.mxu0 %v4246
        %4740 = vmatprep.subr.mxu0 %v4245
        %4741 = vmatpush1.msra.mxu0 %v4244
        %4742 = vmatprep.subr.mxu0 %v4307
        %4743 = vmatpush2.msra.mxu0 %v4306
        %4744 = vmatprep.subr.mxu0 %v4305
        %4745 = vmatpush2.msra.mxu0 %v4304
        %4746 = vmatprep.subr.mxu0 %v4303
        %4747 = vmatpush2.msra.mxu0 %v4302
        %4748 = vmatprep.subr.mxu0 %v4301
        %4749 = vmatpush2.msra.mxu0 %v4300
        %4750 = vmatprep.subr.mxu0 %v4299
        %4751 = vmatpush2.msra.mxu0 %v4298
        %4752 = vmatprep.subr.mxu0 %v4297
        %4753 = vmatpush2.msra.mxu0 %v4296
        %4754 = vmatprep.subr.mxu0 %v4295
        %4755 = vmatpush2.msra.mxu0 %v4294
        %4756 = vmatprep.subr.mxu0 %v4293
        %4757 = vmatpush2.msra.mxu0 %v4292
        %4758 = vmatprep.subr.mxu0 %v4291
        %4759 = vmatpush2.msra.mxu0 %v4290
        %4760 = vmatprep.subr.mxu0 %v4289
        %4761 = vmatpush2.msra.mxu0 %v4288
        %4762 = vmatprep.subr.mxu0 %v4287
        %4763 = vmatpush2.msra.mxu0 %v4286
        %4764 = vmatprep.subr.mxu0 %v4285
        %4765 = vmatpush2.msra.mxu0 %v4284
        %4766 = vmatprep.subr.mxu0 %v4283
        %4767 = vmatpush2.msra.mxu0 %v4282
        %4768 = vmatprep.subr.mxu0 %v4281
        %4769 = vmatpush2.msra.mxu0 %v4280
        %4770 = vmatprep.subr.mxu0 %v4279
        %4771 = vmatpush2.msra.mxu0 %v4278
        %4772 = vmatprep.subr.mxu0 %v4277
        %4773 = vmatpush2.msra.mxu0 %v4276
        %4774 = vmatprep.mubr.f32.mxu0 %v3999
        %4775 = vmatmul.mubr.f32.gmra.mxu0 %v3998
        %v4776 = vpop.f32.mrf.mxu0
        %v4777 = vadd.f32 %v4676, %v4776
        %v4778 = vpop.f32.mrf.mxu0
        %v4779 = vadd.f32 %v4678, %v4778
        %4780 = vmatprep.mubr.f32.mxu0 %v4009
        %4781 = vmatmul.mubr.f32.gmra.mxu0 %v4008
        %v4782 = vpop.f32.mrf.mxu0
        %v4783 = vadd.f32 %v4682, %v4782
        %v4784 = vpop.f32.mrf.mxu0
        %v4785 = vadd.f32 %v4684, %v4784
        %4786 = vmatprep.mubr.f32.mxu0 %v4019
        %4787 = vmatmul.mubr.f32.gmra.mxu0 %v4018
        %v4788 = vpop.f32.mrf.mxu0
        %v4789 = vadd.f32 %v4688, %v4788
        %v4790 = vpop.f32.mrf.mxu0
        %v4791 = vadd.f32 %v4690, %v4790
        %4792 = vmatprep.mubr.f32.mxu0 %v4029
        %4793 = vmatmul.mubr.f32.gmra.mxu0 %v4028
        %v4794 = vpop.f32.mrf.mxu0
        %v4795 = vadd.f32 %v4694, %v4794
        %v4796 = vpop.f32.mrf.mxu0
        %v4797 = vadd.f32 %v4696, %v4796
        %4798 = vmatprep.mubr.f32.mxu0 %v4039
        %4799 = vmatmul.mubr.f32.gmra.mxu0 %v4038
        %v4800 = vpop.f32.mrf.mxu0
        %v4801 = vadd.f32 %v4700, %v4800
        %v4802 = vpop.f32.mrf.mxu0
        %v4803 = vadd.f32 %v4702, %v4802
        %4804 = vmatprep.mubr.f32.mxu0 %v4049
        %4805 = vmatmul.mubr.f32.gmra.mxu0 %v4048
        %v4806 = vpop.f32.mrf.mxu0
        %v4807 = vadd.f32 %v4706, %v4806
        %v4808 = vpop.f32.mrf.mxu0
        %v4809 = vadd.f32 %v4708, %v4808
        %4810 = vdwg.mxu0
        %4811 = vmatprep.subr.mxu0 %v4339
        %4812 = vmatpush1.msra.mxu0 %v4338
        %4813 = vmatprep.subr.mxu0 %v4337
        %4814 = vmatpush1.msra.mxu0 %v4336
        %4815 = vmatprep.subr.mxu0 %v4335
        %4816 = vmatpush1.msra.mxu0 %v4334
        %4817 = vmatprep.subr.mxu0 %v4333
        %4818 = vmatpush1.msra.mxu0 %v4332
        %4819 = vmatprep.subr.mxu0 %v4331
        %4820 = vmatpush1.msra.mxu0 %v4330
        %4821 = vmatprep.subr.mxu0 %v4329
        %4822 = vmatpush1.msra.mxu0 %v4328
        %4823 = vmatprep.subr.mxu0 %v4327
        %4824 = vmatpush1.msra.mxu0 %v4326
        %4825 = vmatprep.subr.mxu0 %v4325
        %4826 = vmatpush1.msra.mxu0 %v4324
        %4827 = vmatprep.subr.mxu0 %v4323
        %4828 = vmatpush1.msra.mxu0 %v4322
        %4829 = vmatprep.subr.mxu0 %v4321
        %4830 = vmatpush1.msra.mxu0 %v4320
        %4831 = vmatprep.subr.mxu0 %v4319
        %4832 = vmatpush1.msra.mxu0 %v4318
        %4833 = vmatprep.subr.mxu0 %v4317
        %4834 = vmatpush1.msra.mxu0 %v4316
        %4835 = vmatprep.subr.mxu0 %v4315
        %4836 = vmatpush1.msra.mxu0 %v4314
        %4837 = vmatprep.subr.mxu0 %v4313
        %4838 = vmatpush1.msra.mxu0 %v4312
        %4839 = vmatprep.subr.mxu0 %v4311
        %4840 = vmatpush1.msra.mxu0 %v4310
        %4841 = vmatprep.subr.mxu0 %v4309
        %4842 = vmatpush1.msra.mxu0 %v4308
        %4843 = vmatprep.subr.mxu0 0.0
        %4844 = vmatpush2.msra.mxu0 0.0
        %4845 = vmatprep.subr.mxu0 0.0
        %4846 = vmatpush2.msra.mxu0 0.0
        %4847 = vmatprep.subr.mxu0 0.0
        %4848 = vmatpush2.msra.mxu0 0.0
        %4849 = vmatprep.subr.mxu0 0.0
        %4850 = vmatpush2.msra.mxu0 0.0
        %4851 = vmatprep.subr.mxu0 0.0
        %4852 = vmatpush2.msra.mxu0 0.0
        %4853 = vmatprep.subr.mxu0 0.0
        %4854 = vmatpush2.msra.mxu0 0.0
        %4855 = vmatprep.subr.mxu0 0.0
        %4856 = vmatpush2.msra.mxu0 0.0
        %4857 = vmatprep.subr.mxu0 0.0
        %4858 = vmatpush2.msra.mxu0 0.0
        %4859 = vmatprep.subr.mxu0 0.0
        %4860 = vmatpush2.msra.mxu0 0.0
        %4861 = vmatprep.subr.mxu0 0.0
        %4862 = vmatpush2.msra.mxu0 0.0
        %4863 = vmatprep.subr.mxu0 %v4351
        %4864 = vmatpush2.msra.mxu0 %v4350
        %4865 = vmatprep.subr.mxu0 %v4349
        %4866 = vmatpush2.msra.mxu0 %v4348
        %4867 = vmatprep.subr.mxu0 %v4347
        %4868 = vmatpush2.msra.mxu0 %v4346
        %4869 = vmatprep.subr.mxu0 %v4345
        %4870 = vmatpush2.msra.mxu0 %v4344
        %4871 = vmatprep.subr.mxu0 %v4343
        %4872 = vmatpush2.msra.mxu0 %v4342
        %4873 = vmatprep.subr.mxu0 %v4341
        %4874 = vmatpush2.msra.mxu0 %v4340
        %4875 = vmatprep.mubr.f32.mxu0 %v4390
        %4876 = vmatmul.mubr.f32.gmra.mxu0 %v4000
        %v4877 = vpop.f32.mrf.mxu0
        %v4878 = vadd.f32 %v4777, %v4877
        %v4879 = vpop.f32.mrf.mxu0
        %v4880 = vadd.f32 %v4779, %v4879
        %4881 = vmatprep.mubr.f32.mxu0 %v4393
        %4882 = vmatmul.mubr.f32.gmra.mxu0 %v4010
        %v4883 = vpop.f32.mrf.mxu0
        %v4884 = vadd.f32 %v4783, %v4883
        %v4885 = vpop.f32.mrf.mxu0
        %v4886 = vadd.f32 %v4785, %v4885
        %4887 = vmatprep.mubr.f32.mxu0 %v4396
        %4888 = vmatmul.mubr.f32.gmra.mxu0 %v4020
        %v4889 = vpop.f32.mrf.mxu0
        %v4890 = vadd.f32 %v4789, %v4889
        %v4891 = vpop.f32.mrf.mxu0
        %v4892 = vadd.f32 %v4791, %v4891
        %4893 = vmatprep.mubr.f32.mxu0 %v4399
        %4894 = vmatmul.mubr.f32.gmra.mxu0 %v4030
        %v4895 = vpop.f32.mrf.mxu0
        %v4896 = vadd.f32 %v4795, %v4895
        %v4897 = vpop.f32.mrf.mxu0
        %v4898 = vadd.f32 %v4797, %v4897
        %4899 = vmatprep.mubr.f32.mxu0 %v4402
        %4900 = vmatmul.mubr.f32.gmra.mxu0 %v4040
        %v4901 = vpop.f32.mrf.mxu0
        %v4902 = vadd.f32 %v4801, %v4901
        %v4903 = vpop.f32.mrf.mxu0
        %v4904 = vadd.f32 %v4803, %v4903
        %4905 = vmatprep.mubr.f32.mxu0 %v4405
        %4906 = vmatmul.mubr.f32.gmra.mxu0 %v4050
        %v4907 = vpop.f32.mrf.mxu0
        %v4908 = vadd.f32 %v4807, %v4907
        %v4909 = vpop.f32.mrf.mxu0
        %v4910 = vadd.f32 %v4809, %v4909
        %4911 = vdwg.mxu0
        %v4912 = vmax.f32 %v4878, 0.0
        %v4913 = vmax.f32 %v4880, 0.0
        %v4914 = vmax.f32 %v4884, 0.0
        %v4915 = vmax.f32 %v4886, 0.0
        %v4916 = vmax.f32 %v4890, 0.0
        %v4917 = vmax.f32 %v4892, 0.0
        %v4918 = vmax.f32 %v4896, 0.0
        %v4919 = vmax.f32 %v4898, 0.0
        %v4920 = vmax.f32 %v4902, 0.0
        %v4921 = vmax.f32 %v4904, 0.0
        %v4922 = vmax.f32 %v4908, 0.0
        %v4923 = vmax.f32 %v4910, 0.0
        %4924 = vst [vmem:[#allocation3] sm:$0xff] %v4912
        %4925 = vst [vmem:[#allocation3 + $0x8] sm:$0xff] %v4913
        %4926 = vst [vmem:[#allocation3 + $0x10] sm:$0xff] %v4914
        %4927 = vst [vmem:[#allocation3 + $0x18] sm:$0xff] %v4915
        %4928 = vst [vmem:[#allocation3 + $0x20] sm:$0xff] %v4916
        %4929 = vst [vmem:[#allocation3 + $0x28] sm:$0xff] %v4917
        %4930 = vst [vmem:[#allocation3 + $0x30] sm:$0xff] %v4918
        %4931 = vst [vmem:[#allocation3 + $0x38] sm:$0xff] %v4919
        %4932 = vst [vmem:[#allocation3 + $0x40] sm:$0xff] %v4920
        %4933 = vst [vmem:[#allocation3 + $0x48] sm:$0xff] %v4921
        %4934 = vst [vmem:[#allocation3 + $0x50] sm:$0xff] %v4922
        %4935 = vst [vmem:[#allocation3 + $0x58] sm:$0xff] %v4923
        %4936 = vst [vmem:[#allocation2] sm:$0xff] 0.0
        %4937 = vst [vmem:[#allocation2 + $0x8] sm:$0xff] 0.0
        %4938 = vst [vmem:[#allocation2 + $0x10] sm:$0xff] 0.0
        %4939 = vst [vmem:[#allocation2 + $0x18] sm:$0xff] 0.0
        %4940 = vst [vmem:[#allocation2 + $0x20] sm:$0xff] 0.0
        %4941 = vst [vmem:[#allocation2 + $0x28] sm:$0xff] 0.0
        %4942 = vst [vmem:[#allocation2 + $0x30] sm:$0xff] 0.0
        %4943 = vst [vmem:[#allocation2 + $0x38] sm:$0xff] 0.0
        %4944 = vst [vmem:[#allocation2 + $0x40] sm:$0xff] 0.0
        %4945 = vst [vmem:[#allocation2 + $0x48] sm:$0xff] 0.0
        %4946 = vst [vmem:[#allocation2 + $0x50] sm:$0xff] 0.0
        %4947 = vst [vmem:[#allocation2 + $0x58] sm:$0xff] 0.0
        %4948 = vst [vmem:[#allocation2 + $0x60] sm:$0xff] 0.0
        %4949 = vst [vmem:[#allocation2 + $0x68] sm:$0xff] 0.0
        %4950 = vst [vmem:[#allocation2 + $0x70] sm:$0xff] 0.0
        %4951 = vst [vmem:[#allocation2 + $0x78] sm:$0xff] 0.0
        %4952 = vst [vmem:[#allocation2 + $0x80] sm:$0xff] 0.0
        %4953 = vst [vmem:[#allocation2 + $0x88] sm:$0xff] 0.0
        %4954 = vst [vmem:[#allocation2 + $0x90] sm:$0xff] 0.0
        %4955 = vst [vmem:[#allocation2 + $0x98] sm:$0xff] 0.0
        %4956 = vst [vmem:[#allocation2 + $0xa0] sm:$0xff] 0.0
        %4957 = vst [vmem:[#allocation2 + $0xa8] sm:$0xff] 0.0
        %4958 = vst [vmem:[#allocation2 + $0xb0] sm:$0xff] 0.0
        %4959 = vst [vmem:[#allocation2 + $0xb8] sm:$0xff] 0.0
        %4960 = vst [vmem:[#allocation2 + $0xc0] sm:$0xff] 0.0
        %4961 = vst [vmem:[#allocation2 + $0xc8] sm:$0xff] 0.0
        %4962 = vst [vmem:[#allocation2 + $0xd0] sm:$0xff] 0.0
        %4963 = vst [vmem:[#allocation2 + $0xd8] sm:$0xff] 0.0
        %4964 = vst [vmem:[#allocation2 + $0xe0] sm:$0xff] 0.0
        %4965 = vst [vmem:[#allocation2 + $0xe8] sm:$0xff] 0.0
        %4966 = vst [vmem:[#allocation2 + $0xf0] sm:$0xff] 0.0
        %4967 = vst [vmem:[#allocation2 + $0xf8] sm:$0xff] 0.0
        %4968 = vst [vmem:[#allocation2 + $0x100] sm:$0xff] 0.0
        %4969 = vst [vmem:[#allocation2 + $0x108] sm:$0xff] 0.0
        %4970 = vst [vmem:[#allocation2 + $0x110] sm:$0xff] 0.0
        %4971 = vst [vmem:[#allocation2 + $0x118] sm:$0xff] 0.0
        %4972 = vst [vmem:[#allocation2 + $0x120] sm:$0xff] 0.0
        %4973 = vst [vmem:[#allocation2 + $0x128] sm:$0xff] 0.0
        %4974 = vst [vmem:[#allocation2 + $0x130] sm:$0xff] 0.0
        %4975 = vst [vmem:[#allocation2 + $0x138] sm:$0xff] 0.0
        %4976 = vst [vmem:[#allocation2 + $0x140] sm:$0xff] 0.0
        %4977 = vst [vmem:[#allocation2 + $0x148] sm:$0xff] 0.0
        %4978 = vst [vmem:[#allocation2 + $0x150] sm:$0xff] 0.0
        %4979 = vst [vmem:[#allocation2 + $0x158] sm:$0xff] 0.0
        %4980 = vst [vmem:[#allocation2 + $0x160] sm:$0xff] 0.0
        %4981 = vst [vmem:[#allocation2 + $0x168] sm:$0xff] 0.0
        %4982 = vst [vmem:[#allocation2 + $0x170] sm:$0xff] 0.0
        %4983 = vst [vmem:[#allocation2 + $0x178] sm:$0xff] 0.0
        %4984 = vst [vmem:[#allocation2 + $0x180] sm:$0xff] 0.0
        %4985 = vst [vmem:[#allocation2 + $0x188] sm:$0xff] 0.0
        %4986 = vst [vmem:[#allocation2 + $0x190] sm:$0xff] 0.0
        %4987 = vst [vmem:[#allocation2 + $0x198] sm:$0xff] 0.0
        %4988 = vst [vmem:[#allocation2 + $0x1a0] sm:$0xff] 0.0
        %4989 = vst [vmem:[#allocation2 + $0x1a8] sm:$0xff] 0.0
        %4990 = vst [vmem:[#allocation2 + $0x1b0] sm:$0xff] 0.0
        %4991 = vst [vmem:[#allocation2 + $0x1b8] sm:$0xff] 0.0
        %4992 = vst [vmem:[#allocation2 + $0x1c0] sm:$0xff] 0.0
        %4993 = vst [vmem:[#allocation2 + $0x1c8] sm:$0xff] 0.0
        %4994 = vst [vmem:[#allocation2 + $0x1d0] sm:$0xff] 0.0
        %4995 = vst [vmem:[#allocation2 + $0x1d8] sm:$0xff] 0.0
        %4996 = vst [vmem:[#allocation2 + $0x1e0] sm:$0xff] 0.0
        %4997 = vst [vmem:[#allocation2 + $0x1e8] sm:$0xff] 0.0
        %4998 = vst [vmem:[#allocation2 + $0x1f0] sm:$0xff] 0.0
        %4999 = vst [vmem:[#allocation2 + $0x1f8] sm:$0xff] 0.0
        %5000 = vst [vmem:[#allocation2 + $0x200] sm:$0xff] 0.0
        %5001 = vst [vmem:[#allocation2 + $0x208] sm:$0xff] 0.0
        %5002 = vst [vmem:[#allocation2 + $0x210] sm:$0xff] 0.0
        %5003 = vst [vmem:[#allocation2 + $0x218] sm:$0xff] 0.0
        %5004 = vst [vmem:[#allocation2 + $0x220] sm:$0xff] 0.0
        %5005 = vst [vmem:[#allocation2 + $0x228] sm:$0xff] 0.0
        %5006 = vst [vmem:[#allocation2 + $0x230] sm:$0xff] 0.0
        %5007 = vst [vmem:[#allocation2 + $0x238] sm:$0xff] 0.0
        %5008 = vst [vmem:[#allocation2 + $0x240] sm:$0xff] 0.0
        %5009 = vst [vmem:[#allocation2 + $0x248] sm:$0xff] 0.0
        %5010 = vst [vmem:[#allocation2 + $0x250] sm:$0xff] 0.0
        %5011 = vst [vmem:[#allocation2 + $0x258] sm:$0xff] 0.0
        %5012 = vst [vmem:[#allocation2 + $0x260] sm:$0xff] 0.0
        %5013 = vst [vmem:[#allocation2 + $0x268] sm:$0xff] 0.0
        %5014 = vst [vmem:[#allocation2 + $0x270] sm:$0xff] 0.0
        %5015 = vst [vmem:[#allocation2 + $0x278] sm:$0xff] 0.0
        %5016 = vst [vmem:[#allocation2 + $0x280] sm:$0xff] 0.0
        %5017 = vst [vmem:[#allocation2 + $0x288] sm:$0xff] 0.0
        %5018 = vst [vmem:[#allocation2 + $0x290] sm:$0xff] 0.0
        %5019 = vst [vmem:[#allocation2 + $0x298] sm:$0xff] 0.0
        %5020 = vst [vmem:[#allocation2 + $0x2a0] sm:$0xff] 0.0
        %5021 = vst [vmem:[#allocation2 + $0x2a8] sm:$0xff] 0.0
        %5022 = vst [vmem:[#allocation2 + $0x2b0] sm:$0xff] 0.0
        %5023 = vst [vmem:[#allocation2 + $0x2b8] sm:$0xff] 0.0
        %5024 = vst [vmem:[#allocation2 + $0x2c0] sm:$0xff] 0.0
        %5025 = vst [vmem:[#allocation2 + $0x2c8] sm:$0xff] 0.0
        %5026 = vst [vmem:[#allocation2 + $0x2d0] sm:$0xff] 0.0
        %5027 = vst [vmem:[#allocation2 + $0x2d8] sm:$0xff] 0.0
        %5028 = vst [vmem:[#allocation2 + $0x2e0] sm:$0xff] 0.0
        %5029 = vst [vmem:[#allocation2 + $0x2e8] sm:$0xff] 0.0
        %5030 = vst [vmem:[#allocation2 + $0x2f0] sm:$0xff] 0.0
        %5031 = vst [vmem:[#allocation2 + $0x2f8] sm:$0xff] 0.0
        %5032 = vst [vmem:[#allocation2 + $0x300] sm:$0xff] 0.0
        %5033 = vst [vmem:[#allocation2 + $0x308] sm:$0xff] 0.0
        %5034 = vst [vmem:[#allocation2 + $0x310] sm:$0xff] 0.0
        %5035 = vst [vmem:[#allocation2 + $0x318] sm:$0xff] 0.0
        %5036 = vst [vmem:[#allocation2 + $0x320] sm:$0xff] 0.0
        %5037 = vst [vmem:[#allocation2 + $0x328] sm:$0xff] 0.0
        %5038 = vst [vmem:[#allocation2 + $0x330] sm:$0xff] 0.0
        %5039 = vst [vmem:[#allocation2 + $0x338] sm:$0xff] 0.0
        %5040 = vst [vmem:[#allocation2 + $0x340] sm:$0xff] 0.0
        %5041 = vst [vmem:[#allocation2 + $0x348] sm:$0xff] 0.0
        %5042 = vst [vmem:[#allocation2 + $0x350] sm:$0xff] 0.0
        %5043 = vst [vmem:[#allocation2 + $0x358] sm:$0xff] 0.0
        %5044 = vst [vmem:[#allocation2 + $0x360] sm:$0xff] 0.0
        %5045 = vst [vmem:[#allocation2 + $0x368] sm:$0xff] 0.0
        %5046 = vst [vmem:[#allocation2 + $0x370] sm:$0xff] 0.0
        %5047 = vst [vmem:[#allocation2 + $0x378] sm:$0xff] 0.0
        %5048 = vst [vmem:[#allocation2 + $0x380] sm:$0xff] 0.0
        %5049 = vst [vmem:[#allocation2 + $0x388] sm:$0xff] 0.0
        %5050 = vst [vmem:[#allocation2 + $0x390] sm:$0xff] 0.0
        %5051 = vst [vmem:[#allocation2 + $0x398] sm:$0xff] 0.0
        %5052 = vst [vmem:[#allocation2 + $0x3a0] sm:$0xff] 0.0
        %5053 = vst [vmem:[#allocation2 + $0x3a8] sm:$0xff] 0.0
        %5054 = vst [vmem:[#allocation2 + $0x3b0] sm:$0xff] 0.0
        %5055 = vst [vmem:[#allocation2 + $0x3b8] sm:$0xff] 0.0
        %5056 = vst [vmem:[#allocation2 + $0x3c0] sm:$0xff] 0.0
        %5057 = vst [vmem:[#allocation2 + $0x3c8] sm:$0xff] 0.0
        %5058 = vst [vmem:[#allocation2 + $0x3d0] sm:$0xff] 0.0
        %5059 = vst [vmem:[#allocation2 + $0x3d8] sm:$0xff] 0.0
        %5060 = vst [vmem:[#allocation2 + $0x3e0] sm:$0xff] 0.0
        %5061 = vst [vmem:[#allocation2 + $0x3e8] sm:$0xff] 0.0
        %5062 = vst [vmem:[#allocation2 + $0x3f0] sm:$0xff] 0.0
        %5063 = vst [vmem:[#allocation2 + $0x3f8] sm:$0xff] 0.0
        %5064 = vst [vmem:[#allocation2 + $0x400] sm:$0xff] 0.0
        %5065 = vst [vmem:[#allocation2 + $0x408] sm:$0xff] 0.0
        %5066 = vst [vmem:[#allocation2 + $0x410] sm:$0xff] 0.0
        %5067 = vst [vmem:[#allocation2 + $0x418] sm:$0xff] 0.0
        %5068 = vst [vmem:[#allocation2 + $0x420] sm:$0xff] 0.0
        %5069 = vst [vmem:[#allocation2 + $0x428] sm:$0xff] 0.0
        %5070 = vst [vmem:[#allocation2 + $0x430] sm:$0xff] 0.0
        %5071 = vst [vmem:[#allocation2 + $0x438] sm:$0xff] 0.0
        %5072 = vst [vmem:[#allocation2 + $0x440] sm:$0xff] 0.0
        %5073 = vst [vmem:[#allocation2 + $0x448] sm:$0xff] 0.0
        %5074 = vst [vmem:[#allocation2 + $0x450] sm:$0xff] 0.0
        %5075 = vst [vmem:[#allocation2 + $0x458] sm:$0xff] 0.0
        %5076 = vst [vmem:[#allocation2 + $0x460] sm:$0xff] 0.0
        %5077 = vst [vmem:[#allocation2 + $0x468] sm:$0xff] 0.0
        %5078 = vst [vmem:[#allocation2 + $0x470] sm:$0xff] 0.0
        %5079 = vst [vmem:[#allocation2 + $0x478] sm:$0xff] 0.0
        %5080 = vst [vmem:[#allocation2 + $0x480] sm:$0xff] 0.0
        %5081 = vst [vmem:[#allocation2 + $0x488] sm:$0xff] 0.0
        %5082 = vst [vmem:[#allocation2 + $0x490] sm:$0xff] 0.0
        %5083 = vst [vmem:[#allocation2 + $0x498] sm:$0xff] 0.0
        %5084 = vst [vmem:[#allocation2 + $0x4a0] sm:$0xff] 0.0
        %5085 = vst [vmem:[#allocation2 + $0x4a8] sm:$0xff] 0.0
        %5086 = vst [vmem:[#allocation2 + $0x4b0] sm:$0xff] 0.0
        %5087 = vst [vmem:[#allocation2 + $0x4b8] sm:$0xff] 0.0
        %5088 = vst [vmem:[#allocation2 + $0x4c0] sm:$0xff] 0.0
        %5089 = vst [vmem:[#allocation2 + $0x4c8] sm:$0xff] 0.0
        %5090 = vst [vmem:[#allocation2 + $0x4d0] sm:$0xff] 0.0
        %5091 = vst [vmem:[#allocation2 + $0x4d8] sm:$0xff] 0.0
        %5092 = vst [vmem:[#allocation2 + $0x4e0] sm:$0xff] 0.0
        %5093 = vst [vmem:[#allocation2 + $0x4e8] sm:$0xff] 0.0
        %5094 = vst [vmem:[#allocation2 + $0x4f0] sm:$0xff] 0.0
        %5095 = vst [vmem:[#allocation2 + $0x4f8] sm:$0xff] 0.0
        %5096 = vst [vmem:[#allocation2 + $0x500] sm:$0xff] 0.0
        %5097 = vst [vmem:[#allocation2 + $0x508] sm:$0xff] 0.0
        %5098 = vst [vmem:[#allocation2 + $0x510] sm:$0xff] 0.0
        %5099 = vst [vmem:[#allocation2 + $0x518] sm:$0xff] 0.0
        %5100 = vst [vmem:[#allocation2 + $0x520] sm:$0xff] 0.0
        %5101 = vst [vmem:[#allocation2 + $0x528] sm:$0xff] 0.0
        %5102 = vst [vmem:[#allocation2 + $0x530] sm:$0xff] 0.0
        %5103 = vst [vmem:[#allocation2 + $0x538] sm:$0xff] 0.0
        %5104 = vst [vmem:[#allocation2 + $0x540] sm:$0xff] 0.0
        %5105 = vst [vmem:[#allocation2 + $0x548] sm:$0xff] 0.0
        %5106 = vst [vmem:[#allocation2 + $0x550] sm:$0xff] 0.0
        %5107 = vst [vmem:[#allocation2 + $0x558] sm:$0xff] 0.0
        %5108 = vst [vmem:[#allocation2 + $0x560] sm:$0xff] 0.0
        %5109 = vst [vmem:[#allocation2 + $0x568] sm:$0xff] 0.0
        %5110 = vst [vmem:[#allocation2 + $0x570] sm:$0xff] 0.0
        %5111 = vst [vmem:[#allocation2 + $0x578] sm:$0xff] 0.0
        %5112 = vst [vmem:[#allocation2 + $0x580] sm:$0xff] 0.0
        %5113 = vst [vmem:[#allocation2 + $0x588] sm:$0xff] 0.0
        %5114 = vst [vmem:[#allocation2 + $0x590] sm:$0xff] 0.0
        %5115 = vst [vmem:[#allocation2 + $0x598] sm:$0xff] 0.0
        %5116 = vst [vmem:[#allocation2 + $0x5a0] sm:$0xff] 0.0
        %5117 = vst [vmem:[#allocation2 + $0x5a8] sm:$0xff] 0.0
        %5118 = vst [vmem:[#allocation2 + $0x5b0] sm:$0xff] 0.0
        %5119 = vst [vmem:[#allocation2 + $0x5b8] sm:$0xff] 0.0
        %5120 = vst [vmem:[#allocation2 + $0x5c0] sm:$0xff] 0.0
        %5121 = vst [vmem:[#allocation2 + $0x5c8] sm:$0xff] 0.0
        %5122 = vst [vmem:[#allocation2 + $0x5d0] sm:$0xff] 0.0
        %5123 = vst [vmem:[#allocation2 + $0x5d8] sm:$0xff] 0.0
        %5124 = vst [vmem:[#allocation2 + $0x5e0] sm:$0xff] 0.0
        %5125 = vst [vmem:[#allocation2 + $0x5e8] sm:$0xff] 0.0
        %5126 = vst [vmem:[#allocation2 + $0x5f0] sm:$0xff] 0.0
        %5127 = vst [vmem:[#allocation2 + $0x5f8] sm:$0xff] 0.0
        %5128 = vst [vmem:[#allocation2 + $0x600] sm:$0xff] 0.0
        %5129 = vst [vmem:[#allocation2 + $0x608] sm:$0xff] 0.0
        %5130 = vst [vmem:[#allocation2 + $0x610] sm:$0xff] 0.0
        %5131 = vst [vmem:[#allocation2 + $0x618] sm:$0xff] 0.0
        %5132 = vst [vmem:[#allocation2 + $0x620] sm:$0xff] 0.0
        %5133 = vst [vmem:[#allocation2 + $0x628] sm:$0xff] 0.0
        %5134 = vst [vmem:[#allocation2 + $0x630] sm:$0xff] 0.0
        %5135 = vst [vmem:[#allocation2 + $0x638] sm:$0xff] 0.0
        %5136 = vst [vmem:[#allocation2 + $0x640] sm:$0xff] 0.0
        %5137 = vst [vmem:[#allocation2 + $0x648] sm:$0xff] 0.0
        %5138 = vst [vmem:[#allocation2 + $0x650] sm:$0xff] 0.0
        %5139 = vst [vmem:[#allocation2 + $0x658] sm:$0xff] 0.0
        %5140 = vst [vmem:[#allocation2 + $0x660] sm:$0xff] 0.0
        %5141 = vst [vmem:[#allocation2 + $0x668] sm:$0xff] 0.0
        %5142 = vst [vmem:[#allocation2 + $0x670] sm:$0xff] 0.0
        %5143 = vst [vmem:[#allocation2 + $0x678] sm:$0xff] 0.0
        %5144 = vst [vmem:[#allocation2 + $0x680] sm:$0xff] 0.0
        %5145 = vst [vmem:[#allocation2 + $0x688] sm:$0xff] 0.0
        %5146 = vst [vmem:[#allocation2 + $0x690] sm:$0xff] 0.0
        %5147 = vst [vmem:[#allocation2 + $0x698] sm:$0xff] 0.0
        %5148 = vst [vmem:[#allocation2 + $0x6a0] sm:$0xff] 0.0
        %5149 = vst [vmem:[#allocation2 + $0x6a8] sm:$0xff] 0.0
        %5150 = vst [vmem:[#allocation2 + $0x6b0] sm:$0xff] 0.0
        %5151 = vst [vmem:[#allocation2 + $0x6b8] sm:$0xff] 0.0
        %5152 = vst [vmem:[#allocation2 + $0x6c0] sm:$0xff] 0.0
        %5153 = vst [vmem:[#allocation2 + $0x6c8] sm:$0xff] 0.0
        %5154 = vst [vmem:[#allocation2 + $0x6d0] sm:$0xff] 0.0
        %5155 = vst [vmem:[#allocation2 + $0x6d8] sm:$0xff] 0.0
        %5156 = vst [vmem:[#allocation2 + $0x6e0] sm:$0xff] 0.0
        %5157 = vst [vmem:[#allocation2 + $0x6e8] sm:$0xff] 0.0
        %5158 = vst [vmem:[#allocation2 + $0x6f0] sm:$0xff] 0.0
        %5159 = vst [vmem:[#allocation2 + $0x6f8] sm:$0xff] 0.0
        %5160 = vst [vmem:[#allocation2 + $0x700] sm:$0xff] 0.0
        %5161 = vst [vmem:[#allocation2 + $0x708] sm:$0xff] 0.0
        %5162 = vst [vmem:[#allocation2 + $0x710] sm:$0xff] 0.0
        %5163 = vst [vmem:[#allocation2 + $0x718] sm:$0xff] 0.0
        %5164 = vst [vmem:[#allocation2 + $0x720] sm:$0xff] 0.0
        %5165 = vst [vmem:[#allocation2 + $0x728] sm:$0xff] 0.0
        %5166 = vst [vmem:[#allocation2 + $0x730] sm:$0xff] 0.0
        %5167 = vst [vmem:[#allocation2 + $0x738] sm:$0xff] 0.0
        %5168 = vst [vmem:[#allocation2 + $0x740] sm:$0xff] 0.0
        %5169 = vst [vmem:[#allocation2 + $0x748] sm:$0xff] 0.0
        %5170 = vst [vmem:[#allocation2 + $0x750] sm:$0xff] 0.0
        %5171 = vst [vmem:[#allocation2 + $0x758] sm:$0xff] 0.0
        %5172 = vst [vmem:[#allocation2 + $0x760] sm:$0xff] 0.0
        %5173 = vst [vmem:[#allocation2 + $0x768] sm:$0xff] 0.0
        %5174 = vst [vmem:[#allocation2 + $0x770] sm:$0xff] 0.0
        %5175 = vst [vmem:[#allocation2 + $0x778] sm:$0xff] 0.0
        %5176 = vst [vmem:[#allocation2 + $0x780] sm:$0xff] 0.0
        %5177 = vst [vmem:[#allocation2 + $0x788] sm:$0xff] 0.0
        %5178 = vst [vmem:[#allocation2 + $0x790] sm:$0xff] 0.0
        %5179 = vst [vmem:[#allocation2 + $0x798] sm:$0xff] 0.0
        %5180 = vst [vmem:[#allocation2 + $0x7a0] sm:$0xff] 0.0
        %5181 = vst [vmem:[#allocation2 + $0x7a8] sm:$0xff] 0.0
        %5182 = vst [vmem:[#allocation2 + $0x7b0] sm:$0xff] 0.0
        %5183 = vst [vmem:[#allocation2 + $0x7b8] sm:$0xff] 0.0
        %5184 = vst [vmem:[#allocation2 + $0x7c0] sm:$0xff] 0.0
        %5185 = vst [vmem:[#allocation2 + $0x7c8] sm:$0xff] 0.0
        %5186 = vst [vmem:[#allocation2 + $0x7d0] sm:$0xff] 0.0
        %5187 = vst [vmem:[#allocation2 + $0x7d8] sm:$0xff] 0.0
        %5188 = vst [vmem:[#allocation2 + $0x7e0] sm:$0xff] 0.0
        %5189 = vst [vmem:[#allocation2 + $0x7e8] sm:$0xff] 0.0
        %5190 = vst [vmem:[#allocation2 + $0x7f0] sm:$0xff] 0.0
        %5191 = vst [vmem:[#allocation2 + $0x7f8] sm:$0xff] 0.0
        %5192 = vst [vmem:[#allocation2 + $0x800] sm:$0xff] 0.0
        %5193 = vst [vmem:[#allocation2 + $0x808] sm:$0xff] 0.0
        %5194 = vst [vmem:[#allocation2 + $0x810] sm:$0xff] 0.0
        %5195 = vst [vmem:[#allocation2 + $0x818] sm:$0xff] 0.0
        %5196 = vst [vmem:[#allocation2 + $0x820] sm:$0xff] 0.0
        %5197 = vst [vmem:[#allocation2 + $0x828] sm:$0xff] 0.0
        %5198 = vst [vmem:[#allocation2 + $0x830] sm:$0xff] 0.0
        %5199 = vst [vmem:[#allocation2 + $0x838] sm:$0xff] 0.0
        %5200 = vst [vmem:[#allocation2 + $0x840] sm:$0xff] 0.0
        %5201 = vst [vmem:[#allocation2 + $0x848] sm:$0xff] 0.0
        %5202 = vst [vmem:[#allocation2 + $0x850] sm:$0xff] 0.0
        %5203 = vst [vmem:[#allocation2 + $0x858] sm:$0xff] 0.0
        %5204 = vst [vmem:[#allocation2 + $0x860] sm:$0xff] 0.0
        %5205 = vst [vmem:[#allocation2 + $0x868] sm:$0xff] 0.0
        %5206 = vst [vmem:[#allocation2 + $0x870] sm:$0xff] 0.0
        %5207 = vst [vmem:[#allocation2 + $0x878] sm:$0xff] 0.0
        %5208 = vst [vmem:[#allocation2 + $0x880] sm:$0xff] 0.0
        %5209 = vst [vmem:[#allocation2 + $0x888] sm:$0xff] 0.0
        %5210 = vst [vmem:[#allocation2 + $0x890] sm:$0xff] 0.0
        %5211 = vst [vmem:[#allocation2 + $0x898] sm:$0xff] 0.0
        %5212 = vst [vmem:[#allocation2 + $0x8a0] sm:$0xff] 0.0
        %5213 = vst [vmem:[#allocation2 + $0x8a8] sm:$0xff] 0.0
        %5214 = vst [vmem:[#allocation2 + $0x8b0] sm:$0xff] 0.0
        %5215 = vst [vmem:[#allocation2 + $0x8b8] sm:$0xff] 0.0
        %5216 = vst [vmem:[#allocation2 + $0x8c0] sm:$0xff] 0.0
        %5217 = vst [vmem:[#allocation2 + $0x8c8] sm:$0xff] 0.0
        %5218 = vst [vmem:[#allocation2 + $0x8d0] sm:$0xff] 0.0
        %5219 = vst [vmem:[#allocation2 + $0x8d8] sm:$0xff] 0.0
        %5220 = vst [vmem:[#allocation2 + $0x8e0] sm:$0xff] 0.0
        %5221 = vst [vmem:[#allocation2 + $0x8e8] sm:$0xff] 0.0
        %5222 = vst [vmem:[#allocation2 + $0x8f0] sm:$0xff] 0.0
        %5223 = vst [vmem:[#allocation2 + $0x8f8] sm:$0xff] 0.0
        %5224 = vst [vmem:[#allocation2 + $0x900] sm:$0xff] 0.0
        %5225 = vst [vmem:[#allocation2 + $0x908] sm:$0xff] 0.0
        %5226 = vst [vmem:[#allocation2 + $0x910] sm:$0xff] 0.0
        %5227 = vst [vmem:[#allocation2 + $0x918] sm:$0xff] 0.0
        %5228 = vst [vmem:[#allocation2 + $0x920] sm:$0xff] 0.0
        %5229 = vst [vmem:[#allocation2 + $0x928] sm:$0xff] 0.0
        %5230 = vst [vmem:[#allocation2 + $0x930] sm:$0xff] 0.0
        %5231 = vst [vmem:[#allocation2 + $0x938] sm:$0xff] 0.0
        %5232 = vst [vmem:[#allocation2 + $0x940] sm:$0xff] 0.0
        %5233 = vst [vmem:[#allocation2 + $0x948] sm:$0xff] 0.0
        %5234 = vst [vmem:[#allocation2 + $0x950] sm:$0xff] 0.0
        %5235 = vst [vmem:[#allocation2 + $0x958] sm:$0xff] 0.0
        %v5236 = vld [vmem:[#allocation3] sm:$0xff]
        %v5237 = vld [vmem:[#allocation3 + $0x8] sm:$0xff]
        %v5238 = vld [vmem:[#allocation3 + $0x10] sm:$0xff]
        %v5239 = vld [vmem:[#allocation3 + $0x18] sm:$0xff]
        %v5240 = vld [vmem:[#allocation3 + $0x20] sm:$0xff]
        %v5241 = vld [vmem:[#allocation3 + $0x28] sm:$0xff]
        %v5242 = vld [vmem:[#allocation3 + $0x30] sm:$0xff]
        %v5243 = vld [vmem:[#allocation3 + $0x38] sm:$0xff]
        %v5244 = vld [vmem:[#allocation3 + $0x40] sm:$0xff]
        %v5245 = vld [vmem:[#allocation3 + $0x48] sm:$0xff]
        %v5246 = vld [vmem:[#allocation3 + $0x50] sm:$0xff]
        %v5247 = vld [vmem:[#allocation3 + $0x58] sm:$0xff]
        %v5248 = vld [vmem:[%s1] ss:$8 sm:$0x3]
        %v5250 = vlaneseq
        %v5251 = vshrl.u32 %v5250, 7
        %v5252 = vsub.s32 0, %v5251
        %v5253 = vrot.slane %v5248, %v5252
        %v5254 = vlaneseq
        %v5255 = vshrl.u32 %v5254, 7
        %v5256 = vsub.s32 1, %v5255
        %v5257 = vrot.slane %v5248, %v5256
        %5258 = vrot.lane.b32.xlu0 %v5253, 94
        %v5259 = vpop.permute.xlu0 %5258
        %5260 = vrot.lane.b32.xlu0 %v5257, 94
        %v5261 = vpop.permute.xlu0 %5260
        %v5262 = vsel %vm332, %v5259, %v5261
        %v5265 = vmul.f32 %v5236, %v5262
        %v5266 = vmul.f32 %v5237, %v5261
        %v5267 = vmul.f32 %v5238, %v5262
        %v5268 = vmul.f32 %v5239, %v5261
        %v5269 = vmul.f32 %v5240, %v5262
        %v5270 = vmul.f32 %v5241, %v5261
        %v5271 = vmul.f32 %v5242, %v5262
        %v5272 = vmul.f32 %v5243, %v5261
        %v5273 = vmul.f32 %v5244, %v5262
        %v5274 = vmul.f32 %v5245, %v5261
        %v5275 = vmul.f32 %v5246, %v5262
        %v5276 = vmul.f32 %v5247, %v5261
        %5289 = vrot.lane.b32.xlu0 %v5265, 34
        %v5290 = vpop.permute.xlu0 %5289
        %5291 = vrot.lane.b32.xlu0 %v5266, 34
        %v5292 = vpop.permute.xlu0 %5291
        %5293 = vrot.lane.b32.xlu0 %v5267, 34
        %v5294 = vpop.permute.xlu0 %5293
        %5295 = vrot.lane.b32.xlu0 %v5268, 34
        %v5296 = vpop.permute.xlu0 %5295
        %5297 = vrot.lane.b32.xlu0 %v5269, 34
        %v5298 = vpop.permute.xlu0 %5297
        %5299 = vrot.lane.b32.xlu0 %v5270, 34
        %v5300 = vpop.permute.xlu0 %5299
        %5301 = vrot.lane.b32.xlu0 %v5271, 34
        %v5302 = vpop.permute.xlu0 %5301
        %5303 = vrot.lane.b32.xlu0 %v5272, 34
        %v5304 = vpop.permute.xlu0 %5303
        %5305 = vrot.lane.b32.xlu0 %v5273, 34
        %v5306 = vpop.permute.xlu0 %5305
        %5307 = vrot.lane.b32.xlu0 %v5274, 34
        %v5308 = vpop.permute.xlu0 %5307
        %5309 = vrot.lane.b32.xlu0 %v5275, 34
        %v5310 = vpop.permute.xlu0 %5309
        %5311 = vrot.lane.b32.xlu0 %v5276, 34
        %v5312 = vpop.permute.xlu0 %5311
        %v5313 = vsel %vm340, %v5290, %v5292
        %v5314 = vsel %vm340, %v5294, %v5296
        %v5315 = vsel %vm340, %v5298, %v5300
        %v5316 = vsel %vm340, %v5302, %v5304
        %v5317 = vsel %vm340, %v5306, %v5308
        %v5318 = vsel %vm340, %v5310, %v5312
        %5331 = vst.msk [vmem:[#allocation2] sm:$0xff] %vm1459, %v5290
        %5332 = vst [vmem:[#allocation2 + $0x8] sm:$0xff] %v5313
        %5333 = vst.msk [vmem:[#allocation2 + $0x10] sm:$0xff] %vm1459, %v5294
        %5334 = vst [vmem:[#allocation2 + $0x18] sm:$0xff] %v5314
        %5335 = vst.msk [vmem:[#allocation2 + $0x20] sm:$0xff] %vm1459, %v5298
        %5336 = vst [vmem:[#allocation2 + $0x28] sm:$0xff] %v5315
        %5337 = vst.msk [vmem:[#allocation2 + $0x30] sm:$0xff] %vm1459, %v5302
        %5338 = vst [vmem:[#allocation2 + $0x38] sm:$0xff] %v5316
        %5339 = vst.msk [vmem:[#allocation2 + $0x40] sm:$0xff] %vm1459, %v5306
        %5340 = vst [vmem:[#allocation2 + $0x48] sm:$0xff] %v5317
        %5341 = vst.msk [vmem:[#allocation2 + $0x50] sm:$0xff] %vm1459, %v5310
        %5342 = vst [vmem:[#allocation2 + $0x58] sm:$0xff] %v5318
        %v5343 = vld [vmem:[#allocation3] sm:$0xff]
        %v5344 = vld [vmem:[#allocation3 + $0x8] sm:$0xff]
        %v5345 = vld [vmem:[#allocation3 + $0x10] sm:$0xff]
        %v5346 = vld [vmem:[#allocation3 + $0x18] sm:$0xff]
        %v5347 = vld [vmem:[#allocation3 + $0x20] sm:$0xff]
        %v5348 = vld [vmem:[#allocation3 + $0x28] sm:$0xff]
        %v5349 = vld [vmem:[#allocation3 + $0x30] sm:$0xff]
        %v5350 = vld [vmem:[#allocation3 + $0x38] sm:$0xff]
        %v5351 = vld [vmem:[#allocation3 + $0x40] sm:$0xff]
        %v5352 = vld [vmem:[#allocation3 + $0x48] sm:$0xff]
        %v5353 = vld [vmem:[#allocation3 + $0x50] sm:$0xff]
        %v5354 = vld [vmem:[#allocation3 + $0x58] sm:$0xff]
        %v5355 = vld [vmem:[%s350] ss:$8 sm:$0x3]
        %v5357 = vlaneseq
        %v5358 = vshrl.u32 %v5357, 7
        %v5359 = vsub.s32 0, %v5358
        %v5360 = vrot.slane %v5355, %v5359
        %v5361 = vlaneseq
        %v5362 = vshrl.u32 %v5361, 7
        %v5363 = vsub.s32 1, %v5362
        %v5364 = vrot.slane %v5355, %v5363
        %5365 = vrot.lane.b32.xlu0 %v5360, 95
        %v5366 = vpop.permute.xlu0 %5365
        %5367 = vrot.lane.b32.xlu0 %v5364, 95
        %v5368 = vpop.permute.xlu0 %5367
        %v5369 = vsel %vm356, %v5366, %v5368
        %v5372 = vmul.f32 %v5343, %v5369
        %v5373 = vmul.f32 %v5344, %v5368
        %v5374 = vmul.f32 %v5345, %v5369
        %v5375 = vmul.f32 %v5346, %v5368
        %v5376 = vmul.f32 %v5347, %v5369
        %v5377 = vmul.f32 %v5348, %v5368
        %v5378 = vmul.f32 %v5349, %v5369
        %v5379 = vmul.f32 %v5350, %v5368
        %v5380 = vmul.f32 %v5351, %v5369
        %v5381 = vmul.f32 %v5352, %v5368
        %v5382 = vmul.f32 %v5353, %v5369
        %v5383 = vmul.f32 %v5354, %v5368
        %5396 = vrot.lane.b32.xlu0 %v5372, 33
        %v5397 = vpop.permute.xlu0 %5396
        %5398 = vrot.lane.b32.xlu0 %v5373, 33
        %v5399 = vpop.permute.xlu0 %5398
        %5400 = vrot.lane.b32.xlu0 %v5374, 33
        %v5401 = vpop.permute.xlu0 %5400
        %5402 = vrot.lane.b32.xlu0 %v5375, 33
        %v5403 = vpop.permute.xlu0 %5402
        %5404 = vrot.lane.b32.xlu0 %v5376, 33
        %v5405 = vpop.permute.xlu0 %5404
        %5406 = vrot.lane.b32.xlu0 %v5377, 33
        %v5407 = vpop.permute.xlu0 %5406
        %5408 = vrot.lane.b32.xlu0 %v5378, 33
        %v5409 = vpop.permute.xlu0 %5408
        %5410 = vrot.lane.b32.xlu0 %v5379, 33
        %v5411 = vpop.permute.xlu0 %5410
        %5412 = vrot.lane.b32.xlu0 %v5380, 33
        %v5413 = vpop.permute.xlu0 %5412
        %5414 = vrot.lane.b32.xlu0 %v5381, 33
        %v5415 = vpop.permute.xlu0 %5414
        %5416 = vrot.lane.b32.xlu0 %v5382, 33
        %v5417 = vpop.permute.xlu0 %5416
        %5418 = vrot.lane.b32.xlu0 %v5383, 33
        %v5419 = vpop.permute.xlu0 %5418
        %v5420 = vsel %vm364, %v5397, %v5399
        %v5421 = vsel %vm364, %v5401, %v5403
        %v5422 = vsel %vm364, %v5405, %v5407
        %v5423 = vsel %vm364, %v5409, %v5411
        %v5424 = vsel %vm364, %v5413, %v5415
        %v5425 = vsel %vm364, %v5417, %v5419
        %5438 = vst.msk [vmem:[#allocation2 + $0x60] sm:$0xff] %vm1567, %v5397
        %5439 = vst [vmem:[#allocation2 + $0x68] sm:$0xff] %v5420
        %5440 = vst.msk [vmem:[#allocation2 + $0x70] sm:$0xff] %vm1567, %v5401
        %5441 = vst [vmem:[#allocation2 + $0x78] sm:$0xff] %v5421
        %5442 = vst.msk [vmem:[#allocation2 + $0x80] sm:$0xff] %vm1567, %v5405
        %5443 = vst [vmem:[#allocation2 + $0x88] sm:$0xff] %v5422
        %5444 = vst.msk [vmem:[#allocation2 + $0x90] sm:$0xff] %vm1567, %v5409
        %5445 = vst [vmem:[#allocation2 + $0x98] sm:$0xff] %v5423
        %5446 = vst.msk [vmem:[#allocation2 + $0xa0] sm:$0xff] %vm1567, %v5413
        %5447 = vst [vmem:[#allocation2 + $0xa8] sm:$0xff] %v5424
        %5448 = vst.msk [vmem:[#allocation2 + $0xb0] sm:$0xff] %vm1567, %v5417
        %5449 = vst [vmem:[#allocation2 + $0xb8] sm:$0xff] %v5425
        %v5450 = vld [vmem:[#allocation3] sm:$0xff]
        %v5451 = vld [vmem:[#allocation3 + $0x8] sm:$0xff]
        %v5452 = vld [vmem:[#allocation3 + $0x10] sm:$0xff]
        %v5453 = vld [vmem:[#allocation3 + $0x18] sm:$0xff]
        %v5454 = vld [vmem:[#allocation3 + $0x20] sm:$0xff]
        %v5455 = vld [vmem:[#allocation3 + $0x28] sm:$0xff]
        %v5456 = vld [vmem:[#allocation3 + $0x30] sm:$0xff]
        %v5457 = vld [vmem:[#allocation3 + $0x38] sm:$0xff]
        %v5458 = vld [vmem:[#allocation3 + $0x40] sm:$0xff]
        %v5459 = vld [vmem:[#allocation3 + $0x48] sm:$0xff]
        %v5460 = vld [vmem:[#allocation3 + $0x50] sm:$0xff]
        %v5461 = vld [vmem:[#allocation3 + $0x58] sm:$0xff]
        %v5462 = vld [vmem:[%s373] ss:$8 sm:$0x3]
        %v5464 = vlaneseq
        %v5465 = vshrl.u32 %v5464, 7
        %v5466 = vsub.s32 0, %v5465
        %v5467 = vrot.slane %v5462, %v5466
        %v5468 = vlaneseq
        %v5469 = vshrl.u32 %v5468, 7
        %v5470 = vsub.s32 1, %v5469
        %v5471 = vrot.slane %v5462, %v5470
        %5472 = vrot.lane.b32.xlu0 %v5467, 96
        %v5473 = vpop.permute.xlu0 %5472
        %5474 = vrot.lane.b32.xlu0 %v5471, 96
        %v5475 = vpop.permute.xlu0 %5474
        %v5476 = vsel %vm379, %v5473, %v5475
        %v5479 = vmul.f32 %v5450, %v5476
        %v5480 = vmul.f32 %v5451, %v5475
        %v5481 = vmul.f32 %v5452, %v5476
        %v5482 = vmul.f32 %v5453, %v5475
        %v5483 = vmul.f32 %v5454, %v5476
        %v5484 = vmul.f32 %v5455, %v5475
        %v5485 = vmul.f32 %v5456, %v5476
        %v5486 = vmul.f32 %v5457, %v5475
        %v5487 = vmul.f32 %v5458, %v5476
        %v5488 = vmul.f32 %v5459, %v5475
        %v5489 = vmul.f32 %v5460, %v5476
        %v5490 = vmul.f32 %v5461, %v5475
        %5503 = vrot.lane.b32.xlu0 %v5479, 32
        %v5504 = vpop.permute.xlu0 %5503
        %5505 = vrot.lane.b32.xlu0 %v5480, 32
        %v5506 = vpop.permute.xlu0 %5505
        %5507 = vrot.lane.b32.xlu0 %v5481, 32
        %v5508 = vpop.permute.xlu0 %5507
        %5509 = vrot.lane.b32.xlu0 %v5482, 32
        %v5510 = vpop.permute.xlu0 %5509
        %5511 = vrot.lane.b32.xlu0 %v5483, 32
        %v5512 = vpop.permute.xlu0 %5511
        %5513 = vrot.lane.b32.xlu0 %v5484, 32
        %v5514 = vpop.permute.xlu0 %5513
        %5515 = vrot.lane.b32.xlu0 %v5485, 32
        %v5516 = vpop.permute.xlu0 %5515
        %5517 = vrot.lane.b32.xlu0 %v5486, 32
        %v5518 = vpop.permute.xlu0 %5517
        %5519 = vrot.lane.b32.xlu0 %v5487, 32
        %v5520 = vpop.permute.xlu0 %5519
        %5521 = vrot.lane.b32.xlu0 %v5488, 32
        %v5522 = vpop.permute.xlu0 %5521
        %5523 = vrot.lane.b32.xlu0 %v5489, 32
        %v5524 = vpop.permute.xlu0 %5523
        %5525 = vrot.lane.b32.xlu0 %v5490, 32
        %v5526 = vpop.permute.xlu0 %5525
        %v5527 = vsel %vm387, %v5504, %v5506
        %v5528 = vsel %vm387, %v5508, %v5510
        %v5529 = vsel %vm387, %v5512, %v5514
        %v5530 = vsel %vm387, %v5516, %v5518
        %v5531 = vsel %vm387, %v5520, %v5522
        %v5532 = vsel %vm387, %v5524, %v5526
        %5545 = vst.msk [vmem:[#allocation2 + $0xc0] sm:$0xff] %vm1675, %v5504
        %5546 = vst [vmem:[#allocation2 + $0xc8] sm:$0xff] %v5527
        %5547 = vst.msk [vmem:[#allocation2 + $0xd0] sm:$0xff] %vm1675, %v5508
        %5548 = vst [vmem:[#allocation2 + $0xd8] sm:$0xff] %v5528
        %5549 = vst.msk [vmem:[#allocation2 + $0xe0] sm:$0xff] %vm1675, %v5512
        %5550 = vst [vmem:[#allocation2 + $0xe8] sm:$0xff] %v5529
        %5551 = vst.msk [vmem:[#allocation2 + $0xf0] sm:$0xff] %vm1675, %v5516
        %5552 = vst [vmem:[#allocation2 + $0xf8] sm:$0xff] %v5530
        %5553 = vst.msk [vmem:[#allocation2 + $0x100] sm:$0xff] %vm1675, %v5520
        %5554 = vst [vmem:[#allocation2 + $0x108] sm:$0xff] %v5531
        %5555 = vst.msk [vmem:[#allocation2 + $0x110] sm:$0xff] %vm1675, %v5524
        %5556 = vst [vmem:[#allocation2 + $0x118] sm:$0xff] %v5532
        %v5557 = vld [vmem:[#allocation3] sm:$0xff]
        %v5558 = vld [vmem:[#allocation3 + $0x8] sm:$0xff]
        %v5559 = vld [vmem:[#allocation3 + $0x10] sm:$0xff]
        %v5560 = vld [vmem:[#allocation3 + $0x18] sm:$0xff]
        %v5561 = vld [vmem:[#allocation3 + $0x20] sm:$0xff]
        %v5562 = vld [vmem:[#allocation3 + $0x28] sm:$0xff]
        %v5563 = vld [vmem:[#allocation3 + $0x30] sm:$0xff]
        %v5564 = vld [vmem:[#allocation3 + $0x38] sm:$0xff]
        %v5565 = vld [vmem:[#allocation3 + $0x40] sm:$0xff]
        %v5566 = vld [vmem:[#allocation3 + $0x48] sm:$0xff]
        %v5567 = vld [vmem:[#allocation3 + $0x50] sm:$0xff]
        %v5568 = vld [vmem:[#allocation3 + $0x58] sm:$0xff]
        %v5569 = vld [vmem:[%s396] ss:$8 sm:$0x3]
        %v5571 = vlaneseq
        %v5572 = vshrl.u32 %v5571, 7
        %v5573 = vsub.s32 0, %v5572
        %v5574 = vrot.slane %v5569, %v5573
        %v5575 = vlaneseq
        %v5576 = vshrl.u32 %v5575, 7
        %v5577 = vsub.s32 1, %v5576
        %v5578 = vrot.slane %v5569, %v5577
        %5579 = vrot.lane.b32.xlu0 %v5574, 97
        %v5580 = vpop.permute.xlu0 %5579
        %5581 = vrot.lane.b32.xlu0 %v5578, 97
        %v5582 = vpop.permute.xlu0 %5581
        %v5583 = vsel %vm402, %v5580, %v5582
        %v5586 = vmul.f32 %v5557, %v5583
        %v5587 = vmul.f32 %v5558, %v5582
        %v5588 = vmul.f32 %v5559, %v5583
        %v5589 = vmul.f32 %v5560, %v5582
        %v5590 = vmul.f32 %v5561, %v5583
        %v5591 = vmul.f32 %v5562, %v5582
        %v5592 = vmul.f32 %v5563, %v5583
        %v5593 = vmul.f32 %v5564, %v5582
        %v5594 = vmul.f32 %v5565, %v5583
        %v5595 = vmul.f32 %v5566, %v5582
        %v5596 = vmul.f32 %v5567, %v5583
        %v5597 = vmul.f32 %v5568, %v5582
        %5610 = vrot.lane.b32.xlu0 %v5586, 31
        %v5611 = vpop.permute.xlu0 %5610
        %5612 = vrot.lane.b32.xlu0 %v5587, 31
        %v5613 = vpop.permute.xlu0 %5612
        %5614 = vrot.lane.b32.xlu0 %v5588, 31
        %v5615 = vpop.permute.xlu0 %5614
        %5616 = vrot.lane.b32.xlu0 %v5589, 31
        %v5617 = vpop.permute.xlu0 %5616
        %5618 = vrot.lane.b32.xlu0 %v5590, 31
        %v5619 = vpop.permute.xlu0 %5618
        %5620 = vrot.lane.b32.xlu0 %v5591, 31
        %v5621 = vpop.permute.xlu0 %5620
        %5622 = vrot.lane.b32.xlu0 %v5592, 31
        %v5623 = vpop.permute.xlu0 %5622
        %5624 = vrot.lane.b32.xlu0 %v5593, 31
        %v5625 = vpop.permute.xlu0 %5624
        %5626 = vrot.lane.b32.xlu0 %v5594, 31
        %v5627 = vpop.permute.xlu0 %5626
        %5628 = vrot.lane.b32.xlu0 %v5595, 31
        %v5629 = vpop.permute.xlu0 %5628
        %5630 = vrot.lane.b32.xlu0 %v5596, 31
        %v5631 = vpop.permute.xlu0 %5630
        %5632 = vrot.lane.b32.xlu0 %v5597, 31
        %v5633 = vpop.permute.xlu0 %5632
        %v5634 = vsel %vm410, %v5611, %v5613
        %v5635 = vsel %vm410, %v5615, %v5617
        %v5636 = vsel %vm410, %v5619, %v5621
        %v5637 = vsel %vm410, %v5623, %v5625
        %v5638 = vsel %vm410, %v5627, %v5629
        %v5639 = vsel %vm410, %v5631, %v5633
        %5652 = vst.msk [vmem:[#allocation2 + $0x120] sm:$0xff] %vm1783, %v5611
        %5653 = vst [vmem:[#allocation2 + $0x128] sm:$0xff] %v5634
        %5654 = vst.msk [vmem:[#allocation2 + $0x130] sm:$0xff] %vm1783, %v5615
        %5655 = vst [vmem:[#allocation2 + $0x138] sm:$0xff] %v5635
        %5656 = vst.msk [vmem:[#allocation2 + $0x140] sm:$0xff] %vm1783, %v5619
        %5657 = vst [vmem:[#allocation2 + $0x148] sm:$0xff] %v5636
        %5658 = vst.msk [vmem:[#allocation2 + $0x150] sm:$0xff] %vm1783, %v5623
        %5659 = vst [vmem:[#allocation2 + $0x158] sm:$0xff] %v5637
        %5660 = vst.msk [vmem:[#allocation2 + $0x160] sm:$0xff] %vm1783, %v5627
        %5661 = vst [vmem:[#allocation2 + $0x168] sm:$0xff] %v5638
        %5662 = vst.msk [vmem:[#allocation2 + $0x170] sm:$0xff] %vm1783, %v5631
        %5663 = vst [vmem:[#allocation2 + $0x178] sm:$0xff] %v5639
        %v5664 = vld [vmem:[#allocation3] sm:$0xff]
        %v5665 = vld [vmem:[#allocation3 + $0x8] sm:$0xff]
        %v5666 = vld [vmem:[#allocation3 + $0x10] sm:$0xff]
        %v5667 = vld [vmem:[#allocation3 + $0x18] sm:$0xff]
        %v5668 = vld [vmem:[#allocation3 + $0x20] sm:$0xff]
        %v5669 = vld [vmem:[#allocation3 + $0x28] sm:$0xff]
        %v5670 = vld [vmem:[#allocation3 + $0x30] sm:$0xff]
        %v5671 = vld [vmem:[#allocation3 + $0x38] sm:$0xff]
        %v5672 = vld [vmem:[#allocation3 + $0x40] sm:$0xff]
        %v5673 = vld [vmem:[#allocation3 + $0x48] sm:$0xff]
        %v5674 = vld [vmem:[#allocation3 + $0x50] sm:$0xff]
        %v5675 = vld [vmem:[#allocation3 + $0x58] sm:$0xff]
        %v5676 = vld [vmem:[%s419] ss:$8 sm:$0x3]
        %v5678 = vlaneseq
        %v5679 = vshrl.u32 %v5678, 7
        %v5680 = vsub.s32 0, %v5679
        %v5681 = vrot.slane %v5676, %v5680
        %v5682 = vlaneseq
        %v5683 = vshrl.u32 %v5682, 7
        %v5684 = vsub.s32 1, %v5683
        %v5685 = vrot.slane %v5676, %v5684
        %5686 = vrot.lane.b32.xlu0 %v5681, 98
        %v5687 = vpop.permute.xlu0 %5686
        %5688 = vrot.lane.b32.xlu0 %v5685, 98
        %v5689 = vpop.permute.xlu0 %5688
        %v5690 = vsel %vm425, %v5687, %v5689
        %v5693 = vmul.f32 %v5664, %v5690
        %v5694 = vmul.f32 %v5665, %v5689
        %v5695 = vmul.f32 %v5666, %v5690
        %v5696 = vmul.f32 %v5667, %v5689
        %v5697 = vmul.f32 %v5668, %v5690
        %v5698 = vmul.f32 %v5669, %v5689
        %v5699 = vmul.f32 %v5670, %v5690
        %v5700 = vmul.f32 %v5671, %v5689
        %v5701 = vmul.f32 %v5672, %v5690
        %v5702 = vmul.f32 %v5673, %v5689
        %v5703 = vmul.f32 %v5674, %v5690
        %v5704 = vmul.f32 %v5675, %v5689
        %5717 = vrot.lane.b32.xlu0 %v5693, 30
        %v5718 = vpop.permute.xlu0 %5717
        %5719 = vrot.lane.b32.xlu0 %v5694, 30
        %v5720 = vpop.permute.xlu0 %5719
        %5721 = vrot.lane.b32.xlu0 %v5695, 30
        %v5722 = vpop.permute.xlu0 %5721
        %5723 = vrot.lane.b32.xlu0 %v5696, 30
        %v5724 = vpop.permute.xlu0 %5723
        %5725 = vrot.lane.b32.xlu0 %v5697, 30
        %v5726 = vpop.permute.xlu0 %5725
        %5727 = vrot.lane.b32.xlu0 %v5698, 30
        %v5728 = vpop.permute.xlu0 %5727
        %5729 = vrot.lane.b32.xlu0 %v5699, 30
        %v5730 = vpop.permute.xlu0 %5729
        %5731 = vrot.lane.b32.xlu0 %v5700, 30
        %v5732 = vpop.permute.xlu0 %5731
        %5733 = vrot.lane.b32.xlu0 %v5701, 30
        %v5734 = vpop.permute.xlu0 %5733
        %5735 = vrot.lane.b32.xlu0 %v5702, 30
        %v5736 = vpop.permute.xlu0 %5735
        %5737 = vrot.lane.b32.xlu0 %v5703, 30
        %v5738 = vpop.permute.xlu0 %5737
        %5739 = vrot.lane.b32.xlu0 %v5704, 30
        %v5740 = vpop.permute.xlu0 %5739
        %v5741 = vsel %vm433, %v5718, %v5720
        %v5742 = vsel %vm433, %v5722, %v5724
        %v5743 = vsel %vm433, %v5726, %v5728
        %v5744 = vsel %vm433, %v5730, %v5732
        %v5745 = vsel %vm433, %v5734, %v5736
        %v5746 = vsel %vm433, %v5738, %v5740
        %5759 = vst.msk [vmem:[#allocation2 + $0x180] sm:$0xff] %vm1891, %v5718
        %5760 = vst [vmem:[#allocation2 + $0x188] sm:$0xff] %v5741
        %5761 = vst.msk [vmem:[#allocation2 + $0x190] sm:$0xff] %vm1891, %v5722
        %5762 = vst [vmem:[#allocation2 + $0x198] sm:$0xff] %v5742
        %5763 = vst.msk [vmem:[#allocation2 + $0x1a0] sm:$0xff] %vm1891, %v5726
        %5764 = vst [vmem:[#allocation2 + $0x1a8] sm:$0xff] %v5743
        %5765 = vst.msk [vmem:[#allocation2 + $0x1b0] sm:$0xff] %vm1891, %v5730
        %5766 = vst [vmem:[#allocation2 + $0x1b8] sm:$0xff] %v5744
        %5767 = vst.msk [vmem:[#allocation2 + $0x1c0] sm:$0xff] %vm1891, %v5734
        %5768 = vst [vmem:[#allocation2 + $0x1c8] sm:$0xff] %v5745
        %5769 = vst.msk [vmem:[#allocation2 + $0x1d0] sm:$0xff] %vm1891, %v5738
        %5770 = vst [vmem:[#allocation2 + $0x1d8] sm:$0xff] %v5746
        %v5771 = vld [vmem:[#allocation3] sm:$0xff]
        %v5772 = vld [vmem:[#allocation3 + $0x8] sm:$0xff]
        %v5773 = vld [vmem:[#allocation3 + $0x10] sm:$0xff]
        %v5774 = vld [vmem:[#allocation3 + $0x18] sm:$0xff]
        %v5775 = vld [vmem:[#allocation3 + $0x20] sm:$0xff]
        %v5776 = vld [vmem:[#allocation3 + $0x28] sm:$0xff]
        %v5777 = vld [vmem:[#allocation3 + $0x30] sm:$0xff]
        %v5778 = vld [vmem:[#allocation3 + $0x38] sm:$0xff]
        %v5779 = vld [vmem:[#allocation3 + $0x40] sm:$0xff]
        %v5780 = vld [vmem:[#allocation3 + $0x48] sm:$0xff]
        %v5781 = vld [vmem:[#allocation3 + $0x50] sm:$0xff]
        %v5782 = vld [vmem:[#allocation3 + $0x58] sm:$0xff]
        %v5783 = vld [vmem:[%s442] ss:$8 sm:$0x3]
        %v5785 = vlaneseq
        %v5786 = vshrl.u32 %v5785, 7
        %v5787 = vsub.s32 0, %v5786
        %v5788 = vrot.slane %v5783, %v5787
        %v5789 = vlaneseq
        %v5790 = vshrl.u32 %v5789, 7
        %v5791 = vsub.s32 1, %v5790
        %v5792 = vrot.slane %v5783, %v5791
        %5793 = vrot.lane.b32.xlu0 %v5788, 110
        %v5794 = vpop.permute.xlu0 %5793
        %5795 = vrot.lane.b32.xlu0 %v5792, 110
        %v5796 = vpop.permute.xlu0 %5795
        %v5797 = vsel %vm448, %v5794, %v5796
        %v5800 = vmul.f32 %v5771, %v5797
        %v5801 = vmul.f32 %v5772, %v5796
        %v5802 = vmul.f32 %v5773, %v5797
        %v5803 = vmul.f32 %v5774, %v5796
        %v5804 = vmul.f32 %v5775, %v5797
        %v5805 = vmul.f32 %v5776, %v5796
        %v5806 = vmul.f32 %v5777, %v5797
        %v5807 = vmul.f32 %v5778, %v5796
        %v5808 = vmul.f32 %v5779, %v5797
        %v5809 = vmul.f32 %v5780, %v5796
        %v5810 = vmul.f32 %v5781, %v5797
        %v5811 = vmul.f32 %v5782, %v5796
        %5824 = vrot.lane.b32.xlu0 %v5800, 18
        %v5825 = vpop.permute.xlu0 %5824
        %5826 = vrot.lane.b32.xlu0 %v5801, 18
        %v5827 = vpop.permute.xlu0 %5826
        %5828 = vrot.lane.b32.xlu0 %v5802, 18
        %v5829 = vpop.permute.xlu0 %5828
        %5830 = vrot.lane.b32.xlu0 %v5803, 18
        %v5831 = vpop.permute.xlu0 %5830
        %5832 = vrot.lane.b32.xlu0 %v5804, 18
        %v5833 = vpop.permute.xlu0 %5832
        %5834 = vrot.lane.b32.xlu0 %v5805, 18
        %v5835 = vpop.permute.xlu0 %5834
        %5836 = vrot.lane.b32.xlu0 %v5806, 18
        %v5837 = vpop.permute.xlu0 %5836
        %5838 = vrot.lane.b32.xlu0 %v5807, 18
        %v5839 = vpop.permute.xlu0 %5838
        %5840 = vrot.lane.b32.xlu0 %v5808, 18
        %v5841 = vpop.permute.xlu0 %5840
        %5842 = vrot.lane.b32.xlu0 %v5809, 18
        %v5843 = vpop.permute.xlu0 %5842
        %5844 = vrot.lane.b32.xlu0 %v5810, 18
        %v5845 = vpop.permute.xlu0 %5844
        %5846 = vrot.lane.b32.xlu0 %v5811, 18
        %v5847 = vpop.permute.xlu0 %5846
        %v5848 = vsel %vm456, %v5825, %v5827
        %v5849 = vsel %vm456, %v5829, %v5831
        %v5850 = vsel %vm456, %v5833, %v5835
        %v5851 = vsel %vm456, %v5837, %v5839
        %v5852 = vsel %vm456, %v5841, %v5843
        %v5853 = vsel %vm456, %v5845, %v5847
        %5866 = vst.msk [vmem:[#allocation2 + $0x1e0] sm:$0xff] %vm1999, %v5825
        %5867 = vst [vmem:[#allocation2 + $0x1e8] sm:$0xff] %v5848
        %5868 = vst.msk [vmem:[#allocation2 + $0x1f0] sm:$0xff] %vm1999, %v5829
        %5869 = vst [vmem:[#allocation2 + $0x1f8] sm:$0xff] %v5849
        %5870 = vst.msk [vmem:[#allocation2 + $0x200] sm:$0xff] %vm1999, %v5833
        %5871 = vst [vmem:[#allocation2 + $0x208] sm:$0xff] %v5850
        %5872 = vst.msk [vmem:[#allocation2 + $0x210] sm:$0xff] %vm1999, %v5837
        %5873 = vst [vmem:[#allocation2 + $0x218] sm:$0xff] %v5851
        %5874 = vst.msk [vmem:[#allocation2 + $0x220] sm:$0xff] %vm1999, %v5841
        %5875 = vst [vmem:[#allocation2 + $0x228] sm:$0xff] %v5852
        %5876 = vst.msk [vmem:[#allocation2 + $0x230] sm:$0xff] %vm1999, %v5845
        %5877 = vst [vmem:[#allocation2 + $0x238] sm:$0xff] %v5853
        %v5878 = vld [vmem:[#allocation3] sm:$0xff]
        %v5879 = vld [vmem:[#allocation3 + $0x8] sm:$0xff]
        %v5880 = vld [vmem:[#allocation3 + $0x10] sm:$0xff]
        %v5881 = vld [vmem:[#allocation3 + $0x18] sm:$0xff]
        %v5882 = vld [vmem:[#allocation3 + $0x20] sm:$0xff]
        %v5883 = vld [vmem:[#allocation3 + $0x28] sm:$0xff]
        %v5884 = vld [vmem:[#allocation3 + $0x30] sm:$0xff]
        %v5885 = vld [vmem:[#allocation3 + $0x38] sm:$0xff]
        %v5886 = vld [vmem:[#allocation3 + $0x40] sm:$0xff]
        %v5887 = vld [vmem:[#allocation3 + $0x48] sm:$0xff]
        %v5888 = vld [vmem:[#allocation3 + $0x50] sm:$0xff]
        %v5889 = vld [vmem:[#allocation3 + $0x58] sm:$0xff]
        %v5890 = vld [vmem:[%s465] ss:$8 sm:$0x3]
        %v5892 = vlaneseq
        %v5893 = vshrl.u32 %v5892, 7
        %v5894 = vsub.s32 0, %v5893
        %v5895 = vrot.slane %v5890, %v5894
        %v5896 = vlaneseq
        %v5897 = vshrl.u32 %v5896, 7
        %v5898 = vsub.s32 1, %v5897
        %v5899 = vrot.slane %v5890, %v5898
        %5900 = vrot.lane.b32.xlu0 %v5895, 111
        %v5901 = vpop.permute.xlu0 %5900
        %5902 = vrot.lane.b32.xlu0 %v5899, 111
        %v5903 = vpop.permute.xlu0 %5902
        %v5904 = vsel %vm471, %v5901, %v5903
        %v5907 = vmul.f32 %v5878, %v5904
        %v5908 = vmul.f32 %v5879, %v5903
        %v5909 = vmul.f32 %v5880, %v5904
        %v5910 = vmul.f32 %v5881, %v5903
        %v5911 = vmul.f32 %v5882, %v5904
        %v5912 = vmul.f32 %v5883, %v5903
        %v5913 = vmul.f32 %v5884, %v5904
        %v5914 = vmul.f32 %v5885, %v5903
        %v5915 = vmul.f32 %v5886, %v5904
        %v5916 = vmul.f32 %v5887, %v5903
        %v5917 = vmul.f32 %v5888, %v5904
        %v5918 = vmul.f32 %v5889, %v5903
        %5931 = vrot.lane.b32.xlu0 %v5907, 17
        %v5932 = vpop.permute.xlu0 %5931
        %5933 = vrot.lane.b32.xlu0 %v5908, 17
        %v5934 = vpop.permute.xlu0 %5933
        %5935 = vrot.lane.b32.xlu0 %v5909, 17
        %v5936 = vpop.permute.xlu0 %5935
        %5937 = vrot.lane.b32.xlu0 %v5910, 17
        %v5938 = vpop.permute.xlu0 %5937
        %5939 = vrot.lane.b32.xlu0 %v5911, 17
        %v5940 = vpop.permute.xlu0 %5939
        %5941 = vrot.lane.b32.xlu0 %v5912, 17
        %v5942 = vpop.permute.xlu0 %5941
        %5943 = vrot.lane.b32.xlu0 %v5913, 17
        %v5944 = vpop.permute.xlu0 %5943
        %5945 = vrot.lane.b32.xlu0 %v5914, 17
        %v5946 = vpop.permute.xlu0 %5945
        %5947 = vrot.lane.b32.xlu0 %v5915, 17
        %v5948 = vpop.permute.xlu0 %5947
        %5949 = vrot.lane.b32.xlu0 %v5916, 17
        %v5950 = vpop.permute.xlu0 %5949
        %5951 = vrot.lane.b32.xlu0 %v5917, 17
        %v5952 = vpop.permute.xlu0 %5951
        %5953 = vrot.lane.b32.xlu0 %v5918, 17
        %v5954 = vpop.permute.xlu0 %5953
        %v5955 = vsel %vm479, %v5932, %v5934
        %v5956 = vsel %vm479, %v5936, %v5938
        %v5957 = vsel %vm479, %v5940, %v5942
        %v5958 = vsel %vm479, %v5944, %v5946
        %v5959 = vsel %vm479, %v5948, %v5950
        %v5960 = vsel %vm479, %v5952, %v5954
        %5973 = vst.msk [vmem:[#allocation2 + $0x240] sm:$0xff] %vm2107, %v5932
        %5974 = vst [vmem:[#allocation2 + $0x248] sm:$0xff] %v5955
        %5975 = vst.msk [vmem:[#allocation2 + $0x250] sm:$0xff] %vm2107, %v5936
        %5976 = vst [vmem:[#allocation2 + $0x258] sm:$0xff] %v5956
        %5977 = vst.msk [vmem:[#allocation2 + $0x260] sm:$0xff] %vm2107, %v5940
        %5978 = vst [vmem:[#allocation2 + $0x268] sm:$0xff] %v5957
        %5979 = vst.msk [vmem:[#allocation2 + $0x270] sm:$0xff] %vm2107, %v5944
        %5980 = vst [vmem:[#allocation2 + $0x278] sm:$0xff] %v5958
        %5981 = vst.msk [vmem:[#allocation2 + $0x280] sm:$0xff] %vm2107, %v5948
        %5982 = vst [vmem:[#allocation2 + $0x288] sm:$0xff] %v5959
        %5983 = vst.msk [vmem:[#allocation2 + $0x290] sm:$0xff] %vm2107, %v5952
        %5984 = vst [vmem:[#allocation2 + $0x298] sm:$0xff] %v5960
        %v5985 = vld [vmem:[#allocation3] sm:$0xff]
        %v5986 = vld [vmem:[#allocation3 + $0x8] sm:$0xff]
        %v5987 = vld [vmem:[#allocation3 + $0x10] sm:$0xff]
        %v5988 = vld [vmem:[#allocation3 + $0x18] sm:$0xff]
        %v5989 = vld [vmem:[#allocation3 + $0x20] sm:$0xff]
        %v5990 = vld [vmem:[#allocation3 + $0x28] sm:$0xff]
        %v5991 = vld [vmem:[#allocation3 + $0x30] sm:$0xff]
        %v5992 = vld [vmem:[#allocation3 + $0x38] sm:$0xff]
        %v5993 = vld [vmem:[#allocation3 + $0x40] sm:$0xff]
        %v5994 = vld [vmem:[#allocation3 + $0x48] sm:$0xff]
        %v5995 = vld [vmem:[#allocation3 + $0x50] sm:$0xff]
        %v5996 = vld [vmem:[#allocation3 + $0x58] sm:$0xff]
        %v5997 = vld [vmem:[%s488] ss:$8 sm:$0x3]
        %v5999 = vlaneseq
        %v6000 = vshrl.u32 %v5999, 7
        %v6001 = vsub.s32 0, %v6000
        %v6002 = vrot.slane %v5997, %v6001
        %v6003 = vlaneseq
        %v6004 = vshrl.u32 %v6003, 7
        %v6005 = vsub.s32 1, %v6004
        %v6006 = vrot.slane %v5997, %v6005
        %6007 = vrot.lane.b32.xlu0 %v6002, 112
        %v6008 = vpop.permute.xlu0 %6007
        %6009 = vrot.lane.b32.xlu0 %v6006, 112
        %v6010 = vpop.permute.xlu0 %6009
        %v6011 = vsel %vm494, %v6008, %v6010
        %v6014 = vmul.f32 %v5985, %v6011
        %v6015 = vmul.f32 %v5986, %v6010
        %v6016 = vmul.f32 %v5987, %v6011
        %v6017 = vmul.f32 %v5988, %v6010
        %v6018 = vmul.f32 %v5989, %v6011
        %v6019 = vmul.f32 %v5990, %v6010
        %v6020 = vmul.f32 %v5991, %v6011
        %v6021 = vmul.f32 %v5992, %v6010
        %v6022 = vmul.f32 %v5993, %v6011
        %v6023 = vmul.f32 %v5994, %v6010
        %v6024 = vmul.f32 %v5995, %v6011
        %v6025 = vmul.f32 %v5996, %v6010
        %6038 = vrot.lane.b32.xlu0 %v6014, 16
        %v6039 = vpop.permute.xlu0 %6038
        %6040 = vrot.lane.b32.xlu0 %v6015, 16
        %v6041 = vpop.permute.xlu0 %6040
        %6042 = vrot.lane.b32.xlu0 %v6016, 16
        %v6043 = vpop.permute.xlu0 %6042
        %6044 = vrot.lane.b32.xlu0 %v6017, 16
        %v6045 = vpop.permute.xlu0 %6044
        %6046 = vrot.lane.b32.xlu0 %v6018, 16
        %v6047 = vpop.permute.xlu0 %6046
        %6048 = vrot.lane.b32.xlu0 %v6019, 16
        %v6049 = vpop.permute.xlu0 %6048
        %6050 = vrot.lane.b32.xlu0 %v6020, 16
        %v6051 = vpop.permute.xlu0 %6050
        %6052 = vrot.lane.b32.xlu0 %v6021, 16
        %v6053 = vpop.permute.xlu0 %6052
        %6054 = vrot.lane.b32.xlu0 %v6022, 16
        %v6055 = vpop.permute.xlu0 %6054
        %6056 = vrot.lane.b32.xlu0 %v6023, 16
        %v6057 = vpop.permute.xlu0 %6056
        %6058 = vrot.lane.b32.xlu0 %v6024, 16
        %v6059 = vpop.permute.xlu0 %6058
        %6060 = vrot.lane.b32.xlu0 %v6025, 16
        %v6061 = vpop.permute.xlu0 %6060
        %v6062 = vsel %vm502, %v6039, %v6041
        %v6063 = vsel %vm502, %v6043, %v6045
        %v6064 = vsel %vm502, %v6047, %v6049
        %v6065 = vsel %vm502, %v6051, %v6053
        %v6066 = vsel %vm502, %v6055, %v6057
        %v6067 = vsel %vm502, %v6059, %v6061
        %6080 = vst.msk [vmem:[#allocation2 + $0x2a0] sm:$0xff] %vm2215, %v6039
        %6081 = vst [vmem:[#allocation2 + $0x2a8] sm:$0xff] %v6062
        %6082 = vst.msk [vmem:[#allocation2 + $0x2b0] sm:$0xff] %vm2215, %v6043
        %6083 = vst [vmem:[#allocation2 + $0x2b8] sm:$0xff] %v6063
        %6084 = vst.msk [vmem:[#allocation2 + $0x2c0] sm:$0xff] %vm2215, %v6047
        %6085 = vst [vmem:[#allocation2 + $0x2c8] sm:$0xff] %v6064
        %6086 = vst.msk [vmem:[#allocation2 + $0x2d0] sm:$0xff] %vm2215, %v6051
        %6087 = vst [vmem:[#allocation2 + $0x2d8] sm:$0xff] %v6065
        %6088 = vst.msk [vmem:[#allocation2 + $0x2e0] sm:$0xff] %vm2215, %v6055
        %6089 = vst [vmem:[#allocation2 + $0x2e8] sm:$0xff] %v6066
        %6090 = vst.msk [vmem:[#allocation2 + $0x2f0] sm:$0xff] %vm2215, %v6059
        %6091 = vst [vmem:[#allocation2 + $0x2f8] sm:$0xff] %v6067
        %v6092 = vld [vmem:[#allocation3] sm:$0xff]
        %v6093 = vld [vmem:[#allocation3 + $0x8] sm:$0xff]
        %v6094 = vld [vmem:[#allocation3 + $0x10] sm:$0xff]
        %v6095 = vld [vmem:[#allocation3 + $0x18] sm:$0xff]
        %v6096 = vld [vmem:[#allocation3 + $0x20] sm:$0xff]
        %v6097 = vld [vmem:[#allocation3 + $0x28] sm:$0xff]
        %v6098 = vld [vmem:[#allocation3 + $0x30] sm:$0xff]
        %v6099 = vld [vmem:[#allocation3 + $0x38] sm:$0xff]
        %v6100 = vld [vmem:[#allocation3 + $0x40] sm:$0xff]
        %v6101 = vld [vmem:[#allocation3 + $0x48] sm:$0xff]
        %v6102 = vld [vmem:[#allocation3 + $0x50] sm:$0xff]
        %v6103 = vld [vmem:[#allocation3 + $0x58] sm:$0xff]
        %v6104 = vld [vmem:[%s511] ss:$8 sm:$0x3]
        %v6106 = vlaneseq
        %v6107 = vshrl.u32 %v6106, 7
        %v6108 = vsub.s32 0, %v6107
        %v6109 = vrot.slane %v6104, %v6108
        %v6110 = vlaneseq
        %v6111 = vshrl.u32 %v6110, 7
        %v6112 = vsub.s32 1, %v6111
        %v6113 = vrot.slane %v6104, %v6112
        %6114 = vrot.lane.b32.xlu0 %v6109, 113
        %v6115 = vpop.permute.xlu0 %6114
        %6116 = vrot.lane.b32.xlu0 %v6113, 113
        %v6117 = vpop.permute.xlu0 %6116
        %v6118 = vsel %vm517, %v6115, %v6117
        %v6121 = vmul.f32 %v6092, %v6118
        %v6122 = vmul.f32 %v6093, %v6117
        %v6123 = vmul.f32 %v6094, %v6118
        %v6124 = vmul.f32 %v6095, %v6117
        %v6125 = vmul.f32 %v6096, %v6118
        %v6126 = vmul.f32 %v6097, %v6117
        %v6127 = vmul.f32 %v6098, %v6118
        %v6128 = vmul.f32 %v6099, %v6117
        %v6129 = vmul.f32 %v6100, %v6118
        %v6130 = vmul.f32 %v6101, %v6117
        %v6131 = vmul.f32 %v6102, %v6118
        %v6132 = vmul.f32 %v6103, %v6117
        %6145 = vrot.lane.b32.xlu0 %v6121, 15
        %v6146 = vpop.permute.xlu0 %6145
        %6147 = vrot.lane.b32.xlu0 %v6122, 15
        %v6148 = vpop.permute.xlu0 %6147
        %6149 = vrot.lane.b32.xlu0 %v6123, 15
        %v6150 = vpop.permute.xlu0 %6149
        %6151 = vrot.lane.b32.xlu0 %v6124, 15
        %v6152 = vpop.permute.xlu0 %6151
        %6153 = vrot.lane.b32.xlu0 %v6125, 15
        %v6154 = vpop.permute.xlu0 %6153
        %6155 = vrot.lane.b32.xlu0 %v6126, 15
        %v6156 = vpop.permute.xlu0 %6155
        %6157 = vrot.lane.b32.xlu0 %v6127, 15
        %v6158 = vpop.permute.xlu0 %6157
        %6159 = vrot.lane.b32.xlu0 %v6128, 15
        %v6160 = vpop.permute.xlu0 %6159
        %6161 = vrot.lane.b32.xlu0 %v6129, 15
        %v6162 = vpop.permute.xlu0 %6161
        %6163 = vrot.lane.b32.xlu0 %v6130, 15
        %v6164 = vpop.permute.xlu0 %6163
        %6165 = vrot.lane.b32.xlu0 %v6131, 15
        %v6166 = vpop.permute.xlu0 %6165
        %6167 = vrot.lane.b32.xlu0 %v6132, 15
        %v6168 = vpop.permute.xlu0 %6167
        %v6169 = vsel %vm525, %v6146, %v6148
        %v6170 = vsel %vm525, %v6150, %v6152
        %v6171 = vsel %vm525, %v6154, %v6156
        %v6172 = vsel %vm525, %v6158, %v6160
        %v6173 = vsel %vm525, %v6162, %v6164
        %v6174 = vsel %vm525, %v6166, %v6168
        %6187 = vst.msk [vmem:[#allocation2 + $0x300] sm:$0xff] %vm2323, %v6146
        %6188 = vst [vmem:[#allocation2 + $0x308] sm:$0xff] %v6169
        %6189 = vst.msk [vmem:[#allocation2 + $0x310] sm:$0xff] %vm2323, %v6150
        %6190 = vst [vmem:[#allocation2 + $0x318] sm:$0xff] %v6170
        %6191 = vst.msk [vmem:[#allocation2 + $0x320] sm:$0xff] %vm2323, %v6154
        %6192 = vst [vmem:[#allocation2 + $0x328] sm:$0xff] %v6171
        %6193 = vst.msk [vmem:[#allocation2 + $0x330] sm:$0xff] %vm2323, %v6158
        %6194 = vst [vmem:[#allocation2 + $0x338] sm:$0xff] %v6172
        %6195 = vst.msk [vmem:[#allocation2 + $0x340] sm:$0xff] %vm2323, %v6162
        %6196 = vst [vmem:[#allocation2 + $0x348] sm:$0xff] %v6173
        %6197 = vst.msk [vmem:[#allocation2 + $0x350] sm:$0xff] %vm2323, %v6166
        %6198 = vst [vmem:[#allocation2 + $0x358] sm:$0xff] %v6174
        %v6199 = vld [vmem:[#allocation3] sm:$0xff]
        %v6200 = vld [vmem:[#allocation3 + $0x8] sm:$0xff]
        %v6201 = vld [vmem:[#allocation3 + $0x10] sm:$0xff]
        %v6202 = vld [vmem:[#allocation3 + $0x18] sm:$0xff]
        %v6203 = vld [vmem:[#allocation3 + $0x20] sm:$0xff]
        %v6204 = vld [vmem:[#allocation3 + $0x28] sm:$0xff]
        %v6205 = vld [vmem:[#allocation3 + $0x30] sm:$0xff]
        %v6206 = vld [vmem:[#allocation3 + $0x38] sm:$0xff]
        %v6207 = vld [vmem:[#allocation3 + $0x40] sm:$0xff]
        %v6208 = vld [vmem:[#allocation3 + $0x48] sm:$0xff]
        %v6209 = vld [vmem:[#allocation3 + $0x50] sm:$0xff]
        %v6210 = vld [vmem:[#allocation3 + $0x58] sm:$0xff]
        %v6211 = vld [vmem:[%s534] ss:$8 sm:$0x3]
        %v6213 = vlaneseq
        %v6214 = vshrl.u32 %v6213, 7
        %v6215 = vsub.s32 0, %v6214
        %v6216 = vrot.slane %v6211, %v6215
        %v6217 = vlaneseq
        %v6218 = vshrl.u32 %v6217, 7
        %v6219 = vsub.s32 1, %v6218
        %v6220 = vrot.slane %v6211, %v6219
        %6221 = vrot.lane.b32.xlu0 %v6216, 114
        %v6222 = vpop.permute.xlu0 %6221
        %6223 = vrot.lane.b32.xlu0 %v6220, 114
        %v6224 = vpop.permute.xlu0 %6223
        %v6225 = vsel %vm540, %v6222, %v6224
        %v6228 = vmul.f32 %v6199, %v6225
        %v6229 = vmul.f32 %v6200, %v6224
        %v6230 = vmul.f32 %v6201, %v6225
        %v6231 = vmul.f32 %v6202, %v6224
        %v6232 = vmul.f32 %v6203, %v6225
        %v6233 = vmul.f32 %v6204, %v6224
        %v6234 = vmul.f32 %v6205, %v6225
        %v6235 = vmul.f32 %v6206, %v6224
        %v6236 = vmul.f32 %v6207, %v6225
        %v6237 = vmul.f32 %v6208, %v6224
        %v6238 = vmul.f32 %v6209, %v6225
        %v6239 = vmul.f32 %v6210, %v6224
        %6252 = vrot.lane.b32.xlu0 %v6228, 14
        %v6253 = vpop.permute.xlu0 %6252
        %6254 = vrot.lane.b32.xlu0 %v6229, 14
        %v6255 = vpop.permute.xlu0 %6254
        %6256 = vrot.lane.b32.xlu0 %v6230, 14
        %v6257 = vpop.permute.xlu0 %6256
        %6258 = vrot.lane.b32.xlu0 %v6231, 14
        %v6259 = vpop.permute.xlu0 %6258
        %6260 = vrot.lane.b32.xlu0 %v6232, 14
        %v6261 = vpop.permute.xlu0 %6260
        %6262 = vrot.lane.b32.xlu0 %v6233, 14
        %v6263 = vpop.permute.xlu0 %6262
        %6264 = vrot.lane.b32.xlu0 %v6234, 14
        %v6265 = vpop.permute.xlu0 %6264
        %6266 = vrot.lane.b32.xlu0 %v6235, 14
        %v6267 = vpop.permute.xlu0 %6266
        %6268 = vrot.lane.b32.xlu0 %v6236, 14
        %v6269 = vpop.permute.xlu0 %6268
        %6270 = vrot.lane.b32.xlu0 %v6237, 14
        %v6271 = vpop.permute.xlu0 %6270
        %6272 = vrot.lane.b32.xlu0 %v6238, 14
        %v6273 = vpop.permute.xlu0 %6272
        %6274 = vrot.lane.b32.xlu0 %v6239, 14
        %v6275 = vpop.permute.xlu0 %6274
        %v6276 = vsel %vm548, %v6253, %v6255
        %v6277 = vsel %vm548, %v6257, %v6259
        %v6278 = vsel %vm548, %v6261, %v6263
        %v6279 = vsel %vm548, %v6265, %v6267
        %v6280 = vsel %vm548, %v6269, %v6271
        %v6281 = vsel %vm548, %v6273, %v6275
        %6294 = vst.msk [vmem:[#allocation2 + $0x360] sm:$0xff] %vm2431, %v6253
        %6295 = vst [vmem:[#allocation2 + $0x368] sm:$0xff] %v6276
        %6296 = vst.msk [vmem:[#allocation2 + $0x370] sm:$0xff] %vm2431, %v6257
        %6297 = vst [vmem:[#allocation2 + $0x378] sm:$0xff] %v6277
        %6298 = vst.msk [vmem:[#allocation2 + $0x380] sm:$0xff] %vm2431, %v6261
        %6299 = vst [vmem:[#allocation2 + $0x388] sm:$0xff] %v6278
        %6300 = vst.msk [vmem:[#allocation2 + $0x390] sm:$0xff] %vm2431, %v6265
        %6301 = vst [vmem:[#allocation2 + $0x398] sm:$0xff] %v6279
        %6302 = vst.msk [vmem:[#allocation2 + $0x3a0] sm:$0xff] %vm2431, %v6269
        %6303 = vst [vmem:[#allocation2 + $0x3a8] sm:$0xff] %v6280
        %6304 = vst.msk [vmem:[#allocation2 + $0x3b0] sm:$0xff] %vm2431, %v6273
        %6305 = vst [vmem:[#allocation2 + $0x3b8] sm:$0xff] %v6281
        %v6306 = vld [vmem:[#allocation3] sm:$0xff]
        %v6307 = vld [vmem:[#allocation3 + $0x8] sm:$0xff]
        %v6308 = vld [vmem:[#allocation3 + $0x10] sm:$0xff]
        %v6309 = vld [vmem:[#allocation3 + $0x18] sm:$0xff]
        %v6310 = vld [vmem:[#allocation3 + $0x20] sm:$0xff]
        %v6311 = vld [vmem:[#allocation3 + $0x28] sm:$0xff]
        %v6312 = vld [vmem:[#allocation3 + $0x30] sm:$0xff]
        %v6313 = vld [vmem:[#allocation3 + $0x38] sm:$0xff]
        %v6314 = vld [vmem:[#allocation3 + $0x40] sm:$0xff]
        %v6315 = vld [vmem:[#allocation3 + $0x48] sm:$0xff]
        %v6316 = vld [vmem:[#allocation3 + $0x50] sm:$0xff]
        %v6317 = vld [vmem:[#allocation3 + $0x58] sm:$0xff]
        %v6318 = vld [vmem:[%s557] ss:$8 sm:$0x3]
        %v6320 = vlaneseq
        %v6321 = vshrl.u32 %v6320, 7
        %v6322 = vsub.s32 0, %v6321
        %v6323 = vrot.slane %v6318, %v6322
        %v6324 = vlaneseq
        %v6325 = vshrl.u32 %v6324, 7
        %v6326 = vsub.s32 1, %v6325
        %v6327 = vrot.slane %v6318, %v6326
        %6328 = vrot.lane.b32.xlu0 %v6323, 126
        %v6329 = vpop.permute.xlu0 %6328
        %6330 = vrot.lane.b32.xlu0 %v6327, 126
        %v6331 = vpop.permute.xlu0 %6330
        %v6332 = vsel %vm563, %v6329, %v6331
        %v6335 = vmul.f32 %v6306, %v6332
        %v6336 = vmul.f32 %v6307, %v6331
        %v6337 = vmul.f32 %v6308, %v6332
        %v6338 = vmul.f32 %v6309, %v6331
        %v6339 = vmul.f32 %v6310, %v6332
        %v6340 = vmul.f32 %v6311, %v6331
        %v6341 = vmul.f32 %v6312, %v6332
        %v6342 = vmul.f32 %v6313, %v6331
        %v6343 = vmul.f32 %v6314, %v6332
        %v6344 = vmul.f32 %v6315, %v6331
        %v6345 = vmul.f32 %v6316, %v6332
        %v6346 = vmul.f32 %v6317, %v6331
        %6359 = vrot.lane.b32.xlu0 %v6335, 2
        %v6360 = vpop.permute.xlu0 %6359
        %6361 = vrot.lane.b32.xlu0 %v6336, 2
        %v6362 = vpop.permute.xlu0 %6361
        %6363 = vrot.lane.b32.xlu0 %v6337, 2
        %v6364 = vpop.permute.xlu0 %6363
        %6365 = vrot.lane.b32.xlu0 %v6338, 2
        %v6366 = vpop.permute.xlu0 %6365
        %6367 = vrot.lane.b32.xlu0 %v6339, 2
        %v6368 = vpop.permute.xlu0 %6367
        %6369 = vrot.lane.b32.xlu0 %v6340, 2
        %v6370 = vpop.permute.xlu0 %6369
        %6371 = vrot.lane.b32.xlu0 %v6341, 2
        %v6372 = vpop.permute.xlu0 %6371
        %6373 = vrot.lane.b32.xlu0 %v6342, 2
        %v6374 = vpop.permute.xlu0 %6373
        %6375 = vrot.lane.b32.xlu0 %v6343, 2
        %v6376 = vpop.permute.xlu0 %6375
        %6377 = vrot.lane.b32.xlu0 %v6344, 2
        %v6378 = vpop.permute.xlu0 %6377
        %6379 = vrot.lane.b32.xlu0 %v6345, 2
        %v6380 = vpop.permute.xlu0 %6379
        %6381 = vrot.lane.b32.xlu0 %v6346, 2
        %v6382 = vpop.permute.xlu0 %6381
        %v6383 = vsel %vm571, %v6360, %v6362
        %v6384 = vsel %vm571, %v6364, %v6366
        %v6385 = vsel %vm571, %v6368, %v6370
        %v6386 = vsel %vm571, %v6372, %v6374
        %v6387 = vsel %vm571, %v6376, %v6378
        %v6388 = vsel %vm571, %v6380, %v6382
        %6401 = vst.msk [vmem:[#allocation2 + $0x3c0] sm:$0xff] %vm2539, %v6360
        %6402 = vst [vmem:[#allocation2 + $0x3c8] sm:$0xff] %v6383
        %6403 = vst.msk [vmem:[#allocation2 + $0x3d0] sm:$0xff] %vm2539, %v6364
        %6404 = vst [vmem:[#allocation2 + $0x3d8] sm:$0xff] %v6384
        %6405 = vst.msk [vmem:[#allocation2 + $0x3e0] sm:$0xff] %vm2539, %v6368
        %6406 = vst [vmem:[#allocation2 + $0x3e8] sm:$0xff] %v6385
        %6407 = vst.msk [vmem:[#allocation2 + $0x3f0] sm:$0xff] %vm2539, %v6372
        %6408 = vst [vmem:[#allocation2 + $0x3f8] sm:$0xff] %v6386
        %6409 = vst.msk [vmem:[#allocation2 + $0x400] sm:$0xff] %vm2539, %v6376
        %6410 = vst [vmem:[#allocation2 + $0x408] sm:$0xff] %v6387
        %6411 = vst.msk [vmem:[#allocation2 + $0x410] sm:$0xff] %vm2539, %v6380
        %6412 = vst [vmem:[#allocation2 + $0x418] sm:$0xff] %v6388
        %v6413 = vld [vmem:[#allocation3] sm:$0xff]
        %v6414 = vld [vmem:[#allocation3 + $0x8] sm:$0xff]
        %v6415 = vld [vmem:[#allocation3 + $0x10] sm:$0xff]
        %v6416 = vld [vmem:[#allocation3 + $0x18] sm:$0xff]
        %v6417 = vld [vmem:[#allocation3 + $0x20] sm:$0xff]
        %v6418 = vld [vmem:[#allocation3 + $0x28] sm:$0xff]
        %v6419 = vld [vmem:[#allocation3 + $0x30] sm:$0xff]
        %v6420 = vld [vmem:[#allocation3 + $0x38] sm:$0xff]
        %v6421 = vld [vmem:[#allocation3 + $0x40] sm:$0xff]
        %v6422 = vld [vmem:[#allocation3 + $0x48] sm:$0xff]
        %v6423 = vld [vmem:[#allocation3 + $0x50] sm:$0xff]
        %v6424 = vld [vmem:[#allocation3 + $0x58] sm:$0xff]
        %v6425 = vld [vmem:[%s580] ss:$8 sm:$0x3]
        %v6427 = vlaneseq
        %v6428 = vshrl.u32 %v6427, 7
        %v6429 = vsub.s32 0, %v6428
        %v6430 = vrot.slane %v6425, %v6429
        %v6431 = vlaneseq
        %v6432 = vshrl.u32 %v6431, 7
        %v6433 = vsub.s32 1, %v6432
        %v6434 = vrot.slane %v6425, %v6433
        %6435 = vrot.lane.b32.xlu0 %v6430, 127
        %v6436 = vpop.permute.xlu0 %6435
        %6437 = vrot.lane.b32.xlu0 %v6434, 127
        %v6438 = vpop.permute.xlu0 %6437
        %v6439 = vsel %vm586, %v6436, %v6438
        %v6442 = vmul.f32 %v6413, %v6439
        %v6443 = vmul.f32 %v6414, %v6438
        %v6444 = vmul.f32 %v6415, %v6439
        %v6445 = vmul.f32 %v6416, %v6438
        %v6446 = vmul.f32 %v6417, %v6439
        %v6447 = vmul.f32 %v6418, %v6438
        %v6448 = vmul.f32 %v6419, %v6439
        %v6449 = vmul.f32 %v6420, %v6438
        %v6450 = vmul.f32 %v6421, %v6439
        %v6451 = vmul.f32 %v6422, %v6438
        %v6452 = vmul.f32 %v6423, %v6439
        %v6453 = vmul.f32 %v6424, %v6438
        %6466 = vrot.lane.b32.xlu0 %v6442, 1
        %v6467 = vpop.permute.xlu0 %6466
        %6468 = vrot.lane.b32.xlu0 %v6443, 1
        %v6469 = vpop.permute.xlu0 %6468
        %6470 = vrot.lane.b32.xlu0 %v6444, 1
        %v6471 = vpop.permute.xlu0 %6470
        %6472 = vrot.lane.b32.xlu0 %v6445, 1
        %v6473 = vpop.permute.xlu0 %6472
        %6474 = vrot.lane.b32.xlu0 %v6446, 1
        %v6475 = vpop.permute.xlu0 %6474
        %6476 = vrot.lane.b32.xlu0 %v6447, 1
        %v6477 = vpop.permute.xlu0 %6476
        %6478 = vrot.lane.b32.xlu0 %v6448, 1
        %v6479 = vpop.permute.xlu0 %6478
        %6480 = vrot.lane.b32.xlu0 %v6449, 1
        %v6481 = vpop.permute.xlu0 %6480
        %6482 = vrot.lane.b32.xlu0 %v6450, 1
        %v6483 = vpop.permute.xlu0 %6482
        %6484 = vrot.lane.b32.xlu0 %v6451, 1
        %v6485 = vpop.permute.xlu0 %6484
        %6486 = vrot.lane.b32.xlu0 %v6452, 1
        %v6487 = vpop.permute.xlu0 %6486
        %6488 = vrot.lane.b32.xlu0 %v6453, 1
        %v6489 = vpop.permute.xlu0 %6488
        %v6490 = vsel %vm594, %v6467, %v6469
        %v6491 = vsel %vm594, %v6471, %v6473
        %v6492 = vsel %vm594, %v6475, %v6477
        %v6493 = vsel %vm594, %v6479, %v6481
        %v6494 = vsel %vm594, %v6483, %v6485
        %v6495 = vsel %vm594, %v6487, %v6489
        %6508 = vst.msk [vmem:[#allocation2 + $0x420] sm:$0xff] %vm2647, %v6467
        %6509 = vst [vmem:[#allocation2 + $0x428] sm:$0xff] %v6490
        %6510 = vst.msk [vmem:[#allocation2 + $0x430] sm:$0xff] %vm2647, %v6471
        %6511 = vst [vmem:[#allocation2 + $0x438] sm:$0xff] %v6491
        %6512 = vst.msk [vmem:[#allocation2 + $0x440] sm:$0xff] %vm2647, %v6475
        %6513 = vst [vmem:[#allocation2 + $0x448] sm:$0xff] %v6492
        %6514 = vst.msk [vmem:[#allocation2 + $0x450] sm:$0xff] %vm2647, %v6479
        %6515 = vst [vmem:[#allocation2 + $0x458] sm:$0xff] %v6493
        %6516 = vst.msk [vmem:[#allocation2 + $0x460] sm:$0xff] %vm2647, %v6483
        %6517 = vst [vmem:[#allocation2 + $0x468] sm:$0xff] %v6494
        %6518 = vst.msk [vmem:[#allocation2 + $0x470] sm:$0xff] %vm2647, %v6487
        %6519 = vst [vmem:[#allocation2 + $0x478] sm:$0xff] %v6495
        %v6520 = vld [vmem:[#allocation3] sm:$0xff]
        %v6521 = vld [vmem:[#allocation3 + $0x8] sm:$0xff]
        %v6522 = vld [vmem:[#allocation3 + $0x10] sm:$0xff]
        %v6523 = vld [vmem:[#allocation3 + $0x18] sm:$0xff]
        %v6524 = vld [vmem:[#allocation3 + $0x20] sm:$0xff]
        %v6525 = vld [vmem:[#allocation3 + $0x28] sm:$0xff]
        %v6526 = vld [vmem:[#allocation3 + $0x30] sm:$0xff]
        %v6527 = vld [vmem:[#allocation3 + $0x38] sm:$0xff]
        %v6528 = vld [vmem:[#allocation3 + $0x40] sm:$0xff]
        %v6529 = vld [vmem:[#allocation3 + $0x48] sm:$0xff]
        %v6530 = vld [vmem:[#allocation3 + $0x50] sm:$0xff]
        %v6531 = vld [vmem:[#allocation3 + $0x58] sm:$0xff]
        %v6532 = vld [vmem:[%s603] ss:$8 sm:$0x3]
        %v6534 = vlaneseq
        %v6535 = vshrl.u32 %v6534, 7
        %v6536 = vsub.s32 0, %v6535
        %v6537 = vrot.slane %v6532, %v6536
        %v6538 = vlaneseq
        %v6539 = vshrl.u32 %v6538, 7
        %v6540 = vsub.s32 1, %v6539
        %v6541 = vrot.slane %v6532, %v6540
        %v6544 = vmul.f32 %v6520, %v6537
        %v6545 = vmul.f32 %v6521, %v6541
        %v6546 = vmul.f32 %v6522, %v6537
        %v6547 = vmul.f32 %v6523, %v6541
        %v6548 = vmul.f32 %v6524, %v6537
        %v6549 = vmul.f32 %v6525, %v6541
        %v6550 = vmul.f32 %v6526, %v6537
        %v6551 = vmul.f32 %v6527, %v6541
        %v6552 = vmul.f32 %v6528, %v6537
        %v6553 = vmul.f32 %v6529, %v6541
        %v6554 = vmul.f32 %v6530, %v6537
        %v6555 = vmul.f32 %v6531, %v6541
        %6556 = vst [vmem:[#allocation2 + $0x480] sm:$0xff] %v6544
        %6557 = vst [vmem:[#allocation2 + $0x488] sm:$0xff] %v6545
        %6558 = vst [vmem:[#allocation2 + $0x490] sm:$0xff] %v6546
        %6559 = vst [vmem:[#allocation2 + $0x498] sm:$0xff] %v6547
        %6560 = vst [vmem:[#allocation2 + $0x4a0] sm:$0xff] %v6548
        %6561 = vst [vmem:[#allocation2 + $0x4a8] sm:$0xff] %v6549
        %6562 = vst [vmem:[#allocation2 + $0x4b0] sm:$0xff] %v6550
        %6563 = vst [vmem:[#allocation2 + $0x4b8] sm:$0xff] %v6551
        %6564 = vst [vmem:[#allocation2 + $0x4c0] sm:$0xff] %v6552
        %6565 = vst [vmem:[#allocation2 + $0x4c8] sm:$0xff] %v6553
        %6566 = vst [vmem:[#allocation2 + $0x4d0] sm:$0xff] %v6554
        %6567 = vst [vmem:[#allocation2 + $0x4d8] sm:$0xff] %v6555
        %v6568 = vld [vmem:[#allocation3] sm:$0xff]
        %v6569 = vld [vmem:[#allocation3 + $0x8] sm:$0xff]
        %v6570 = vld [vmem:[#allocation3 + $0x10] sm:$0xff]
        %v6571 = vld [vmem:[#allocation3 + $0x18] sm:$0xff]
        %v6572 = vld [vmem:[#allocation3 + $0x20] sm:$0xff]
        %v6573 = vld [vmem:[#allocation3 + $0x28] sm:$0xff]
        %v6574 = vld [vmem:[#allocation3 + $0x30] sm:$0xff]
        %v6575 = vld [vmem:[#allocation3 + $0x38] sm:$0xff]
        %v6576 = vld [vmem:[#allocation3 + $0x40] sm:$0xff]
        %v6577 = vld [vmem:[#allocation3 + $0x48] sm:$0xff]
        %v6578 = vld [vmem:[#allocation3 + $0x50] sm:$0xff]
        %v6579 = vld [vmem:[#allocation3 + $0x58] sm:$0xff]
        %v6580 = vld [vmem:[%s612] ss:$8 sm:$0x3]
        %v6582 = vlaneseq
        %v6583 = vshrl.u32 %v6582, 7
        %v6584 = vsub.s32 0, %v6583
        %v6585 = vrot.slane %v6580, %v6584
        %v6586 = vlaneseq
        %v6587 = vshrl.u32 %v6586, 7
        %v6588 = vsub.s32 1, %v6587
        %v6589 = vrot.slane %v6580, %v6588
        %6590 = vrot.lane.b32.xlu0 %v6585, 1
        %v6591 = vpop.permute.xlu0 %6590
        %6592 = vrot.lane.b32.xlu0 %v6589, 1
        %v6593 = vpop.permute.xlu0 %6592
        %v6594 = vsel %vm594, %v6591, %v6593
        %v6597 = vmul.f32 %v6568, %v6591
        %v6598 = vmul.f32 %v6569, %v6594
        %v6599 = vmul.f32 %v6570, %v6591
        %v6600 = vmul.f32 %v6571, %v6594
        %v6601 = vmul.f32 %v6572, %v6591
        %v6602 = vmul.f32 %v6573, %v6594
        %v6603 = vmul.f32 %v6574, %v6591
        %v6604 = vmul.f32 %v6575, %v6594
        %v6605 = vmul.f32 %v6576, %v6591
        %v6606 = vmul.f32 %v6577, %v6594
        %v6607 = vmul.f32 %v6578, %v6591
        %v6608 = vmul.f32 %v6579, %v6594
        %6621 = vrot.lane.b32.xlu0 %v6597, 127
        %v6622 = vpop.permute.xlu0 %6621
        %6623 = vrot.lane.b32.xlu0 %v6598, 127
        %v6624 = vpop.permute.xlu0 %6623
        %6625 = vrot.lane.b32.xlu0 %v6599, 127
        %v6626 = vpop.permute.xlu0 %6625
        %6627 = vrot.lane.b32.xlu0 %v6600, 127
        %v6628 = vpop.permute.xlu0 %6627
        %6629 = vrot.lane.b32.xlu0 %v6601, 127
        %v6630 = vpop.permute.xlu0 %6629
        %6631 = vrot.lane.b32.xlu0 %v6602, 127
        %v6632 = vpop.permute.xlu0 %6631
        %6633 = vrot.lane.b32.xlu0 %v6603, 127
        %v6634 = vpop.permute.xlu0 %6633
        %6635 = vrot.lane.b32.xlu0 %v6604, 127
        %v6636 = vpop.permute.xlu0 %6635
        %6637 = vrot.lane.b32.xlu0 %v6605, 127
        %v6638 = vpop.permute.xlu0 %6637
        %6639 = vrot.lane.b32.xlu0 %v6606, 127
        %v6640 = vpop.permute.xlu0 %6639
        %6641 = vrot.lane.b32.xlu0 %v6607, 127
        %v6642 = vpop.permute.xlu0 %6641
        %6643 = vrot.lane.b32.xlu0 %v6608, 127
        %v6644 = vpop.permute.xlu0 %6643
        %v6645 = vsel %vm586, %v6622, %v6624
        %v6646 = vsel %vm586, %v6626, %v6628
        %v6647 = vsel %vm586, %v6630, %v6632
        %v6648 = vsel %vm586, %v6634, %v6636
        %v6649 = vsel %vm586, %v6638, %v6640
        %v6650 = vsel %vm586, %v6642, %v6644
        %6663 = vst [vmem:[#allocation2 + $0x4e0] sm:$0xff] %v6645
        %6664 = vst.msk [vmem:[#allocation2 + $0x4e8] sm:$0xff] %vm586, %v6624
        %6665 = vst [vmem:[#allocation2 + $0x4f0] sm:$0xff] %v6646
        %6666 = vst.msk [vmem:[#allocation2 + $0x4f8] sm:$0xff] %vm586, %v6628
        %6667 = vst [vmem:[#allocation2 + $0x500] sm:$0xff] %v6647
        %6668 = vst.msk [vmem:[#allocation2 + $0x508] sm:$0xff] %vm586, %v6632
        %6669 = vst [vmem:[#allocation2 + $0x510] sm:$0xff] %v6648
        %6670 = vst.msk [vmem:[#allocation2 + $0x518] sm:$0xff] %vm586, %v6636
        %6671 = vst [vmem:[#allocation2 + $0x520] sm:$0xff] %v6649
        %6672 = vst.msk [vmem:[#allocation2 + $0x528] sm:$0xff] %vm586, %v6640
        %6673 = vst [vmem:[#allocation2 + $0x530] sm:$0xff] %v6650
        %6674 = vst.msk [vmem:[#allocation2 + $0x538] sm:$0xff] %vm586, %v6644
        %v6675 = vld [vmem:[#allocation3] sm:$0xff]
        %v6676 = vld [vmem:[#allocation3 + $0x8] sm:$0xff]
        %v6677 = vld [vmem:[#allocation3 + $0x10] sm:$0xff]
        %v6678 = vld [vmem:[#allocation3 + $0x18] sm:$0xff]
        %v6679 = vld [vmem:[#allocation3 + $0x20] sm:$0xff]
        %v6680 = vld [vmem:[#allocation3 + $0x28] sm:$0xff]
        %v6681 = vld [vmem:[#allocation3 + $0x30] sm:$0xff]
        %v6682 = vld [vmem:[#allocation3 + $0x38] sm:$0xff]
        %v6683 = vld [vmem:[#allocation3 + $0x40] sm:$0xff]
        %v6684 = vld [vmem:[#allocation3 + $0x48] sm:$0xff]
        %v6685 = vld [vmem:[#allocation3 + $0x50] sm:$0xff]
        %v6686 = vld [vmem:[#allocation3 + $0x58] sm:$0xff]
        %v6687 = vld [vmem:[%s633] ss:$8 sm:$0x3]
        %v6689 = vlaneseq
        %v6690 = vshrl.u32 %v6689, 7
        %v6691 = vsub.s32 0, %v6690
        %v6692 = vrot.slane %v6687, %v6691
        %v6693 = vlaneseq
        %v6694 = vshrl.u32 %v6693, 7
        %v6695 = vsub.s32 1, %v6694
        %v6696 = vrot.slane %v6687, %v6695
        %6697 = vrot.lane.b32.xlu0 %v6692, 2
        %v6698 = vpop.permute.xlu0 %6697
        %6699 = vrot.lane.b32.xlu0 %v6696, 2
        %v6700 = vpop.permute.xlu0 %6699
        %v6701 = vsel %vm571, %v6698, %v6700
        %v6704 = vmul.f32 %v6675, %v6698
        %v6705 = vmul.f32 %v6676, %v6701
        %v6706 = vmul.f32 %v6677, %v6698
        %v6707 = vmul.f32 %v6678, %v6701
        %v6708 = vmul.f32 %v6679, %v6698
        %v6709 = vmul.f32 %v6680, %v6701
        %v6710 = vmul.f32 %v6681, %v6698
        %v6711 = vmul.f32 %v6682, %v6701
        %v6712 = vmul.f32 %v6683, %v6698
        %v6713 = vmul.f32 %v6684, %v6701
        %v6714 = vmul.f32 %v6685, %v6698
        %v6715 = vmul.f32 %v6686, %v6701
        %6728 = vrot.lane.b32.xlu0 %v6704, 126
        %v6729 = vpop.permute.xlu0 %6728
        %6730 = vrot.lane.b32.xlu0 %v6705, 126
        %v6731 = vpop.permute.xlu0 %6730
        %6732 = vrot.lane.b32.xlu0 %v6706, 126
        %v6733 = vpop.permute.xlu0 %6732
        %6734 = vrot.lane.b32.xlu0 %v6707, 126
        %v6735 = vpop.permute.xlu0 %6734
        %6736 = vrot.lane.b32.xlu0 %v6708, 126
        %v6737 = vpop.permute.xlu0 %6736
        %6738 = vrot.lane.b32.xlu0 %v6709, 126
        %v6739 = vpop.permute.xlu0 %6738
        %6740 = vrot.lane.b32.xlu0 %v6710, 126
        %v6741 = vpop.permute.xlu0 %6740
        %6742 = vrot.lane.b32.xlu0 %v6711, 126
        %v6743 = vpop.permute.xlu0 %6742
        %6744 = vrot.lane.b32.xlu0 %v6712, 126
        %v6745 = vpop.permute.xlu0 %6744
        %6746 = vrot.lane.b32.xlu0 %v6713, 126
        %v6747 = vpop.permute.xlu0 %6746
        %6748 = vrot.lane.b32.xlu0 %v6714, 126
        %v6749 = vpop.permute.xlu0 %6748
        %6750 = vrot.lane.b32.xlu0 %v6715, 126
        %v6751 = vpop.permute.xlu0 %6750
        %v6752 = vsel %vm563, %v6729, %v6731
        %v6753 = vsel %vm563, %v6733, %v6735
        %v6754 = vsel %vm563, %v6737, %v6739
        %v6755 = vsel %vm563, %v6741, %v6743
        %v6756 = vsel %vm563, %v6745, %v6747
        %v6757 = vsel %vm563, %v6749, %v6751
        %6770 = vst [vmem:[#allocation2 + $0x540] sm:$0xff] %v6752
        %6771 = vst.msk [vmem:[#allocation2 + $0x548] sm:$0xff] %vm563, %v6731
        %6772 = vst [vmem:[#allocation2 + $0x550] sm:$0xff] %v6753
        %6773 = vst.msk [vmem:[#allocation2 + $0x558] sm:$0xff] %vm563, %v6735
        %6774 = vst [vmem:[#allocation2 + $0x560] sm:$0xff] %v6754
        %6775 = vst.msk [vmem:[#allocation2 + $0x568] sm:$0xff] %vm563, %v6739
        %6776 = vst [vmem:[#allocation2 + $0x570] sm:$0xff] %v6755
        %6777 = vst.msk [vmem:[#allocation2 + $0x578] sm:$0xff] %vm563, %v6743
        %6778 = vst [vmem:[#allocation2 + $0x580] sm:$0xff] %v6756
        %6779 = vst.msk [vmem:[#allocation2 + $0x588] sm:$0xff] %vm563, %v6747
        %6780 = vst [vmem:[#allocation2 + $0x590] sm:$0xff] %v6757
        %6781 = vst.msk [vmem:[#allocation2 + $0x598] sm:$0xff] %vm563, %v6751
        %v6782 = vld [vmem:[#allocation3] sm:$0xff]
        %v6783 = vld [vmem:[#allocation3 + $0x8] sm:$0xff]
        %v6784 = vld [vmem:[#allocation3 + $0x10] sm:$0xff]
        %v6785 = vld [vmem:[#allocation3 + $0x18] sm:$0xff]
        %v6786 = vld [vmem:[#allocation3 + $0x20] sm:$0xff]
        %v6787 = vld [vmem:[#allocation3 + $0x28] sm:$0xff]
        %v6788 = vld [vmem:[#allocation3 + $0x30] sm:$0xff]
        %v6789 = vld [vmem:[#allocation3 + $0x38] sm:$0xff]
        %v6790 = vld [vmem:[#allocation3 + $0x40] sm:$0xff]
        %v6791 = vld [vmem:[#allocation3 + $0x48] sm:$0xff]
        %v6792 = vld [vmem:[#allocation3 + $0x50] sm:$0xff]
        %v6793 = vld [vmem:[#allocation3 + $0x58] sm:$0xff]
        %v6794 = vld [vmem:[%s654] ss:$8 sm:$0x3]
        %v6796 = vlaneseq
        %v6797 = vshrl.u32 %v6796, 7
        %v6798 = vsub.s32 0, %v6797
        %v6799 = vrot.slane %v6794, %v6798
        %v6800 = vlaneseq
        %v6801 = vshrl.u32 %v6800, 7
        %v6802 = vsub.s32 1, %v6801
        %v6803 = vrot.slane %v6794, %v6802
        %6804 = vrot.lane.b32.xlu0 %v6799, 14
        %v6805 = vpop.permute.xlu0 %6804
        %6806 = vrot.lane.b32.xlu0 %v6803, 14
        %v6807 = vpop.permute.xlu0 %6806
        %v6808 = vsel %vm548, %v6805, %v6807
        %v6811 = vmul.f32 %v6782, %v6805
        %v6812 = vmul.f32 %v6783, %v6808
        %v6813 = vmul.f32 %v6784, %v6805
        %v6814 = vmul.f32 %v6785, %v6808
        %v6815 = vmul.f32 %v6786, %v6805
        %v6816 = vmul.f32 %v6787, %v6808
        %v6817 = vmul.f32 %v6788, %v6805
        %v6818 = vmul.f32 %v6789, %v6808
        %v6819 = vmul.f32 %v6790, %v6805
        %v6820 = vmul.f32 %v6791, %v6808
        %v6821 = vmul.f32 %v6792, %v6805
        %v6822 = vmul.f32 %v6793, %v6808
        %6835 = vrot.lane.b32.xlu0 %v6811, 114
        %v6836 = vpop.permute.xlu0 %6835
        %6837 = vrot.lane.b32.xlu0 %v6812, 114
        %v6838 = vpop.permute.xlu0 %6837
        %6839 = vrot.lane.b32.xlu0 %v6813, 114
        %v6840 = vpop.permute.xlu0 %6839
        %6841 = vrot.lane.b32.xlu0 %v6814, 114
        %v6842 = vpop.permute.xlu0 %6841
        %6843 = vrot.lane.b32.xlu0 %v6815, 114
        %v6844 = vpop.permute.xlu0 %6843
        %6845 = vrot.lane.b32.xlu0 %v6816, 114
        %v6846 = vpop.permute.xlu0 %6845
        %6847 = vrot.lane.b32.xlu0 %v6817, 114
        %v6848 = vpop.permute.xlu0 %6847
        %6849 = vrot.lane.b32.xlu0 %v6818, 114
        %v6850 = vpop.permute.xlu0 %6849
        %6851 = vrot.lane.b32.xlu0 %v6819, 114
        %v6852 = vpop.permute.xlu0 %6851
        %6853 = vrot.lane.b32.xlu0 %v6820, 114
        %v6854 = vpop.permute.xlu0 %6853
        %6855 = vrot.lane.b32.xlu0 %v6821, 114
        %v6856 = vpop.permute.xlu0 %6855
        %6857 = vrot.lane.b32.xlu0 %v6822, 114
        %v6858 = vpop.permute.xlu0 %6857
        %v6859 = vsel %vm540, %v6836, %v6838
        %v6860 = vsel %vm540, %v6840, %v6842
        %v6861 = vsel %vm540, %v6844, %v6846
        %v6862 = vsel %vm540, %v6848, %v6850
        %v6863 = vsel %vm540, %v6852, %v6854
        %v6864 = vsel %vm540, %v6856, %v6858
        %6877 = vst [vmem:[#allocation2 + $0x5a0] sm:$0xff] %v6859
        %6878 = vst.msk [vmem:[#allocation2 + $0x5a8] sm:$0xff] %vm540, %v6838
        %6879 = vst [vmem:[#allocation2 + $0x5b0] sm:$0xff] %v6860
        %6880 = vst.msk [vmem:[#allocation2 + $0x5b8] sm:$0xff] %vm540, %v6842
        %6881 = vst [vmem:[#allocation2 + $0x5c0] sm:$0xff] %v6861
        %6882 = vst.msk [vmem:[#allocation2 + $0x5c8] sm:$0xff] %vm540, %v6846
        %6883 = vst [vmem:[#allocation2 + $0x5d0] sm:$0xff] %v6862
        %6884 = vst.msk [vmem:[#allocation2 + $0x5d8] sm:$0xff] %vm540, %v6850
        %6885 = vst [vmem:[#allocation2 + $0x5e0] sm:$0xff] %v6863
        %6886 = vst.msk [vmem:[#allocation2 + $0x5e8] sm:$0xff] %vm540, %v6854
        %6887 = vst [vmem:[#allocation2 + $0x5f0] sm:$0xff] %v6864
        %6888 = vst.msk [vmem:[#allocation2 + $0x5f8] sm:$0xff] %vm540, %v6858
        %v6889 = vld [vmem:[#allocation3] sm:$0xff]
        %v6890 = vld [vmem:[#allocation3 + $0x8] sm:$0xff]
        %v6891 = vld [vmem:[#allocation3 + $0x10] sm:$0xff]
        %v6892 = vld [vmem:[#allocation3 + $0x18] sm:$0xff]
        %v6893 = vld [vmem:[#allocation3 + $0x20] sm:$0xff]
        %v6894 = vld [vmem:[#allocation3 + $0x28] sm:$0xff]
        %v6895 = vld [vmem:[#allocation3 + $0x30] sm:$0xff]
        %v6896 = vld [vmem:[#allocation3 + $0x38] sm:$0xff]
        %v6897 = vld [vmem:[#allocation3 + $0x40] sm:$0xff]
        %v6898 = vld [vmem:[#allocation3 + $0x48] sm:$0xff]
        %v6899 = vld [vmem:[#allocation3 + $0x50] sm:$0xff]
        %v6900 = vld [vmem:[#allocation3 + $0x58] sm:$0xff]
        %v6901 = vld [vmem:[%s675] ss:$8 sm:$0x3]
        %v6903 = vlaneseq
        %v6904 = vshrl.u32 %v6903, 7
        %v6905 = vsub.s32 0, %v6904
        %v6906 = vrot.slane %v6901, %v6905
        %v6907 = vlaneseq
        %v6908 = vshrl.u32 %v6907, 7
        %v6909 = vsub.s32 1, %v6908
        %v6910 = vrot.slane %v6901, %v6909
        %6911 = vrot.lane.b32.xlu0 %v6906, 15
        %v6912 = vpop.permute.xlu0 %6911
        %6913 = vrot.lane.b32.xlu0 %v6910, 15
        %v6914 = vpop.permute.xlu0 %6913
        %v6915 = vsel %vm525, %v6912, %v6914
        %v6918 = vmul.f32 %v6889, %v6912
        %v6919 = vmul.f32 %v6890, %v6915
        %v6920 = vmul.f32 %v6891, %v6912
        %v6921 = vmul.f32 %v6892, %v6915
        %v6922 = vmul.f32 %v6893, %v6912
        %v6923 = vmul.f32 %v6894, %v6915
        %v6924 = vmul.f32 %v6895, %v6912
        %v6925 = vmul.f32 %v6896, %v6915
        %v6926 = vmul.f32 %v6897, %v6912
        %v6927 = vmul.f32 %v6898, %v6915
        %v6928 = vmul.f32 %v6899, %v6912
        %v6929 = vmul.f32 %v6900, %v6915
        %6942 = vrot.lane.b32.xlu0 %v6918, 113
        %v6943 = vpop.permute.xlu0 %6942
        %6944 = vrot.lane.b32.xlu0 %v6919, 113
        %v6945 = vpop.permute.xlu0 %6944
        %6946 = vrot.lane.b32.xlu0 %v6920, 113
        %v6947 = vpop.permute.xlu0 %6946
        %6948 = vrot.lane.b32.xlu0 %v6921, 113
        %v6949 = vpop.permute.xlu0 %6948
        %6950 = vrot.lane.b32.xlu0 %v6922, 113
        %v6951 = vpop.permute.xlu0 %6950
        %6952 = vrot.lane.b32.xlu0 %v6923, 113
        %v6953 = vpop.permute.xlu0 %6952
        %6954 = vrot.lane.b32.xlu0 %v6924, 113
        %v6955 = vpop.permute.xlu0 %6954
        %6956 = vrot.lane.b32.xlu0 %v6925, 113
        %v6957 = vpop.permute.xlu0 %6956
        %6958 = vrot.lane.b32.xlu0 %v6926, 113
        %v6959 = vpop.permute.xlu0 %6958
        %6960 = vrot.lane.b32.xlu0 %v6927, 113
        %v6961 = vpop.permute.xlu0 %6960
        %6962 = vrot.lane.b32.xlu0 %v6928, 113
        %v6963 = vpop.permute.xlu0 %6962
        %6964 = vrot.lane.b32.xlu0 %v6929, 113
        %v6965 = vpop.permute.xlu0 %6964
        %v6966 = vsel %vm517, %v6943, %v6945
        %v6967 = vsel %vm517, %v6947, %v6949
        %v6968 = vsel %vm517, %v6951, %v6953
        %v6969 = vsel %vm517, %v6955, %v6957
        %v6970 = vsel %vm517, %v6959, %v6961
        %v6971 = vsel %vm517, %v6963, %v6965
        %6984 = vst [vmem:[#allocation2 + $0x600] sm:$0xff] %v6966
        %6985 = vst.msk [vmem:[#allocation2 + $0x608] sm:$0xff] %vm517, %v6945
        %6986 = vst [vmem:[#allocation2 + $0x610] sm:$0xff] %v6967
        %6987 = vst.msk [vmem:[#allocation2 + $0x618] sm:$0xff] %vm517, %v6949
        %6988 = vst [vmem:[#allocation2 + $0x620] sm:$0xff] %v6968
        %6989 = vst.msk [vmem:[#allocation2 + $0x628] sm:$0xff] %vm517, %v6953
        %6990 = vst [vmem:[#allocation2 + $0x630] sm:$0xff] %v6969
        %6991 = vst.msk [vmem:[#allocation2 + $0x638] sm:$0xff] %vm517, %v6957
        %6992 = vst [vmem:[#allocation2 + $0x640] sm:$0xff] %v6970
        %6993 = vst.msk [vmem:[#allocation2 + $0x648] sm:$0xff] %vm517, %v6961
        %6994 = vst [vmem:[#allocation2 + $0x650] sm:$0xff] %v6971
        %6995 = vst.msk [vmem:[#allocation2 + $0x658] sm:$0xff] %vm517, %v6965
        %v6996 = vld [vmem:[#allocation3] sm:$0xff]
        %v6997 = vld [vmem:[#allocation3 + $0x8] sm:$0xff]
        %v6998 = vld [vmem:[#allocation3 + $0x10] sm:$0xff]
        %v6999 = vld [vmem:[#allocation3 + $0x18] sm:$0xff]
        %v7000 = vld [vmem:[#allocation3 + $0x20] sm:$0xff]
        %v7001 = vld [vmem:[#allocation3 + $0x28] sm:$0xff]
        %v7002 = vld [vmem:[#allocation3 + $0x30] sm:$0xff]
        %v7003 = vld [vmem:[#allocation3 + $0x38] sm:$0xff]
        %v7004 = vld [vmem:[#allocation3 + $0x40] sm:$0xff]
        %v7005 = vld [vmem:[#allocation3 + $0x48] sm:$0xff]
        %v7006 = vld [vmem:[#allocation3 + $0x50] sm:$0xff]
        %v7007 = vld [vmem:[#allocation3 + $0x58] sm:$0xff]
        %v7008 = vld [vmem:[%s696] ss:$8 sm:$0x3]
        %v7010 = vlaneseq
        %v7011 = vshrl.u32 %v7010, 7
        %v7012 = vsub.s32 0, %v7011
        %v7013 = vrot.slane %v7008, %v7012
        %v7014 = vlaneseq
        %v7015 = vshrl.u32 %v7014, 7
        %v7016 = vsub.s32 1, %v7015
        %v7017 = vrot.slane %v7008, %v7016
        %7018 = vrot.lane.b32.xlu0 %v7013, 16
        %v7019 = vpop.permute.xlu0 %7018
        %7020 = vrot.lane.b32.xlu0 %v7017, 16
        %v7021 = vpop.permute.xlu0 %7020
        %v7022 = vsel %vm502, %v7019, %v7021
        %v7025 = vmul.f32 %v6996, %v7019
        %v7026 = vmul.f32 %v6997, %v7022
        %v7027 = vmul.f32 %v6998, %v7019
        %v7028 = vmul.f32 %v6999, %v7022
        %v7029 = vmul.f32 %v7000, %v7019
        %v7030 = vmul.f32 %v7001, %v7022
        %v7031 = vmul.f32 %v7002, %v7019
        %v7032 = vmul.f32 %v7003, %v7022
        %v7033 = vmul.f32 %v7004, %v7019
        %v7034 = vmul.f32 %v7005, %v7022
        %v7035 = vmul.f32 %v7006, %v7019
        %v7036 = vmul.f32 %v7007, %v7022
        %7049 = vrot.lane.b32.xlu0 %v7025, 112
        %v7050 = vpop.permute.xlu0 %7049
        %7051 = vrot.lane.b32.xlu0 %v7026, 112
        %v7052 = vpop.permute.xlu0 %7051
        %7053 = vrot.lane.b32.xlu0 %v7027, 112
        %v7054 = vpop.permute.xlu0 %7053
        %7055 = vrot.lane.b32.xlu0 %v7028, 112
        %v7056 = vpop.permute.xlu0 %7055
        %7057 = vrot.lane.b32.xlu0 %v7029, 112
        %v7058 = vpop.permute.xlu0 %7057
        %7059 = vrot.lane.b32.xlu0 %v7030, 112
        %v7060 = vpop.permute.xlu0 %7059
        %7061 = vrot.lane.b32.xlu0 %v7031, 112
        %v7062 = vpop.permute.xlu0 %7061
        %7063 = vrot.lane.b32.xlu0 %v7032, 112
        %v7064 = vpop.permute.xlu0 %7063
        %7065 = vrot.lane.b32.xlu0 %v7033, 112
        %v7066 = vpop.permute.xlu0 %7065
        %7067 = vrot.lane.b32.xlu0 %v7034, 112
        %v7068 = vpop.permute.xlu0 %7067
        %7069 = vrot.lane.b32.xlu0 %v7035, 112
        %v7070 = vpop.permute.xlu0 %7069
        %7071 = vrot.lane.b32.xlu0 %v7036, 112
        %v7072 = vpop.permute.xlu0 %7071
        %v7073 = vsel %vm494, %v7050, %v7052
        %v7074 = vsel %vm494, %v7054, %v7056
        %v7075 = vsel %vm494, %v7058, %v7060
        %v7076 = vsel %vm494, %v7062, %v7064
        %v7077 = vsel %vm494, %v7066, %v7068
        %v7078 = vsel %vm494, %v7070, %v7072
        %7091 = vst [vmem:[#allocation2 + $0x660] sm:$0xff] %v7073
        %7092 = vst.msk [vmem:[#allocation2 + $0x668] sm:$0xff] %vm494, %v7052
        %7093 = vst [vmem:[#allocation2 + $0x670] sm:$0xff] %v7074
        %7094 = vst.msk [vmem:[#allocation2 + $0x678] sm:$0xff] %vm494, %v7056
        %7095 = vst [vmem:[#allocation2 + $0x680] sm:$0xff] %v7075
        %7096 = vst.msk [vmem:[#allocation2 + $0x688] sm:$0xff] %vm494, %v7060
        %7097 = vst [vmem:[#allocation2 + $0x690] sm:$0xff] %v7076
        %7098 = vst.msk [vmem:[#allocation2 + $0x698] sm:$0xff] %vm494, %v7064
        %7099 = vst [vmem:[#allocation2 + $0x6a0] sm:$0xff] %v7077
        %7100 = vst.msk [vmem:[#allocation2 + $0x6a8] sm:$0xff] %vm494, %v7068
        %7101 = vst [vmem:[#allocation2 + $0x6b0] sm:$0xff] %v7078
        %7102 = vst.msk [vmem:[#allocation2 + $0x6b8] sm:$0xff] %vm494, %v7072
        %v7103 = vld [vmem:[#allocation3] sm:$0xff]
        %v7104 = vld [vmem:[#allocation3 + $0x8] sm:$0xff]
        %v7105 = vld [vmem:[#allocation3 + $0x10] sm:$0xff]
        %v7106 = vld [vmem:[#allocation3 + $0x18] sm:$0xff]
        %v7107 = vld [vmem:[#allocation3 + $0x20] sm:$0xff]
        %v7108 = vld [vmem:[#allocation3 + $0x28] sm:$0xff]
        %v7109 = vld [vmem:[#allocation3 + $0x30] sm:$0xff]
        %v7110 = vld [vmem:[#allocation3 + $0x38] sm:$0xff]
        %v7111 = vld [vmem:[#allocation3 + $0x40] sm:$0xff]
        %v7112 = vld [vmem:[#allocation3 + $0x48] sm:$0xff]
        %v7113 = vld [vmem:[#allocation3 + $0x50] sm:$0xff]
        %v7114 = vld [vmem:[#allocation3 + $0x58] sm:$0xff]
        %v7115 = vld [vmem:[%s717] ss:$8 sm:$0x3]
        %v7117 = vlaneseq
        %v7118 = vshrl.u32 %v7117, 7
        %v7119 = vsub.s32 0, %v7118
        %v7120 = vrot.slane %v7115, %v7119
        %v7121 = vlaneseq
        %v7122 = vshrl.u32 %v7121, 7
        %v7123 = vsub.s32 1, %v7122
        %v7124 = vrot.slane %v7115, %v7123
        %7125 = vrot.lane.b32.xlu0 %v7120, 17
        %v7126 = vpop.permute.xlu0 %7125
        %7127 = vrot.lane.b32.xlu0 %v7124, 17
        %v7128 = vpop.permute.xlu0 %7127
        %v7129 = vsel %vm479, %v7126, %v7128
        %v7132 = vmul.f32 %v7103, %v7126
        %v7133 = vmul.f32 %v7104, %v7129
        %v7134 = vmul.f32 %v7105, %v7126
        %v7135 = vmul.f32 %v7106, %v7129
        %v7136 = vmul.f32 %v7107, %v7126
        %v7137 = vmul.f32 %v7108, %v7129
        %v7138 = vmul.f32 %v7109, %v7126
        %v7139 = vmul.f32 %v7110, %v7129
        %v7140 = vmul.f32 %v7111, %v7126
        %v7141 = vmul.f32 %v7112, %v7129
        %v7142 = vmul.f32 %v7113, %v7126
        %v7143 = vmul.f32 %v7114, %v7129
        %7156 = vrot.lane.b32.xlu0 %v7132, 111
        %v7157 = vpop.permute.xlu0 %7156
        %7158 = vrot.lane.b32.xlu0 %v7133, 111
        %v7159 = vpop.permute.xlu0 %7158
        %7160 = vrot.lane.b32.xlu0 %v7134, 111
        %v7161 = vpop.permute.xlu0 %7160
        %7162 = vrot.lane.b32.xlu0 %v7135, 111
        %v7163 = vpop.permute.xlu0 %7162
        %7164 = vrot.lane.b32.xlu0 %v7136, 111
        %v7165 = vpop.permute.xlu0 %7164
        %7166 = vrot.lane.b32.xlu0 %v7137, 111
        %v7167 = vpop.permute.xlu0 %7166
        %7168 = vrot.lane.b32.xlu0 %v7138, 111
        %v7169 = vpop.permute.xlu0 %7168
        %7170 = vrot.lane.b32.xlu0 %v7139, 111
        %v7171 = vpop.permute.xlu0 %7170
        %7172 = vrot.lane.b32.xlu0 %v7140, 111
        %v7173 = vpop.permute.xlu0 %7172
        %7174 = vrot.lane.b32.xlu0 %v7141, 111
        %v7175 = vpop.permute.xlu0 %7174
        %7176 = vrot.lane.b32.xlu0 %v7142, 111
        %v7177 = vpop.permute.xlu0 %7176
        %7178 = vrot.lane.b32.xlu0 %v7143, 111
        %v7179 = vpop.permute.xlu0 %7178
        %v7180 = vsel %vm471, %v7157, %v7159
        %v7181 = vsel %vm471, %v7161, %v7163
        %v7182 = vsel %vm471, %v7165, %v7167
        %v7183 = vsel %vm471, %v7169, %v7171
        %v7184 = vsel %vm471, %v7173, %v7175
        %v7185 = vsel %vm471, %v7177, %v7179
        %7198 = vst [vmem:[#allocation2 + $0x6c0] sm:$0xff] %v7180
        %7199 = vst.msk [vmem:[#allocation2 + $0x6c8] sm:$0xff] %vm471, %v7159
        %7200 = vst [vmem:[#allocation2 + $0x6d0] sm:$0xff] %v7181
        %7201 = vst.msk [vmem:[#allocation2 + $0x6d8] sm:$0xff] %vm471, %v7163
        %7202 = vst [vmem:[#allocation2 + $0x6e0] sm:$0xff] %v7182
        %7203 = vst.msk [vmem:[#allocation2 + $0x6e8] sm:$0xff] %vm471, %v7167
        %7204 = vst [vmem:[#allocation2 + $0x6f0] sm:$0xff] %v7183
        %7205 = vst.msk [vmem:[#allocation2 + $0x6f8] sm:$0xff] %vm471, %v7171
        %7206 = vst [vmem:[#allocation2 + $0x700] sm:$0xff] %v7184
        %7207 = vst.msk [vmem:[#allocation2 + $0x708] sm:$0xff] %vm471, %v7175
        %7208 = vst [vmem:[#allocation2 + $0x710] sm:$0xff] %v7185
        %7209 = vst.msk [vmem:[#allocation2 + $0x718] sm:$0xff] %vm471, %v7179
        %v7210 = vld [vmem:[#allocation3] sm:$0xff]
        %v7211 = vld [vmem:[#allocation3 + $0x8] sm:$0xff]
        %v7212 = vld [vmem:[#allocation3 + $0x10] sm:$0xff]
        %v7213 = vld [vmem:[#allocation3 + $0x18] sm:$0xff]
        %v7214 = vld [vmem:[#allocation3 + $0x20] sm:$0xff]
        %v7215 = vld [vmem:[#allocation3 + $0x28] sm:$0xff]
        %v7216 = vld [vmem:[#allocation3 + $0x30] sm:$0xff]
        %v7217 = vld [vmem:[#allocation3 + $0x38] sm:$0xff]
        %v7218 = vld [vmem:[#allocation3 + $0x40] sm:$0xff]
        %v7219 = vld [vmem:[#allocation3 + $0x48] sm:$0xff]
        %v7220 = vld [vmem:[#allocation3 + $0x50] sm:$0xff]
        %v7221 = vld [vmem:[#allocation3 + $0x58] sm:$0xff]
        %v7222 = vld [vmem:[%s738] ss:$8 sm:$0x3]
        %v7224 = vlaneseq
        %v7225 = vshrl.u32 %v7224, 7
        %v7226 = vsub.s32 0, %v7225
        %v7227 = vrot.slane %v7222, %v7226
        %v7228 = vlaneseq
        %v7229 = vshrl.u32 %v7228, 7
        %v7230 = vsub.s32 1, %v7229
        %v7231 = vrot.slane %v7222, %v7230
        %7232 = vrot.lane.b32.xlu0 %v7227, 18
        %v7233 = vpop.permute.xlu0 %7232
        %7234 = vrot.lane.b32.xlu0 %v7231, 18
        %v7235 = vpop.permute.xlu0 %7234
        %v7236 = vsel %vm456, %v7233, %v7235
        %v7239 = vmul.f32 %v7210, %v7233
        %v7240 = vmul.f32 %v7211, %v7236
        %v7241 = vmul.f32 %v7212, %v7233
        %v7242 = vmul.f32 %v7213, %v7236
        %v7243 = vmul.f32 %v7214, %v7233
        %v7244 = vmul.f32 %v7215, %v7236
        %v7245 = vmul.f32 %v7216, %v7233
        %v7246 = vmul.f32 %v7217, %v7236
        %v7247 = vmul.f32 %v7218, %v7233
        %v7248 = vmul.f32 %v7219, %v7236
        %v7249 = vmul.f32 %v7220, %v7233
        %v7250 = vmul.f32 %v7221, %v7236
        %7263 = vrot.lane.b32.xlu0 %v7239, 110
        %v7264 = vpop.permute.xlu0 %7263
        %7265 = vrot.lane.b32.xlu0 %v7240, 110
        %v7266 = vpop.permute.xlu0 %7265
        %7267 = vrot.lane.b32.xlu0 %v7241, 110
        %v7268 = vpop.permute.xlu0 %7267
        %7269 = vrot.lane.b32.xlu0 %v7242, 110
        %v7270 = vpop.permute.xlu0 %7269
        %7271 = vrot.lane.b32.xlu0 %v7243, 110
        %v7272 = vpop.permute.xlu0 %7271
        %7273 = vrot.lane.b32.xlu0 %v7244, 110
        %v7274 = vpop.permute.xlu0 %7273
        %7275 = vrot.lane.b32.xlu0 %v7245, 110
        %v7276 = vpop.permute.xlu0 %7275
        %7277 = vrot.lane.b32.xlu0 %v7246, 110
        %v7278 = vpop.permute.xlu0 %7277
        %7279 = vrot.lane.b32.xlu0 %v7247, 110
        %v7280 = vpop.permute.xlu0 %7279
        %7281 = vrot.lane.b32.xlu0 %v7248, 110
        %v7282 = vpop.permute.xlu0 %7281
        %7283 = vrot.lane.b32.xlu0 %v7249, 110
        %v7284 = vpop.permute.xlu0 %7283
        %7285 = vrot.lane.b32.xlu0 %v7250, 110
        %v7286 = vpop.permute.xlu0 %7285
        %v7287 = vsel %vm448, %v7264, %v7266
        %v7288 = vsel %vm448, %v7268, %v7270
        %v7289 = vsel %vm448, %v7272, %v7274
        %v7290 = vsel %vm448, %v7276, %v7278
        %v7291 = vsel %vm448, %v7280, %v7282
        %v7292 = vsel %vm448, %v7284, %v7286
        %7305 = vst [vmem:[#allocation2 + $0x720] sm:$0xff] %v7287
        %7306 = vst.msk [vmem:[#allocation2 + $0x728] sm:$0xff] %vm448, %v7266
        %7307 = vst [vmem:[#allocation2 + $0x730] sm:$0xff] %v7288
        %7308 = vst.msk [vmem:[#allocation2 + $0x738] sm:$0xff] %vm448, %v7270
        %7309 = vst [vmem:[#allocation2 + $0x740] sm:$0xff] %v7289
        %7310 = vst.msk [vmem:[#allocation2 + $0x748] sm:$0xff] %vm448, %v7274
        %7311 = vst [vmem:[#allocation2 + $0x750] sm:$0xff] %v7290
        %7312 = vst.msk [vmem:[#allocation2 + $0x758] sm:$0xff] %vm448, %v7278
        %7313 = vst [vmem:[#allocation2 + $0x760] sm:$0xff] %v7291
        %7314 = vst.msk [vmem:[#allocation2 + $0x768] sm:$0xff] %vm448, %v7282
        %7315 = vst [vmem:[#allocation2 + $0x770] sm:$0xff] %v7292
        %7316 = vst.msk [vmem:[#allocation2 + $0x778] sm:$0xff] %vm448, %v7286
        %v7317 = vld [vmem:[#allocation3] sm:$0xff]
        %v7318 = vld [vmem:[#allocation3 + $0x8] sm:$0xff]
        %v7319 = vld [vmem:[#allocation3 + $0x10] sm:$0xff]
        %v7320 = vld [vmem:[#allocation3 + $0x18] sm:$0xff]
        %v7321 = vld [vmem:[#allocation3 + $0x20] sm:$0xff]
        %v7322 = vld [vmem:[#allocation3 + $0x28] sm:$0xff]
        %v7323 = vld [vmem:[#allocation3 + $0x30] sm:$0xff]
        %v7324 = vld [vmem:[#allocation3 + $0x38] sm:$0xff]
        %v7325 = vld [vmem:[#allocation3 + $0x40] sm:$0xff]
        %v7326 = vld [vmem:[#allocation3 + $0x48] sm:$0xff]
        %v7327 = vld [vmem:[#allocation3 + $0x50] sm:$0xff]
        %v7328 = vld [vmem:[#allocation3 + $0x58] sm:$0xff]
        %v7329 = vld [vmem:[%s759] ss:$8 sm:$0x3]
        %v7331 = vlaneseq
        %v7332 = vshrl.u32 %v7331, 7
        %v7333 = vsub.s32 0, %v7332
        %v7334 = vrot.slane %v7329, %v7333
        %v7335 = vlaneseq
        %v7336 = vshrl.u32 %v7335, 7
        %v7337 = vsub.s32 1, %v7336
        %v7338 = vrot.slane %v7329, %v7337
        %7339 = vrot.lane.b32.xlu0 %v7334, 30
        %v7340 = vpop.permute.xlu0 %7339
        %7341 = vrot.lane.b32.xlu0 %v7338, 30
        %v7342 = vpop.permute.xlu0 %7341
        %v7343 = vsel %vm433, %v7340, %v7342
        %v7346 = vmul.f32 %v7317, %v7340
        %v7347 = vmul.f32 %v7318, %v7343
        %v7348 = vmul.f32 %v7319, %v7340
        %v7349 = vmul.f32 %v7320, %v7343
        %v7350 = vmul.f32 %v7321, %v7340
        %v7351 = vmul.f32 %v7322, %v7343
        %v7352 = vmul.f32 %v7323, %v7340
        %v7353 = vmul.f32 %v7324, %v7343
        %v7354 = vmul.f32 %v7325, %v7340
        %v7355 = vmul.f32 %v7326, %v7343
        %v7356 = vmul.f32 %v7327, %v7340
        %v7357 = vmul.f32 %v7328, %v7343
        %7370 = vrot.lane.b32.xlu0 %v7346, 98
        %v7371 = vpop.permute.xlu0 %7370
        %7372 = vrot.lane.b32.xlu0 %v7347, 98
        %v7373 = vpop.permute.xlu0 %7372
        %7374 = vrot.lane.b32.xlu0 %v7348, 98
        %v7375 = vpop.permute.xlu0 %7374
        %7376 = vrot.lane.b32.xlu0 %v7349, 98
        %v7377 = vpop.permute.xlu0 %7376
        %7378 = vrot.lane.b32.xlu0 %v7350, 98
        %v7379 = vpop.permute.xlu0 %7378
        %7380 = vrot.lane.b32.xlu0 %v7351, 98
        %v7381 = vpop.permute.xlu0 %7380
        %7382 = vrot.lane.b32.xlu0 %v7352, 98
        %v7383 = vpop.permute.xlu0 %7382
        %7384 = vrot.lane.b32.xlu0 %v7353, 98
        %v7385 = vpop.permute.xlu0 %7384
        %7386 = vrot.lane.b32.xlu0 %v7354, 98
        %v7387 = vpop.permute.xlu0 %7386
        %7388 = vrot.lane.b32.xlu0 %v7355, 98
        %v7389 = vpop.permute.xlu0 %7388
        %7390 = vrot.lane.b32.xlu0 %v7356, 98
        %v7391 = vpop.permute.xlu0 %7390
        %7392 = vrot.lane.b32.xlu0 %v7357, 98
        %v7393 = vpop.permute.xlu0 %7392
        %v7394 = vsel %vm425, %v7371, %v7373
        %v7395 = vsel %vm425, %v7375, %v7377
        %v7396 = vsel %vm425, %v7379, %v7381
        %v7397 = vsel %vm425, %v7383, %v7385
        %v7398 = vsel %vm425, %v7387, %v7389
        %v7399 = vsel %vm425, %v7391, %v7393
        %7412 = vst [vmem:[#allocation2 + $0x780] sm:$0xff] %v7394
        %7413 = vst.msk [vmem:[#allocation2 + $0x788] sm:$0xff] %vm425, %v7373
        %7414 = vst [vmem:[#allocation2 + $0x790] sm:$0xff] %v7395
        %7415 = vst.msk [vmem:[#allocation2 + $0x798] sm:$0xff] %vm425, %v7377
        %7416 = vst [vmem:[#allocation2 + $0x7a0] sm:$0xff] %v7396
        %7417 = vst.msk [vmem:[#allocation2 + $0x7a8] sm:$0xff] %vm425, %v7381
        %7418 = vst [vmem:[#allocation2 + $0x7b0] sm:$0xff] %v7397
        %7419 = vst.msk [vmem:[#allocation2 + $0x7b8] sm:$0xff] %vm425, %v7385
        %7420 = vst [vmem:[#allocation2 + $0x7c0] sm:$0xff] %v7398
        %7421 = vst.msk [vmem:[#allocation2 + $0x7c8] sm:$0xff] %vm425, %v7389
        %7422 = vst [vmem:[#allocation2 + $0x7d0] sm:$0xff] %v7399
        %7423 = vst.msk [vmem:[#allocation2 + $0x7d8] sm:$0xff] %vm425, %v7393
        %v7424 = vld [vmem:[#allocation3] sm:$0xff]
        %v7425 = vld [vmem:[#allocation3 + $0x8] sm:$0xff]
        %v7426 = vld [vmem:[#allocation3 + $0x10] sm:$0xff]
        %v7427 = vld [vmem:[#allocation3 + $0x18] sm:$0xff]
        %v7428 = vld [vmem:[#allocation3 + $0x20] sm:$0xff]
        %v7429 = vld [vmem:[#allocation3 + $0x28] sm:$0xff]
        %v7430 = vld [vmem:[#allocation3 + $0x30] sm:$0xff]
        %v7431 = vld [vmem:[#allocation3 + $0x38] sm:$0xff]
        %v7432 = vld [vmem:[#allocation3 + $0x40] sm:$0xff]
        %v7433 = vld [vmem:[#allocation3 + $0x48] sm:$0xff]
        %v7434 = vld [vmem:[#allocation3 + $0x50] sm:$0xff]
        %v7435 = vld [vmem:[#allocation3 + $0x58] sm:$0xff]
        %v7436 = vld [vmem:[%s780] ss:$8 sm:$0x3]
        %v7438 = vlaneseq
        %v7439 = vshrl.u32 %v7438, 7
        %v7440 = vsub.s32 0, %v7439
        %v7441 = vrot.slane %v7436, %v7440
        %v7442 = vlaneseq
        %v7443 = vshrl.u32 %v7442, 7
        %v7444 = vsub.s32 1, %v7443
        %v7445 = vrot.slane %v7436, %v7444
        %7446 = vrot.lane.b32.xlu0 %v7441, 31
        %v7447 = vpop.permute.xlu0 %7446
        %7448 = vrot.lane.b32.xlu0 %v7445, 31
        %v7449 = vpop.permute.xlu0 %7448
        %v7450 = vsel %vm410, %v7447, %v7449
        %v7453 = vmul.f32 %v7424, %v7447
        %v7454 = vmul.f32 %v7425, %v7450
        %v7455 = vmul.f32 %v7426, %v7447
        %v7456 = vmul.f32 %v7427, %v7450
        %v7457 = vmul.f32 %v7428, %v7447
        %v7458 = vmul.f32 %v7429, %v7450
        %v7459 = vmul.f32 %v7430, %v7447
        %v7460 = vmul.f32 %v7431, %v7450
        %v7461 = vmul.f32 %v7432, %v7447
        %v7462 = vmul.f32 %v7433, %v7450
        %v7463 = vmul.f32 %v7434, %v7447
        %v7464 = vmul.f32 %v7435, %v7450
        %7477 = vrot.lane.b32.xlu0 %v7453, 97
        %v7478 = vpop.permute.xlu0 %7477
        %7479 = vrot.lane.b32.xlu0 %v7454, 97
        %v7480 = vpop.permute.xlu0 %7479
        %7481 = vrot.lane.b32.xlu0 %v7455, 97
        %v7482 = vpop.permute.xlu0 %7481
        %7483 = vrot.lane.b32.xlu0 %v7456, 97
        %v7484 = vpop.permute.xlu0 %7483
        %7485 = vrot.lane.b32.xlu0 %v7457, 97
        %v7486 = vpop.permute.xlu0 %7485
        %7487 = vrot.lane.b32.xlu0 %v7458, 97
        %v7488 = vpop.permute.xlu0 %7487
        %7489 = vrot.lane.b32.xlu0 %v7459, 97
        %v7490 = vpop.permute.xlu0 %7489
        %7491 = vrot.lane.b32.xlu0 %v7460, 97
        %v7492 = vpop.permute.xlu0 %7491
        %7493 = vrot.lane.b32.xlu0 %v7461, 97
        %v7494 = vpop.permute.xlu0 %7493
        %7495 = vrot.lane.b32.xlu0 %v7462, 97
        %v7496 = vpop.permute.xlu0 %7495
        %7497 = vrot.lane.b32.xlu0 %v7463, 97
        %v7498 = vpop.permute.xlu0 %7497
        %7499 = vrot.lane.b32.xlu0 %v7464, 97
        %v7500 = vpop.permute.xlu0 %7499
        %v7501 = vsel %vm402, %v7478, %v7480
        %v7502 = vsel %vm402, %v7482, %v7484
        %v7503 = vsel %vm402, %v7486, %v7488
        %v7504 = vsel %vm402, %v7490, %v7492
        %v7505 = vsel %vm402, %v7494, %v7496
        %v7506 = vsel %vm402, %v7498, %v7500
        %7519 = vst [vmem:[#allocation2 + $0x7e0] sm:$0xff] %v7501
        %7520 = vst.msk [vmem:[#allocation2 + $0x7e8] sm:$0xff] %vm402, %v7480
        %7521 = vst [vmem:[#allocation2 + $0x7f0] sm:$0xff] %v7502
        %7522 = vst.msk [vmem:[#allocation2 + $0x7f8] sm:$0xff] %vm402, %v7484
        %7523 = vst [vmem:[#allocation2 + $0x800] sm:$0xff] %v7503
        %7524 = vst.msk [vmem:[#allocation2 + $0x808] sm:$0xff] %vm402, %v7488
        %7525 = vst [vmem:[#allocation2 + $0x810] sm:$0xff] %v7504
        %7526 = vst.msk [vmem:[#allocation2 + $0x818] sm:$0xff] %vm402, %v7492
        %7527 = vst [vmem:[#allocation2 + $0x820] sm:$0xff] %v7505
        %7528 = vst.msk [vmem:[#allocation2 + $0x828] sm:$0xff] %vm402, %v7496
        %7529 = vst [vmem:[#allocation2 + $0x830] sm:$0xff] %v7506
        %7530 = vst.msk [vmem:[#allocation2 + $0x838] sm:$0xff] %vm402, %v7500
        %v7531 = vld [vmem:[#allocation3] sm:$0xff]
        %v7532 = vld [vmem:[#allocation3 + $0x8] sm:$0xff]
        %v7533 = vld [vmem:[#allocation3 + $0x10] sm:$0xff]
        %v7534 = vld [vmem:[#allocation3 + $0x18] sm:$0xff]
        %v7535 = vld [vmem:[#allocation3 + $0x20] sm:$0xff]
        %v7536 = vld [vmem:[#allocation3 + $0x28] sm:$0xff]
        %v7537 = vld [vmem:[#allocation3 + $0x30] sm:$0xff]
        %v7538 = vld [vmem:[#allocation3 + $0x38] sm:$0xff]
        %v7539 = vld [vmem:[#allocation3 + $0x40] sm:$0xff]
        %v7540 = vld [vmem:[#allocation3 + $0x48] sm:$0xff]
        %v7541 = vld [vmem:[#allocation3 + $0x50] sm:$0xff]
        %v7542 = vld [vmem:[#allocation3 + $0x58] sm:$0xff]
        %v7543 = vld [vmem:[%s801] ss:$8 sm:$0x3]
        %v7545 = vlaneseq
        %v7546 = vshrl.u32 %v7545, 7
        %v7547 = vsub.s32 0, %v7546
        %v7548 = vrot.slane %v7543, %v7547
        %v7549 = vlaneseq
        %v7550 = vshrl.u32 %v7549, 7
        %v7551 = vsub.s32 1, %v7550
        %v7552 = vrot.slane %v7543, %v7551
        %7553 = vrot.lane.b32.xlu0 %v7548, 32
        %v7554 = vpop.permute.xlu0 %7553
        %7555 = vrot.lane.b32.xlu0 %v7552, 32
        %v7556 = vpop.permute.xlu0 %7555
        %v7557 = vsel %vm387, %v7554, %v7556
        %v7560 = vmul.f32 %v7531, %v7554
        %v7561 = vmul.f32 %v7532, %v7557
        %v7562 = vmul.f32 %v7533, %v7554
        %v7563 = vmul.f32 %v7534, %v7557
        %v7564 = vmul.f32 %v7535, %v7554
        %v7565 = vmul.f32 %v7536, %v7557
        %v7566 = vmul.f32 %v7537, %v7554
        %v7567 = vmul.f32 %v7538, %v7557
        %v7568 = vmul.f32 %v7539, %v7554
        %v7569 = vmul.f32 %v7540, %v7557
        %v7570 = vmul.f32 %v7541, %v7554
        %v7571 = vmul.f32 %v7542, %v7557
        %7584 = vrot.lane.b32.xlu0 %v7560, 96
        %v7585 = vpop.permute.xlu0 %7584
        %7586 = vrot.lane.b32.xlu0 %v7561, 96
        %v7587 = vpop.permute.xlu0 %7586
        %7588 = vrot.lane.b32.xlu0 %v7562, 96
        %v7589 = vpop.permute.xlu0 %7588
        %7590 = vrot.lane.b32.xlu0 %v7563, 96
        %v7591 = vpop.permute.xlu0 %7590
        %7592 = vrot.lane.b32.xlu0 %v7564, 96
        %v7593 = vpop.permute.xlu0 %7592
        %7594 = vrot.lane.b32.xlu0 %v7565, 96
        %v7595 = vpop.permute.xlu0 %7594
        %7596 = vrot.lane.b32.xlu0 %v7566, 96
        %v7597 = vpop.permute.xlu0 %7596
        %7598 = vrot.lane.b32.xlu0 %v7567, 96
        %v7599 = vpop.permute.xlu0 %7598
        %7600 = vrot.lane.b32.xlu0 %v7568, 96
        %v7601 = vpop.permute.xlu0 %7600
        %7602 = vrot.lane.b32.xlu0 %v7569, 96
        %v7603 = vpop.permute.xlu0 %7602
        %7604 = vrot.lane.b32.xlu0 %v7570, 96
        %v7605 = vpop.permute.xlu0 %7604
        %7606 = vrot.lane.b32.xlu0 %v7571, 96
        %v7607 = vpop.permute.xlu0 %7606
        %v7608 = vsel %vm379, %v7585, %v7587
        %v7609 = vsel %vm379, %v7589, %v7591
        %v7610 = vsel %vm379, %v7593, %v7595
        %v7611 = vsel %vm379, %v7597, %v7599
        %v7612 = vsel %vm379, %v7601, %v7603
        %v7613 = vsel %vm379, %v7605, %v7607
        %7626 = vst [vmem:[#allocation2 + $0x840] sm:$0xff] %v7608
        %7627 = vst.msk [vmem:[#allocation2 + $0x848] sm:$0xff] %vm379, %v7587
        %7628 = vst [vmem:[#allocation2 + $0x850] sm:$0xff] %v7609
        %7629 = vst.msk [vmem:[#allocation2 + $0x858] sm:$0xff] %vm379, %v7591
        %7630 = vst [vmem:[#allocation2 + $0x860] sm:$0xff] %v7610
        %7631 = vst.msk [vmem:[#allocation2 + $0x868] sm:$0xff] %vm379, %v7595
        %7632 = vst [vmem:[#allocation2 + $0x870] sm:$0xff] %v7611
        %7633 = vst.msk [vmem:[#allocation2 + $0x878] sm:$0xff] %vm379, %v7599
        %7634 = vst [vmem:[#allocation2 + $0x880] sm:$0xff] %v7612
        %7635 = vst.msk [vmem:[#allocation2 + $0x888] sm:$0xff] %vm379, %v7603
        %7636 = vst [vmem:[#allocation2 + $0x890] sm:$0xff] %v7613
        %7637 = vst.msk [vmem:[#allocation2 + $0x898] sm:$0xff] %vm379, %v7607
        %v7638 = vld [vmem:[#allocation3] sm:$0xff]
        %v7639 = vld [vmem:[#allocation3 + $0x8] sm:$0xff]
        %v7640 = vld [vmem:[#allocation3 + $0x10] sm:$0xff]
        %v7641 = vld [vmem:[#allocation3 + $0x18] sm:$0xff]
        %v7642 = vld [vmem:[#allocation3 + $0x20] sm:$0xff]
        %v7643 = vld [vmem:[#allocation3 + $0x28] sm:$0xff]
        %v7644 = vld [vmem:[#allocation3 + $0x30] sm:$0xff]
        %v7645 = vld [vmem:[#allocation3 + $0x38] sm:$0xff]
        %v7646 = vld [vmem:[#allocation3 + $0x40] sm:$0xff]
        %v7647 = vld [vmem:[#allocation3 + $0x48] sm:$0xff]
        %v7648 = vld [vmem:[#allocation3 + $0x50] sm:$0xff]
        %v7649 = vld [vmem:[#allocation3 + $0x58] sm:$0xff]
        %v7650 = vld [vmem:[%s822] ss:$8 sm:$0x3]
        %v7652 = vlaneseq
        %v7653 = vshrl.u32 %v7652, 7
        %v7654 = vsub.s32 0, %v7653
        %v7655 = vrot.slane %v7650, %v7654
        %v7656 = vlaneseq
        %v7657 = vshrl.u32 %v7656, 7
        %v7658 = vsub.s32 1, %v7657
        %v7659 = vrot.slane %v7650, %v7658
        %7660 = vrot.lane.b32.xlu0 %v7655, 33
        %v7661 = vpop.permute.xlu0 %7660
        %7662 = vrot.lane.b32.xlu0 %v7659, 33
        %v7663 = vpop.permute.xlu0 %7662
        %v7664 = vsel %vm364, %v7661, %v7663
        %v7667 = vmul.f32 %v7638, %v7661
        %v7668 = vmul.f32 %v7639, %v7664
        %v7669 = vmul.f32 %v7640, %v7661
        %v7670 = vmul.f32 %v7641, %v7664
        %v7671 = vmul.f32 %v7642, %v7661
        %v7672 = vmul.f32 %v7643, %v7664
        %v7673 = vmul.f32 %v7644, %v7661
        %v7674 = vmul.f32 %v7645, %v7664
        %v7675 = vmul.f32 %v7646, %v7661
        %v7676 = vmul.f32 %v7647, %v7664
        %v7677 = vmul.f32 %v7648, %v7661
        %v7678 = vmul.f32 %v7649, %v7664
        %7691 = vrot.lane.b32.xlu0 %v7667, 95
        %v7692 = vpop.permute.xlu0 %7691
        %7693 = vrot.lane.b32.xlu0 %v7668, 95
        %v7694 = vpop.permute.xlu0 %7693
        %7695 = vrot.lane.b32.xlu0 %v7669, 95
        %v7696 = vpop.permute.xlu0 %7695
        %7697 = vrot.lane.b32.xlu0 %v7670, 95
        %v7698 = vpop.permute.xlu0 %7697
        %7699 = vrot.lane.b32.xlu0 %v7671, 95
        %v7700 = vpop.permute.xlu0 %7699
        %7701 = vrot.lane.b32.xlu0 %v7672, 95
        %v7702 = vpop.permute.xlu0 %7701
        %7703 = vrot.lane.b32.xlu0 %v7673, 95
        %v7704 = vpop.permute.xlu0 %7703
        %7705 = vrot.lane.b32.xlu0 %v7674, 95
        %v7706 = vpop.permute.xlu0 %7705
        %7707 = vrot.lane.b32.xlu0 %v7675, 95
        %v7708 = vpop.permute.xlu0 %7707
        %7709 = vrot.lane.b32.xlu0 %v7676, 95
        %v7710 = vpop.permute.xlu0 %7709
        %7711 = vrot.lane.b32.xlu0 %v7677, 95
        %v7712 = vpop.permute.xlu0 %7711
        %7713 = vrot.lane.b32.xlu0 %v7678, 95
        %v7714 = vpop.permute.xlu0 %7713
        %v7715 = vsel %vm356, %v7692, %v7694
        %v7716 = vsel %vm356, %v7696, %v7698
        %v7717 = vsel %vm356, %v7700, %v7702
        %v7718 = vsel %vm356, %v7704, %v7706
        %v7719 = vsel %vm356, %v7708, %v7710
        %v7720 = vsel %vm356, %v7712, %v7714
        %7733 = vst [vmem:[#allocation2 + $0x8a0] sm:$0xff] %v7715
        %7734 = vst.msk [vmem:[#allocation2 + $0x8a8] sm:$0xff] %vm356, %v7694
        %7735 = vst [vmem:[#allocation2 + $0x8b0] sm:$0xff] %v7716
        %7736 = vst.msk [vmem:[#allocation2 + $0x8b8] sm:$0xff] %vm356, %v7698
        %7737 = vst [vmem:[#allocation2 + $0x8c0] sm:$0xff] %v7717
        %7738 = vst.msk [vmem:[#allocation2 + $0x8c8] sm:$0xff] %vm356, %v7702
        %7739 = vst [vmem:[#allocation2 + $0x8d0] sm:$0xff] %v7718
        %7740 = vst.msk [vmem:[#allocation2 + $0x8d8] sm:$0xff] %vm356, %v7706
        %7741 = vst [vmem:[#allocation2 + $0x8e0] sm:$0xff] %v7719
        %7742 = vst.msk [vmem:[#allocation2 + $0x8e8] sm:$0xff] %vm356, %v7710
        %7743 = vst [vmem:[#allocation2 + $0x8f0] sm:$0xff] %v7720
        %7744 = vst.msk [vmem:[#allocation2 + $0x8f8] sm:$0xff] %vm356, %v7714
        %v7745 = vld [vmem:[#allocation3] sm:$0xff]
        %v7746 = vld [vmem:[#allocation3 + $0x8] sm:$0xff]
        %v7747 = vld [vmem:[#allocation3 + $0x10] sm:$0xff]
        %v7748 = vld [vmem:[#allocation3 + $0x18] sm:$0xff]
        %v7749 = vld [vmem:[#allocation3 + $0x20] sm:$0xff]
        %v7750 = vld [vmem:[#allocation3 + $0x28] sm:$0xff]
        %v7751 = vld [vmem:[#allocation3 + $0x30] sm:$0xff]
        %v7752 = vld [vmem:[#allocation3 + $0x38] sm:$0xff]
        %v7753 = vld [vmem:[#allocation3 + $0x40] sm:$0xff]
        %v7754 = vld [vmem:[#allocation3 + $0x48] sm:$0xff]
        %v7755 = vld [vmem:[#allocation3 + $0x50] sm:$0xff]
        %v7756 = vld [vmem:[#allocation3 + $0x58] sm:$0xff]
        %v7757 = vld [vmem:[%s843] ss:$8 sm:$0x3]
        %v7759 = vlaneseq
        %v7760 = vshrl.u32 %v7759, 7
        %v7761 = vsub.s32 0, %v7760
        %v7762 = vrot.slane %v7757, %v7761
        %v7763 = vlaneseq
        %v7764 = vshrl.u32 %v7763, 7
        %v7765 = vsub.s32 1, %v7764
        %v7766 = vrot.slane %v7757, %v7765
        %7767 = vrot.lane.b32.xlu0 %v7762, 34
        %v7768 = vpop.permute.xlu0 %7767
        %7769 = vrot.lane.b32.xlu0 %v7766, 34
        %v7770 = vpop.permute.xlu0 %7769
        %v7771 = vsel %vm340, %v7768, %v7770
        %v7774 = vmul.f32 %v7745, %v7768
        %v7775 = vmul.f32 %v7746, %v7771
        %v7776 = vmul.f32 %v7747, %v7768
        %v7777 = vmul.f32 %v7748, %v7771
        %v7778 = vmul.f32 %v7749, %v7768
        %v7779 = vmul.f32 %v7750, %v7771
        %v7780 = vmul.f32 %v7751, %v7768
        %v7781 = vmul.f32 %v7752, %v7771
        %v7782 = vmul.f32 %v7753, %v7768
        %v7783 = vmul.f32 %v7754, %v7771
        %v7784 = vmul.f32 %v7755, %v7768
        %v7785 = vmul.f32 %v7756, %v7771
        %7798 = vrot.lane.b32.xlu0 %v7774, 94
        %v7799 = vpop.permute.xlu0 %7798
        %7800 = vrot.lane.b32.xlu0 %v7775, 94
        %v7801 = vpop.permute.xlu0 %7800
        %7802 = vrot.lane.b32.xlu0 %v7776, 94
        %v7803 = vpop.permute.xlu0 %7802
        %7804 = vrot.lane.b32.xlu0 %v7777, 94
        %v7805 = vpop.permute.xlu0 %7804
        %7806 = vrot.lane.b32.xlu0 %v7778, 94
        %v7807 = vpop.permute.xlu0 %7806
        %7808 = vrot.lane.b32.xlu0 %v7779, 94
        %v7809 = vpop.permute.xlu0 %7808
        %7810 = vrot.lane.b32.xlu0 %v7780, 94
        %v7811 = vpop.permute.xlu0 %7810
        %7812 = vrot.lane.b32.xlu0 %v7781, 94
        %v7813 = vpop.permute.xlu0 %7812
        %7814 = vrot.lane.b32.xlu0 %v7782, 94
        %v7815 = vpop.permute.xlu0 %7814
        %7816 = vrot.lane.b32.xlu0 %v7783, 94
        %v7817 = vpop.permute.xlu0 %7816
        %7818 = vrot.lane.b32.xlu0 %v7784, 94
        %v7819 = vpop.permute.xlu0 %7818
        %7820 = vrot.lane.b32.xlu0 %v7785, 94
        %v7821 = vpop.permute.xlu0 %7820
        %v7822 = vsel %vm332, %v7799, %v7801
        %v7823 = vsel %vm332, %v7803, %v7805
        %v7824 = vsel %vm332, %v7807, %v7809
        %v7825 = vsel %vm332, %v7811, %v7813
        %v7826 = vsel %vm332, %v7815, %v7817
        %v7827 = vsel %vm332, %v7819, %v7821
        %7840 = vst [vmem:[#allocation2 + $0x900] sm:$0xff] %v7822
        %7841 = vst.msk [vmem:[#allocation2 + $0x908] sm:$0xff] %vm332, %v7801
        %7842 = vst [vmem:[#allocation2 + $0x910] sm:$0xff] %v7823
        %7843 = vst.msk [vmem:[#allocation2 + $0x918] sm:$0xff] %vm332, %v7805
        %7844 = vst [vmem:[#allocation2 + $0x920] sm:$0xff] %v7824
        %7845 = vst.msk [vmem:[#allocation2 + $0x928] sm:$0xff] %vm332, %v7809
        %7846 = vst [vmem:[#allocation2 + $0x930] sm:$0xff] %v7825
        %7847 = vst.msk [vmem:[#allocation2 + $0x938] sm:$0xff] %vm332, %v7813
        %7848 = vst [vmem:[#allocation2 + $0x940] sm:$0xff] %v7826
        %7849 = vst.msk [vmem:[#allocation2 + $0x948] sm:$0xff] %vm332, %v7817
        %7850 = vst [vmem:[#allocation2 + $0x950] sm:$0xff] %v7827
        %7851 = vst.msk [vmem:[#allocation2 + $0x958] sm:$0xff] %vm332, %v7821
        %v7852 = vld [vmem:[%s6] sm:$0xff]
        %v7853 = vld [vmem:[%s6 + $0x8] sm:$0x3]
        %v7854 = vld [vmem:[#allocation2] sm:$0xff]
        %v7855 = vld [vmem:[#allocation2 + $0x8] sm:$0xff]
        %v7856 = vld [vmem:[#allocation2 + $0x10] sm:$0xff]
        %v7857 = vld [vmem:[#allocation2 + $0x18] sm:$0xff]
        %v7858 = vld [vmem:[#allocation2 + $0x20] sm:$0xff]
        %v7859 = vld [vmem:[#allocation2 + $0x28] sm:$0xff]
        %v7860 = vld [vmem:[#allocation2 + $0x30] sm:$0xff]
        %v7861 = vld [vmem:[#allocation2 + $0x38] sm:$0xff]
        %v7862 = vld [vmem:[#allocation2 + $0x40] sm:$0xff]
        %v7863 = vld [vmem:[#allocation2 + $0x48] sm:$0xff]
        %v7864 = vld [vmem:[#allocation2 + $0x50] sm:$0xff]
        %v7865 = vld [vmem:[#allocation2 + $0x58] sm:$0xff]
        %v7866 = vld [vmem:[#allocation2 + $0x60] sm:$0xff]
        %v7867 = vld [vmem:[#allocation2 + $0x68] sm:$0xff]
        %v7868 = vld [vmem:[#allocation2 + $0x70] sm:$0xff]
        %v7869 = vld [vmem:[#allocation2 + $0x78] sm:$0xff]
        %v7870 = vld [vmem:[#allocation2 + $0x80] sm:$0xff]
        %v7871 = vld [vmem:[#allocation2 + $0x88] sm:$0xff]
        %v7872 = vld [vmem:[#allocation2 + $0x90] sm:$0xff]
        %v7873 = vld [vmem:[#allocation2 + $0x98] sm:$0xff]
        %v7874 = vld [vmem:[#allocation2 + $0xa0] sm:$0xff]
        %v7875 = vld [vmem:[#allocation2 + $0xa8] sm:$0xff]
        %v7876 = vld [vmem:[#allocation2 + $0xb0] sm:$0xff]
        %v7877 = vld [vmem:[#allocation2 + $0xb8] sm:$0xff]
        %v7878 = vld [vmem:[#allocation2 + $0xc0] sm:$0xff]
        %v7879 = vld [vmem:[#allocation2 + $0xc8] sm:$0xff]
        %v7880 = vld [vmem:[#allocation2 + $0xd0] sm:$0xff]
        %v7881 = vld [vmem:[#allocation2 + $0xd8] sm:$0xff]
        %v7882 = vld [vmem:[#allocation2 + $0xe0] sm:$0xff]
        %v7883 = vld [vmem:[#allocation2 + $0xe8] sm:$0xff]
        %v7884 = vld [vmem:[#allocation2 + $0xf0] sm:$0xff]
        %v7885 = vld [vmem:[#allocation2 + $0xf8] sm:$0xff]
        %v7886 = vld [vmem:[#allocation2 + $0x100] sm:$0xff]
        %v7887 = vld [vmem:[#allocation2 + $0x108] sm:$0xff]
        %v7888 = vld [vmem:[#allocation2 + $0x110] sm:$0xff]
        %v7889 = vld [vmem:[#allocation2 + $0x118] sm:$0xff]
        %v7890 = vld [vmem:[#allocation2 + $0x120] sm:$0xff]
        %v7891 = vld [vmem:[#allocation2 + $0x128] sm:$0xff]
        %v7892 = vld [vmem:[#allocation2 + $0x130] sm:$0xff]
        %v7893 = vld [vmem:[#allocation2 + $0x138] sm:$0xff]
        %v7894 = vld [vmem:[#allocation2 + $0x140] sm:$0xff]
        %v7895 = vld [vmem:[#allocation2 + $0x148] sm:$0xff]
        %v7896 = vld [vmem:[#allocation2 + $0x150] sm:$0xff]
        %v7897 = vld [vmem:[#allocation2 + $0x158] sm:$0xff]
        %v7898 = vld [vmem:[#allocation2 + $0x160] sm:$0xff]
        %v7899 = vld [vmem:[#allocation2 + $0x168] sm:$0xff]
        %v7900 = vld [vmem:[#allocation2 + $0x170] sm:$0xff]
        %v7901 = vld [vmem:[#allocation2 + $0x178] sm:$0xff]
        %v7902 = vld [vmem:[#allocation2 + $0x180] sm:$0xff]
        %v7903 = vld [vmem:[#allocation2 + $0x188] sm:$0xff]
        %v7904 = vld [vmem:[#allocation2 + $0x190] sm:$0xff]
        %v7905 = vld [vmem:[#allocation2 + $0x198] sm:$0xff]
        %v7906 = vld [vmem:[#allocation2 + $0x1a0] sm:$0xff]
        %v7907 = vld [vmem:[#allocation2 + $0x1a8] sm:$0xff]
        %v7908 = vld [vmem:[#allocation2 + $0x1b0] sm:$0xff]
        %v7909 = vld [vmem:[#allocation2 + $0x1b8] sm:$0xff]
        %v7910 = vld [vmem:[#allocation2 + $0x1c0] sm:$0xff]
        %v7911 = vld [vmem:[#allocation2 + $0x1c8] sm:$0xff]
        %v7912 = vld [vmem:[#allocation2 + $0x1d0] sm:$0xff]
        %v7913 = vld [vmem:[#allocation2 + $0x1d8] sm:$0xff]
        %v7914 = vld [vmem:[#allocation2 + $0x1e0] sm:$0xff]
        %v7915 = vld [vmem:[#allocation2 + $0x1e8] sm:$0xff]
        %v7916 = vld [vmem:[#allocation2 + $0x1f0] sm:$0xff]
        %v7917 = vld [vmem:[#allocation2 + $0x1f8] sm:$0xff]
        %v7918 = vld [vmem:[#allocation2 + $0x200] sm:$0xff]
        %v7919 = vld [vmem:[#allocation2 + $0x208] sm:$0xff]
        %v7920 = vld [vmem:[#allocation2 + $0x210] sm:$0xff]
        %v7921 = vld [vmem:[#allocation2 + $0x218] sm:$0xff]
        %v7922 = vld [vmem:[#allocation2 + $0x220] sm:$0xff]
        %v7923 = vld [vmem:[#allocation2 + $0x228] sm:$0xff]
        %v7924 = vld [vmem:[#allocation2 + $0x230] sm:$0xff]
        %v7925 = vld [vmem:[#allocation2 + $0x238] sm:$0xff]
        %v7926 = vld [vmem:[#allocation2 + $0x240] sm:$0xff]
        %v7927 = vld [vmem:[#allocation2 + $0x248] sm:$0xff]
        %v7928 = vld [vmem:[#allocation2 + $0x250] sm:$0xff]
        %v7929 = vld [vmem:[#allocation2 + $0x258] sm:$0xff]
        %v7930 = vld [vmem:[#allocation2 + $0x260] sm:$0xff]
        %v7931 = vld [vmem:[#allocation2 + $0x268] sm:$0xff]
        %v7932 = vld [vmem:[#allocation2 + $0x270] sm:$0xff]
        %v7933 = vld [vmem:[#allocation2 + $0x278] sm:$0xff]
        %v7934 = vld [vmem:[#allocation2 + $0x280] sm:$0xff]
        %v7935 = vld [vmem:[#allocation2 + $0x288] sm:$0xff]
        %v7936 = vld [vmem:[#allocation2 + $0x290] sm:$0xff]
        %v7937 = vld [vmem:[#allocation2 + $0x298] sm:$0xff]
        %v7938 = vld [vmem:[#allocation2 + $0x2a0] sm:$0xff]
        %v7939 = vld [vmem:[#allocation2 + $0x2a8] sm:$0xff]
        %v7940 = vld [vmem:[#allocation2 + $0x2b0] sm:$0xff]
        %v7941 = vld [vmem:[#allocation2 + $0x2b8] sm:$0xff]
        %v7942 = vld [vmem:[#allocation2 + $0x2c0] sm:$0xff]
        %v7943 = vld [vmem:[#allocation2 + $0x2c8] sm:$0xff]
        %v7944 = vld [vmem:[#allocation2 + $0x2d0] sm:$0xff]
        %v7945 = vld [vmem:[#allocation2 + $0x2d8] sm:$0xff]
        %v7946 = vld [vmem:[#allocation2 + $0x2e0] sm:$0xff]
        %v7947 = vld [vmem:[#allocation2 + $0x2e8] sm:$0xff]
        %v7948 = vld [vmem:[#allocation2 + $0x2f0] sm:$0xff]
        %v7949 = vld [vmem:[#allocation2 + $0x2f8] sm:$0xff]
        %v7950 = vld [vmem:[#allocation2 + $0x300] sm:$0xff]
        %v7951 = vld [vmem:[#allocation2 + $0x308] sm:$0xff]
        %v7952 = vld [vmem:[#allocation2 + $0x310] sm:$0xff]
        %v7953 = vld [vmem:[#allocation2 + $0x318] sm:$0xff]
        %v7954 = vld [vmem:[#allocation2 + $0x320] sm:$0xff]
        %v7955 = vld [vmem:[#allocation2 + $0x328] sm:$0xff]
        %v7956 = vld [vmem:[#allocation2 + $0x330] sm:$0xff]
        %v7957 = vld [vmem:[#allocation2 + $0x338] sm:$0xff]
        %v7958 = vld [vmem:[#allocation2 + $0x340] sm:$0xff]
        %v7959 = vld [vmem:[#allocation2 + $0x348] sm:$0xff]
        %v7960 = vld [vmem:[#allocation2 + $0x350] sm:$0xff]
        %v7961 = vld [vmem:[#allocation2 + $0x358] sm:$0xff]
        %v7962 = vld [vmem:[#allocation2 + $0x360] sm:$0xff]
        %v7963 = vld [vmem:[#allocation2 + $0x368] sm:$0xff]
        %v7964 = vld [vmem:[#allocation2 + $0x370] sm:$0xff]
        %v7965 = vld [vmem:[#allocation2 + $0x378] sm:$0xff]
        %v7966 = vld [vmem:[#allocation2 + $0x380] sm:$0xff]
        %v7967 = vld [vmem:[#allocation2 + $0x388] sm:$0xff]
        %v7968 = vld [vmem:[#allocation2 + $0x390] sm:$0xff]
        %v7969 = vld [vmem:[#allocation2 + $0x398] sm:$0xff]
        %v7970 = vld [vmem:[#allocation2 + $0x3a0] sm:$0xff]
        %v7971 = vld [vmem:[#allocation2 + $0x3a8] sm:$0xff]
        %v7972 = vld [vmem:[#allocation2 + $0x3b0] sm:$0xff]
        %v7973 = vld [vmem:[#allocation2 + $0x3b8] sm:$0xff]
        %v7974 = vld [vmem:[#allocation2 + $0x3c0] sm:$0xff]
        %v7975 = vld [vmem:[#allocation2 + $0x3c8] sm:$0xff]
        %v7976 = vld [vmem:[#allocation2 + $0x3d0] sm:$0xff]
        %v7977 = vld [vmem:[#allocation2 + $0x3d8] sm:$0xff]
        %v7978 = vld [vmem:[#allocation2 + $0x3e0] sm:$0xff]
        %v7979 = vld [vmem:[#allocation2 + $0x3e8] sm:$0xff]
        %v7980 = vld [vmem:[#allocation2 + $0x3f0] sm:$0xff]
        %v7981 = vld [vmem:[#allocation2 + $0x3f8] sm:$0xff]
        %v7982 = vld [vmem:[#allocation2 + $0x400] sm:$0xff]
        %v7983 = vld [vmem:[#allocation2 + $0x408] sm:$0xff]
        %v7984 = vld [vmem:[#allocation2 + $0x410] sm:$0xff]
        %v7985 = vld [vmem:[#allocation2 + $0x418] sm:$0xff]
        %v7986 = vld [vmem:[#allocation2 + $0x420] sm:$0xff]
        %v7987 = vld [vmem:[#allocation2 + $0x428] sm:$0xff]
        %v7988 = vld [vmem:[#allocation2 + $0x430] sm:$0xff]
        %v7989 = vld [vmem:[#allocation2 + $0x438] sm:$0xff]
        %v7990 = vld [vmem:[#allocation2 + $0x440] sm:$0xff]
        %v7991 = vld [vmem:[#allocation2 + $0x448] sm:$0xff]
        %v7992 = vld [vmem:[#allocation2 + $0x450] sm:$0xff]
        %v7993 = vld [vmem:[#allocation2 + $0x458] sm:$0xff]
        %v7994 = vld [vmem:[#allocation2 + $0x460] sm:$0xff]
        %v7995 = vld [vmem:[#allocation2 + $0x468] sm:$0xff]
        %v7996 = vld [vmem:[#allocation2 + $0x470] sm:$0xff]
        %v7997 = vld [vmem:[#allocation2 + $0x478] sm:$0xff]
        %v7998 = vld [vmem:[#allocation2 + $0x480] sm:$0xff]
        %v7999 = vld [vmem:[#allocation2 + $0x488] sm:$0xff]
        %v8000 = vld [vmem:[#allocation2 + $0x490] sm:$0xff]
        %v8001 = vld [vmem:[#allocation2 + $0x498] sm:$0xff]
        %v8002 = vld [vmem:[#allocation2 + $0x4a0] sm:$0xff]
        %v8003 = vld [vmem:[#allocation2 + $0x4a8] sm:$0xff]
        %v8004 = vld [vmem:[#allocation2 + $0x4b0] sm:$0xff]
        %v8005 = vld [vmem:[#allocation2 + $0x4b8] sm:$0xff]
        %v8006 = vld [vmem:[#allocation2 + $0x4c0] sm:$0xff]
        %v8007 = vld [vmem:[#allocation2 + $0x4c8] sm:$0xff]
        %v8008 = vld [vmem:[#allocation2 + $0x4d0] sm:$0xff]
        %v8009 = vld [vmem:[#allocation2 + $0x4d8] sm:$0xff]
        %v8010 = vld [vmem:[#allocation2 + $0x4e0] sm:$0xff]
        %v8011 = vld [vmem:[#allocation2 + $0x4e8] sm:$0xff]
        %v8012 = vld [vmem:[#allocation2 + $0x4f0] sm:$0xff]
        %v8013 = vld [vmem:[#allocation2 + $0x4f8] sm:$0xff]
        %v8014 = vld [vmem:[#allocation2 + $0x500] sm:$0xff]
        %v8015 = vld [vmem:[#allocation2 + $0x508] sm:$0xff]
        %v8016 = vld [vmem:[#allocation2 + $0x510] sm:$0xff]
        %v8017 = vld [vmem:[#allocation2 + $0x518] sm:$0xff]
        %v8018 = vld [vmem:[#allocation2 + $0x520] sm:$0xff]
        %v8019 = vld [vmem:[#allocation2 + $0x528] sm:$0xff]
        %v8020 = vld [vmem:[#allocation2 + $0x530] sm:$0xff]
        %v8021 = vld [vmem:[#allocation2 + $0x538] sm:$0xff]
        %v8022 = vld [vmem:[#allocation2 + $0x540] sm:$0xff]
        %v8023 = vld [vmem:[#allocation2 + $0x548] sm:$0xff]
        %v8024 = vld [vmem:[#allocation2 + $0x550] sm:$0xff]
        %v8025 = vld [vmem:[#allocation2 + $0x558] sm:$0xff]
        %v8026 = vld [vmem:[#allocation2 + $0x560] sm:$0xff]
        %v8027 = vld [vmem:[#allocation2 + $0x568] sm:$0xff]
        %v8028 = vld [vmem:[#allocation2 + $0x570] sm:$0xff]
        %v8029 = vld [vmem:[#allocation2 + $0x578] sm:$0xff]
        %v8030 = vld [vmem:[#allocation2 + $0x580] sm:$0xff]
        %v8031 = vld [vmem:[#allocation2 + $0x588] sm:$0xff]
        %v8032 = vld [vmem:[#allocation2 + $0x590] sm:$0xff]
        %v8033 = vld [vmem:[#allocation2 + $0x598] sm:$0xff]
        %v8034 = vld [vmem:[#allocation2 + $0x5a0] sm:$0xff]
        %v8035 = vld [vmem:[#allocation2 + $0x5a8] sm:$0xff]
        %v8036 = vld [vmem:[#allocation2 + $0x5b0] sm:$0xff]
        %v8037 = vld [vmem:[#allocation2 + $0x5b8] sm:$0xff]
        %v8038 = vld [vmem:[#allocation2 + $0x5c0] sm:$0xff]
        %v8039 = vld [vmem:[#allocation2 + $0x5c8] sm:$0xff]
        %v8040 = vld [vmem:[#allocation2 + $0x5d0] sm:$0xff]
        %v8041 = vld [vmem:[#allocation2 + $0x5d8] sm:$0xff]
        %v8042 = vld [vmem:[#allocation2 + $0x5e0] sm:$0xff]
        %v8043 = vld [vmem:[#allocation2 + $0x5e8] sm:$0xff]
        %v8044 = vld [vmem:[#allocation2 + $0x5f0] sm:$0xff]
        %v8045 = vld [vmem:[#allocation2 + $0x5f8] sm:$0xff]
        %v8046 = vld [vmem:[#allocation2 + $0x600] sm:$0xff]
        %v8047 = vld [vmem:[#allocation2 + $0x608] sm:$0xff]
        %v8048 = vld [vmem:[#allocation2 + $0x610] sm:$0xff]
        %v8049 = vld [vmem:[#allocation2 + $0x618] sm:$0xff]
        %v8050 = vld [vmem:[#allocation2 + $0x620] sm:$0xff]
        %v8051 = vld [vmem:[#allocation2 + $0x628] sm:$0xff]
        %v8052 = vld [vmem:[#allocation2 + $0x630] sm:$0xff]
        %v8053 = vld [vmem:[#allocation2 + $0x638] sm:$0xff]
        %v8054 = vld [vmem:[#allocation2 + $0x640] sm:$0xff]
        %v8055 = vld [vmem:[#allocation2 + $0x648] sm:$0xff]
        %v8056 = vld [vmem:[#allocation2 + $0x650] sm:$0xff]
        %v8057 = vld [vmem:[#allocation2 + $0x658] sm:$0xff]
        %v8058 = vld [vmem:[#allocation2 + $0x660] sm:$0xff]
        %v8059 = vld [vmem:[#allocation2 + $0x668] sm:$0xff]
        %v8060 = vld [vmem:[#allocation2 + $0x670] sm:$0xff]
        %v8061 = vld [vmem:[#allocation2 + $0x678] sm:$0xff]
        %v8062 = vld [vmem:[#allocation2 + $0x680] sm:$0xff]
        %v8063 = vld [vmem:[#allocation2 + $0x688] sm:$0xff]
        %v8064 = vld [vmem:[#allocation2 + $0x690] sm:$0xff]
        %v8065 = vld [vmem:[#allocation2 + $0x698] sm:$0xff]
        %v8066 = vld [vmem:[#allocation2 + $0x6a0] sm:$0xff]
        %v8067 = vld [vmem:[#allocation2 + $0x6a8] sm:$0xff]
        %v8068 = vld [vmem:[#allocation2 + $0x6b0] sm:$0xff]
        %v8069 = vld [vmem:[#allocation2 + $0x6b8] sm:$0xff]
        %v8070 = vld [vmem:[#allocation2 + $0x6c0] sm:$0xff]
        %v8071 = vld [vmem:[#allocation2 + $0x6c8] sm:$0xff]
        %v8072 = vld [vmem:[#allocation2 + $0x6d0] sm:$0xff]
        %v8073 = vld [vmem:[#allocation2 + $0x6d8] sm:$0xff]
        %v8074 = vld [vmem:[#allocation2 + $0x6e0] sm:$0xff]
        %v8075 = vld [vmem:[#allocation2 + $0x6e8] sm:$0xff]
        %v8076 = vld [vmem:[#allocation2 + $0x6f0] sm:$0xff]
        %v8077 = vld [vmem:[#allocation2 + $0x6f8] sm:$0xff]
        %v8078 = vld [vmem:[#allocation2 + $0x700] sm:$0xff]
        %v8079 = vld [vmem:[#allocation2 + $0x708] sm:$0xff]
        %v8080 = vld [vmem:[#allocation2 + $0x710] sm:$0xff]
        %v8081 = vld [vmem:[#allocation2 + $0x718] sm:$0xff]
        %v8082 = vld [vmem:[#allocation2 + $0x720] sm:$0xff]
        %v8083 = vld [vmem:[#allocation2 + $0x728] sm:$0xff]
        %v8084 = vld [vmem:[#allocation2 + $0x730] sm:$0xff]
        %v8085 = vld [vmem:[#allocation2 + $0x738] sm:$0xff]
        %v8086 = vld [vmem:[#allocation2 + $0x740] sm:$0xff]
        %v8087 = vld [vmem:[#allocation2 + $0x748] sm:$0xff]
        %v8088 = vld [vmem:[#allocation2 + $0x750] sm:$0xff]
        %v8089 = vld [vmem:[#allocation2 + $0x758] sm:$0xff]
        %v8090 = vld [vmem:[#allocation2 + $0x760] sm:$0xff]
        %v8091 = vld [vmem:[#allocation2 + $0x768] sm:$0xff]
        %v8092 = vld [vmem:[#allocation2 + $0x770] sm:$0xff]
        %v8093 = vld [vmem:[#allocation2 + $0x778] sm:$0xff]
        %v8094 = vld [vmem:[#allocation2 + $0x780] sm:$0xff]
        %v8095 = vld [vmem:[#allocation2 + $0x788] sm:$0xff]
        %v8096 = vld [vmem:[#allocation2 + $0x790] sm:$0xff]
        %v8097 = vld [vmem:[#allocation2 + $0x798] sm:$0xff]
        %v8098 = vld [vmem:[#allocation2 + $0x7a0] sm:$0xff]
        %v8099 = vld [vmem:[#allocation2 + $0x7a8] sm:$0xff]
        %v8100 = vld [vmem:[#allocation2 + $0x7b0] sm:$0xff]
        %v8101 = vld [vmem:[#allocation2 + $0x7b8] sm:$0xff]
        %v8102 = vld [vmem:[#allocation2 + $0x7c0] sm:$0xff]
        %v8103 = vld [vmem:[#allocation2 + $0x7c8] sm:$0xff]
        %v8104 = vld [vmem:[#allocation2 + $0x7d0] sm:$0xff]
        %v8105 = vld [vmem:[#allocation2 + $0x7d8] sm:$0xff]
        %v8106 = vld [vmem:[#allocation2 + $0x7e0] sm:$0xff]
        %v8107 = vld [vmem:[#allocation2 + $0x7e8] sm:$0xff]
        %v8108 = vld [vmem:[#allocation2 + $0x7f0] sm:$0xff]
        %v8109 = vld [vmem:[#allocation2 + $0x7f8] sm:$0xff]
        %v8110 = vld [vmem:[#allocation2 + $0x800] sm:$0xff]
        %v8111 = vld [vmem:[#allocation2 + $0x808] sm:$0xff]
        %v8112 = vld [vmem:[#allocation2 + $0x810] sm:$0xff]
        %v8113 = vld [vmem:[#allocation2 + $0x818] sm:$0xff]
        %v8114 = vld [vmem:[#allocation2 + $0x820] sm:$0xff]
        %v8115 = vld [vmem:[#allocation2 + $0x828] sm:$0xff]
        %v8116 = vld [vmem:[#allocation2 + $0x830] sm:$0xff]
        %v8117 = vld [vmem:[#allocation2 + $0x838] sm:$0xff]
        %v8118 = vld [vmem:[#allocation2 + $0x840] sm:$0xff]
        %v8119 = vld [vmem:[#allocation2 + $0x848] sm:$0xff]
        %v8120 = vld [vmem:[#allocation2 + $0x850] sm:$0xff]
        %v8121 = vld [vmem:[#allocation2 + $0x858] sm:$0xff]
        %v8122 = vld [vmem:[#allocation2 + $0x860] sm:$0xff]
        %v8123 = vld [vmem:[#allocation2 + $0x868] sm:$0xff]
        %v8124 = vld [vmem:[#allocation2 + $0x870] sm:$0xff]
        %v8125 = vld [vmem:[#allocation2 + $0x878] sm:$0xff]
        %v8126 = vld [vmem:[#allocation2 + $0x880] sm:$0xff]
        %v8127 = vld [vmem:[#allocation2 + $0x888] sm:$0xff]
        %v8128 = vld [vmem:[#allocation2 + $0x890] sm:$0xff]
        %v8129 = vld [vmem:[#allocation2 + $0x898] sm:$0xff]
        %v8130 = vld [vmem:[#allocation2 + $0x8a0] sm:$0xff]
        %v8131 = vld [vmem:[#allocation2 + $0x8a8] sm:$0xff]
        %v8132 = vld [vmem:[#allocation2 + $0x8b0] sm:$0xff]
        %v8133 = vld [vmem:[#allocation2 + $0x8b8] sm:$0xff]
        %v8134 = vld [vmem:[#allocation2 + $0x8c0] sm:$0xff]
        %v8135 = vld [vmem:[#allocation2 + $0x8c8] sm:$0xff]
        %v8136 = vld [vmem:[#allocation2 + $0x8d0] sm:$0xff]
        %v8137 = vld [vmem:[#allocation2 + $0x8d8] sm:$0xff]
        %v8138 = vld [vmem:[#allocation2 + $0x8e0] sm:$0xff]
        %v8139 = vld [vmem:[#allocation2 + $0x8e8] sm:$0xff]
        %v8140 = vld [vmem:[#allocation2 + $0x8f0] sm:$0xff]
        %v8141 = vld [vmem:[#allocation2 + $0x8f8] sm:$0xff]
        %v8142 = vld [vmem:[#allocation2 + $0x900] sm:$0xff]
        %v8143 = vld [vmem:[#allocation2 + $0x908] sm:$0xff]
        %v8144 = vld [vmem:[#allocation2 + $0x910] sm:$0xff]
        %v8145 = vld [vmem:[#allocation2 + $0x918] sm:$0xff]
        %v8146 = vld [vmem:[#allocation2 + $0x920] sm:$0xff]
        %v8147 = vld [vmem:[#allocation2 + $0x928] sm:$0xff]
        %v8148 = vld [vmem:[#allocation2 + $0x930] sm:$0xff]
        %v8149 = vld [vmem:[#allocation2 + $0x938] sm:$0xff]
        %v8150 = vld [vmem:[#allocation2 + $0x940] sm:$0xff]
        %v8151 = vld [vmem:[#allocation2 + $0x948] sm:$0xff]
        %v8152 = vld [vmem:[#allocation2 + $0x950] sm:$0xff]
        %v8153 = vld [vmem:[#allocation2 + $0x958] sm:$0xff]
        %v8154 = vld [vmem:[#allocation4] sm:$0x1]
        %8156 = vset.pattern.permute.xlu0 0
        %8157 = vperm.xlu0 %8156, %v8154
        %v8158 = vpop.permute.xlu0 %8157
        %v8160 = vlaneseq
        %v8161 = vshrl.u32 %v8160, 7
        %v8162 = vsub.s32 0, %v8161
        %v8163 = vrot.slane %v8158, %v8162
        %v8166 = vlaneseq
        %v8167 = vshrl.u32 %v8166, 7
        %v8168 = vsub.s32 0, %v8167
        %v8169 = vrot.slane %v7852, %v8168
        %v8170 = vlaneseq
        %v8171 = vshrl.u32 %v8170, 7
        %v8172 = vsub.s32 1, %v8171
        %v8173 = vrot.slane %v7852, %v8172
        %v8174 = vlaneseq
        %v8175 = vshrl.u32 %v8174, 7
        %v8176 = vsub.s32 2, %v8175
        %v8177 = vrot.slane %v7852, %v8176
        %v8178 = vlaneseq
        %v8179 = vshrl.u32 %v8178, 7
        %v8180 = vsub.s32 3, %v8179
        %v8181 = vrot.slane %v7852, %v8180
        %v8182 = vlaneseq
        %v8183 = vshrl.u32 %v8182, 7
        %v8184 = vsub.s32 4, %v8183
        %v8185 = vrot.slane %v7852, %v8184
        %v8186 = vlaneseq
        %v8187 = vshrl.u32 %v8186, 7
        %v8188 = vsub.s32 5, %v8187
        %v8189 = vrot.slane %v7852, %v8188
        %v8190 = vlaneseq
        %v8191 = vshrl.u32 %v8190, 7
        %v8192 = vsub.s32 6, %v8191
        %v8193 = vrot.slane %v7852, %v8192
        %v8194 = vlaneseq
        %v8195 = vshrl.u32 %v8194, 7
        %v8196 = vsub.s32 7, %v8195
        %v8197 = vrot.slane %v7852, %v8196
        %v8198 = vlaneseq
        %v8199 = vshrl.u32 %v8198, 7
        %v8200 = vsub.s32 0, %v8199
        %v8201 = vrot.slane %v7853, %v8200
        %v8202 = vlaneseq
        %v8203 = vshrl.u32 %v8202, 7
        %v8204 = vsub.s32 1, %v8203
        %v8205 = vrot.slane %v7853, %v8204
        %v8215 = vsel %vm4388, %v8205, 0
        %8217 = vmatprep.subr.mxu0 %v7885
        %8218 = vmatpush1.msra.mxu0 %v7884
        %8219 = vmatprep.subr.mxu0 %v7883
        %8220 = vmatpush1.msra.mxu0 %v7882
        %8221 = vmatprep.subr.mxu0 %v7881
        %8222 = vmatpush1.msra.mxu0 %v7880
        %8223 = vmatprep.subr.mxu0 %v7879
        %8224 = vmatpush1.msra.mxu0 %v7878
        %8225 = vmatprep.subr.mxu0 %v7877
        %8226 = vmatpush1.msra.mxu0 %v7876
        %8227 = vmatprep.subr.mxu0 %v7875
        %8228 = vmatpush1.msra.mxu0 %v7874
        %8229 = vmatprep.subr.mxu0 %v7873
        %8230 = vmatpush1.msra.mxu0 %v7872
        %8231 = vmatprep.subr.mxu0 %v7871
        %8232 = vmatpush1.msra.mxu0 %v7870
        %8233 = vmatprep.subr.mxu0 %v7869
        %8234 = vmatpush1.msra.mxu0 %v7868
        %8235 = vmatprep.subr.mxu0 %v7867
        %8236 = vmatpush1.msra.mxu0 %v7866
        %8237 = vmatprep.subr.mxu0 %v7865
        %8238 = vmatpush1.msra.mxu0 %v7864
        %8239 = vmatprep.subr.mxu0 %v7863
        %8240 = vmatpush1.msra.mxu0 %v7862
        %8241 = vmatprep.subr.mxu0 %v7861
        %8242 = vmatpush1.msra.mxu0 %v7860
        %8243 = vmatprep.subr.mxu0 %v7859
        %8244 = vmatpush1.msra.mxu0 %v7858
        %8245 = vmatprep.subr.mxu0 %v7857
        %8246 = vmatpush1.msra.mxu0 %v7856
        %8247 = vmatprep.subr.mxu0 %v7855
        %8248 = vmatpush1.msra.mxu0 %v7854
        %8249 = vmatprep.subr.mxu0 %v7917
        %8250 = vmatpush2.msra.mxu0 %v7916
        %8251 = vmatprep.subr.mxu0 %v7915
        %8252 = vmatpush2.msra.mxu0 %v7914
        %8253 = vmatprep.subr.mxu0 %v7913
        %8254 = vmatpush2.msra.mxu0 %v7912
        %8255 = vmatprep.subr.mxu0 %v7911
        %8256 = vmatpush2.msra.mxu0 %v7910
        %8257 = vmatprep.subr.mxu0 %v7909
        %8258 = vmatpush2.msra.mxu0 %v7908
        %8259 = vmatprep.subr.mxu0 %v7907
        %8260 = vmatpush2.msra.mxu0 %v7906
        %8261 = vmatprep.subr.mxu0 %v7905
        %8262 = vmatpush2.msra.mxu0 %v7904
        %8263 = vmatprep.subr.mxu0 %v7903
        %8264 = vmatpush2.msra.mxu0 %v7902
        %8265 = vmatprep.subr.mxu0 %v7901
        %8266 = vmatpush2.msra.mxu0 %v7900
        %8267 = vmatprep.subr.mxu0 %v7899
        %8268 = vmatpush2.msra.mxu0 %v7898
        %8269 = vmatprep.subr.mxu0 %v7897
        %8270 = vmatpush2.msra.mxu0 %v7896
        %8271 = vmatprep.subr.mxu0 %v7895
        %8272 = vmatpush2.msra.mxu0 %v7894
        %8273 = vmatprep.subr.mxu0 %v7893
        %8274 = vmatpush2.msra.mxu0 %v7892
        %8275 = vmatprep.subr.mxu0 %v7891
        %8276 = vmatpush2.msra.mxu0 %v7890
        %8277 = vmatprep.subr.mxu0 %v7889
        %8278 = vmatpush2.msra.mxu0 %v7888
        %8279 = vmatprep.subr.mxu0 %v7887
        %8280 = vmatpush2.msra.mxu0 %v7886
        %8281 = vmatprep.mubr.f32.mxu0 %v8173
        %8282 = vmatmul.mubr.f32.gmra.mxu0 %v8169
        %v8283 = vpop.f32.mrf.mxu0
        %v8284 = vadd.f32 %v8163, %v8283
        %v8285 = vpop.f32.mrf.mxu0
        %v8286 = vadd.f32 %v8163, %v8285
        %8287 = vdwg.mxu0
        %8288 = vmatprep.subr.mxu0 %v7949
        %8289 = vmatpush1.msra.mxu0 %v7948
        %8290 = vmatprep.subr.mxu0 %v7947
        %8291 = vmatpush1.msra.mxu0 %v7946
        %8292 = vmatprep.subr.mxu0 %v7945
        %8293 = vmatpush1.msra.mxu0 %v7944
        %8294 = vmatprep.subr.mxu0 %v7943
        %8295 = vmatpush1.msra.mxu0 %v7942
        %8296 = vmatprep.subr.mxu0 %v7941
        %8297 = vmatpush1.msra.mxu0 %v7940
        %8298 = vmatprep.subr.mxu0 %v7939
        %8299 = vmatpush1.msra.mxu0 %v7938
        %8300 = vmatprep.subr.mxu0 %v7937
        %8301 = vmatpush1.msra.mxu0 %v7936
        %8302 = vmatprep.subr.mxu0 %v7935
        %8303 = vmatpush1.msra.mxu0 %v7934
        %8304 = vmatprep.subr.mxu0 %v7933
        %8305 = vmatpush1.msra.mxu0 %v7932
        %8306 = vmatprep.subr.mxu0 %v7931
        %8307 = vmatpush1.msra.mxu0 %v7930
        %8308 = vmatprep.subr.mxu0 %v7929
        %8309 = vmatpush1.msra.mxu0 %v7928
        %8310 = vmatprep.subr.mxu0 %v7927
        %8311 = vmatpush1.msra.mxu0 %v7926
        %8312 = vmatprep.subr.mxu0 %v7925
        %8313 = vmatpush1.msra.mxu0 %v7924
        %8314 = vmatprep.subr.mxu0 %v7923
        %8315 = vmatpush1.msra.mxu0 %v7922
        %8316 = vmatprep.subr.mxu0 %v7921
        %8317 = vmatpush1.msra.mxu0 %v7920
        %8318 = vmatprep.subr.mxu0 %v7919
        %8319 = vmatpush1.msra.mxu0 %v7918
        %8320 = vmatprep.subr.mxu0 %v7981
        %8321 = vmatpush2.msra.mxu0 %v7980
        %8322 = vmatprep.subr.mxu0 %v7979
        %8323 = vmatpush2.msra.mxu0 %v7978
        %8324 = vmatprep.subr.mxu0 %v7977
        %8325 = vmatpush2.msra.mxu0 %v7976
        %8326 = vmatprep.subr.mxu0 %v7975
        %8327 = vmatpush2.msra.mxu0 %v7974
        %8328 = vmatprep.subr.mxu0 %v7973
        %8329 = vmatpush2.msra.mxu0 %v7972
        %8330 = vmatprep.subr.mxu0 %v7971
        %8331 = vmatpush2.msra.mxu0 %v7970
        %8332 = vmatprep.subr.mxu0 %v7969
        %8333 = vmatpush2.msra.mxu0 %v7968
        %8334 = vmatprep.subr.mxu0 %v7967
        %8335 = vmatpush2.msra.mxu0 %v7966
        %8336 = vmatprep.subr.mxu0 %v7965
        %8337 = vmatpush2.msra.mxu0 %v7964
        %8338 = vmatprep.subr.mxu0 %v7963
        %8339 = vmatpush2.msra.mxu0 %v7962
        %8340 = vmatprep.subr.mxu0 %v7961
        %8341 = vmatpush2.msra.mxu0 %v7960
        %8342 = vmatprep.subr.mxu0 %v7959
        %8343 = vmatpush2.msra.mxu0 %v7958
        %8344 = vmatprep.subr.mxu0 %v7957
        %8345 = vmatpush2.msra.mxu0 %v7956
        %8346 = vmatprep.subr.mxu0 %v7955
        %8347 = vmatpush2.msra.mxu0 %v7954
        %8348 = vmatprep.subr.mxu0 %v7953
        %8349 = vmatpush2.msra.mxu0 %v7952
        %8350 = vmatprep.subr.mxu0 %v7951
        %8351 = vmatpush2.msra.mxu0 %v7950
        %8352 = vmatprep.mubr.f32.mxu0 %v8181
        %8353 = vmatmul.mubr.f32.gmra.mxu0 %v8177
        %v8354 = vpop.f32.mrf.mxu0
        %v8355 = vadd.f32 %v8284, %v8354
        %v8356 = vpop.f32.mrf.mxu0
        %v8357 = vadd.f32 %v8286, %v8356
        %8358 = vdwg.mxu0
        %8359 = vmatprep.subr.mxu0 %v8013
        %8360 = vmatpush1.msra.mxu0 %v8012
        %8361 = vmatprep.subr.mxu0 %v8011
        %8362 = vmatpush1.msra.mxu0 %v8010
        %8363 = vmatprep.subr.mxu0 %v8009
        %8364 = vmatpush1.msra.mxu0 %v8008
        %8365 = vmatprep.subr.mxu0 %v8007
        %8366 = vmatpush1.msra.mxu0 %v8006
        %8367 = vmatprep.subr.mxu0 %v8005
        %8368 = vmatpush1.msra.mxu0 %v8004
        %8369 = vmatprep.subr.mxu0 %v8003
        %8370 = vmatpush1.msra.mxu0 %v8002
        %8371 = vmatprep.subr.mxu0 %v8001
        %8372 = vmatpush1.msra.mxu0 %v8000
        %8373 = vmatprep.subr.mxu0 %v7999
        %8374 = vmatpush1.msra.mxu0 %v7998
        %8375 = vmatprep.subr.mxu0 %v7997
        %8376 = vmatpush1.msra.mxu0 %v7996
        %8377 = vmatprep.subr.mxu0 %v7995
        %8378 = vmatpush1.msra.mxu0 %v7994
        %8379 = vmatprep.subr.mxu0 %v7993
        %8380 = vmatpush1.msra.mxu0 %v7992
        %8381 = vmatprep.subr.mxu0 %v7991
        %8382 = vmatpush1.msra.mxu0 %v7990
        %8383 = vmatprep.subr.mxu0 %v7989
        %8384 = vmatpush1.msra.mxu0 %v7988
        %8385 = vmatprep.subr.mxu0 %v7987
        %8386 = vmatpush1.msra.mxu0 %v7986
        %8387 = vmatprep.subr.mxu0 %v7985
        %8388 = vmatpush1.msra.mxu0 %v7984
        %8389 = vmatprep.subr.mxu0 %v7983
        %8390 = vmatpush1.msra.mxu0 %v7982
        %8391 = vmatprep.subr.mxu0 %v8045
        %8392 = vmatpush2.msra.mxu0 %v8044
        %8393 = vmatprep.subr.mxu0 %v8043
        %8394 = vmatpush2.msra.mxu0 %v8042
        %8395 = vmatprep.subr.mxu0 %v8041
        %8396 = vmatpush2.msra.mxu0 %v8040
        %8397 = vmatprep.subr.mxu0 %v8039
        %8398 = vmatpush2.msra.mxu0 %v8038
        %8399 = vmatprep.subr.mxu0 %v8037
        %8400 = vmatpush2.msra.mxu0 %v8036
        %8401 = vmatprep.subr.mxu0 %v8035
        %8402 = vmatpush2.msra.mxu0 %v8034
        %8403 = vmatprep.subr.mxu0 %v8033
        %8404 = vmatpush2.msra.mxu0 %v8032
        %8405 = vmatprep.subr.mxu0 %v8031
        %8406 = vmatpush2.msra.mxu0 %v8030
        %8407 = vmatprep.subr.mxu0 %v8029
        %8408 = vmatpush2.msra.mxu0 %v8028
        %8409 = vmatprep.subr.mxu0 %v8027
        %8410 = vmatpush2.msra.mxu0 %v8026
        %8411 = vmatprep.subr.mxu0 %v8025
        %8412 = vmatpush2.msra.mxu0 %v8024
        %8413 = vmatprep.subr.mxu0 %v8023
        %8414 = vmatpush2.msra.mxu0 %v8022
        %8415 = vmatprep.subr.mxu0 %v8021
        %8416 = vmatpush2.msra.mxu0 %v8020
        %8417 = vmatprep.subr.mxu0 %v8019
        %8418 = vmatpush2.msra.mxu0 %v8018
        %8419 = vmatprep.subr.mxu0 %v8017
        %8420 = vmatpush2.msra.mxu0 %v8016
        %8421 = vmatprep.subr.mxu0 %v8015
        %8422 = vmatpush2.msra.mxu0 %v8014
        %8423 = vmatprep.mubr.f32.mxu0 %v8189
        %8424 = vmatmul.mubr.f32.gmra.mxu0 %v8185
        %v8425 = vpop.f32.mrf.mxu0
        %v8426 = vadd.f32 %v8355, %v8425
        %v8427 = vpop.f32.mrf.mxu0
        %v8428 = vadd.f32 %v8357, %v8427
        %8429 = vdwg.mxu0
        %8430 = vmatprep.subr.mxu0 %v8077
        %8431 = vmatpush1.msra.mxu0 %v8076
        %8432 = vmatprep.subr.mxu0 %v8075
        %8433 = vmatpush1.msra.mxu0 %v8074
        %8434 = vmatprep.subr.mxu0 %v8073
        %8435 = vmatpush1.msra.mxu0 %v8072
        %8436 = vmatprep.subr.mxu0 %v8071
        %8437 = vmatpush1.msra.mxu0 %v8070
        %8438 = vmatprep.subr.mxu0 %v8069
        %8439 = vmatpush1.msra.mxu0 %v8068
        %8440 = vmatprep.subr.mxu0 %v8067
        %8441 = vmatpush1.msra.mxu0 %v8066
        %8442 = vmatprep.subr.mxu0 %v8065
        %8443 = vmatpush1.msra.mxu0 %v8064
        %8444 = vmatprep.subr.mxu0 %v8063
        %8445 = vmatpush1.msra.mxu0 %v8062
        %8446 = vmatprep.subr.mxu0 %v8061
        %8447 = vmatpush1.msra.mxu0 %v8060
        %8448 = vmatprep.subr.mxu0 %v8059
        %8449 = vmatpush1.msra.mxu0 %v8058
        %8450 = vmatprep.subr.mxu0 %v8057
        %8451 = vmatpush1.msra.mxu0 %v8056
        %8452 = vmatprep.subr.mxu0 %v8055
        %8453 = vmatpush1.msra.mxu0 %v8054
        %8454 = vmatprep.subr.mxu0 %v8053
        %8455 = vmatpush1.msra.mxu0 %v8052
        %8456 = vmatprep.subr.mxu0 %v8051
        %8457 = vmatpush1.msra.mxu0 %v8050
        %8458 = vmatprep.subr.mxu0 %v8049
        %8459 = vmatpush1.msra.mxu0 %v8048
        %8460 = vmatprep.subr.mxu0 %v8047
        %8461 = vmatpush1.msra.mxu0 %v8046
        %8462 = vmatprep.subr.mxu0 %v8109
        %8463 = vmatpush2.msra.mxu0 %v8108
        %8464 = vmatprep.subr.mxu0 %v8107
        %8465 = vmatpush2.msra.mxu0 %v8106
        %8466 = vmatprep.subr.mxu0 %v8105
        %8467 = vmatpush2.msra.mxu0 %v8104
        %8468 = vmatprep.subr.mxu0 %v8103
        %8469 = vmatpush2.msra.mxu0 %v8102
        %8470 = vmatprep.subr.mxu0 %v8101
        %8471 = vmatpush2.msra.mxu0 %v8100
        %8472 = vmatprep.subr.mxu0 %v8099
        %8473 = vmatpush2.msra.mxu0 %v8098
        %8474 = vmatprep.subr.mxu0 %v8097
        %8475 = vmatpush2.msra.mxu0 %v8096
        %8476 = vmatprep.subr.mxu0 %v8095
        %8477 = vmatpush2.msra.mxu0 %v8094
        %8478 = vmatprep.subr.mxu0 %v8093
        %8479 = vmatpush2.msra.mxu0 %v8092
        %8480 = vmatprep.subr.mxu0 %v8091
        %8481 = vmatpush2.msra.mxu0 %v8090
        %8482 = vmatprep.subr.mxu0 %v8089
        %8483 = vmatpush2.msra.mxu0 %v8088
        %8484 = vmatprep.subr.mxu0 %v8087
        %8485 = vmatpush2.msra.mxu0 %v8086
        %8486 = vmatprep.subr.mxu0 %v8085
        %8487 = vmatpush2.msra.mxu0 %v8084
        %8488 = vmatprep.subr.mxu0 %v8083
        %8489 = vmatpush2.msra.mxu0 %v8082
        %8490 = vmatprep.subr.mxu0 %v8081
        %8491 = vmatpush2.msra.mxu0 %v8080
        %8492 = vmatprep.subr.mxu0 %v8079
        %8493 = vmatpush2.msra.mxu0 %v8078
        %8494 = vmatprep.mubr.f32.mxu0 %v8197
        %8495 = vmatmul.mubr.f32.gmra.mxu0 %v8193
        %v8496 = vpop.f32.mrf.mxu0
        %v8497 = vadd.f32 %v8426, %v8496
        %v8498 = vpop.f32.mrf.mxu0
        %v8499 = vadd.f32 %v8428, %v8498
        %8500 = vdwg.mxu0
        %8501 = vmatprep.subr.mxu0 %v8141
        %8502 = vmatpush1.msra.mxu0 %v8140
        %8503 = vmatprep.subr.mxu0 %v8139
        %8504 = vmatpush1.msra.mxu0 %v8138
        %8505 = vmatprep.subr.mxu0 %v8137
        %8506 = vmatpush1.msra.mxu0 %v8136
        %8507 = vmatprep.subr.mxu0 %v8135
        %8508 = vmatpush1.msra.mxu0 %v8134
        %8509 = vmatprep.subr.mxu0 %v8133
        %8510 = vmatpush1.msra.mxu0 %v8132
        %8511 = vmatprep.subr.mxu0 %v8131
        %8512 = vmatpush1.msra.mxu0 %v8130
        %8513 = vmatprep.subr.mxu0 %v8129
        %8514 = vmatpush1.msra.mxu0 %v8128
        %8515 = vmatprep.subr.mxu0 %v8127
        %8516 = vmatpush1.msra.mxu0 %v8126
        %8517 = vmatprep.subr.mxu0 %v8125
        %8518 = vmatpush1.msra.mxu0 %v8124
        %8519 = vmatprep.subr.mxu0 %v8123
        %8520 = vmatpush1.msra.mxu0 %v8122
        %8521 = vmatprep.subr.mxu0 %v8121
        %8522 = vmatpush1.msra.mxu0 %v8120
        %8523 = vmatprep.subr.mxu0 %v8119
        %8524 = vmatpush1.msra.mxu0 %v8118
        %8525 = vmatprep.subr.mxu0 %v8117
        %8526 = vmatpush1.msra.mxu0 %v8116
        %8527 = vmatprep.subr.mxu0 %v8115
        %8528 = vmatpush1.msra.mxu0 %v8114
        %8529 = vmatprep.subr.mxu0 %v8113
        %8530 = vmatpush1.msra.mxu0 %v8112
        %8531 = vmatprep.subr.mxu0 %v8111
        %8532 = vmatpush1.msra.mxu0 %v8110
        %8533 = vmatprep.subr.mxu0 0.0
        %8534 = vmatpush2.msra.mxu0 0.0
        %8535 = vmatprep.subr.mxu0 0.0
        %8536 = vmatpush2.msra.mxu0 0.0
        %8537 = vmatprep.subr.mxu0 0.0
        %8538 = vmatpush2.msra.mxu0 0.0
        %8539 = vmatprep.subr.mxu0 0.0
        %8540 = vmatpush2.msra.mxu0 0.0
        %8541 = vmatprep.subr.mxu0 0.0
        %8542 = vmatpush2.msra.mxu0 0.0
        %8543 = vmatprep.subr.mxu0 0.0
        %8544 = vmatpush2.msra.mxu0 0.0
        %8545 = vmatprep.subr.mxu0 0.0
        %8546 = vmatpush2.msra.mxu0 0.0
        %8547 = vmatprep.subr.mxu0 0.0
        %8548 = vmatpush2.msra.mxu0 0.0
        %8549 = vmatprep.subr.mxu0 0.0
        %8550 = vmatpush2.msra.mxu0 0.0
        %8551 = vmatprep.subr.mxu0 0.0
        %8552 = vmatpush2.msra.mxu0 0.0
        %8553 = vmatprep.subr.mxu0 %v8153
        %8554 = vmatpush2.msra.mxu0 %v8152
        %8555 = vmatprep.subr.mxu0 %v8151
        %8556 = vmatpush2.msra.mxu0 %v8150
        %8557 = vmatprep.subr.mxu0 %v8149
        %8558 = vmatpush2.msra.mxu0 %v8148
        %8559 = vmatprep.subr.mxu0 %v8147
        %8560 = vmatpush2.msra.mxu0 %v8146
        %8561 = vmatprep.subr.mxu0 %v8145
        %8562 = vmatpush2.msra.mxu0 %v8144
        %8563 = vmatprep.subr.mxu0 %v8143
        %8564 = vmatpush2.msra.mxu0 %v8142
        %8565 = vmatprep.mubr.f32.mxu0 %v8215
        %8566 = vmatmul.mubr.f32.gmra.mxu0 %v8201
        %v8567 = vpop.f32.mrf.mxu0
        %v8568 = vadd.f32 %v8497, %v8567
        %v8569 = vpop.f32.mrf.mxu0
        %v8570 = vadd.f32 %v8499, %v8569
        %8571 = vdwg.mxu0
        %v8574 = vcombine.low %v8568, %v8570
        %v8576 = vunpack.c.l.s4 1966171168
        %v8577 = vunpack.c.0.s8 %v8576
        %v8578 = vlaneseq
        %v8579 = vshrl.u32 %v8578, 7
        %v8580 = vsub.s32 %v8577, %v8579
        %v8581 = vrot.slane %v8574, %v8580
        %v8583 = vunpack.c.l.s4 1966171168
        %v8584 = vunpack.c.0.s8 %v8583
        %v8585 = vlaneseq
        %v8586 = vshrl.u32 %v8585, 7
        %v8587 = vsub.s32 %v8584, %v8586
        %v8588 = vrot.slane %v8581, %v8587
        %8590 = vst.msk [vmem:[%s313] sm:$0x3] %vm607, %v8588
        %s8591 = sand.u32 %s206, 1
        %s8592 = scalar_lea.sflag [#allocation7], %s8591
        %s8593 = sand.u32 %s206, 1
        %s8594 = smul.addr %s8593, 2
        %s8595 = scalar_lea.vmem [#allocation8], %s8594
        // Predicated region
        $region57: #{tpu_custom_call.1} parent=51 // pred_check
          %p8596 = pneg %p216
        $region58: #{tpu_custom_call.1} parent=51 // pred_check_branch
          %8598 = sbr.rel (%p8596) target = $region60
        $region59: #{tpu_custom_call.1} parent=51 // pred_region
          %s8600 = ssub.s32 32, 32
          %8601 = vsyncadd %s8592, %s8600
          %s8602 = smul.addr %s25, 2
          %s8603 = smul.addr %s8602, 16
          %s8604 = scalar_lea.hbm %s8, %s8603
          %s8606 = sshll.u32 %s8595, 4
          %s8607 = int_to_ptr.vmem [resolvable:$true] %s8606
          %8609 = dma.vmem_to_hbm [thread:$0]  %s8607, 32, %s8604, %s8592
        $region60: #{tpu_custom_call.1} parent=51 // pred_fallthru
          _
      $region52: #{tpu_custom_call.1} parent=5 // pred_fallthru
        _
      %p8610 = scmp.le.s32.totalorder 2, %s20
      // Predicated region
      $region61: #{tpu_custom_call.1} parent=5 // pred_check
        %p8611 = pneg %p8610
      $region62: #{tpu_custom_call.1} parent=5 // pred_check_branch
        %8613 = sbr.rel (%p8611) target = $region64
      $region63: #{tpu_custom_call.1} parent=5 // pred_region
        %s8614 = ssub.s32 %s20, 2
        // Predicated region
        $region65: #{tpu_custom_call.1} parent=63 // pred_check
          %p8615 = pneg %p222
        $region66: #{tpu_custom_call.1} parent=63 // pred_check_branch
          %8617 = sbr.rel (%p8615) target = $region68
        $region67: #{tpu_custom_call.1} parent=63 // pred_region
          %s8618 = sand.u32 %s207, 1
          %s8619 = scalar_lea.sflag [#allocation7], %s8618
          %s8620 = sand.u32 %s207, 1
          %s8621 = smul.addr %s8620, 2
          %s8622 = scalar_lea.vmem [#allocation8], %s8621
          %8623 = dma.done %s8619, 32
        $region68: #{tpu_custom_call.1} parent=63 // pred_fallthru
          _
      $region64: #{tpu_custom_call.1} parent=5 // pred_fallthru
        _
    $region6: #{tpu_custom_call.1} parent=1 // loop_footer
      %s24 = sadd.s32 1, %s20
    $region7: #{tpu_custom_call.1} parent=1 // loop_footer_branch
      %19 = sbr.rel target = $region3
    $region8: #{tpu_custom_call.1} parent=1 // loop_exit
      _
    %8624 = vsyncpa [#allocation6], 1
    %s8625 = scalar_lea.sflag [#allocation6], 1
    %8626 = vsyncpa %s8625, 1
    %8627 = vsyncpa [#allocation7], 1
    %s8628 = scalar_lea.sflag [#allocation7], 1
    %8629 = vsyncpa %s8628, 1

</llo_original>
